<compile_context>
chip_gen: v6e
topology: v6e:2x2x1
jax: 0.10.0
libtpu: 0.0.40
codegen_flags: <defaults>
</compile_context>

<pallas_src>
import jax
import jax.numpy as jnp
import numpy as np
from jax.experimental import pallas as pl
from jax.experimental.pallas import tpu as pltpu

EPS = 1e-5
MXU_DTYPE = jnp.bfloat16      # matmul operand dtype (f32 accumulation everywhere)


def _full_spec(shape):
    # every operand is 2-D and used as a single whole-array block
    return pl.BlockSpec(shape, lambda i: (0, 0))


# ----------------------------------------------------------------------------
# Kernel 1: ConvBlock (conv-as-matmul -> BatchNorm2d(batch stats) -> ReLU)
# ----------------------------------------------------------------------------
def _conv_bn_relu_kernel(p_ref, w_ref, gb_ref, o_ref):
    """p_ref: (M, K) im2col patches (bf16); w_ref: (K, C) weight (bf16);
    gb_ref: (2, C) packed [gamma, beta] (f32); o_ref: (M, C) f32.

    Conv bias omitted: it cancels exactly inside training-mode BatchNorm.
    """
    acc = jnp.dot(p_ref[...], w_ref[...], preferred_element_type=jnp.float32)
    gb = gb_ref[...]
    inv_m = 1.0 / acc.shape[0]
    mu = jnp.sum(acc, axis=0, keepdims=True) * inv_m
    ex2 = jnp.sum(acc * acc, axis=0, keepdims=True) * inv_m
    scale = jax.lax.rsqrt(ex2 - mu * mu + EPS) * gb[0:1, :]      # rsqrt -> EUP slot
    shift = gb[1:2, :] - mu * scale
    o_ref[...] = jnp.maximum(acc * scale + shift, 0.0)            # single HBM write


def conv_bn_relu(patches, w2d, gamma, beta):
    M, K = patches.shape
    C = w2d.shape[1]
    gb = jnp.stack([gamma, beta], axis=0)                         # one packed (2, C) operand
    return pl.pallas_call(
        _conv_bn_relu_kernel,
        out_shape=jax.ShapeDtypeStruct((M, C), jnp.float32),
        grid=(1,),
        in_specs=[_full_spec((M, K)), _full_spec((K, C)), _full_spec((2, C))],
        out_specs=_full_spec((M, C)),
        compiler_params=pltpu.CompilerParams(dimension_semantics=("arbitrary",)),
    )(patches, w2d, gb)


# ----------------------------------------------------------------------------
# Kernel 2: conv2-block -> conv3-block -> avgpool -> conv_final -> BN1d -> ReLU -> heads
# ----------------------------------------------------------------------------
def _encoder_rest_kernel(p2_ref, w2_ref, sel_ref, w3_ref, wf_ref, wm_ref, wl_ref,
                         v2_ref, v3_ref,
                         enc2_ref, enc3_ref, last_ref, mean_ref, logvar_ref):
    """v2_ref: (2, C2)  [gamma2, beta2]
       v3_ref: (7, H)   [gamma3, beta3, bf, bn1d_gamma, bn1d_beta, b_mean, b_logvar]"""
    cdt = w2_ref.dtype
    v2 = v2_ref[...]
    v3 = v3_ref[...]

    def bn_relu(acc, gamma, beta):
        inv_m = 1.0 / acc.shape[0]
        mu = jnp.sum(acc, axis=0, keepdims=True) * inv_m
        ex2 = jnp.sum(acc * acc, axis=0, keepdims=True) * inv_m
        scale = jax.lax.rsqrt(ex2 - mu * mu + EPS) * gamma
        return jnp.maximum(acc * scale + (beta - mu * scale), 0.0)

    # ---- ConvBlock 2: conv(k=3, s=3) + BN2d + ReLU (conv bias cancels in BN) ----
    acc2 = jnp.dot(p2_ref[...], w2_ref[...], preferred_element_type=jnp.float32)
    y2 = bn_relu(acc2, v2[0:1, :], v2[1:2, :])                    # (M2, C2) = enc2 rows
    enc2_ref[...] = y2

    # ---- ConvBlock 3: conv(k=3, s=5) + BN2d + ReLU, entirely on the VMEM-resident enc2 ----
    # Patch rows are gathered with a constant 0/1 selection matmul (MXU) per tap, then
    # accumulated against the 9 (C2, C3) weight slices.
    npix, c3 = enc3_ref.shape
    c2 = w2_ref.shape[1]
    y2c = y2.astype(cdt)
    acc3 = jnp.zeros((npix, c3), jnp.float32)
    for t in range(9):                                            # unrolled k*k taps
        pat = jnp.dot(sel_ref[t * npix:(t + 1) * npix, :], y2c,
                      preferred_element_type=jnp.float32).astype(cdt)
        acc3 = acc3 + jnp.dot(pat, w3_ref[t * c2:(t + 1) * c2, :],
                              preferred_element_type=jnp.float32)
    y3 = bn_relu(acc3, v3[0:1, :], v3[1:2, :])                    # (npix, C3) = enc3 rows
    enc3_ref[...] = y3

    # ---- adaptive_avg_pool2d(1) -> conv_final(1x1) -> BN1d -> ReLU -> heads ----
    # Pooling commutes with the 1x1 conv (both linear), so pool first; conv_final bias is
    # added after pooling (identical result), no (M3, H) intermediate, no pooling operand.
    n = last_ref.shape[0]
    hw = npix // n
    pooled = jnp.concatenate(
        [jnp.sum(y3[i * hw:(i + 1) * hw, :], axis=0, keepdims=True) for i in range(n)],
        axis=0) * (1.0 / hw)                                      # (N, H)
    enc_last = jnp.dot(pooled.astype(cdt), wf_ref[...],
                       preferred_element_type=jnp.float32) + v3[2:3, :]
    last_ref[...] = enc_last

    inv_n = 1.0 / n
    mu = jnp.sum(enc_last, axis=0, keepdims=True) * inv_n
    ex2 = jnp.sum(enc_last * enc_last, axis=0, keepdims=True) * inv_n
    scale = jax.lax.rsqrt(ex2 - mu * mu + EPS) * v3[3:4, :]
    z = jnp.maximum(enc_last * scale + (v3[4:5, :] - mu * scale), 0.0)
    zc = z.astype(cdt)
    mean_ref[...] = jnp.dot(zc, wm_ref[...], preferred_element_type=jnp.float32) + v3[5:6, :]
    logvar_ref[...] = jnp.dot(zc, wl_ref[...], preferred_element_type=jnp.float32) + v3[6:7, :]


def encoder_rest(p2, w2, sel, w3, wf, wm, wl, v2, v3, n_batch, npix):
    M2 = p2.shape[0]
    C2 = w2.shape[1]
    H = w3.shape[1]
    out_shape = (
        jax.ShapeDtypeStruct((M2, C2), jnp.float32),              # enc2 rows
        jax.ShapeDtypeStruct((npix, H), jnp.float32),             # enc3 rows
        jax.ShapeDtypeStruct((n_batch, H), jnp.float32),          # enc_last
        jax.ShapeDtypeStruct((n_batch, H), jnp.float32),          # mean
        jax.ShapeDtypeStruct((n_batch, H), jnp.float32),          # logvar
    )
    return pl.pallas_call(
        _encoder_rest_kernel,
        out_shape=out_shape,
        grid=(1,),
        in_specs=[_full_spec(a.shape) for a in (p2, w2, sel, w3, wf, wm, wl, v2, v3)],
        out_specs=tuple(_full_spec(s.shape) for s in out_shape),
        compiler_params=pltpu.CompilerParams(dimension_semantics=("arbitrary",)),
    )(p2, w2, sel, w3, wf, wm, wl, v2, v3)


# ----------------------------------------------------------------------------
# JAX glue: im2col, conv3 gather matrix, module composition
# ----------------------------------------------------------------------------
def im2col(x, k, s):
    """x: (N,H,W,C) NHWC -> patches (N*Ho*Wo, k*k*C), flat order = (kh, kw, cin)."""
    N, H, W, C = x.shape
    Ho = (H - k) // s + 1
    Wo = (W - k) // s + 1
    cols = []
    for i in range(k):
        for j in range(k):
            cols.append(x[:, i:i + s * (Ho - 1) + 1:s, j:j + s * (Wo - 1) + 1:s, :])
    patches = jnp.stack(cols, axis=3)                    # (N, Ho, Wo, k*k, C)
    return patches.reshape(N * Ho * Wo, k * k * C), (N, Ho, Wo)


def _conv3_selection(n, h2, w2, k, s, ho, wo):
    """0/1 matrix (k*k*n*ho*wo, n*h2*w2): row block t = di*k+dj picks, for every output
    pixel, the enc2 row feeding it through tap (di, dj).  S @ enc2_rows gathers patches."""
    sel = np.zeros((k * k, n * ho * wo, n * h2 * w2), np.float32)
    for di in range(k):
        for dj in range(k):
            t = di * k + dj
            for b in range(n):
                for i in range(ho):
                    for j in range(wo):
                        r = (b * ho + i) * wo + j
                        c = (b * h2 + s * i + di) * w2 + s * j + dj
                        sel[t, r, c] = 1.0
    return sel.reshape(k * k * n * ho * wo, n * h2 * w2)


def init_params(key, num_input_channels, num_hidden_channels):
    assert num_hidden_channels > 128
    ks = list(jax.random.split(key, 12))

    def conv_w(k, kh, ci, co):
        return jax.random.normal(k, (kh, kh, ci, co), jnp.float32) / jnp.sqrt(kh * kh * ci)

    def lin_w(k, ci, co):
        return jax.random.normal(k, (ci, co), jnp.float32) / jnp.sqrt(ci)

    H = num_hidden_channels
    return {
        "w1": conv_w(ks[0], 3, num_input_channels, 32),
        "b1": 0.01 * jax.random.normal(ks[1], (32,), jnp.float32),
        "g1": jnp.ones((32,), jnp.float32), "be1": jnp.zeros((32,), jnp.float32),
        "w2": conv_w(ks[2], 3, 32, 128),
        "b2": 0.01 * jax.random.normal(ks[3], (128,), jnp.float32),
        "g2": jnp.ones((128,), jnp.float32), "be2": jnp.zeros((128,), jnp.float32),
        "w3": conv_w(ks[4], 3, 128, H),
        "b3": 0.01 * jax.random.normal(ks[5], (H,), jnp.float32),
        "g3": jnp.ones((H,), jnp.float32), "be3": jnp.zeros((H,), jnp.float32),
        "wf": lin_w(ks[6], H, H),
        "bf": 0.01 * jax.random.normal(ks[7], (H,), jnp.float32),
        "gbn": jnp.ones((H,), jnp.float32), "bbn": jnp.zeros((H,), jnp.float32),
        "wm": lin_w(ks[8], H, H),
        "bm": 0.01 * jax.random.normal(ks[9], (H,), jnp.float32),
        "wl": lin_w(ks[10], H, H),
        "bl": 0.01 * jax.random.normal(ks[11], (H,), jnp.float32),
    }


@jax.jit
def variational_encoder_forward(params, x_nchw):
    # layout: PyTorch-style NCHW input -> NHWC for the TPU kernels
    x = jnp.transpose(x_nchw, (0, 2, 3, 1)).astype(jnp.float32)
    N = x.shape[0]
    H = params["wf"].shape[0]
    c1 = params["w1"].shape[-1]
    c2 = params["w2"].shape[-1]

    # ---- ConvBlock 1 (stride 1): im2col in XLA, fused conv+BN+ReLU kernel ----
    p1, (_, Ho1, Wo1) = im2col(x, 3, 1)
    enc1_2d = conv_bn_relu(p1.astype(MXU_DTYPE),
                           params["w1"].reshape(-1, c1).astype(MXU_DTYPE),
                           params["g1"], params["be1"])
    enc1 = enc1_2d.reshape(N, Ho1, Wo1, c1)

    # ---- ConvBlock2 + ConvBlock3 + pool + conv_final + BN1d + ReLU + heads: one kernel ----
    p2, (_, Ho2, Wo2) = im2col(enc1, 3, 3)            # stride == k: inflation-free
    Ho3 = (Ho2 - 3) // 5 + 1
    Wo3 = (Wo2 - 3) // 5 + 1
    npix = N * Ho3 * Wo3
    sel = jnp.asarray(_conv3_selection(N, Ho2, Wo2, 3, 5, Ho3, Wo3), dtype=MXU_DTYPE)

    v2 = jnp.stack([params["g2"], params["be2"]], axis=0)
    v3 = jnp.stack([params["g3"], params["be3"], params["bf"],
                    params["gbn"], params["bbn"], params["bm"], params["bl"]], axis=0)

    enc2_2d, enc3_2d, enc_last, mean, logvar = encoder_rest(
        p2.astype(MXU_DTYPE),
        params["w2"].reshape(-1, c2).astype(MXU_DTYPE),
        sel,
        params["w3"].reshape(9 * c2, H).astype(MXU_DTYPE),
        params["wf"].astype(MXU_DTYPE),
        params["wm"].astype(MXU_DTYPE),
        params["wl"].astype(MXU_DTYPE),
        v2, v3, N, npix)

    return {
        "enc1": enc1,                                             # NHWC
        "enc2": enc2_2d.reshape(N, Ho2, Wo2, c2),
        "enc3": enc3_2d.reshape(N, Ho3, Wo3, H),
        "enc_last": enc_last.reshape(N, 1, 1, H),                 # NHWC analogue of (N,H,1,1)
        "mean": mean, "logvar": logvar,
    }


# ----------------------------------------------------------------------------
# Pure-JAX reference (mirrors the kernel's MXU operand precision; includes conv biases
# so the kernel's "bias cancels in BatchNorm" optimization is validated by the check).
# adaptive_avg_pool2d(1) is applied before the 1x1 conv_final — they commute exactly.
# ----------------------------------------------------------------------------
def reference_forward(params, x_nchw, mxu_dtype=jnp.float32):
    x = jnp.transpose(x_nchw, (0, 2, 3, 1)).astype(jnp.float32)

    def conv_block_ref(x, w, b, g, be, s):
        y = jax.lax.conv_general_dilated(
            x.astype(mxu_dtype), w.astype(mxu_dtype), (s, s), "VALID",
            dimension_numbers=("NHWC", "HWIO", "NHWC"),
            preferred_element_type=jnp.float32) + b
        mu = y.mean(axis=(0, 1, 2), keepdims=True)
        var = ((y - mu) ** 2).mean(axis=(0, 1, 2), keepdims=True)
        return jnp.maximum((y - mu) * jax.lax.rsqrt(var + EPS) * g + be, 0.0)

    e1 = conv_block_ref(x, params["w1"], params["b1"], params["g1"], params["be1"], 1)
    e2 = conv_block_ref(e1, params["w2"], params["b2"], params["g2"], params["be2"], 3)
    e3 = conv_block_ref(e2, params["w3"], params["b3"], params["g3"], params["be3"], 5)

    pooled = e3.mean(axis=(1, 2))                                 # (N, H)
    enc_last = jnp.dot(pooled.astype(mxu_dtype), params["wf"].astype(mxu_dtype),
                       preferred_element_type=jnp.float32) + params["bf"]
    mu = enc_last.mean(axis=0, keepdims=True)
    var = ((enc_last - mu) ** 2).mean(axis=0, keepdims=True)
    z = jnp.maximum((enc_last - mu) * jax.lax.rsqrt(var + EPS) * params["gbn"]
                    + params["bbn"], 0.0)
    mean = jnp.dot(z.astype(mxu_dtype), params["wm"].astype(mxu_dtype),
                   preferred_element_type=jnp.float32) + params["bm"]
    logvar = jnp.dot(z.astype(mxu_dtype), params["wl"].astype(mxu_dtype),
                     preferred_element_type=jnp.float32) + params["bl"]
    return {"enc1": e1, "enc2": e2, "enc3": e3, "enc_last": enc_last,
            "mean": mean, "logvar": logvar}


# ----------------------------------------------------------------------------
if __name__ == "__main__":
    NUM_INPUT_CHANNELS = 4
    NUM_HIDDEN_CHANNELS = 160   # module asserts > 128
    BATCH = 2
    SPATIAL = 32                # enc1 30x30 -> enc2 10x10 -> enc3 2x2

    key = jax.random.PRNGKey(0)
    k_param, k_x = jax.random.split(key)
    params = init_params(k_param, NUM_INPUT_CHANNELS, NUM_HIDDEN_CHANNELS)

    # PyTorch-style NCHW input
    x = jax.random.normal(k_x, (BATCH, NUM_INPUT_CHANNELS, SPATIAL, SPATIAL), jnp.float32)

    out = jax.block_until_ready(variational_encoder_forward(params, x))
    ref = jax.block_until_ready(reference_forward(params, x, MXU_DTYPE))

    assert out["enc1"].shape == (BATCH, 30, 30, 32)
    assert out["enc2"].shape == (BATCH, 10, 10, 128)
    assert out["enc3"].shape == (BATCH, 2, 2, NUM_HIDDEN_CHANNELS)
    assert out["enc_last"].shape == (BATCH, 1, 1, NUM_HIDDEN_CHANNELS)
    assert out["mean"].shape == (BATCH, NUM_HIDDEN_CHANNELS)
    assert out["logvar"].shape == (BATCH, NUM_HIDDEN_CHANNELS)

    def close(a, b, tol):
        return bool(jnp.allclose(a, b, rtol=tol, atol=tol))

    assert close(out["enc1"], ref["enc1"], 2e-2)
    assert close(out["enc2"], ref["enc2"], 2e-2)
    assert close(out["enc3"], ref["enc3"], 2e-2)
    assert close(out["enc_last"].reshape(BATCH, NUM_HIDDEN_CHANNELS), ref["enc_last"], 2e-2)
    # BatchNorm1d over a batch of 2 amplifies benign operand-precision (bf16) differences
    # on channels where the two samples nearly coincide, so the heads get a looser bound.
    assert close(out["mean"], ref["mean"], 5e-2)
    assert close(out["logvar"], ref["logvar"], 5e-2)

    # TODO(synk): BatchNorm running-mean/var buffer updates (training-side state) are not
    # modeled; only the training-mode forward normalization (batch statistics) is computed.
    print("KERNEL_OK")
</pallas_src>

<mosaic_0001>
module attributes {stable_mosaic.version = 11 : i64} {
  func.func @_conv_bn_relu_kernel(%arg0: i32, %arg1: memref<1800x36xbf16, #tpu.memory_space<vmem>>, %arg2: memref<36x32xbf16, #tpu.memory_space<vmem>>, %arg3: memref<2x32xf32, #tpu.memory_space<vmem>>, %arg4: memref<1800x32xf32, #tpu.memory_space<vmem>>) attributes {dimension_semantics = [#tpu.dimension_semantics<arbitrary>], iteration_bounds = array<i64: 1>, scalar_prefetch = 0 : i64, scratch_operands = 0 : i64, tpu.core_type = #tpu.core_type<tc>, window_params = [{pipeline_mode = #tpu.pipeline_mode<synchronous>, transform_indices = @transform_0, window_bounds = array<i64: 1800, 36>}, {pipeline_mode = #tpu.pipeline_mode<synchronous>, transform_indices = @transform_1, window_bounds = array<i64: 36, 32>}, {pipeline_mode = #tpu.pipeline_mode<synchronous>, transform_indices = @transform_2, window_bounds = array<i64: 2, 32>}, {pipeline_mode = #tpu.pipeline_mode<synchronous>, transform_indices = @transform_3, window_bounds = array<i64: 1800, 32>}]} {
    %c0 = arith.constant 0 : index
    %c0_0 = arith.constant 0 : index
    %0 = vector.load %arg1[%c0, %c0_0] : memref<1800x36xbf16, #tpu.memory_space<vmem>>, vector<1800x36xbf16>
    %c0_1 = arith.constant 0 : index
    %c0_2 = arith.constant 0 : index
    %1 = vector.load %arg2[%c0_1, %c0_2] : memref<36x32xbf16, #tpu.memory_space<vmem>>, vector<36x32xbf16>
    %cst = arith.constant dense<0.000000e+00> : vector<1800x32xf32>
    %2 = tpu.matmul %0, %1, %cst {dimension_numbers = #tpu.dot_dimension_numbers<[1], [0], [0], [1], [0, 0, 1, 1], [], []>} : vector<1800x36xbf16>, vector<36x32xbf16>, vector<1800x32xf32> -> vector<1800x32xf32>
    %c0_3 = arith.constant 0 : index
    %c0_4 = arith.constant 0 : index
    %3 = vector.load %arg3[%c0_3, %c0_4] : memref<2x32xf32, #tpu.memory_space<vmem>>, vector<2x32xf32>
    %cst_5 = arith.constant dense<0.000000e+00> : vector<32xf32>
    %4 = vector.multi_reduction <add>, %2, %cst_5 [0] : vector<1800x32xf32> to vector<32xf32>
    %5 = vector.shape_cast %4 : vector<32xf32> to vector<1x32xf32>
    %cst_6 = arith.constant 5.55555569E-4 : f32
    %6 = vector.broadcast %cst_6 : f32 to vector<1x32xf32>
    %7 = arith.mulf %5, %6 : vector<1x32xf32>
    %8 = arith.mulf %2, %2 : vector<1800x32xf32>
    %cst_7 = arith.constant dense<0.000000e+00> : vector<32xf32>
    %9 = vector.multi_reduction <add>, %8, %cst_7 [0] : vector<1800x32xf32> to vector<32xf32>
    %10 = vector.shape_cast %9 : vector<32xf32> to vector<1x32xf32>
    %cst_8 = arith.constant 5.55555569E-4 : f32
    %11 = vector.broadcast %cst_8 : f32 to vector<1x32xf32>
    %12 = arith.mulf %10, %11 : vector<1x32xf32>
    %13 = arith.mulf %7, %7 : vector<1x32xf32>
    %14 = arith.subf %12, %13 : vector<1x32xf32>
    %cst_9 = arith.constant 9.99999974E-6 : f32
    %15 = vector.broadcast %cst_9 : f32 to vector<1x32xf32>
    %16 = arith.addf %14, %15 : vector<1x32xf32>
    %17 = math.rsqrt %16 : vector<1x32xf32>
    %18 = vector.extract_strided_slice %3 {offsets = [0, 0], sizes = [1, 32], strides = [1, 1]} : vector<2x32xf32> to vector<1x32xf32>
    %19 = arith.mulf %17, %18 : vector<1x32xf32>
    %20 = vector.extract_strided_slice %3 {offsets = [1, 0], sizes = [1, 32], strides = [1, 1]} : vector<2x32xf32> to vector<1x32xf32>
    %21 = arith.mulf %7, %19 : vector<1x32xf32>
    %22 = arith.subf %20, %21 : vector<1x32xf32>
    %23 = vector.broadcast %19 : vector<1x32xf32> to vector<1800x32xf32>
    %24 = arith.mulf %2, %23 : vector<1800x32xf32>
    %25 = vector.broadcast %22 : vector<1x32xf32> to vector<1800x32xf32>
    %26 = arith.addf %24, %25 : vector<1800x32xf32>
    %cst_10 = arith.constant 0.000000e+00 : f32
    %27 = vector.broadcast %cst_10 : f32 to vector<1800x32xf32>
    %28 = arith.maximumf %26, %27 : vector<1800x32xf32>
    %c0_11 = arith.constant 0 : index
    %c0_12 = arith.constant 0 : index
    %29 = vector.load %arg4[%c0_11, %c0_12] : memref<1800x32xf32, #tpu.memory_space<vmem>>, vector<1800x32xf32>
    tpu.vector_store %arg4[%c0_11, %c0_12], %28 {strides = array<i32>} : memref<1800x32xf32, #tpu.memory_space<vmem>>, vector<1800x32xf32>,
    return
  }
  func.func @transform_0(%arg0: i32) -> (i32, i32) {
    %c0_i32 = arith.constant 0 : i32
    %c0_i32_0 = arith.constant 0 : i32
    %c0_i32_1 = arith.constant 0 : i32
    return %c0_i32, %c0_i32_0 : i32, i32
  }
  func.func @transform_1(%arg0: i32) -> (i32, i32) {
    %c0_i32 = arith.constant 0 : i32
    %c0_i32_0 = arith.constant 0 : i32
    %c0_i32_1 = arith.constant 0 : i32
    return %c0_i32, %c0_i32_0 : i32, i32
  }
  func.func @transform_2(%arg0: i32) -> (i32, i32) {
    %c0_i32 = arith.constant 0 : i32
    %c0_i32_0 = arith.constant 0 : i32
    %c0_i32_1 = arith.constant 0 : i32
    return %c0_i32, %c0_i32_0 : i32, i32
  }
  func.func @transform_3(%arg0: i32) -> (i32, i32) {
    %c0_i32 = arith.constant 0 : i32
    %c0_i32_0 = arith.constant 0 : i32
    %c0_i32_1 = arith.constant 0 : i32
    return %c0_i32, %c0_i32_0 : i32, i32
  }
}

module attributes {stable_mosaic.version = 11 : i64} {
  func.func @_encoder_rest_kernel(%arg0: i32, %arg1: memref<200x288xbf16, #tpu.memory_space<vmem>>, %arg2: memref<288x128xbf16, #tpu.memory_space<vmem>>, %arg3: memref<72x200xbf16, #tpu.memory_space<vmem>>, %arg4: memref<1152x160xbf16, #tpu.memory_space<vmem>>, %arg5: memref<160x160xbf16, #tpu.memory_space<vmem>>, %arg6: memref<160x160xbf16, #tpu.memory_space<vmem>>, %arg7: memref<160x160xbf16, #tpu.memory_space<vmem>>, %arg8: memref<2x128xf32, #tpu.memory_space<vmem>>, %arg9: memref<7x160xf32, #tpu.memory_space<vmem>>, %arg10: memref<200x128xf32, #tpu.memory_space<vmem>>, %arg11: memref<8x160xf32, #tpu.memory_space<vmem>>, %arg12: memref<2x160xf32, #tpu.memory_space<vmem>>, %arg13: memref<2x160xf32, #tpu.memory_space<vmem>>, %arg14: memref<2x160xf32, #tpu.memory_space<vmem>>) attributes {dimension_semantics = [#tpu.dimension_semantics<arbitrary>], iteration_bounds = array<i64: 1>, scalar_prefetch = 0 : i64, scratch_operands = 0 : i64, tpu.core_type = #tpu.core_type<tc>, window_params = [{pipeline_mode = #tpu.pipeline_mode<synchronous>, transform_indices = @transform_0, window_bounds = array<i64: 200, 288>}, {pipeline_mode = #tpu.pipeline_mode<synchronous>, transform_indices = @transform_1, window_bounds = array<i64: 288, 128>}, {pipeline_mode = #tpu.pipeline_mode<synchronous>, transform_indices = @transform_2, window_bounds = array<i64: 72, 200>}, {pipeline_mode = #tpu.pipeline_mode<synchronous>, transform_indices = @transform_3, window_bounds = array<i64: 1152, 160>}, {pipeline_mode = #tpu.pipeline_mode<synchronous>, transform_indices = @transform_4, window_bounds = array<i64: 160, 160>}, {pipeline_mode = #tpu.pipeline_mode<synchronous>, transform_indices = @transform_5, window_bounds = array<i64: 160, 160>}, {pipeline_mode = #tpu.pipeline_mode<synchronous>, transform_indices = @transform_6, window_bounds = array<i64: 160, 160>}, {pipeline_mode = #tpu.pipeline_mode<synchronous>, transform_indices = @transform_7, window_bounds = array<i64: 2, 128>}, {pipeline_mode = #tpu.pipeline_mode<synchronous>, transform_indices = @transform_8, window_bounds = array<i64: 7, 160>}, {pipeline_mode = #tpu.pipeline_mode<synchronous>, transform_indices = @transform_9, window_bounds = array<i64: 200, 128>}, {pipeline_mode = #tpu.pipeline_mode<synchronous>, transform_indices = @transform_10, window_bounds = array<i64: 8, 160>}, {pipeline_mode = #tpu.pipeline_mode<synchronous>, transform_indices = @transform_11, window_bounds = array<i64: 2, 160>}, {pipeline_mode = #tpu.pipeline_mode<synchronous>, transform_indices = @transform_12, window_bounds = array<i64: 2, 160>}, {pipeline_mode = #tpu.pipeline_mode<synchronous>, transform_indices = @transform_13, window_bounds = array<i64: 2, 160>}]} {
    %c0 = arith.constant 0 : index
    %c0_0 = arith.constant 0 : index
    %0 = vector.load %arg8[%c0, %c0_0] : memref<2x128xf32, #tpu.memory_space<vmem>>, vector<2x128xf32>
    %c0_1 = arith.constant 0 : index
    %c0_2 = arith.constant 0 : index
    %1 = vector.load %arg9[%c0_1, %c0_2] : memref<7x160xf32, #tpu.memory_space<vmem>>, vector<7x160xf32>
    %c0_3 = arith.constant 0 : index
    %c0_4 = arith.constant 0 : index
    %2 = vector.load %arg1[%c0_3, %c0_4] : memref<200x288xbf16, #tpu.memory_space<vmem>>, vector<200x288xbf16>
    %c0_5 = arith.constant 0 : index
    %c0_6 = arith.constant 0 : index
    %3 = vector.load %arg2[%c0_5, %c0_6] : memref<288x128xbf16, #tpu.memory_space<vmem>>, vector<288x128xbf16>
    %cst = arith.constant dense<0.000000e+00> : vector<200x128xf32>
    %4 = tpu.matmul %2, %3, %cst {dimension_numbers = #tpu.dot_dimension_numbers<[1], [0], [0], [1], [0, 0, 1, 1], [], []>} : vector<200x288xbf16>, vector<288x128xbf16>, vector<200x128xf32> -> vector<200x128xf32>
    %5 = vector.extract_strided_slice %0 {offsets = [0, 0], sizes = [1, 128], strides = [1, 1]} : vector<2x128xf32> to vector<1x128xf32>
    %6 = vector.extract_strided_slice %0 {offsets = [1, 0], sizes = [1, 128], strides = [1, 1]} : vector<2x128xf32> to vector<1x128xf32>
    %cst_7 = arith.constant dense<0.000000e+00> : vector<128xf32>
    %7 = vector.multi_reduction <add>, %4, %cst_7 [0] : vector<200x128xf32> to vector<128xf32>
    %8 = vector.shape_cast %7 : vector<128xf32> to vector<1x128xf32>
    %cst_8 = arith.constant 5.000000e-03 : f32
    %9 = vector.broadcast %cst_8 : f32 to vector<1x128xf32>
    %10 = arith.mulf %8, %9 : vector<1x128xf32>
    %11 = arith.mulf %4, %4 : vector<200x128xf32>
    %cst_9 = arith.constant dense<0.000000e+00> : vector<128xf32>
    %12 = vector.multi_reduction <add>, %11, %cst_9 [0] : vector<200x128xf32> to vector<128xf32>
    %13 = vector.shape_cast %12 : vector<128xf32> to vector<1x128xf32>
    %cst_10 = arith.constant 5.000000e-03 : f32
    %14 = vector.broadcast %cst_10 : f32 to vector<1x128xf32>
    %15 = arith.mulf %13, %14 : vector<1x128xf32>
    %16 = arith.mulf %10, %10 : vector<1x128xf32>
    %17 = arith.subf %15, %16 : vector<1x128xf32>
    %cst_11 = arith.constant 9.99999974E-6 : f32
    %18 = vector.broadcast %cst_11 : f32 to vector<1x128xf32>
    %19 = arith.addf %17, %18 : vector<1x128xf32>
    %20 = math.rsqrt %19 : vector<1x128xf32>
    %21 = arith.mulf %20, %5 : vector<1x128xf32>
    %22 = vector.broadcast %21 : vector<1x128xf32> to vector<200x128xf32>
    %23 = arith.mulf %4, %22 : vector<200x128xf32>
    %24 = arith.mulf %10, %21 : vector<1x128xf32>
    %25 = arith.subf %6, %24 : vector<1x128xf32>
    %26 = vector.broadcast %25 : vector<1x128xf32> to vector<200x128xf32>
    %27 = arith.addf %23, %26 : vector<200x128xf32>
    %cst_12 = arith.constant 0.000000e+00 : f32
    %28 = vector.broadcast %cst_12 : f32 to vector<200x128xf32>
    %29 = arith.maximumf %27, %28 : vector<200x128xf32>
    %c0_13 = arith.constant 0 : index
    %c0_14 = arith.constant 0 : index
    %30 = vector.load %arg10[%c0_13, %c0_14] : memref<200x128xf32, #tpu.memory_space<vmem>>, vector<200x128xf32>
    tpu.vector_store %arg10[%c0_13, %c0_14], %29 {strides = array<i32>} : memref<200x128xf32, #tpu.memory_space<vmem>>, vector<200x128xf32>,
    %31 = arith.truncf %29 : vector<200x128xf32> to vector<200x128xbf16>
    %cst_15 = arith.constant 0.000000e+00 : f32
    %32 = vector.broadcast %cst_15 : f32 to vector<8x160xf32>
    %c0_16 = arith.constant 0 : index
    %c0_17 = arith.constant 0 : index
    %33 = vector.load %arg3[%c0_16, %c0_17] : memref<72x200xbf16, #tpu.memory_space<vmem>>, vector<8x200xbf16>
    %cst_18 = arith.constant dense<0.000000e+00> : vector<8x128xf32>
    %34 = tpu.matmul %33, %31, %cst_18 {dimension_numbers = #tpu.dot_dimension_numbers<[1], [0], [0], [1], [0, 0, 1, 1], [], []>} : vector<8x200xbf16>, vector<200x128xbf16>, vector<8x128xf32> -> vector<8x128xf32>
    %35 = arith.truncf %34 : vector<8x128xf32> to vector<8x128xbf16>
    %c0_19 = arith.constant 0 : index
    %c0_20 = arith.constant 0 : index
    %36 = vector.load %arg4[%c0_19, %c0_20] : memref<1152x160xbf16, #tpu.memory_space<vmem>>, vector<128x160xbf16>
    %cst_21 = arith.constant dense<0.000000e+00> : vector<8x160xf32>
    %37 = tpu.matmul %35, %36, %cst_21 {dimension_numbers = #tpu.dot_dimension_numbers<[1], [0], [0], [1], [0, 0, 1, 1], [], []>} : vector<8x128xbf16>, vector<128x160xbf16>, vector<8x160xf32> -> vector<8x160xf32>
    %38 = arith.addf %32, %37 : vector<8x160xf32>
    %c8 = arith.constant 8 : index
    %c0_22 = arith.constant 0 : index
    %39 = vector.load %arg3[%c8, %c0_22] : memref<72x200xbf16, #tpu.memory_space<vmem>>, vector<8x200xbf16>
    %cst_23 = arith.constant dense<0.000000e+00> : vector<8x128xf32>
    %40 = tpu.matmul %39, %31, %cst_23 {dimension_numbers = #tpu.dot_dimension_numbers<[1], [0], [0], [1], [0, 0, 1, 1], [], []>} : vector<8x200xbf16>, vector<200x128xbf16>, vector<8x128xf32> -> vector<8x128xf32>
    %41 = arith.truncf %40 : vector<8x128xf32> to vector<8x128xbf16>
    %c128 = arith.constant 128 : index
    %c0_24 = arith.constant 0 : index
    %42 = vector.load %arg4[%c128, %c0_24] : memref<1152x160xbf16, #tpu.memory_space<vmem>>, vector<128x160xbf16>
    %cst_25 = arith.constant dense<0.000000e+00> : vector<8x160xf32>
    %43 = tpu.matmul %41, %42, %cst_25 {dimension_numbers = #tpu.dot_dimension_numbers<[1], [0], [0], [1], [0, 0, 1, 1], [], []>} : vector<8x128xbf16>, vector<128x160xbf16>, vector<8x160xf32> -> vector<8x160xf32>
    %44 = arith.addf %38, %43 : vector<8x160xf32>
    %c16 = arith.constant 16 : index
    %c0_26 = arith.constant 0 : index
    %45 = vector.load %arg3[%c16, %c0_26] : memref<72x200xbf16, #tpu.memory_space<vmem>>, vector<8x200xbf16>
    %cst_27 = arith.constant dense<0.000000e+00> : vector<8x128xf32>
    %46 = tpu.matmul %45, %31, %cst_27 {dimension_numbers = #tpu.dot_dimension_numbers<[1], [0], [0], [1], [0, 0, 1, 1], [], []>} : vector<8x200xbf16>, vector<200x128xbf16>, vector<8x128xf32> -> vector<8x128xf32>
    %47 = arith.truncf %46 : vector<8x128xf32> to vector<8x128xbf16>
    %c256 = arith.constant 256 : index
    %c0_28 = arith.constant 0 : index
    %48 = vector.load %arg4[%c256, %c0_28] : memref<1152x160xbf16, #tpu.memory_space<vmem>>, vector<128x160xbf16>
    %cst_29 = arith.constant dense<0.000000e+00> : vector<8x160xf32>
    %49 = tpu.matmul %47, %48, %cst_29 {dimension_numbers = #tpu.dot_dimension_numbers<[1], [0], [0], [1], [0, 0, 1, 1], [], []>} : vector<8x128xbf16>, vector<128x160xbf16>, vector<8x160xf32> -> vector<8x160xf32>
    %50 = arith.addf %44, %49 : vector<8x160xf32>
    %c24 = arith.constant 24 : index
    %c0_30 = arith.constant 0 : index
    %51 = vector.load %arg3[%c24, %c0_30] : memref<72x200xbf16, #tpu.memory_space<vmem>>, vector<8x200xbf16>
    %cst_31 = arith.constant dense<0.000000e+00> : vector<8x128xf32>
    %52 = tpu.matmul %51, %31, %cst_31 {dimension_numbers = #tpu.dot_dimension_numbers<[1], [0], [0], [1], [0, 0, 1, 1], [], []>} : vector<8x200xbf16>, vector<200x128xbf16>, vector<8x128xf32> -> vector<8x128xf32>
    %53 = arith.truncf %52 : vector<8x128xf32> to vector<8x128xbf16>
    %c384 = arith.constant 384 : index
    %c0_32 = arith.constant 0 : index
    %54 = vector.load %arg4[%c384, %c0_32] : memref<1152x160xbf16, #tpu.memory_space<vmem>>, vector<128x160xbf16>
    %cst_33 = arith.constant dense<0.000000e+00> : vector<8x160xf32>
    %55 = tpu.matmul %53, %54, %cst_33 {dimension_numbers = #tpu.dot_dimension_numbers<[1], [0], [0], [1], [0, 0, 1, 1], [], []>} : vector<8x128xbf16>, vector<128x160xbf16>, vector<8x160xf32> -> vector<8x160xf32>
    %56 = arith.addf %50, %55 : vector<8x160xf32>
    %c32 = arith.constant 32 : index
    %c0_34 = arith.constant 0 : index
    %57 = vector.load %arg3[%c32, %c0_34] : memref<72x200xbf16, #tpu.memory_space<vmem>>, vector<8x200xbf16>
    %cst_35 = arith.constant dense<0.000000e+00> : vector<8x128xf32>
    %58 = tpu.matmul %57, %31, %cst_35 {dimension_numbers = #tpu.dot_dimension_numbers<[1], [0], [0], [1], [0, 0, 1, 1], [], []>} : vector<8x200xbf16>, vector<200x128xbf16>, vector<8x128xf32> -> vector<8x128xf32>
    %59 = arith.truncf %58 : vector<8x128xf32> to vector<8x128xbf16>
    %c512 = arith.constant 512 : index
    %c0_36 = arith.constant 0 : index
    %60 = vector.load %arg4[%c512, %c0_36] : memref<1152x160xbf16, #tpu.memory_space<vmem>>, vector<128x160xbf16>
    %cst_37 = arith.constant dense<0.000000e+00> : vector<8x160xf32>
    %61 = tpu.matmul %59, %60, %cst_37 {dimension_numbers = #tpu.dot_dimension_numbers<[1], [0], [0], [1], [0, 0, 1, 1], [], []>} : vector<8x128xbf16>, vector<128x160xbf16>, vector<8x160xf32> -> vector<8x160xf32>
    %62 = arith.addf %56, %61 : vector<8x160xf32>
    %c40 = arith.constant 40 : index
    %c0_38 = arith.constant 0 : index
    %63 = vector.load %arg3[%c40, %c0_38] : memref<72x200xbf16, #tpu.memory_space<vmem>>, vector<8x200xbf16>
    %cst_39 = arith.constant dense<0.000000e+00> : vector<8x128xf32>
    %64 = tpu.matmul %63, %31, %cst_39 {dimension_numbers = #tpu.dot_dimension_numbers<[1], [0], [0], [1], [0, 0, 1, 1], [], []>} : vector<8x200xbf16>, vector<200x128xbf16>, vector<8x128xf32> -> vector<8x128xf32>
    %65 = arith.truncf %64 : vector<8x128xf32> to vector<8x128xbf16>
    %c640 = arith.constant 640 : index
    %c0_40 = arith.constant 0 : index
    %66 = vector.load %arg4[%c640, %c0_40] : memref<1152x160xbf16, #tpu.memory_space<vmem>>, vector<128x160xbf16>
    %cst_41 = arith.constant dense<0.000000e+00> : vector<8x160xf32>
    %67 = tpu.matmul %65, %66, %cst_41 {dimension_numbers = #tpu.dot_dimension_numbers<[1], [0], [0], [1], [0, 0, 1, 1], [], []>} : vector<8x128xbf16>, vector<128x160xbf16>, vector<8x160xf32> -> vector<8x160xf32>
    %68 = arith.addf %62, %67 : vector<8x160xf32>
    %c48 = arith.constant 48 : index
    %c0_42 = arith.constant 0 : index
    %69 = vector.load %arg3[%c48, %c0_42] : memref<72x200xbf16, #tpu.memory_space<vmem>>, vector<8x200xbf16>
    %cst_43 = arith.constant dense<0.000000e+00> : vector<8x128xf32>
    %70 = tpu.matmul %69, %31, %cst_43 {dimension_numbers = #tpu.dot_dimension_numbers<[1], [0], [0], [1], [0, 0, 1, 1], [], []>} : vector<8x200xbf16>, vector<200x128xbf16>, vector<8x128xf32> -> vector<8x128xf32>
    %71 = arith.truncf %70 : vector<8x128xf32> to vector<8x128xbf16>
    %c768 = arith.constant 768 : index
    %c0_44 = arith.constant 0 : index
    %72 = vector.load %arg4[%c768, %c0_44] : memref<1152x160xbf16, #tpu.memory_space<vmem>>, vector<128x160xbf16>
    %cst_45 = arith.constant dense<0.000000e+00> : vector<8x160xf32>
    %73 = tpu.matmul %71, %72, %cst_45 {dimension_numbers = #tpu.dot_dimension_numbers<[1], [0], [0], [1], [0, 0, 1, 1], [], []>} : vector<8x128xbf16>, vector<128x160xbf16>, vector<8x160xf32> -> vector<8x160xf32>
    %74 = arith.addf %68, %73 : vector<8x160xf32>
    %c56 = arith.constant 56 : index
    %c0_46 = arith.constant 0 : index
    %75 = vector.load %arg3[%c56, %c0_46] : memref<72x200xbf16, #tpu.memory_space<vmem>>, vector<8x200xbf16>
    %cst_47 = arith.constant dense<0.000000e+00> : vector<8x128xf32>
    %76 = tpu.matmul %75, %31, %cst_47 {dimension_numbers = #tpu.dot_dimension_numbers<[1], [0], [0], [1], [0, 0, 1, 1], [], []>} : vector<8x200xbf16>, vector<200x128xbf16>, vector<8x128xf32> -> vector<8x128xf32>
    %77 = arith.truncf %76 : vector<8x128xf32> to vector<8x128xbf16>
    %c896 = arith.constant 896 : index
    %c0_48 = arith.constant 0 : index
    %78 = vector.load %arg4[%c896, %c0_48] : memref<1152x160xbf16, #tpu.memory_space<vmem>>, vector<128x160xbf16>
    %cst_49 = arith.constant dense<0.000000e+00> : vector<8x160xf32>
    %79 = tpu.matmul %77, %78, %cst_49 {dimension_numbers = #tpu.dot_dimension_numbers<[1], [0], [0], [1], [0, 0, 1, 1], [], []>} : vector<8x128xbf16>, vector<128x160xbf16>, vector<8x160xf32> -> vector<8x160xf32>
    %80 = arith.addf %74, %79 : vector<8x160xf32>
    %c64 = arith.constant 64 : index
    %c0_50 = arith.constant 0 : index
    %81 = vector.load %arg3[%c64, %c0_50] : memref<72x200xbf16, #tpu.memory_space<vmem>>, vector<8x200xbf16>
    %cst_51 = arith.constant dense<0.000000e+00> : vector<8x128xf32>
    %82 = tpu.matmul %81, %31, %cst_51 {dimension_numbers = #tpu.dot_dimension_numbers<[1], [0], [0], [1], [0, 0, 1, 1], [], []>} : vector<8x200xbf16>, vector<200x128xbf16>, vector<8x128xf32> -> vector<8x128xf32>
    %83 = arith.truncf %82 : vector<8x128xf32> to vector<8x128xbf16>
    %c1024 = arith.constant 1024 : index
    %c0_52 = arith.constant 0 : index
    %84 = vector.load %arg4[%c1024, %c0_52] : memref<1152x160xbf16, #tpu.memory_space<vmem>>, vector<128x160xbf16>
    %cst_53 = arith.constant dense<0.000000e+00> : vector<8x160xf32>
    %85 = tpu.matmul %83, %84, %cst_53 {dimension_numbers = #tpu.dot_dimension_numbers<[1], [0], [0], [1], [0, 0, 1, 1], [], []>} : vector<8x128xbf16>, vector<128x160xbf16>, vector<8x160xf32> -> vector<8x160xf32>
    %86 = arith.addf %80, %85 : vector<8x160xf32>
    %87 = vector.extract_strided_slice %1 {offsets = [0, 0], sizes = [1, 160], strides = [1, 1]} : vector<7x160xf32> to vector<1x160xf32>
    %88 = vector.extract_strided_slice %1 {offsets = [1, 0], sizes = [1, 160], strides = [1, 1]} : vector<7x160xf32> to vector<1x160xf32>
    %cst_54 = arith.constant dense<0.000000e+00> : vector<160xf32>
    %89 = vector.multi_reduction <add>, %86, %cst_54 [0] : vector<8x160xf32> to vector<160xf32>
    %90 = vector.shape_cast %89 : vector<160xf32> to vector<1x160xf32>
    %cst_55 = arith.constant 1.250000e-01 : f32
    %91 = vector.broadcast %cst_55 : f32 to vector<1x160xf32>
    %92 = arith.mulf %90, %91 : vector<1x160xf32>
    %93 = arith.mulf %86, %86 : vector<8x160xf32>
    %cst_56 = arith.constant dense<0.000000e+00> : vector<160xf32>
    %94 = vector.multi_reduction <add>, %93, %cst_56 [0] : vector<8x160xf32> to vector<160xf32>
    %95 = vector.shape_cast %94 : vector<160xf32> to vector<1x160xf32>
    %cst_57 = arith.constant 1.250000e-01 : f32
    %96 = vector.broadcast %cst_57 : f32 to vector<1x160xf32>
    %97 = arith.mulf %95, %96 : vector<1x160xf32>
    %98 = arith.mulf %92, %92 : vector<1x160xf32>
    %99 = arith.subf %97, %98 : vector<1x160xf32>
    %cst_58 = arith.constant 9.99999974E-6 : f32
    %100 = vector.broadcast %cst_58 : f32 to vector<1x160xf32>
    %101 = arith.addf %99, %100 : vector<1x160xf32>
    %102 = math.rsqrt %101 : vector<1x160xf32>
    %103 = arith.mulf %102, %87 : vector<1x160xf32>
    %104 = vector.broadcast %103 : vector<1x160xf32> to vector<8x160xf32>
    %105 = arith.mulf %86, %104 : vector<8x160xf32>
    %106 = arith.mulf %92, %103 : vector<1x160xf32>
    %107 = arith.subf %88, %106 : vector<1x160xf32>
    %108 = vector.broadcast %107 : vector<1x160xf32> to vector<8x160xf32>
    %109 = arith.addf %105, %108 : vector<8x160xf32>
    %cst_59 = arith.constant 0.000000e+00 : f32
    %110 = vector.broadcast %cst_59 : f32 to vector<8x160xf32>
    %111 = arith.maximumf %109, %110 : vector<8x160xf32>
    %c0_60 = arith.constant 0 : index
    %c0_61 = arith.constant 0 : index
    %112 = vector.load %arg11[%c0_60, %c0_61] : memref<8x160xf32, #tpu.memory_space<vmem>>, vector<8x160xf32>
    tpu.vector_store %arg11[%c0_60, %c0_61], %111 {strides = array<i32>} : memref<8x160xf32, #tpu.memory_space<vmem>>, vector<8x160xf32>,
    %113 = vector.extract_strided_slice %111 {offsets = [0, 0], sizes = [4, 160], strides = [1, 1]} : vector<8x160xf32> to vector<4x160xf32>
    %cst_62 = arith.constant dense<0.000000e+00> : vector<160xf32>
    %114 = vector.multi_reduction <add>, %113, %cst_62 [0] : vector<4x160xf32> to vector<160xf32>
    %115 = vector.shape_cast %114 : vector<160xf32> to vector<1x160xf32>
    %116 = vector.extract_strided_slice %111 {offsets = [4, 0], sizes = [4, 160], strides = [1, 1]} : vector<8x160xf32> to vector<4x160xf32>
    %cst_63 = arith.constant dense<0.000000e+00> : vector<160xf32>
    %117 = vector.multi_reduction <add>, %116, %cst_63 [0] : vector<4x160xf32> to vector<160xf32>
    %118 = vector.shape_cast %117 : vector<160xf32> to vector<1x160xf32>
    %119 = tpu.concatenate %115, %118 in 0 : vector<1x160xf32>, vector<1x160xf32> -> vector<2x160xf32>
    %cst_64 = arith.constant 2.500000e-01 : f32
    %120 = vector.broadcast %cst_64 : f32 to vector<2x160xf32>
    %121 = arith.mulf %119, %120 : vector<2x160xf32>
    %122 = arith.truncf %121 : vector<2x160xf32> to vector<2x160xbf16>
    %c0_65 = arith.constant 0 : index
    %c0_66 = arith.constant 0 : index
    %123 = vector.load %arg5[%c0_65, %c0_66] : memref<160x160xbf16, #tpu.memory_space<vmem>>, vector<160x160xbf16>
    %cst_67 = arith.constant dense<0.000000e+00> : vector<2x160xf32>
    %124 = tpu.matmul %122, %123, %cst_67 {dimension_numbers = #tpu.dot_dimension_numbers<[1], [0], [0], [1], [0, 0, 1, 1], [], []>} : vector<2x160xbf16>, vector<160x160xbf16>, vector<2x160xf32> -> vector<2x160xf32>
    %125 = vector.extract_strided_slice %1 {offsets = [2, 0], sizes = [1, 160], strides = [1, 1]} : vector<7x160xf32> to vector<1x160xf32>
    %126 = vector.broadcast %125 : vector<1x160xf32> to vector<2x160xf32>
    %127 = arith.addf %124, %126 : vector<2x160xf32>
    %c0_68 = arith.constant 0 : index
    %c0_69 = arith.constant 0 : index
    %128 = vector.load %arg12[%c0_68, %c0_69] : memref<2x160xf32, #tpu.memory_space<vmem>>, vector<2x160xf32>
    tpu.vector_store %arg12[%c0_68, %c0_69], %127 {strides = array<i32>} : memref<2x160xf32, #tpu.memory_space<vmem>>, vector<2x160xf32>,
    %cst_70 = arith.constant dense<0.000000e+00> : vector<160xf32>
    %129 = vector.multi_reduction <add>, %127, %cst_70 [0] : vector<2x160xf32> to vector<160xf32>
    %130 = vector.shape_cast %129 : vector<160xf32> to vector<1x160xf32>
    %cst_71 = arith.constant 5.000000e-01 : f32
    %131 = vector.broadcast %cst_71 : f32 to vector<1x160xf32>
    %132 = arith.mulf %130, %131 : vector<1x160xf32>
    %133 = arith.mulf %127, %127 : vector<2x160xf32>
    %cst_72 = arith.constant dense<0.000000e+00> : vector<160xf32>
    %134 = vector.multi_reduction <add>, %133, %cst_72 [0] : vector<2x160xf32> to vector<160xf32>
    %135 = vector.shape_cast %134 : vector<160xf32> to vector<1x160xf32>
    %cst_73 = arith.constant 5.000000e-01 : f32
    %136 = vector.broadcast %cst_73 : f32 to vector<1x160xf32>
    %137 = arith.mulf %135, %136 : vector<1x160xf32>
    %138 = arith.mulf %132, %132 : vector<1x160xf32>
    %139 = arith.subf %137, %138 : vector<1x160xf32>
    %cst_74 = arith.constant 9.99999974E-6 : f32
    %140 = vector.broadcast %cst_74 : f32 to vector<1x160xf32>
    %141 = arith.addf %139, %140 : vector<1x160xf32>
    %142 = math.rsqrt %141 : vector<1x160xf32>
    %143 = vector.extract_strided_slice %1 {offsets = [3, 0], sizes = [1, 160], strides = [1, 1]} : vector<7x160xf32> to vector<1x160xf32>
    %144 = arith.mulf %142, %143 : vector<1x160xf32>
    %145 = vector.broadcast %144 : vector<1x160xf32> to vector<2x160xf32>
    %146 = arith.mulf %127, %145 : vector<2x160xf32>
    %147 = vector.extract_strided_slice %1 {offsets = [4, 0], sizes = [1, 160], strides = [1, 1]} : vector<7x160xf32> to vector<1x160xf32>
    %148 = arith.mulf %132, %144 : vector<1x160xf32>
    %149 = arith.subf %147, %148 : vector<1x160xf32>
    %150 = vector.broadcast %149 : vector<1x160xf32> to vector<2x160xf32>
    %151 = arith.addf %146, %150 : vector<2x160xf32>
    %cst_75 = arith.constant 0.000000e+00 : f32
    %152 = vector.broadcast %cst_75 : f32 to vector<2x160xf32>
    %153 = arith.maximumf %151, %152 : vector<2x160xf32>
    %154 = arith.truncf %153 : vector<2x160xf32> to vector<2x160xbf16>
    %c0_76 = arith.constant 0 : index
    %c0_77 = arith.constant 0 : index
    %155 = vector.load %arg6[%c0_76, %c0_77] : memref<160x160xbf16, #tpu.memory_space<vmem>>, vector<160x160xbf16>
    %cst_78 = arith.constant dense<0.000000e+00> : vector<2x160xf32>
    %156 = tpu.matmul %154, %155, %cst_78 {dimension_numbers = #tpu.dot_dimension_numbers<[1], [0], [0], [1], [0, 0, 1, 1], [], []>} : vector<2x160xbf16>, vector<160x160xbf16>, vector<2x160xf32> -> vector<2x160xf32>
    %157 = vector.extract_strided_slice %1 {offsets = [5, 0], sizes = [1, 160], strides = [1, 1]} : vector<7x160xf32> to vector<1x160xf32>
    %158 = vector.broadcast %157 : vector<1x160xf32> to vector<2x160xf32>
    %159 = arith.addf %156, %158 : vector<2x160xf32>
    %c0_79 = arith.constant 0 : index
    %c0_80 = arith.constant 0 : index
    %160 = vector.load %arg13[%c0_79, %c0_80] : memref<2x160xf32, #tpu.memory_space<vmem>>, vector<2x160xf32>
    tpu.vector_store %arg13[%c0_79, %c0_80], %159 {strides = array<i32>} : memref<2x160xf32, #tpu.memory_space<vmem>>, vector<2x160xf32>,
    %c0_81 = arith.constant 0 : index
    %c0_82 = arith.constant 0 : index
    %161 = vector.load %arg7[%c0_81, %c0_82] : memref<160x160xbf16, #tpu.memory_space<vmem>>, vector<160x160xbf16>
    %cst_83 = arith.constant dense<0.000000e+00> : vector<2x160xf32>
    %162 = tpu.matmul %154, %161, %cst_83 {dimension_numbers = #tpu.dot_dimension_numbers<[1], [0], [0], [1], [0, 0, 1, 1], [], []>} : vector<2x160xbf16>, vector<160x160xbf16>, vector<2x160xf32> -> vector<2x160xf32>
    %163 = vector.extract_strided_slice %1 {offsets = [6, 0], sizes = [1, 160], strides = [1, 1]} : vector<7x160xf32> to vector<1x160xf32>
    %164 = vector.broadcast %163 : vector<1x160xf32> to vector<2x160xf32>
    %165 = arith.addf %162, %164 : vector<2x160xf32>
    %c0_84 = arith.constant 0 : index
    %c0_85 = arith.constant 0 : index
    %166 = vector.load %arg14[%c0_84, %c0_85] : memref<2x160xf32, #tpu.memory_space<vmem>>, vector<2x160xf32>
    tpu.vector_store %arg14[%c0_84, %c0_85], %165 {strides = array<i32>} : memref<2x160xf32, #tpu.memory_space<vmem>>, vector<2x160xf32>,
    return
  }
  func.func @transform_0(%arg0: i32) -> (i32, i32) {
    %c0_i32 = arith.constant 0 : i32
    %c0_i32_0 = arith.constant 0 : i32
    %c0_i32_1 = arith.constant 0 : i32
    return %c0_i32, %c0_i32_0 : i32, i32
  }
  func.func @transform_1(%arg0: i32) -> (i32, i32) {
    %c0_i32 = arith.constant 0 : i32
    %c0_i32_0 = arith.constant 0 : i32
    %c0_i32_1 = arith.constant 0 : i32
    return %c0_i32, %c0_i32_0 : i32, i32
  }
  func.func @transform_2(%arg0: i32) -> (i32, i32) {
    %c0_i32 = arith.constant 0 : i32
    %c0_i32_0 = arith.constant 0 : i32
    %c0_i32_1 = arith.constant 0 : i32
    return %c0_i32, %c0_i32_0 : i32, i32
  }
  func.func @transform_3(%arg0: i32) -> (i32, i32) {
    %c0_i32 = arith.constant 0 : i32
    %c0_i32_0 = arith.constant 0 : i32
    %c0_i32_1 = arith.constant 0 : i32
    return %c0_i32, %c0_i32_0 : i32, i32
  }
  func.func @transform_4(%arg0: i32) -> (i32, i32) {
    %c0_i32 = arith.constant 0 : i32
    %c0_i32_0 = arith.constant 0 : i32
    %c0_i32_1 = arith.constant 0 : i32
    return %c0_i32, %c0_i32_0 : i32, i32
  }
  func.func @transform_5(%arg0: i32) -> (i32, i32) {
    %c0_i32 = arith.constant 0 : i32
    %c0_i32_0 = arith.constant 0 : i32
    %c0_i32_1 = arith.constant 0 : i32
    return %c0_i32, %c0_i32_0 : i32, i32
  }
  func.func @transform_6(%arg0: i32) -> (i32, i32) {
    %c0_i32 = arith.constant 0 : i32
    %c0_i32_0 = arith.constant 0 : i32
    %c0_i32_1 = arith.constant 0 : i32
    return %c0_i32, %c0_i32_0 : i32, i32
  }
  func.func @transform_7(%arg0: i32) -> (i32, i32) {
    %c0_i32 = arith.constant 0 : i32
    %c0_i32_0 = arith.constant 0 : i32
    %c0_i32_1 = arith.constant 0 : i32
    return %c0_i32, %c0_i32_0 : i32, i32
  }
  func.func @transform_8(%arg0: i32) -> (i32, i32) {
    %c0_i32 = arith.constant 0 : i32
    %c0_i32_0 = arith.constant 0 : i32
    %c0_i32_1 = arith.constant 0 : i32
    return %c0_i32, %c0_i32_0 : i32, i32
  }
  func.func @transform_9(%arg0: i32) -> (i32, i32) {
    %c0_i32 = arith.constant 0 : i32
    %c0_i32_0 = arith.constant 0 : i32
    %c0_i32_1 = arith.constant 0 : i32
    return %c0_i32, %c0_i32_0 : i32, i32
  }
  func.func @transform_10(%arg0: i32) -> (i32, i32) {
    %c0_i32 = arith.constant 0 : i32
    %c0_i32_0 = arith.constant 0 : i32
    %c0_i32_1 = arith.constant 0 : i32
    return %c0_i32, %c0_i32_0 : i32, i32
  }
  func.func @transform_11(%arg0: i32) -> (i32, i32) {
    %c0_i32 = arith.constant 0 : i32
    %c0_i32_0 = arith.constant 0 : i32
    %c0_i32_1 = arith.constant 0 : i32
    return %c0_i32, %c0_i32_0 : i32, i32
  }
  func.func @transform_12(%arg0: i32) -> (i32, i32) {
    %c0_i32 = arith.constant 0 : i32
    %c0_i32_0 = arith.constant 0 : i32
    %c0_i32_1 = arith.constant 0 : i32
    return %c0_i32, %c0_i32_0 : i32, i32
  }
  func.func @transform_13(%arg0: i32) -> (i32, i32) {
    %c0_i32 = arith.constant 0 : i32
    %c0_i32_0 = arith.constant 0 : i32
    %c0_i32_1 = arith.constant 0 : i32
    return %c0_i32, %c0_i32_0 : i32, i32
  }
}

</mosaic_0001>

<llo_original>
// kernel: variational_encoder_forward.2
$region0: #{variational_encoder_forward.2}
  #allocation0 [shape = 'u32[]', space=smem, size = 0x4, offset = 0x4, fixed_abs, tag = 'smem constant byte address 0x4 - core index']
  #allocation1 [shape = 'u32[144,128]{1,0:T(1,128)}', space=vmem, size = 0x12000, scoped, tag = 'internal scratch']
  %s0 = inlined_call_operand.vmem [shape: bf16[1800,36], index: 0, kind: input, shape index: {}]
  %s1 = inlined_call_operand.vmem [shape: bf16[36,32], index: 1, kind: input, shape index: {}]
  %s2 = inlined_call_operand.vmem [shape: f32[2,32], index: 2, kind: input, shape index: {}]
  %s3 = inlined_call_operand.vmem [shape: f32[1800,32], index: 3, kind: output, shape index: {}]
  %s4 = sld [smem:[#allocation0]]
  $region22: #{variational_encoder_forward.2} parent=0
    _
  %s6 = ssub.s32 1, %s4
  %s7 = scalar_select 0, %s6, %s4
  // Predicated region
  $region2: #{variational_encoder_forward.2} parent=0 // pred_check
    _
  $region3: #{variational_encoder_forward.2} parent=0 // pred_check_branch
    %9 = sbr.rel (0) target = $region5
  $region4: #{variational_encoder_forward.2} parent=0 // pred_region
    _
  $region5: #{variational_encoder_forward.2} parent=0 // pred_fallthru
    _
  // Predicated region
  $region6: #{variational_encoder_forward.2} parent=0 // pred_check
    _
  $region7: #{variational_encoder_forward.2} parent=0 // pred_check_branch
    %11 = sbr.rel (0) target = $region9
  $region8: #{variational_encoder_forward.2} parent=0 // pred_region
    _
  $region9: #{variational_encoder_forward.2} parent=0 // pred_fallthru
    _
  // Predicated region
  $region10: #{variational_encoder_forward.2} parent=0 // pred_check
    _
  $region11: #{variational_encoder_forward.2} parent=0 // pred_check_branch
    %13 = sbr.rel (0) target = $region13
  $region12: #{variational_encoder_forward.2} parent=0 // pred_region
    _
  $region13: #{variational_encoder_forward.2} parent=0 // pred_fallthru
    _
  %v15 = vld [vmem:[%s0] sm:$0xf]
  %v16 = vld [vmem:[%s0 + $0x4] sm:$0xf]
  %v17 = vld [vmem:[%s0 + $0x8] sm:$0xf]
  %v18 = vld [vmem:[%s0 + $0xc] sm:$0xf]
  %v19 = vld [vmem:[%s0 + $0x10] sm:$0xf]
  %v20 = vld [vmem:[%s0 + $0x14] sm:$0xf]
  %v21 = vld [vmem:[%s0 + $0x18] sm:$0xf]
  %v22 = vld [vmem:[%s0 + $0x1c] sm:$0xf]
  %v23 = vld [vmem:[%s0 + $0x20] sm:$0xf]
  %v24 = vld [vmem:[%s0 + $0x24] sm:$0xf]
  %v25 = vld [vmem:[%s0 + $0x28] sm:$0xf]
  %v26 = vld [vmem:[%s0 + $0x2c] sm:$0xf]
  %v27 = vld [vmem:[%s0 + $0x30] sm:$0xf]
  %v28 = vld [vmem:[%s0 + $0x34] sm:$0xf]
  %v29 = vld [vmem:[%s0 + $0x38] sm:$0xf]
  %v30 = vld [vmem:[%s0 + $0x3c] sm:$0xf]
  %v31 = vld [vmem:[%s0 + $0x40] sm:$0xf]
  %v32 = vld [vmem:[%s0 + $0x44] sm:$0xf]
  %v33 = vld [vmem:[%s0 + $0x48] sm:$0xf]
  %v34 = vld [vmem:[%s0 + $0x4c] sm:$0xf]
  %v35 = vld [vmem:[%s0 + $0x50] sm:$0xf]
  %v36 = vld [vmem:[%s0 + $0x54] sm:$0xf]
  %v37 = vld [vmem:[%s0 + $0x58] sm:$0xf]
  %v38 = vld [vmem:[%s0 + $0x5c] sm:$0xf]
  %v39 = vld [vmem:[%s0 + $0x60] sm:$0xf]
  %v40 = vld [vmem:[%s0 + $0x64] sm:$0xf]
  %v41 = vld [vmem:[%s0 + $0x68] sm:$0xf]
  %v42 = vld [vmem:[%s0 + $0x6c] sm:$0xf]
  %v43 = vld [vmem:[%s0 + $0x70] sm:$0xf]
  %v44 = vld [vmem:[%s0 + $0x74] sm:$0xf]
  %v45 = vld [vmem:[%s0 + $0x78] sm:$0xf]
  %v46 = vld [vmem:[%s0 + $0x7c] sm:$0xf]
  %v47 = vld [vmem:[%s0 + $0x80] sm:$0xf]
  %v48 = vld [vmem:[%s0 + $0x84] sm:$0xf]
  %v49 = vld [vmem:[%s0 + $0x88] sm:$0xf]
  %v50 = vld [vmem:[%s0 + $0x8c] sm:$0xf]
  %v51 = vld [vmem:[%s0 + $0x90] sm:$0xf]
  %v52 = vld [vmem:[%s0 + $0x94] sm:$0xf]
  %v53 = vld [vmem:[%s0 + $0x98] sm:$0xf]
  %v54 = vld [vmem:[%s0 + $0x9c] sm:$0xf]
  %v55 = vld [vmem:[%s0 + $0xa0] sm:$0xf]
  %v56 = vld [vmem:[%s0 + $0xa4] sm:$0xf]
  %v57 = vld [vmem:[%s0 + $0xa8] sm:$0xf]
  %v58 = vld [vmem:[%s0 + $0xac] sm:$0xf]
  %v59 = vld [vmem:[%s0 + $0xb0] sm:$0xf]
  %v60 = vld [vmem:[%s0 + $0xb4] sm:$0xf]
  %v61 = vld [vmem:[%s0 + $0xb8] sm:$0xf]
  %v62 = vld [vmem:[%s0 + $0xbc] sm:$0xf]
  %v63 = vld [vmem:[%s0 + $0xc0] sm:$0xf]
  %v64 = vld [vmem:[%s0 + $0xc4] sm:$0xf]
  %v65 = vld [vmem:[%s0 + $0xc8] sm:$0xf]
  %v66 = vld [vmem:[%s0 + $0xcc] sm:$0xf]
  %v67 = vld [vmem:[%s0 + $0xd0] sm:$0xf]
  %v68 = vld [vmem:[%s0 + $0xd4] sm:$0xf]
  %v69 = vld [vmem:[%s0 + $0xd8] sm:$0xf]
  %v70 = vld [vmem:[%s0 + $0xdc] sm:$0xf]
  %v71 = vld [vmem:[%s0 + $0xe0] sm:$0xf]
  %v72 = vld [vmem:[%s0 + $0xe4] sm:$0xf]
  %v73 = vld [vmem:[%s0 + $0xe8] sm:$0xf]
  %v74 = vld [vmem:[%s0 + $0xec] sm:$0xf]
  %v75 = vld [vmem:[%s0 + $0xf0] sm:$0xf]
  %v76 = vld [vmem:[%s0 + $0xf4] sm:$0xf]
  %v77 = vld [vmem:[%s0 + $0xf8] sm:$0xf]
  %v78 = vld [vmem:[%s0 + $0xfc] sm:$0xf]
  %v79 = vld [vmem:[%s0 + $0x100] sm:$0xf]
  %v80 = vld [vmem:[%s0 + $0x104] sm:$0xf]
  %v81 = vld [vmem:[%s0 + $0x108] sm:$0xf]
  %v82 = vld [vmem:[%s0 + $0x10c] sm:$0xf]
  %v83 = vld [vmem:[%s0 + $0x110] sm:$0xf]
  %v84 = vld [vmem:[%s0 + $0x114] sm:$0xf]
  %v85 = vld [vmem:[%s0 + $0x118] sm:$0xf]
  %v86 = vld [vmem:[%s0 + $0x11c] sm:$0xf]
  %v87 = vld [vmem:[%s0 + $0x120] sm:$0xf]
  %v88 = vld [vmem:[%s0 + $0x124] sm:$0xf]
  %v89 = vld [vmem:[%s0 + $0x128] sm:$0xf]
  %v90 = vld [vmem:[%s0 + $0x12c] sm:$0xf]
  %v91 = vld [vmem:[%s0 + $0x130] sm:$0xf]
  %v92 = vld [vmem:[%s0 + $0x134] sm:$0xf]
  %v93 = vld [vmem:[%s0 + $0x138] sm:$0xf]
  %v94 = vld [vmem:[%s0 + $0x13c] sm:$0xf]
  %v95 = vld [vmem:[%s0 + $0x140] sm:$0xf]
  %v96 = vld [vmem:[%s0 + $0x144] sm:$0xf]
  %v97 = vld [vmem:[%s0 + $0x148] sm:$0xf]
  %v98 = vld [vmem:[%s0 + $0x14c] sm:$0xf]
  %v99 = vld [vmem:[%s0 + $0x150] sm:$0xf]
  %v100 = vld [vmem:[%s0 + $0x154] sm:$0xf]
  %v101 = vld [vmem:[%s0 + $0x158] sm:$0xf]
  %v102 = vld [vmem:[%s0 + $0x15c] sm:$0xf]
  %v103 = vld [vmem:[%s0 + $0x160] sm:$0xf]
  %v104 = vld [vmem:[%s0 + $0x164] sm:$0xf]
  %v105 = vld [vmem:[%s0 + $0x168] sm:$0xf]
  %v106 = vld [vmem:[%s0 + $0x16c] sm:$0xf]
  %v107 = vld [vmem:[%s0 + $0x170] sm:$0xf]
  %v108 = vld [vmem:[%s0 + $0x174] sm:$0xf]
  %v109 = vld [vmem:[%s0 + $0x178] sm:$0xf]
  %v110 = vld [vmem:[%s0 + $0x17c] sm:$0xf]
  %v111 = vld [vmem:[%s0 + $0x180] sm:$0xf]
  %v112 = vld [vmem:[%s0 + $0x184] sm:$0xf]
  %v113 = vld [vmem:[%s0 + $0x188] sm:$0xf]
  %v114 = vld [vmem:[%s0 + $0x18c] sm:$0xf]
  %v115 = vld [vmem:[%s0 + $0x190] sm:$0xf]
  %v116 = vld [vmem:[%s0 + $0x194] sm:$0xf]
  %v117 = vld [vmem:[%s0 + $0x198] sm:$0xf]
  %v118 = vld [vmem:[%s0 + $0x19c] sm:$0xf]
  %v119 = vld [vmem:[%s0 + $0x1a0] sm:$0xf]
  %v120 = vld [vmem:[%s0 + $0x1a4] sm:$0xf]
  %v121 = vld [vmem:[%s0 + $0x1a8] sm:$0xf]
  %v122 = vld [vmem:[%s0 + $0x1ac] sm:$0xf]
  %v123 = vld [vmem:[%s0 + $0x1b0] sm:$0xf]
  %v124 = vld [vmem:[%s0 + $0x1b4] sm:$0xf]
  %v125 = vld [vmem:[%s0 + $0x1b8] sm:$0xf]
  %v126 = vld [vmem:[%s0 + $0x1bc] sm:$0xf]
  %v127 = vld [vmem:[%s0 + $0x1c0] sm:$0xf]
  %v128 = vld [vmem:[%s0 + $0x1c4] sm:$0xf]
  %v129 = vld [vmem:[%s0 + $0x1c8] sm:$0xf]
  %v130 = vld [vmem:[%s0 + $0x1cc] sm:$0xf]
  %v131 = vld [vmem:[%s0 + $0x1d0] sm:$0xf]
  %v132 = vld [vmem:[%s0 + $0x1d4] sm:$0xf]
  %v133 = vld [vmem:[%s0 + $0x1d8] sm:$0xf]
  %v134 = vld [vmem:[%s0 + $0x1dc] sm:$0xf]
  %v135 = vld [vmem:[%s0 + $0x1e0] sm:$0xf]
  %v136 = vld [vmem:[%s0 + $0x1e4] sm:$0xf]
  %v137 = vld [vmem:[%s0 + $0x1e8] sm:$0xf]
  %v138 = vld [vmem:[%s0 + $0x1ec] sm:$0xf]
  %v139 = vld [vmem:[%s0 + $0x1f0] sm:$0xf]
  %v140 = vld [vmem:[%s0 + $0x1f4] sm:$0xf]
  %v141 = vld [vmem:[%s0 + $0x1f8] sm:$0xf]
  %v142 = vld [vmem:[%s0 + $0x1fc] sm:$0xf]
  %v143 = vld [vmem:[%s0 + $0x200] sm:$0xf]
  %v144 = vld [vmem:[%s0 + $0x204] sm:$0xf]
  %v145 = vld [vmem:[%s0 + $0x208] sm:$0xf]
  %v146 = vld [vmem:[%s0 + $0x20c] sm:$0xf]
  %v147 = vld [vmem:[%s0 + $0x210] sm:$0xf]
  %v148 = vld [vmem:[%s0 + $0x214] sm:$0xf]
  %v149 = vld [vmem:[%s0 + $0x218] sm:$0xf]
  %v150 = vld [vmem:[%s0 + $0x21c] sm:$0xf]
  %v151 = vld [vmem:[%s0 + $0x220] sm:$0xf]
  %v152 = vld [vmem:[%s0 + $0x224] sm:$0xf]
  %v153 = vld [vmem:[%s0 + $0x228] sm:$0xf]
  %v154 = vld [vmem:[%s0 + $0x22c] sm:$0xf]
  %v155 = vld [vmem:[%s0 + $0x230] sm:$0xf]
  %v156 = vld [vmem:[%s0 + $0x234] sm:$0xf]
  %v157 = vld [vmem:[%s0 + $0x238] sm:$0xf]
  %v158 = vld [vmem:[%s0 + $0x23c] sm:$0xf]
  %v159 = vld [vmem:[%s0 + $0x240] sm:$0xf]
  %v160 = vld [vmem:[%s0 + $0x244] sm:$0xf]
  %v161 = vld [vmem:[%s0 + $0x248] sm:$0xf]
  %v162 = vld [vmem:[%s0 + $0x24c] sm:$0xf]
  %v163 = vld [vmem:[%s0 + $0x250] sm:$0xf]
  %v164 = vld [vmem:[%s0 + $0x254] sm:$0xf]
  %v165 = vld [vmem:[%s0 + $0x258] sm:$0xf]
  %v166 = vld [vmem:[%s0 + $0x25c] sm:$0xf]
  %v167 = vld [vmem:[%s0 + $0x260] sm:$0xf]
  %v168 = vld [vmem:[%s0 + $0x264] sm:$0xf]
  %v169 = vld [vmem:[%s0 + $0x268] sm:$0xf]
  %v170 = vld [vmem:[%s0 + $0x26c] sm:$0xf]
  %v171 = vld [vmem:[%s0 + $0x270] sm:$0xf]
  %v172 = vld [vmem:[%s0 + $0x274] sm:$0xf]
  %v173 = vld [vmem:[%s0 + $0x278] sm:$0xf]
  %v174 = vld [vmem:[%s0 + $0x27c] sm:$0xf]
  %v175 = vld [vmem:[%s0 + $0x280] sm:$0xf]
  %v176 = vld [vmem:[%s0 + $0x284] sm:$0xf]
  %v177 = vld [vmem:[%s0 + $0x288] sm:$0xf]
  %v178 = vld [vmem:[%s0 + $0x28c] sm:$0xf]
  %v179 = vld [vmem:[%s0 + $0x290] sm:$0xf]
  %v180 = vld [vmem:[%s0 + $0x294] sm:$0xf]
  %v181 = vld [vmem:[%s0 + $0x298] sm:$0xf]
  %v182 = vld [vmem:[%s0 + $0x29c] sm:$0xf]
  %v183 = vld [vmem:[%s0 + $0x2a0] sm:$0xf]
  %v184 = vld [vmem:[%s0 + $0x2a4] sm:$0xf]
  %v185 = vld [vmem:[%s0 + $0x2a8] sm:$0xf]
  %v186 = vld [vmem:[%s0 + $0x2ac] sm:$0xf]
  %v187 = vld [vmem:[%s0 + $0x2b0] sm:$0xf]
  %v188 = vld [vmem:[%s0 + $0x2b4] sm:$0xf]
  %v189 = vld [vmem:[%s0 + $0x2b8] sm:$0xf]
  %v190 = vld [vmem:[%s0 + $0x2bc] sm:$0xf]
  %v191 = vld [vmem:[%s0 + $0x2c0] sm:$0xf]
  %v192 = vld [vmem:[%s0 + $0x2c4] sm:$0xf]
  %v193 = vld [vmem:[%s0 + $0x2c8] sm:$0xf]
  %v194 = vld [vmem:[%s0 + $0x2cc] sm:$0xf]
  %v195 = vld [vmem:[%s0 + $0x2d0] sm:$0xf]
  %v196 = vld [vmem:[%s0 + $0x2d4] sm:$0xf]
  %v197 = vld [vmem:[%s0 + $0x2d8] sm:$0xf]
  %v198 = vld [vmem:[%s0 + $0x2dc] sm:$0xf]
  %v199 = vld [vmem:[%s0 + $0x2e0] sm:$0xf]
  %v200 = vld [vmem:[%s0 + $0x2e4] sm:$0xf]
  %v201 = vld [vmem:[%s0 + $0x2e8] sm:$0xf]
  %v202 = vld [vmem:[%s0 + $0x2ec] sm:$0xf]
  %v203 = vld [vmem:[%s0 + $0x2f0] sm:$0xf]
  %v204 = vld [vmem:[%s0 + $0x2f4] sm:$0xf]
  %v205 = vld [vmem:[%s0 + $0x2f8] sm:$0xf]
  %v206 = vld [vmem:[%s0 + $0x2fc] sm:$0xf]
  %v207 = vld [vmem:[%s0 + $0x300] sm:$0xf]
  %v208 = vld [vmem:[%s0 + $0x304] sm:$0xf]
  %v209 = vld [vmem:[%s0 + $0x308] sm:$0xf]
  %v210 = vld [vmem:[%s0 + $0x30c] sm:$0xf]
  %v211 = vld [vmem:[%s0 + $0x310] sm:$0xf]
  %v212 = vld [vmem:[%s0 + $0x314] sm:$0xf]
  %v213 = vld [vmem:[%s0 + $0x318] sm:$0xf]
  %v214 = vld [vmem:[%s0 + $0x31c] sm:$0xf]
  %v215 = vld [vmem:[%s0 + $0x320] sm:$0xf]
  %v216 = vld [vmem:[%s0 + $0x324] sm:$0xf]
  %v217 = vld [vmem:[%s0 + $0x328] sm:$0xf]
  %v218 = vld [vmem:[%s0 + $0x32c] sm:$0xf]
  %v219 = vld [vmem:[%s0 + $0x330] sm:$0xf]
  %v220 = vld [vmem:[%s0 + $0x334] sm:$0xf]
  %v221 = vld [vmem:[%s0 + $0x338] sm:$0xf]
  %v222 = vld [vmem:[%s0 + $0x33c] sm:$0xf]
  %v223 = vld [vmem:[%s0 + $0x340] sm:$0xf]
  %v224 = vld [vmem:[%s0 + $0x344] sm:$0xf]
  %v225 = vld [vmem:[%s0 + $0x348] sm:$0xf]
  %v226 = vld [vmem:[%s0 + $0x34c] sm:$0xf]
  %v227 = vld [vmem:[%s0 + $0x350] sm:$0xf]
  %v228 = vld [vmem:[%s0 + $0x354] sm:$0xf]
  %v229 = vld [vmem:[%s0 + $0x358] sm:$0xf]
  %v230 = vld [vmem:[%s0 + $0x35c] sm:$0xf]
  %v231 = vld [vmem:[%s0 + $0x360] sm:$0xf]
  %v232 = vld [vmem:[%s0 + $0x364] sm:$0xf]
  %v233 = vld [vmem:[%s0 + $0x368] sm:$0xf]
  %v234 = vld [vmem:[%s0 + $0x36c] sm:$0xf]
  %v235 = vld [vmem:[%s0 + $0x370] sm:$0xf]
  %v236 = vld [vmem:[%s0 + $0x374] sm:$0xf]
  %v237 = vld [vmem:[%s0 + $0x378] sm:$0xf]
  %v238 = vld [vmem:[%s0 + $0x37c] sm:$0xf]
  %v239 = vld [vmem:[%s0 + $0x380] sm:$0xf]
  %v240 = vld [vmem:[%s1] sm:$0xf]
  %v241 = vld [vmem:[%s1 + $0x4] sm:$0xf]
  %v242 = vld [vmem:[%s1 + $0x8] sm:$0xf]
  %v243 = vld [vmem:[%s1 + $0xc] sm:$0xf]
  %v244 = vld [vmem:[%s1 + $0x10] sm:$0x3]
  %v470 = vunpack.c.l.b16 %v15
  %v471 = vunpack.c.l.b16 %v16
  %v472 = vunpack.c.l.b16 %v17
  %v473 = vunpack.c.l.b16 %v18
  %v474 = vunpack.c.l.b16 %v19
  %v475 = vunpack.c.l.b16 %v20
  %v476 = vunpack.c.l.b16 %v21
  %v477 = vunpack.c.l.b16 %v22
  %v478 = vunpack.c.l.b16 %v23
  %v479 = vunpack.c.l.b16 %v24
  %v480 = vunpack.c.l.b16 %v25
  %v481 = vunpack.c.l.b16 %v26
  %v482 = vunpack.c.l.b16 %v27
  %v483 = vunpack.c.l.b16 %v28
  %v484 = vunpack.c.l.b16 %v29
  %v485 = vunpack.c.l.b16 %v30
  %v486 = vunpack.c.l.b16 %v31
  %v487 = vunpack.c.l.b16 %v32
  %v488 = vunpack.c.l.b16 %v33
  %v489 = vunpack.c.l.b16 %v34
  %v490 = vunpack.c.l.b16 %v35
  %v491 = vunpack.c.l.b16 %v36
  %v492 = vunpack.c.l.b16 %v37
  %v493 = vunpack.c.l.b16 %v38
  %v494 = vunpack.c.l.b16 %v39
  %v495 = vunpack.c.l.b16 %v40
  %v496 = vunpack.c.l.b16 %v41
  %v497 = vunpack.c.l.b16 %v42
  %v498 = vunpack.c.l.b16 %v43
  %v499 = vunpack.c.l.b16 %v44
  %v500 = vunpack.c.l.b16 %v45
  %v501 = vunpack.c.l.b16 %v46
  %v502 = vunpack.c.l.b16 %v47
  %v503 = vunpack.c.l.b16 %v48
  %v504 = vunpack.c.l.b16 %v49
  %v505 = vunpack.c.l.b16 %v50
  %v506 = vunpack.c.l.b16 %v51
  %v507 = vunpack.c.l.b16 %v52
  %v508 = vunpack.c.l.b16 %v53
  %v509 = vunpack.c.l.b16 %v54
  %v510 = vunpack.c.l.b16 %v55
  %v511 = vunpack.c.l.b16 %v56
  %v512 = vunpack.c.l.b16 %v57
  %v513 = vunpack.c.l.b16 %v58
  %v514 = vunpack.c.l.b16 %v59
  %v515 = vunpack.c.l.b16 %v60
  %v516 = vunpack.c.l.b16 %v61
  %v517 = vunpack.c.l.b16 %v62
  %v518 = vunpack.c.l.b16 %v63
  %v519 = vunpack.c.l.b16 %v64
  %v520 = vunpack.c.l.b16 %v65
  %v521 = vunpack.c.l.b16 %v66
  %v522 = vunpack.c.l.b16 %v67
  %v523 = vunpack.c.l.b16 %v68
  %v524 = vunpack.c.l.b16 %v69
  %v525 = vunpack.c.l.b16 %v70
  %v526 = vunpack.c.l.b16 %v71
  %v527 = vunpack.c.l.b16 %v72
  %v528 = vunpack.c.l.b16 %v73
  %v529 = vunpack.c.l.b16 %v74
  %v530 = vunpack.c.l.b16 %v75
  %v531 = vunpack.c.l.b16 %v76
  %v532 = vunpack.c.l.b16 %v77
  %v533 = vunpack.c.l.b16 %v78
  %v534 = vunpack.c.l.b16 %v79
  %v535 = vunpack.c.l.b16 %v80
  %v536 = vunpack.c.l.b16 %v81
  %v537 = vunpack.c.l.b16 %v82
  %v538 = vunpack.c.l.b16 %v83
  %v539 = vunpack.c.l.b16 %v84
  %v540 = vunpack.c.l.b16 %v85
  %v541 = vunpack.c.l.b16 %v86
  %v542 = vunpack.c.l.b16 %v87
  %v543 = vunpack.c.l.b16 %v88
  %v544 = vunpack.c.l.b16 %v89
  %v545 = vunpack.c.l.b16 %v90
  %v546 = vunpack.c.l.b16 %v91
  %v547 = vunpack.c.l.b16 %v92
  %v548 = vunpack.c.l.b16 %v93
  %v549 = vunpack.c.l.b16 %v94
  %v550 = vunpack.c.l.b16 %v95
  %v551 = vunpack.c.l.b16 %v96
  %v552 = vunpack.c.l.b16 %v97
  %v553 = vunpack.c.l.b16 %v98
  %v554 = vunpack.c.l.b16 %v99
  %v555 = vunpack.c.l.b16 %v100
  %v556 = vunpack.c.l.b16 %v101
  %v557 = vunpack.c.l.b16 %v102
  %v558 = vunpack.c.l.b16 %v103
  %v559 = vunpack.c.l.b16 %v104
  %v560 = vunpack.c.l.b16 %v105
  %v561 = vunpack.c.l.b16 %v106
  %v562 = vunpack.c.l.b16 %v107
  %v563 = vunpack.c.l.b16 %v108
  %v564 = vunpack.c.l.b16 %v109
  %v565 = vunpack.c.l.b16 %v110
  %v566 = vunpack.c.l.b16 %v111
  %v567 = vunpack.c.l.b16 %v112
  %v568 = vunpack.c.l.b16 %v113
  %v569 = vunpack.c.l.b16 %v114
  %v570 = vunpack.c.l.b16 %v115
  %v571 = vunpack.c.l.b16 %v116
  %v572 = vunpack.c.l.b16 %v117
  %v573 = vunpack.c.l.b16 %v118
  %v574 = vunpack.c.l.b16 %v119
  %v575 = vunpack.c.l.b16 %v120
  %v576 = vunpack.c.l.b16 %v121
  %v577 = vunpack.c.l.b16 %v122
  %v578 = vunpack.c.l.b16 %v123
  %v579 = vunpack.c.l.b16 %v124
  %v580 = vunpack.c.l.b16 %v125
  %v581 = vunpack.c.l.b16 %v126
  %v582 = vunpack.c.l.b16 %v127
  %v583 = vunpack.c.l.b16 %v128
  %v584 = vunpack.c.l.b16 %v129
  %v585 = vunpack.c.l.b16 %v130
  %v586 = vunpack.c.l.b16 %v131
  %v587 = vunpack.c.l.b16 %v132
  %v588 = vunpack.c.l.b16 %v133
  %v589 = vunpack.c.l.b16 %v134
  %v590 = vunpack.c.l.b16 %v135
  %v591 = vunpack.c.l.b16 %v136
  %v592 = vunpack.c.l.b16 %v137
  %v593 = vunpack.c.l.b16 %v138
  %v594 = vunpack.c.l.b16 %v139
  %v595 = vunpack.c.l.b16 %v140
  %v596 = vunpack.c.l.b16 %v141
  %v597 = vunpack.c.l.b16 %v142
  %v598 = vunpack.c.l.b16 %v143
  %v599 = vunpack.c.l.b16 %v144
  %v600 = vunpack.c.l.b16 %v145
  %v601 = vunpack.c.l.b16 %v146
  %v602 = vunpack.c.l.b16 %v147
  %v603 = vunpack.c.l.b16 %v148
  %v604 = vunpack.c.l.b16 %v149
  %v605 = vunpack.c.l.b16 %v150
  %v606 = vunpack.c.l.b16 %v151
  %v607 = vunpack.c.l.b16 %v152
  %v608 = vunpack.c.l.b16 %v153
  %v609 = vunpack.c.l.b16 %v154
  %v610 = vunpack.c.l.b16 %v155
  %v611 = vunpack.c.l.b16 %v156
  %v612 = vunpack.c.l.b16 %v157
  %v613 = vunpack.c.l.b16 %v158
  %v614 = vunpack.c.l.b16 %v159
  %v615 = vunpack.c.l.b16 %v160
  %v616 = vunpack.c.l.b16 %v161
  %v617 = vunpack.c.l.b16 %v162
  %v618 = vunpack.c.l.b16 %v163
  %v619 = vunpack.c.l.b16 %v164
  %v620 = vunpack.c.l.b16 %v165
  %v621 = vunpack.c.l.b16 %v166
  %v622 = vunpack.c.l.b16 %v167
  %v623 = vunpack.c.l.b16 %v168
  %v624 = vunpack.c.l.b16 %v169
  %v625 = vunpack.c.l.b16 %v170
  %v626 = vunpack.c.l.b16 %v171
  %v627 = vunpack.c.l.b16 %v172
  %v628 = vunpack.c.l.b16 %v173
  %v629 = vunpack.c.l.b16 %v174
  %v630 = vunpack.c.l.b16 %v175
  %v631 = vunpack.c.l.b16 %v176
  %v632 = vunpack.c.l.b16 %v177
  %v633 = vunpack.c.l.b16 %v178
  %v634 = vunpack.c.l.b16 %v179
  %v635 = vunpack.c.l.b16 %v180
  %v636 = vunpack.c.l.b16 %v181
  %v637 = vunpack.c.l.b16 %v182
  %v638 = vunpack.c.l.b16 %v183
  %v639 = vunpack.c.l.b16 %v184
  %v640 = vunpack.c.l.b16 %v185
  %v641 = vunpack.c.l.b16 %v186
  %v642 = vunpack.c.l.b16 %v187
  %v643 = vunpack.c.l.b16 %v188
  %v644 = vunpack.c.l.b16 %v189
  %v645 = vunpack.c.l.b16 %v190
  %v646 = vunpack.c.l.b16 %v191
  %v647 = vunpack.c.l.b16 %v192
  %v648 = vunpack.c.l.b16 %v193
  %v649 = vunpack.c.l.b16 %v194
  %v650 = vunpack.c.l.b16 %v195
  %v651 = vunpack.c.l.b16 %v196
  %v652 = vunpack.c.l.b16 %v197
  %v653 = vunpack.c.l.b16 %v198
  %v654 = vunpack.c.l.b16 %v199
  %v655 = vunpack.c.l.b16 %v200
  %v656 = vunpack.c.l.b16 %v201
  %v657 = vunpack.c.l.b16 %v202
  %v658 = vunpack.c.l.b16 %v203
  %v659 = vunpack.c.l.b16 %v204
  %v660 = vunpack.c.l.b16 %v205
  %v661 = vunpack.c.l.b16 %v206
  %v662 = vunpack.c.l.b16 %v207
  %v663 = vunpack.c.l.b16 %v208
  %v664 = vunpack.c.l.b16 %v209
  %v665 = vunpack.c.l.b16 %v210
  %v666 = vunpack.c.l.b16 %v211
  %v667 = vunpack.c.l.b16 %v212
  %v668 = vunpack.c.l.b16 %v213
  %v669 = vunpack.c.l.b16 %v214
  %v670 = vunpack.c.l.b16 %v215
  %v671 = vunpack.c.l.b16 %v216
  %v672 = vunpack.c.l.b16 %v217
  %v673 = vunpack.c.l.b16 %v218
  %v674 = vunpack.c.l.b16 %v219
  %v675 = vunpack.c.l.b16 %v220
  %v676 = vunpack.c.l.b16 %v221
  %v677 = vunpack.c.l.b16 %v222
  %v678 = vunpack.c.l.b16 %v223
  %v679 = vunpack.c.l.b16 %v224
  %v680 = vunpack.c.l.b16 %v225
  %v681 = vunpack.c.l.b16 %v226
  %v682 = vunpack.c.l.b16 %v227
  %v683 = vunpack.c.l.b16 %v228
  %v684 = vunpack.c.l.b16 %v229
  %v685 = vunpack.c.l.b16 %v230
  %v686 = vunpack.c.l.b16 %v231
  %v687 = vunpack.c.l.b16 %v232
  %v688 = vunpack.c.l.b16 %v233
  %v689 = vunpack.c.l.b16 %v234
  %v690 = vunpack.c.l.b16 %v235
  %v691 = vunpack.c.l.b16 %v236
  %v692 = vunpack.c.l.b16 %v237
  %v693 = vunpack.c.l.b16 %v238
  %v694 = vunpack.c.l.b16 %v239
  %v695 = vpack.c.b16 %v471, %v470
  %v696 = vpack.c.b16 %v473, %v472
  %v697 = vpack.c.b16 %v475, %v474
  %v698 = vpack.c.b16 %v477, %v476
  %v699 = vpack.c.b16 %v479, %v478
  %v700 = vpack.c.b16 %v481, %v480
  %v701 = vpack.c.b16 %v483, %v482
  %v702 = vpack.c.b16 %v485, %v484
  %v703 = vpack.c.b16 %v487, %v486
  %v704 = vpack.c.b16 %v489, %v488
  %v705 = vpack.c.b16 %v491, %v490
  %v706 = vpack.c.b16 %v493, %v492
  %v707 = vpack.c.b16 %v495, %v494
  %v708 = vpack.c.b16 %v497, %v496
  %v709 = vpack.c.b16 %v499, %v498
  %v710 = vpack.c.b16 %v501, %v500
  %v711 = vpack.c.b16 %v503, %v502
  %v712 = vpack.c.b16 %v505, %v504
  %v713 = vpack.c.b16 %v507, %v506
  %v714 = vpack.c.b16 %v509, %v508
  %v715 = vpack.c.b16 %v511, %v510
  %v716 = vpack.c.b16 %v513, %v512
  %v717 = vpack.c.b16 %v515, %v514
  %v718 = vpack.c.b16 %v517, %v516
  %v719 = vpack.c.b16 %v519, %v518
  %v720 = vpack.c.b16 %v521, %v520
  %v721 = vpack.c.b16 %v523, %v522
  %v722 = vpack.c.b16 %v525, %v524
  %v723 = vpack.c.b16 %v527, %v526
  %v724 = vpack.c.b16 %v529, %v528
  %v725 = vpack.c.b16 %v531, %v530
  %v726 = vpack.c.b16 %v533, %v532
  %v727 = vpack.c.b16 %v535, %v534
  %v728 = vpack.c.b16 %v537, %v536
  %v729 = vpack.c.b16 %v539, %v538
  %v730 = vpack.c.b16 %v541, %v540
  %v731 = vpack.c.b16 %v543, %v542
  %v732 = vpack.c.b16 %v545, %v544
  %v733 = vpack.c.b16 %v547, %v546
  %v734 = vpack.c.b16 %v549, %v548
  %v735 = vpack.c.b16 %v551, %v550
  %v736 = vpack.c.b16 %v553, %v552
  %v737 = vpack.c.b16 %v555, %v554
  %v738 = vpack.c.b16 %v557, %v556
  %v739 = vpack.c.b16 %v559, %v558
  %v740 = vpack.c.b16 %v561, %v560
  %v741 = vpack.c.b16 %v563, %v562
  %v742 = vpack.c.b16 %v565, %v564
  %v743 = vpack.c.b16 %v567, %v566
  %v744 = vpack.c.b16 %v569, %v568
  %v745 = vpack.c.b16 %v571, %v570
  %v746 = vpack.c.b16 %v573, %v572
  %v747 = vpack.c.b16 %v575, %v574
  %v748 = vpack.c.b16 %v577, %v576
  %v749 = vpack.c.b16 %v579, %v578
  %v750 = vpack.c.b16 %v581, %v580
  %v751 = vpack.c.b16 %v583, %v582
  %v752 = vpack.c.b16 %v585, %v584
  %v753 = vpack.c.b16 %v587, %v586
  %v754 = vpack.c.b16 %v589, %v588
  %v755 = vpack.c.b16 %v591, %v590
  %v756 = vpack.c.b16 %v593, %v592
  %v757 = vpack.c.b16 %v595, %v594
  %v758 = vpack.c.b16 %v597, %v596
  %v759 = vpack.c.b16 %v599, %v598
  %v760 = vpack.c.b16 %v601, %v600
  %v761 = vpack.c.b16 %v603, %v602
  %v762 = vpack.c.b16 %v605, %v604
  %v763 = vpack.c.b16 %v607, %v606
  %v764 = vpack.c.b16 %v609, %v608
  %v765 = vpack.c.b16 %v611, %v610
  %v766 = vpack.c.b16 %v613, %v612
  %v767 = vpack.c.b16 %v615, %v614
  %v768 = vpack.c.b16 %v617, %v616
  %v769 = vpack.c.b16 %v619, %v618
  %v770 = vpack.c.b16 %v621, %v620
  %v771 = vpack.c.b16 %v623, %v622
  %v772 = vpack.c.b16 %v625, %v624
  %v773 = vpack.c.b16 %v627, %v626
  %v774 = vpack.c.b16 %v629, %v628
  %v775 = vpack.c.b16 %v631, %v630
  %v776 = vpack.c.b16 %v633, %v632
  %v777 = vpack.c.b16 %v635, %v634
  %v778 = vpack.c.b16 %v637, %v636
  %v779 = vpack.c.b16 %v639, %v638
  %v780 = vpack.c.b16 %v641, %v640
  %v781 = vpack.c.b16 %v643, %v642
  %v782 = vpack.c.b16 %v645, %v644
  %v783 = vpack.c.b16 %v647, %v646
  %v784 = vpack.c.b16 %v649, %v648
  %v785 = vpack.c.b16 %v651, %v650
  %v786 = vpack.c.b16 %v653, %v652
  %v787 = vpack.c.b16 %v655, %v654
  %v788 = vpack.c.b16 %v657, %v656
  %v789 = vpack.c.b16 %v659, %v658
  %v790 = vpack.c.b16 %v661, %v660
  %v791 = vpack.c.b16 %v663, %v662
  %v792 = vpack.c.b16 %v665, %v664
  %v793 = vpack.c.b16 %v667, %v666
  %v794 = vpack.c.b16 %v669, %v668
  %v795 = vpack.c.b16 %v671, %v670
  %v796 = vpack.c.b16 %v673, %v672
  %v797 = vpack.c.b16 %v675, %v674
  %v798 = vpack.c.b16 %v677, %v676
  %v799 = vpack.c.b16 %v679, %v678
  %v800 = vpack.c.b16 %v681, %v680
  %v801 = vpack.c.b16 %v683, %v682
  %v802 = vpack.c.b16 %v685, %v684
  %v803 = vpack.c.b16 %v687, %v686
  %v804 = vpack.c.b16 %v689, %v688
  %v805 = vpack.c.b16 %v691, %v690
  %v806 = vpack.c.b16 %v693, %v692
  %v807 = vpack.c.b16 %v694, %v694
  %v813 = vunpack.c.l.b16 %v240
  %v814 = vunpack.c.l.b16 %v241
  %v815 = vunpack.c.l.b16 %v242
  %v816 = vunpack.c.l.b16 %v243
  %v817 = vunpack.c.l.b16 %v244
  %v818 = vpack.c.b16 %v814, %v813
  %v819 = vpack.c.b16 %v816, %v815
  %v820 = vpack.c.b16 %v817, %v817
  %vm823 = vcmask 293888
  %v825 = vsel %vm823, %v695, 0
  %v828 = vsel %vm823, %v696, 0
  %v831 = vsel %vm823, %v697, 0
  %v834 = vsel %vm823, %v698, 0
  %v837 = vsel %vm823, %v699, 0
  %v840 = vsel %vm823, %v700, 0
  %v843 = vsel %vm823, %v701, 0
  %v846 = vsel %vm823, %v702, 0
  %v849 = vsel %vm823, %v703, 0
  %v852 = vsel %vm823, %v704, 0
  %v855 = vsel %vm823, %v705, 0
  %v858 = vsel %vm823, %v706, 0
  %v861 = vsel %vm823, %v707, 0
  %v864 = vsel %vm823, %v708, 0
  %v867 = vsel %vm823, %v709, 0
  %v870 = vsel %vm823, %v710, 0
  %v873 = vsel %vm823, %v711, 0
  %v876 = vsel %vm823, %v712, 0
  %v879 = vsel %vm823, %v713, 0
  %v882 = vsel %vm823, %v714, 0
  %v885 = vsel %vm823, %v715, 0
  %v888 = vsel %vm823, %v716, 0
  %v891 = vsel %vm823, %v717, 0
  %v894 = vsel %vm823, %v718, 0
  %v897 = vsel %vm823, %v719, 0
  %v900 = vsel %vm823, %v720, 0
  %v903 = vsel %vm823, %v721, 0
  %v906 = vsel %vm823, %v722, 0
  %v909 = vsel %vm823, %v723, 0
  %v912 = vsel %vm823, %v724, 0
  %v915 = vsel %vm823, %v725, 0
  %v918 = vsel %vm823, %v726, 0
  %v921 = vsel %vm823, %v727, 0
  %v924 = vsel %vm823, %v728, 0
  %v927 = vsel %vm823, %v729, 0
  %v930 = vsel %vm823, %v730, 0
  %v933 = vsel %vm823, %v731, 0
  %v936 = vsel %vm823, %v732, 0
  %v939 = vsel %vm823, %v733, 0
  %v942 = vsel %vm823, %v734, 0
  %v945 = vsel %vm823, %v735, 0
  %v948 = vsel %vm823, %v736, 0
  %v951 = vsel %vm823, %v737, 0
  %v954 = vsel %vm823, %v738, 0
  %v957 = vsel %vm823, %v739, 0
  %v960 = vsel %vm823, %v740, 0
  %v963 = vsel %vm823, %v741, 0
  %v966 = vsel %vm823, %v742, 0
  %v969 = vsel %vm823, %v743, 0
  %v972 = vsel %vm823, %v744, 0
  %v975 = vsel %vm823, %v745, 0
  %v978 = vsel %vm823, %v746, 0
  %v981 = vsel %vm823, %v747, 0
  %v984 = vsel %vm823, %v748, 0
  %v987 = vsel %vm823, %v749, 0
  %v990 = vsel %vm823, %v750, 0
  %v993 = vsel %vm823, %v751, 0
  %v996 = vsel %vm823, %v752, 0
  %v999 = vsel %vm823, %v753, 0
  %v1002 = vsel %vm823, %v754, 0
  %v1005 = vsel %vm823, %v755, 0
  %v1008 = vsel %vm823, %v756, 0
  %v1011 = vsel %vm823, %v757, 0
  %v1014 = vsel %vm823, %v758, 0
  %v1017 = vsel %vm823, %v759, 0
  %v1020 = vsel %vm823, %v760, 0
  %v1023 = vsel %vm823, %v761, 0
  %v1026 = vsel %vm823, %v762, 0
  %v1029 = vsel %vm823, %v763, 0
  %v1032 = vsel %vm823, %v764, 0
  %v1035 = vsel %vm823, %v765, 0
  %v1038 = vsel %vm823, %v766, 0
  %v1041 = vsel %vm823, %v767, 0
  %v1044 = vsel %vm823, %v768, 0
  %v1047 = vsel %vm823, %v769, 0
  %v1050 = vsel %vm823, %v770, 0
  %v1053 = vsel %vm823, %v771, 0
  %v1056 = vsel %vm823, %v772, 0
  %v1059 = vsel %vm823, %v773, 0
  %v1062 = vsel %vm823, %v774, 0
  %v1065 = vsel %vm823, %v775, 0
  %v1068 = vsel %vm823, %v776, 0
  %v1071 = vsel %vm823, %v777, 0
  %v1074 = vsel %vm823, %v778, 0
  %v1077 = vsel %vm823, %v779, 0
  %v1080 = vsel %vm823, %v780, 0
  %v1083 = vsel %vm823, %v781, 0
  %v1086 = vsel %vm823, %v782, 0
  %v1089 = vsel %vm823, %v783, 0
  %v1092 = vsel %vm823, %v784, 0
  %v1095 = vsel %vm823, %v785, 0
  %v1098 = vsel %vm823, %v786, 0
  %v1101 = vsel %vm823, %v787, 0
  %v1104 = vsel %vm823, %v788, 0
  %v1107 = vsel %vm823, %v789, 0
  %v1110 = vsel %vm823, %v790, 0
  %v1113 = vsel %vm823, %v791, 0
  %v1116 = vsel %vm823, %v792, 0
  %v1119 = vsel %vm823, %v793, 0
  %v1122 = vsel %vm823, %v794, 0
  %v1125 = vsel %vm823, %v795, 0
  %v1128 = vsel %vm823, %v796, 0
  %v1131 = vsel %vm823, %v797, 0
  %v1134 = vsel %vm823, %v798, 0
  %v1137 = vsel %vm823, %v799, 0
  %v1140 = vsel %vm823, %v800, 0
  %v1143 = vsel %vm823, %v801, 0
  %v1146 = vsel %vm823, %v802, 0
  %v1149 = vsel %vm823, %v803, 0
  %v1152 = vsel %vm823, %v804, 0
  %v1155 = vsel %vm823, %v805, 0
  %v1158 = vsel %vm823, %v806, 0
  %v1161 = vsel %vm823, %v807, 0
  %vm1163 = vcmask 1041408
  %v1165 = vsel %vm1163, %v820, 0
  %1167 = vmatprep.subr.bf16.mxu0 0
  %1168 = vmatpush1.bf16.msra.mxu0 0
  %1169 = vmatprep.subr.bf16.mxu0 0
  %1170 = vmatpush1.bf16.msra.mxu0 0
  %1171 = vmatprep.subr.bf16.mxu0 0
  %1172 = vmatpush1.bf16.msra.mxu0 0
  %1173 = vmatprep.subr.bf16.mxu0 0
  %1174 = vmatpush1.bf16.msra.mxu0 0
  %1175 = vmatprep.subr.bf16.mxu0 0
  %1176 = vmatpush1.bf16.msra.mxu0 0
  %1177 = vmatprep.subr.bf16.mxu0 0
  %1178 = vmatpush1.bf16.msra.mxu0 %v1165
  %1179 = vmatprep.subr.bf16.mxu0 0
  %1180 = vmatpush1.bf16.msra.mxu0 %v819
  %1181 = vmatprep.subr.bf16.mxu0 0
  %1182 = vmatpush1.bf16.msra.mxu0 %v818
  %1183 = vmatprep.subr.bf16.mxu0 0
  %1184 = vmatpush2.bf16.msra.mxu0 0
  %1185 = vmatprep.subr.bf16.mxu0 0
  %1186 = vmatpush2.bf16.msra.mxu0 0
  %1187 = vmatprep.subr.bf16.mxu0 0
  %1188 = vmatpush2.bf16.msra.mxu0 0
  %1189 = vmatprep.subr.bf16.mxu0 0
  %1190 = vmatpush2.bf16.msra.mxu0 0
  %1191 = vmatprep.subr.bf16.mxu0 0
  %1192 = vmatpush2.bf16.msra.mxu0 0
  %1193 = vmatprep.subr.bf16.mxu0 0
  %1194 = vmatpush2.bf16.msra.mxu0 0
  %1195 = vmatprep.subr.bf16.mxu0 0
  %1196 = vmatpush2.bf16.msra.mxu0 0
  %1197 = vmatprep.subr.bf16.mxu0 0
  %1198 = vmatpush2.bf16.msra.mxu0 0
  %1199 = vmatprep.mubr.bf16.mxu0 0
  %1200 = vmatmul.mubr.bf16.gmra.mxu0 %v825
  %v1201 = vpop.f32.mrf.mxu0
  %v1202 = vadd.f32 0.0, %v1201
  %v1203 = vpop.f32.mrf.mxu0
  %v1204 = vpop.f32.mrf.mxu0
  %v1205 = vadd.f32 0.0, %v1204
  %v1206 = vpop.f32.mrf.mxu0
  %1207 = vmatprep.mubr.bf16.mxu0 0
  %1208 = vmatmul.mubr.bf16.gmra.mxu0 %v828
  %v1209 = vpop.f32.mrf.mxu0
  %v1210 = vadd.f32 0.0, %v1209
  %v1211 = vpop.f32.mrf.mxu0
  %v1212 = vpop.f32.mrf.mxu0
  %v1213 = vadd.f32 0.0, %v1212
  %v1214 = vpop.f32.mrf.mxu0
  %1215 = vmatprep.mubr.bf16.mxu0 0
  %1216 = vmatmul.mubr.bf16.gmra.mxu0 %v831
  %v1217 = vpop.f32.mrf.mxu0
  %v1218 = vadd.f32 0.0, %v1217
  %v1219 = vpop.f32.mrf.mxu0
  %v1220 = vpop.f32.mrf.mxu0
  %v1221 = vadd.f32 0.0, %v1220
  %v1222 = vpop.f32.mrf.mxu0
  %1223 = vmatprep.mubr.bf16.mxu0 0
  %1224 = vmatmul.mubr.bf16.gmra.mxu0 %v834
  %v1225 = vpop.f32.mrf.mxu0
  %v1226 = vadd.f32 0.0, %v1225
  %v1227 = vpop.f32.mrf.mxu0
  %v1228 = vpop.f32.mrf.mxu0
  %v1229 = vadd.f32 0.0, %v1228
  %v1230 = vpop.f32.mrf.mxu0
  %1231 = vmatprep.mubr.bf16.mxu0 0
  %1232 = vmatmul.mubr.bf16.gmra.mxu0 %v837
  %v1233 = vpop.f32.mrf.mxu0
  %v1234 = vadd.f32 0.0, %v1233
  %v1235 = vpop.f32.mrf.mxu0
  %v1236 = vpop.f32.mrf.mxu0
  %v1237 = vadd.f32 0.0, %v1236
  %v1238 = vpop.f32.mrf.mxu0
  %1239 = vmatprep.mubr.bf16.mxu0 0
  %1240 = vmatmul.mubr.bf16.gmra.mxu0 %v840
  %v1241 = vpop.f32.mrf.mxu0
  %v1242 = vadd.f32 0.0, %v1241
  %v1243 = vpop.f32.mrf.mxu0
  %v1244 = vpop.f32.mrf.mxu0
  %v1245 = vadd.f32 0.0, %v1244
  %v1246 = vpop.f32.mrf.mxu0
  %1247 = vmatprep.mubr.bf16.mxu0 0
  %1248 = vmatmul.mubr.bf16.gmra.mxu0 %v843
  %v1249 = vpop.f32.mrf.mxu0
  %v1250 = vadd.f32 0.0, %v1249
  %v1251 = vpop.f32.mrf.mxu0
  %v1252 = vpop.f32.mrf.mxu0
  %v1253 = vadd.f32 0.0, %v1252
  %v1254 = vpop.f32.mrf.mxu0
  %1255 = vmatprep.mubr.bf16.mxu0 0
  %1256 = vmatmul.mubr.bf16.gmra.mxu0 %v846
  %v1257 = vpop.f32.mrf.mxu0
  %v1258 = vadd.f32 0.0, %v1257
  %v1259 = vpop.f32.mrf.mxu0
  %v1260 = vpop.f32.mrf.mxu0
  %v1261 = vadd.f32 0.0, %v1260
  %v1262 = vpop.f32.mrf.mxu0
  %1263 = vmatprep.mubr.bf16.mxu0 0
  %1264 = vmatmul.mubr.bf16.gmra.mxu0 %v849
  %v1265 = vpop.f32.mrf.mxu0
  %v1266 = vadd.f32 0.0, %v1265
  %v1267 = vpop.f32.mrf.mxu0
  %v1268 = vpop.f32.mrf.mxu0
  %v1269 = vadd.f32 0.0, %v1268
  %v1270 = vpop.f32.mrf.mxu0
  %1271 = vmatprep.mubr.bf16.mxu0 0
  %1272 = vmatmul.mubr.bf16.gmra.mxu0 %v852
  %v1273 = vpop.f32.mrf.mxu0
  %v1274 = vadd.f32 0.0, %v1273
  %v1275 = vpop.f32.mrf.mxu0
  %v1276 = vpop.f32.mrf.mxu0
  %v1277 = vadd.f32 0.0, %v1276
  %v1278 = vpop.f32.mrf.mxu0
  %1279 = vmatprep.mubr.bf16.mxu0 0
  %1280 = vmatmul.mubr.bf16.gmra.mxu0 %v855
  %v1281 = vpop.f32.mrf.mxu0
  %v1282 = vadd.f32 0.0, %v1281
  %v1283 = vpop.f32.mrf.mxu0
  %v1284 = vpop.f32.mrf.mxu0
  %v1285 = vadd.f32 0.0, %v1284
  %v1286 = vpop.f32.mrf.mxu0
  %1287 = vmatprep.mubr.bf16.mxu0 0
  %1288 = vmatmul.mubr.bf16.gmra.mxu0 %v858
  %v1289 = vpop.f32.mrf.mxu0
  %v1290 = vadd.f32 0.0, %v1289
  %v1291 = vpop.f32.mrf.mxu0
  %v1292 = vpop.f32.mrf.mxu0
  %v1293 = vadd.f32 0.0, %v1292
  %v1294 = vpop.f32.mrf.mxu0
  %1295 = vmatprep.mubr.bf16.mxu0 0
  %1296 = vmatmul.mubr.bf16.gmra.mxu0 %v861
  %v1297 = vpop.f32.mrf.mxu0
  %v1298 = vadd.f32 0.0, %v1297
  %v1299 = vpop.f32.mrf.mxu0
  %v1300 = vpop.f32.mrf.mxu0
  %v1301 = vadd.f32 0.0, %v1300
  %v1302 = vpop.f32.mrf.mxu0
  %1303 = vmatprep.mubr.bf16.mxu0 0
  %1304 = vmatmul.mubr.bf16.gmra.mxu0 %v864
  %v1305 = vpop.f32.mrf.mxu0
  %v1306 = vadd.f32 0.0, %v1305
  %v1307 = vpop.f32.mrf.mxu0
  %v1308 = vpop.f32.mrf.mxu0
  %v1309 = vadd.f32 0.0, %v1308
  %v1310 = vpop.f32.mrf.mxu0
  %1311 = vmatprep.mubr.bf16.mxu0 0
  %1312 = vmatmul.mubr.bf16.gmra.mxu0 %v867
  %v1313 = vpop.f32.mrf.mxu0
  %v1314 = vadd.f32 0.0, %v1313
  %v1315 = vpop.f32.mrf.mxu0
  %v1316 = vpop.f32.mrf.mxu0
  %v1317 = vadd.f32 0.0, %v1316
  %v1318 = vpop.f32.mrf.mxu0
  %1319 = vmatprep.mubr.bf16.mxu0 0
  %1320 = vmatmul.mubr.bf16.gmra.mxu0 %v870
  %v1321 = vpop.f32.mrf.mxu0
  %v1322 = vadd.f32 0.0, %v1321
  %v1323 = vpop.f32.mrf.mxu0
  %v1324 = vpop.f32.mrf.mxu0
  %v1325 = vadd.f32 0.0, %v1324
  %v1326 = vpop.f32.mrf.mxu0
  %1327 = vmatprep.mubr.bf16.mxu0 0
  %1328 = vmatmul.mubr.bf16.gmra.mxu0 %v873
  %v1329 = vpop.f32.mrf.mxu0
  %v1330 = vadd.f32 0.0, %v1329
  %v1331 = vpop.f32.mrf.mxu0
  %v1332 = vpop.f32.mrf.mxu0
  %v1333 = vadd.f32 0.0, %v1332
  %v1334 = vpop.f32.mrf.mxu0
  %1335 = vmatprep.mubr.bf16.mxu0 0
  %1336 = vmatmul.mubr.bf16.gmra.mxu0 %v876
  %v1337 = vpop.f32.mrf.mxu0
  %v1338 = vadd.f32 0.0, %v1337
  %v1339 = vpop.f32.mrf.mxu0
  %v1340 = vpop.f32.mrf.mxu0
  %v1341 = vadd.f32 0.0, %v1340
  %v1342 = vpop.f32.mrf.mxu0
  %1343 = vmatprep.mubr.bf16.mxu0 0
  %1344 = vmatmul.mubr.bf16.gmra.mxu0 %v879
  %v1345 = vpop.f32.mrf.mxu0
  %v1346 = vadd.f32 0.0, %v1345
  %v1347 = vpop.f32.mrf.mxu0
  %v1348 = vpop.f32.mrf.mxu0
  %v1349 = vadd.f32 0.0, %v1348
  %v1350 = vpop.f32.mrf.mxu0
  %1351 = vmatprep.mubr.bf16.mxu0 0
  %1352 = vmatmul.mubr.bf16.gmra.mxu0 %v882
  %v1353 = vpop.f32.mrf.mxu0
  %v1354 = vadd.f32 0.0, %v1353
  %v1355 = vpop.f32.mrf.mxu0
  %v1356 = vpop.f32.mrf.mxu0
  %v1357 = vadd.f32 0.0, %v1356
  %v1358 = vpop.f32.mrf.mxu0
  %1359 = vmatprep.mubr.bf16.mxu0 0
  %1360 = vmatmul.mubr.bf16.gmra.mxu0 %v885
  %v1361 = vpop.f32.mrf.mxu0
  %v1362 = vadd.f32 0.0, %v1361
  %v1363 = vpop.f32.mrf.mxu0
  %v1364 = vpop.f32.mrf.mxu0
  %v1365 = vadd.f32 0.0, %v1364
  %v1366 = vpop.f32.mrf.mxu0
  %1367 = vmatprep.mubr.bf16.mxu0 0
  %1368 = vmatmul.mubr.bf16.gmra.mxu0 %v888
  %v1369 = vpop.f32.mrf.mxu0
  %v1370 = vadd.f32 0.0, %v1369
  %v1371 = vpop.f32.mrf.mxu0
  %v1372 = vpop.f32.mrf.mxu0
  %v1373 = vadd.f32 0.0, %v1372
  %v1374 = vpop.f32.mrf.mxu0
  %1375 = vmatprep.mubr.bf16.mxu0 0
  %1376 = vmatmul.mubr.bf16.gmra.mxu0 %v891
  %v1377 = vpop.f32.mrf.mxu0
  %v1378 = vadd.f32 0.0, %v1377
  %v1379 = vpop.f32.mrf.mxu0
  %v1380 = vpop.f32.mrf.mxu0
  %v1381 = vadd.f32 0.0, %v1380
  %v1382 = vpop.f32.mrf.mxu0
  %1383 = vmatprep.mubr.bf16.mxu0 0
  %1384 = vmatmul.mubr.bf16.gmra.mxu0 %v894
  %v1385 = vpop.f32.mrf.mxu0
  %v1386 = vadd.f32 0.0, %v1385
  %v1387 = vpop.f32.mrf.mxu0
  %v1388 = vpop.f32.mrf.mxu0
  %v1389 = vadd.f32 0.0, %v1388
  %v1390 = vpop.f32.mrf.mxu0
  %1391 = vmatprep.mubr.bf16.mxu0 0
  %1392 = vmatmul.mubr.bf16.gmra.mxu0 %v897
  %v1393 = vpop.f32.mrf.mxu0
  %v1394 = vadd.f32 0.0, %v1393
  %v1395 = vpop.f32.mrf.mxu0
  %v1396 = vpop.f32.mrf.mxu0
  %v1397 = vadd.f32 0.0, %v1396
  %v1398 = vpop.f32.mrf.mxu0
  %1399 = vmatprep.mubr.bf16.mxu0 0
  %1400 = vmatmul.mubr.bf16.gmra.mxu0 %v900
  %v1401 = vpop.f32.mrf.mxu0
  %v1402 = vadd.f32 0.0, %v1401
  %v1403 = vpop.f32.mrf.mxu0
  %v1404 = vpop.f32.mrf.mxu0
  %v1405 = vadd.f32 0.0, %v1404
  %v1406 = vpop.f32.mrf.mxu0
  %1407 = vmatprep.mubr.bf16.mxu0 0
  %1408 = vmatmul.mubr.bf16.gmra.mxu0 %v903
  %v1409 = vpop.f32.mrf.mxu0
  %v1410 = vadd.f32 0.0, %v1409
  %v1411 = vpop.f32.mrf.mxu0
  %v1412 = vpop.f32.mrf.mxu0
  %v1413 = vadd.f32 0.0, %v1412
  %v1414 = vpop.f32.mrf.mxu0
  %1415 = vmatprep.mubr.bf16.mxu0 0
  %1416 = vmatmul.mubr.bf16.gmra.mxu0 %v906
  %v1417 = vpop.f32.mrf.mxu0
  %v1418 = vadd.f32 0.0, %v1417
  %v1419 = vpop.f32.mrf.mxu0
  %v1420 = vpop.f32.mrf.mxu0
  %v1421 = vadd.f32 0.0, %v1420
  %v1422 = vpop.f32.mrf.mxu0
  %1423 = vmatprep.mubr.bf16.mxu0 0
  %1424 = vmatmul.mubr.bf16.gmra.mxu0 %v909
  %v1425 = vpop.f32.mrf.mxu0
  %v1426 = vadd.f32 0.0, %v1425
  %v1427 = vpop.f32.mrf.mxu0
  %v1428 = vpop.f32.mrf.mxu0
  %v1429 = vadd.f32 0.0, %v1428
  %v1430 = vpop.f32.mrf.mxu0
  %1431 = vmatprep.mubr.bf16.mxu0 0
  %1432 = vmatmul.mubr.bf16.gmra.mxu0 %v912
  %v1433 = vpop.f32.mrf.mxu0
  %v1434 = vadd.f32 0.0, %v1433
  %v1435 = vpop.f32.mrf.mxu0
  %v1436 = vpop.f32.mrf.mxu0
  %v1437 = vadd.f32 0.0, %v1436
  %v1438 = vpop.f32.mrf.mxu0
  %1439 = vmatprep.mubr.bf16.mxu0 0
  %1440 = vmatmul.mubr.bf16.gmra.mxu0 %v915
  %v1441 = vpop.f32.mrf.mxu0
  %v1442 = vadd.f32 0.0, %v1441
  %v1443 = vpop.f32.mrf.mxu0
  %v1444 = vpop.f32.mrf.mxu0
  %v1445 = vadd.f32 0.0, %v1444
  %v1446 = vpop.f32.mrf.mxu0
  %1447 = vmatprep.mubr.bf16.mxu0 0
  %1448 = vmatmul.mubr.bf16.gmra.mxu0 %v918
  %v1449 = vpop.f32.mrf.mxu0
  %v1450 = vadd.f32 0.0, %v1449
  %v1451 = vpop.f32.mrf.mxu0
  %v1452 = vpop.f32.mrf.mxu0
  %v1453 = vadd.f32 0.0, %v1452
  %v1454 = vpop.f32.mrf.mxu0
  %1455 = vmatprep.mubr.bf16.mxu0 0
  %1456 = vmatmul.mubr.bf16.gmra.mxu0 %v921
  %v1457 = vpop.f32.mrf.mxu0
  %v1458 = vadd.f32 0.0, %v1457
  %v1459 = vpop.f32.mrf.mxu0
  %v1460 = vpop.f32.mrf.mxu0
  %v1461 = vadd.f32 0.0, %v1460
  %v1462 = vpop.f32.mrf.mxu0
  %1463 = vmatprep.mubr.bf16.mxu0 0
  %1464 = vmatmul.mubr.bf16.gmra.mxu0 %v924
  %v1465 = vpop.f32.mrf.mxu0
  %v1466 = vadd.f32 0.0, %v1465
  %v1467 = vpop.f32.mrf.mxu0
  %v1468 = vpop.f32.mrf.mxu0
  %v1469 = vadd.f32 0.0, %v1468
  %v1470 = vpop.f32.mrf.mxu0
  %1471 = vmatprep.mubr.bf16.mxu0 0
  %1472 = vmatmul.mubr.bf16.gmra.mxu0 %v927
  %v1473 = vpop.f32.mrf.mxu0
  %v1474 = vadd.f32 0.0, %v1473
  %v1475 = vpop.f32.mrf.mxu0
  %v1476 = vpop.f32.mrf.mxu0
  %v1477 = vadd.f32 0.0, %v1476
  %v1478 = vpop.f32.mrf.mxu0
  %1479 = vmatprep.mubr.bf16.mxu0 0
  %1480 = vmatmul.mubr.bf16.gmra.mxu0 %v930
  %v1481 = vpop.f32.mrf.mxu0
  %v1482 = vadd.f32 0.0, %v1481
  %v1483 = vpop.f32.mrf.mxu0
  %v1484 = vpop.f32.mrf.mxu0
  %v1485 = vadd.f32 0.0, %v1484
  %v1486 = vpop.f32.mrf.mxu0
  %1487 = vmatprep.mubr.bf16.mxu0 0
  %1488 = vmatmul.mubr.bf16.gmra.mxu0 %v933
  %v1489 = vpop.f32.mrf.mxu0
  %v1490 = vadd.f32 0.0, %v1489
  %v1491 = vpop.f32.mrf.mxu0
  %v1492 = vpop.f32.mrf.mxu0
  %v1493 = vadd.f32 0.0, %v1492
  %v1494 = vpop.f32.mrf.mxu0
  %1495 = vmatprep.mubr.bf16.mxu0 0
  %1496 = vmatmul.mubr.bf16.gmra.mxu0 %v936
  %v1497 = vpop.f32.mrf.mxu0
  %v1498 = vadd.f32 0.0, %v1497
  %v1499 = vpop.f32.mrf.mxu0
  %v1500 = vpop.f32.mrf.mxu0
  %v1501 = vadd.f32 0.0, %v1500
  %v1502 = vpop.f32.mrf.mxu0
  %1503 = vmatprep.mubr.bf16.mxu0 0
  %1504 = vmatmul.mubr.bf16.gmra.mxu0 %v939
  %v1505 = vpop.f32.mrf.mxu0
  %v1506 = vadd.f32 0.0, %v1505
  %v1507 = vpop.f32.mrf.mxu0
  %v1508 = vpop.f32.mrf.mxu0
  %v1509 = vadd.f32 0.0, %v1508
  %v1510 = vpop.f32.mrf.mxu0
  %1511 = vmatprep.mubr.bf16.mxu0 0
  %1512 = vmatmul.mubr.bf16.gmra.mxu0 %v942
  %v1513 = vpop.f32.mrf.mxu0
  %v1514 = vadd.f32 0.0, %v1513
  %v1515 = vpop.f32.mrf.mxu0
  %v1516 = vpop.f32.mrf.mxu0
  %v1517 = vadd.f32 0.0, %v1516
  %v1518 = vpop.f32.mrf.mxu0
  %1519 = vmatprep.mubr.bf16.mxu0 0
  %1520 = vmatmul.mubr.bf16.gmra.mxu0 %v945
  %v1521 = vpop.f32.mrf.mxu0
  %v1522 = vadd.f32 0.0, %v1521
  %v1523 = vpop.f32.mrf.mxu0
  %v1524 = vpop.f32.mrf.mxu0
  %v1525 = vadd.f32 0.0, %v1524
  %v1526 = vpop.f32.mrf.mxu0
  %1527 = vmatprep.mubr.bf16.mxu0 0
  %1528 = vmatmul.mubr.bf16.gmra.mxu0 %v948
  %v1529 = vpop.f32.mrf.mxu0
  %v1530 = vadd.f32 0.0, %v1529
  %v1531 = vpop.f32.mrf.mxu0
  %v1532 = vpop.f32.mrf.mxu0
  %v1533 = vadd.f32 0.0, %v1532
  %v1534 = vpop.f32.mrf.mxu0
  %1535 = vmatprep.mubr.bf16.mxu0 0
  %1536 = vmatmul.mubr.bf16.gmra.mxu0 %v951
  %v1537 = vpop.f32.mrf.mxu0
  %v1538 = vadd.f32 0.0, %v1537
  %v1539 = vpop.f32.mrf.mxu0
  %v1540 = vpop.f32.mrf.mxu0
  %v1541 = vadd.f32 0.0, %v1540
  %v1542 = vpop.f32.mrf.mxu0
  %1543 = vmatprep.mubr.bf16.mxu0 0
  %1544 = vmatmul.mubr.bf16.gmra.mxu0 %v954
  %v1545 = vpop.f32.mrf.mxu0
  %v1546 = vadd.f32 0.0, %v1545
  %v1547 = vpop.f32.mrf.mxu0
  %v1548 = vpop.f32.mrf.mxu0
  %v1549 = vadd.f32 0.0, %v1548
  %v1550 = vpop.f32.mrf.mxu0
  %1551 = vmatprep.mubr.bf16.mxu0 0
  %1552 = vmatmul.mubr.bf16.gmra.mxu0 %v957
  %v1553 = vpop.f32.mrf.mxu0
  %v1554 = vadd.f32 0.0, %v1553
  %v1555 = vpop.f32.mrf.mxu0
  %v1556 = vpop.f32.mrf.mxu0
  %v1557 = vadd.f32 0.0, %v1556
  %v1558 = vpop.f32.mrf.mxu0
  %1559 = vmatprep.mubr.bf16.mxu0 0
  %1560 = vmatmul.mubr.bf16.gmra.mxu0 %v960
  %v1561 = vpop.f32.mrf.mxu0
  %v1562 = vadd.f32 0.0, %v1561
  %v1563 = vpop.f32.mrf.mxu0
  %v1564 = vpop.f32.mrf.mxu0
  %v1565 = vadd.f32 0.0, %v1564
  %v1566 = vpop.f32.mrf.mxu0
  %1567 = vmatprep.mubr.bf16.mxu0 0
  %1568 = vmatmul.mubr.bf16.gmra.mxu0 %v963
  %v1569 = vpop.f32.mrf.mxu0
  %v1570 = vadd.f32 0.0, %v1569
  %v1571 = vpop.f32.mrf.mxu0
  %v1572 = vpop.f32.mrf.mxu0
  %v1573 = vadd.f32 0.0, %v1572
  %v1574 = vpop.f32.mrf.mxu0
  %1575 = vmatprep.mubr.bf16.mxu0 0
  %1576 = vmatmul.mubr.bf16.gmra.mxu0 %v966
  %v1577 = vpop.f32.mrf.mxu0
  %v1578 = vadd.f32 0.0, %v1577
  %v1579 = vpop.f32.mrf.mxu0
  %v1580 = vpop.f32.mrf.mxu0
  %v1581 = vadd.f32 0.0, %v1580
  %v1582 = vpop.f32.mrf.mxu0
  %1583 = vmatprep.mubr.bf16.mxu0 0
  %1584 = vmatmul.mubr.bf16.gmra.mxu0 %v969
  %v1585 = vpop.f32.mrf.mxu0
  %v1586 = vadd.f32 0.0, %v1585
  %v1587 = vpop.f32.mrf.mxu0
  %v1588 = vpop.f32.mrf.mxu0
  %v1589 = vadd.f32 0.0, %v1588
  %v1590 = vpop.f32.mrf.mxu0
  %1591 = vmatprep.mubr.bf16.mxu0 0
  %1592 = vmatmul.mubr.bf16.gmra.mxu0 %v972
  %v1593 = vpop.f32.mrf.mxu0
  %v1594 = vadd.f32 0.0, %v1593
  %v1595 = vpop.f32.mrf.mxu0
  %v1596 = vpop.f32.mrf.mxu0
  %v1597 = vadd.f32 0.0, %v1596
  %v1598 = vpop.f32.mrf.mxu0
  %1599 = vmatprep.mubr.bf16.mxu0 0
  %1600 = vmatmul.mubr.bf16.gmra.mxu0 %v975
  %v1601 = vpop.f32.mrf.mxu0
  %v1602 = vadd.f32 0.0, %v1601
  %v1603 = vpop.f32.mrf.mxu0
  %v1604 = vpop.f32.mrf.mxu0
  %v1605 = vadd.f32 0.0, %v1604
  %v1606 = vpop.f32.mrf.mxu0
  %1607 = vmatprep.mubr.bf16.mxu0 0
  %1608 = vmatmul.mubr.bf16.gmra.mxu0 %v978
  %v1609 = vpop.f32.mrf.mxu0
  %v1610 = vadd.f32 0.0, %v1609
  %v1611 = vpop.f32.mrf.mxu0
  %v1612 = vpop.f32.mrf.mxu0
  %v1613 = vadd.f32 0.0, %v1612
  %v1614 = vpop.f32.mrf.mxu0
  %1615 = vmatprep.mubr.bf16.mxu0 0
  %1616 = vmatmul.mubr.bf16.gmra.mxu0 %v981
  %v1617 = vpop.f32.mrf.mxu0
  %v1618 = vadd.f32 0.0, %v1617
  %v1619 = vpop.f32.mrf.mxu0
  %v1620 = vpop.f32.mrf.mxu0
  %v1621 = vadd.f32 0.0, %v1620
  %v1622 = vpop.f32.mrf.mxu0
  %1623 = vmatprep.mubr.bf16.mxu0 0
  %1624 = vmatmul.mubr.bf16.gmra.mxu0 %v984
  %v1625 = vpop.f32.mrf.mxu0
  %v1626 = vadd.f32 0.0, %v1625
  %v1627 = vpop.f32.mrf.mxu0
  %v1628 = vpop.f32.mrf.mxu0
  %v1629 = vadd.f32 0.0, %v1628
  %v1630 = vpop.f32.mrf.mxu0
  %1631 = vmatprep.mubr.bf16.mxu0 0
  %1632 = vmatmul.mubr.bf16.gmra.mxu0 %v987
  %v1633 = vpop.f32.mrf.mxu0
  %v1634 = vadd.f32 0.0, %v1633
  %v1635 = vpop.f32.mrf.mxu0
  %v1636 = vpop.f32.mrf.mxu0
  %v1637 = vadd.f32 0.0, %v1636
  %v1638 = vpop.f32.mrf.mxu0
  %1639 = vmatprep.mubr.bf16.mxu0 0
  %1640 = vmatmul.mubr.bf16.gmra.mxu0 %v990
  %v1641 = vpop.f32.mrf.mxu0
  %v1642 = vadd.f32 0.0, %v1641
  %v1643 = vpop.f32.mrf.mxu0
  %v1644 = vpop.f32.mrf.mxu0
  %v1645 = vadd.f32 0.0, %v1644
  %v1646 = vpop.f32.mrf.mxu0
  %1647 = vmatprep.mubr.bf16.mxu0 0
  %1648 = vmatmul.mubr.bf16.gmra.mxu0 %v993
  %v1649 = vpop.f32.mrf.mxu0
  %v1650 = vadd.f32 0.0, %v1649
  %v1651 = vpop.f32.mrf.mxu0
  %v1652 = vpop.f32.mrf.mxu0
  %v1653 = vadd.f32 0.0, %v1652
  %v1654 = vpop.f32.mrf.mxu0
  %1655 = vmatprep.mubr.bf16.mxu0 0
  %1656 = vmatmul.mubr.bf16.gmra.mxu0 %v996
  %v1657 = vpop.f32.mrf.mxu0
  %v1658 = vadd.f32 0.0, %v1657
  %v1659 = vpop.f32.mrf.mxu0
  %v1660 = vpop.f32.mrf.mxu0
  %v1661 = vadd.f32 0.0, %v1660
  %v1662 = vpop.f32.mrf.mxu0
  %1663 = vmatprep.mubr.bf16.mxu0 0
  %1664 = vmatmul.mubr.bf16.gmra.mxu0 %v999
  %v1665 = vpop.f32.mrf.mxu0
  %v1666 = vadd.f32 0.0, %v1665
  %v1667 = vpop.f32.mrf.mxu0
  %v1668 = vpop.f32.mrf.mxu0
  %v1669 = vadd.f32 0.0, %v1668
  %v1670 = vpop.f32.mrf.mxu0
  %1671 = vmatprep.mubr.bf16.mxu0 0
  %1672 = vmatmul.mubr.bf16.gmra.mxu0 %v1002
  %v1673 = vpop.f32.mrf.mxu0
  %v1674 = vadd.f32 0.0, %v1673
  %v1675 = vpop.f32.mrf.mxu0
  %v1676 = vpop.f32.mrf.mxu0
  %v1677 = vadd.f32 0.0, %v1676
  %v1678 = vpop.f32.mrf.mxu0
  %1679 = vmatprep.mubr.bf16.mxu0 0
  %1680 = vmatmul.mubr.bf16.gmra.mxu0 %v1005
  %v1681 = vpop.f32.mrf.mxu0
  %v1682 = vadd.f32 0.0, %v1681
  %v1683 = vpop.f32.mrf.mxu0
  %v1684 = vpop.f32.mrf.mxu0
  %v1685 = vadd.f32 0.0, %v1684
  %v1686 = vpop.f32.mrf.mxu0
  %1687 = vmatprep.mubr.bf16.mxu0 0
  %1688 = vmatmul.mubr.bf16.gmra.mxu0 %v1008
  %v1689 = vpop.f32.mrf.mxu0
  %v1690 = vadd.f32 0.0, %v1689
  %v1691 = vpop.f32.mrf.mxu0
  %v1692 = vpop.f32.mrf.mxu0
  %v1693 = vadd.f32 0.0, %v1692
  %v1694 = vpop.f32.mrf.mxu0
  %1695 = vmatprep.mubr.bf16.mxu0 0
  %1696 = vmatmul.mubr.bf16.gmra.mxu0 %v1011
  %v1697 = vpop.f32.mrf.mxu0
  %v1698 = vadd.f32 0.0, %v1697
  %v1699 = vpop.f32.mrf.mxu0
  %v1700 = vpop.f32.mrf.mxu0
  %v1701 = vadd.f32 0.0, %v1700
  %v1702 = vpop.f32.mrf.mxu0
  %1703 = vmatprep.mubr.bf16.mxu0 0
  %1704 = vmatmul.mubr.bf16.gmra.mxu0 %v1014
  %v1705 = vpop.f32.mrf.mxu0
  %v1706 = vadd.f32 0.0, %v1705
  %v1707 = vpop.f32.mrf.mxu0
  %v1708 = vpop.f32.mrf.mxu0
  %v1709 = vadd.f32 0.0, %v1708
  %v1710 = vpop.f32.mrf.mxu0
  %1711 = vmatprep.mubr.bf16.mxu0 0
  %1712 = vmatmul.mubr.bf16.gmra.mxu0 %v1017
  %v1713 = vpop.f32.mrf.mxu0
  %v1714 = vadd.f32 0.0, %v1713
  %v1715 = vpop.f32.mrf.mxu0
  %v1716 = vpop.f32.mrf.mxu0
  %v1717 = vadd.f32 0.0, %v1716
  %v1718 = vpop.f32.mrf.mxu0
  %1719 = vmatprep.mubr.bf16.mxu0 0
  %1720 = vmatmul.mubr.bf16.gmra.mxu0 %v1020
  %v1721 = vpop.f32.mrf.mxu0
  %v1722 = vadd.f32 0.0, %v1721
  %v1723 = vpop.f32.mrf.mxu0
  %v1724 = vpop.f32.mrf.mxu0
  %v1725 = vadd.f32 0.0, %v1724
  %v1726 = vpop.f32.mrf.mxu0
  %1727 = vmatprep.mubr.bf16.mxu0 0
  %1728 = vmatmul.mubr.bf16.gmra.mxu0 %v1023
  %v1729 = vpop.f32.mrf.mxu0
  %v1730 = vadd.f32 0.0, %v1729
  %v1731 = vpop.f32.mrf.mxu0
  %v1732 = vpop.f32.mrf.mxu0
  %v1733 = vadd.f32 0.0, %v1732
  %v1734 = vpop.f32.mrf.mxu0
  %1735 = vmatprep.mubr.bf16.mxu0 0
  %1736 = vmatmul.mubr.bf16.gmra.mxu0 %v1026
  %v1737 = vpop.f32.mrf.mxu0
  %v1738 = vadd.f32 0.0, %v1737
  %v1739 = vpop.f32.mrf.mxu0
  %v1740 = vpop.f32.mrf.mxu0
  %v1741 = vadd.f32 0.0, %v1740
  %v1742 = vpop.f32.mrf.mxu0
  %1743 = vmatprep.mubr.bf16.mxu0 0
  %1744 = vmatmul.mubr.bf16.gmra.mxu0 %v1029
  %v1745 = vpop.f32.mrf.mxu0
  %v1746 = vadd.f32 0.0, %v1745
  %v1747 = vpop.f32.mrf.mxu0
  %v1748 = vpop.f32.mrf.mxu0
  %v1749 = vadd.f32 0.0, %v1748
  %v1750 = vpop.f32.mrf.mxu0
  %1751 = vmatprep.mubr.bf16.mxu0 0
  %1752 = vmatmul.mubr.bf16.gmra.mxu0 %v1032
  %v1753 = vpop.f32.mrf.mxu0
  %v1754 = vadd.f32 0.0, %v1753
  %v1755 = vpop.f32.mrf.mxu0
  %v1756 = vpop.f32.mrf.mxu0
  %v1757 = vadd.f32 0.0, %v1756
  %v1758 = vpop.f32.mrf.mxu0
  %1759 = vmatprep.mubr.bf16.mxu0 0
  %1760 = vmatmul.mubr.bf16.gmra.mxu0 %v1035
  %v1761 = vpop.f32.mrf.mxu0
  %v1762 = vadd.f32 0.0, %v1761
  %v1763 = vpop.f32.mrf.mxu0
  %v1764 = vpop.f32.mrf.mxu0
  %v1765 = vadd.f32 0.0, %v1764
  %v1766 = vpop.f32.mrf.mxu0
  %1767 = vmatprep.mubr.bf16.mxu0 0
  %1768 = vmatmul.mubr.bf16.gmra.mxu0 %v1038
  %v1769 = vpop.f32.mrf.mxu0
  %v1770 = vadd.f32 0.0, %v1769
  %v1771 = vpop.f32.mrf.mxu0
  %v1772 = vpop.f32.mrf.mxu0
  %v1773 = vadd.f32 0.0, %v1772
  %v1774 = vpop.f32.mrf.mxu0
  %1775 = vmatprep.mubr.bf16.mxu0 0
  %1776 = vmatmul.mubr.bf16.gmra.mxu0 %v1041
  %v1777 = vpop.f32.mrf.mxu0
  %v1778 = vadd.f32 0.0, %v1777
  %v1779 = vpop.f32.mrf.mxu0
  %v1780 = vpop.f32.mrf.mxu0
  %v1781 = vadd.f32 0.0, %v1780
  %v1782 = vpop.f32.mrf.mxu0
  %1783 = vmatprep.mubr.bf16.mxu0 0
  %1784 = vmatmul.mubr.bf16.gmra.mxu0 %v1044
  %v1785 = vpop.f32.mrf.mxu0
  %v1786 = vadd.f32 0.0, %v1785
  %v1787 = vpop.f32.mrf.mxu0
  %v1788 = vpop.f32.mrf.mxu0
  %v1789 = vadd.f32 0.0, %v1788
  %v1790 = vpop.f32.mrf.mxu0
  %1791 = vmatprep.mubr.bf16.mxu0 0
  %1792 = vmatmul.mubr.bf16.gmra.mxu0 %v1047
  %v1793 = vpop.f32.mrf.mxu0
  %v1794 = vadd.f32 0.0, %v1793
  %v1795 = vpop.f32.mrf.mxu0
  %v1796 = vpop.f32.mrf.mxu0
  %v1797 = vadd.f32 0.0, %v1796
  %v1798 = vpop.f32.mrf.mxu0
  %1799 = vmatprep.mubr.bf16.mxu0 0
  %1800 = vmatmul.mubr.bf16.gmra.mxu0 %v1050
  %v1801 = vpop.f32.mrf.mxu0
  %v1802 = vadd.f32 0.0, %v1801
  %v1803 = vpop.f32.mrf.mxu0
  %v1804 = vpop.f32.mrf.mxu0
  %v1805 = vadd.f32 0.0, %v1804
  %v1806 = vpop.f32.mrf.mxu0
  %1807 = vmatprep.mubr.bf16.mxu0 0
  %1808 = vmatmul.mubr.bf16.gmra.mxu0 %v1053
  %v1809 = vpop.f32.mrf.mxu0
  %v1810 = vadd.f32 0.0, %v1809
  %v1811 = vpop.f32.mrf.mxu0
  %v1812 = vpop.f32.mrf.mxu0
  %v1813 = vadd.f32 0.0, %v1812
  %v1814 = vpop.f32.mrf.mxu0
  %1815 = vmatprep.mubr.bf16.mxu0 0
  %1816 = vmatmul.mubr.bf16.gmra.mxu0 %v1056
  %v1817 = vpop.f32.mrf.mxu0
  %v1818 = vadd.f32 0.0, %v1817
  %v1819 = vpop.f32.mrf.mxu0
  %v1820 = vpop.f32.mrf.mxu0
  %v1821 = vadd.f32 0.0, %v1820
  %v1822 = vpop.f32.mrf.mxu0
  %1823 = vmatprep.mubr.bf16.mxu0 0
  %1824 = vmatmul.mubr.bf16.gmra.mxu0 %v1059
  %v1825 = vpop.f32.mrf.mxu0
  %v1826 = vadd.f32 0.0, %v1825
  %v1827 = vpop.f32.mrf.mxu0
  %v1828 = vpop.f32.mrf.mxu0
  %v1829 = vadd.f32 0.0, %v1828
  %v1830 = vpop.f32.mrf.mxu0
  %1831 = vmatprep.mubr.bf16.mxu0 0
  %1832 = vmatmul.mubr.bf16.gmra.mxu0 %v1062
  %v1833 = vpop.f32.mrf.mxu0
  %v1834 = vadd.f32 0.0, %v1833
  %v1835 = vpop.f32.mrf.mxu0
  %v1836 = vpop.f32.mrf.mxu0
  %v1837 = vadd.f32 0.0, %v1836
  %v1838 = vpop.f32.mrf.mxu0
  %1839 = vmatprep.mubr.bf16.mxu0 0
  %1840 = vmatmul.mubr.bf16.gmra.mxu0 %v1065
  %v1841 = vpop.f32.mrf.mxu0
  %v1842 = vadd.f32 0.0, %v1841
  %v1843 = vpop.f32.mrf.mxu0
  %v1844 = vpop.f32.mrf.mxu0
  %v1845 = vadd.f32 0.0, %v1844
  %v1846 = vpop.f32.mrf.mxu0
  %1847 = vmatprep.mubr.bf16.mxu0 0
  %1848 = vmatmul.mubr.bf16.gmra.mxu0 %v1068
  %v1849 = vpop.f32.mrf.mxu0
  %v1850 = vadd.f32 0.0, %v1849
  %v1851 = vpop.f32.mrf.mxu0
  %v1852 = vpop.f32.mrf.mxu0
  %v1853 = vadd.f32 0.0, %v1852
  %v1854 = vpop.f32.mrf.mxu0
  %1855 = vmatprep.mubr.bf16.mxu0 0
  %1856 = vmatmul.mubr.bf16.gmra.mxu0 %v1071
  %v1857 = vpop.f32.mrf.mxu0
  %v1858 = vadd.f32 0.0, %v1857
  %v1859 = vpop.f32.mrf.mxu0
  %v1860 = vpop.f32.mrf.mxu0
  %v1861 = vadd.f32 0.0, %v1860
  %v1862 = vpop.f32.mrf.mxu0
  %1863 = vmatprep.mubr.bf16.mxu0 0
  %1864 = vmatmul.mubr.bf16.gmra.mxu0 %v1074
  %v1865 = vpop.f32.mrf.mxu0
  %v1866 = vadd.f32 0.0, %v1865
  %v1867 = vpop.f32.mrf.mxu0
  %v1868 = vpop.f32.mrf.mxu0
  %v1869 = vadd.f32 0.0, %v1868
  %v1870 = vpop.f32.mrf.mxu0
  %1871 = vmatprep.mubr.bf16.mxu0 0
  %1872 = vmatmul.mubr.bf16.gmra.mxu0 %v1077
  %v1873 = vpop.f32.mrf.mxu0
  %v1874 = vadd.f32 0.0, %v1873
  %v1875 = vpop.f32.mrf.mxu0
  %v1876 = vpop.f32.mrf.mxu0
  %v1877 = vadd.f32 0.0, %v1876
  %v1878 = vpop.f32.mrf.mxu0
  %1879 = vmatprep.mubr.bf16.mxu0 0
  %1880 = vmatmul.mubr.bf16.gmra.mxu0 %v1080
  %v1881 = vpop.f32.mrf.mxu0
  %v1882 = vadd.f32 0.0, %v1881
  %v1883 = vpop.f32.mrf.mxu0
  %v1884 = vpop.f32.mrf.mxu0
  %v1885 = vadd.f32 0.0, %v1884
  %v1886 = vpop.f32.mrf.mxu0
  %1887 = vmatprep.mubr.bf16.mxu0 0
  %1888 = vmatmul.mubr.bf16.gmra.mxu0 %v1083
  %v1889 = vpop.f32.mrf.mxu0
  %v1890 = vadd.f32 0.0, %v1889
  %v1891 = vpop.f32.mrf.mxu0
  %v1892 = vpop.f32.mrf.mxu0
  %v1893 = vadd.f32 0.0, %v1892
  %v1894 = vpop.f32.mrf.mxu0
  %1895 = vmatprep.mubr.bf16.mxu0 0
  %1896 = vmatmul.mubr.bf16.gmra.mxu0 %v1086
  %v1897 = vpop.f32.mrf.mxu0
  %v1898 = vadd.f32 0.0, %v1897
  %v1899 = vpop.f32.mrf.mxu0
  %v1900 = vpop.f32.mrf.mxu0
  %v1901 = vadd.f32 0.0, %v1900
  %v1902 = vpop.f32.mrf.mxu0
  %1903 = vmatprep.mubr.bf16.mxu0 0
  %1904 = vmatmul.mubr.bf16.gmra.mxu0 %v1089
  %v1905 = vpop.f32.mrf.mxu0
  %v1906 = vadd.f32 0.0, %v1905
  %v1907 = vpop.f32.mrf.mxu0
  %v1908 = vpop.f32.mrf.mxu0
  %v1909 = vadd.f32 0.0, %v1908
  %v1910 = vpop.f32.mrf.mxu0
  %1911 = vmatprep.mubr.bf16.mxu0 0
  %1912 = vmatmul.mubr.bf16.gmra.mxu0 %v1092
  %v1913 = vpop.f32.mrf.mxu0
  %v1914 = vadd.f32 0.0, %v1913
  %v1915 = vpop.f32.mrf.mxu0
  %v1916 = vpop.f32.mrf.mxu0
  %v1917 = vadd.f32 0.0, %v1916
  %v1918 = vpop.f32.mrf.mxu0
  %1919 = vmatprep.mubr.bf16.mxu0 0
  %1920 = vmatmul.mubr.bf16.gmra.mxu0 %v1095
  %v1921 = vpop.f32.mrf.mxu0
  %v1922 = vadd.f32 0.0, %v1921
  %v1923 = vpop.f32.mrf.mxu0
  %v1924 = vpop.f32.mrf.mxu0
  %v1925 = vadd.f32 0.0, %v1924
  %v1926 = vpop.f32.mrf.mxu0
  %1927 = vmatprep.mubr.bf16.mxu0 0
  %1928 = vmatmul.mubr.bf16.gmra.mxu0 %v1098
  %v1929 = vpop.f32.mrf.mxu0
  %v1930 = vadd.f32 0.0, %v1929
  %v1931 = vpop.f32.mrf.mxu0
  %v1932 = vpop.f32.mrf.mxu0
  %v1933 = vadd.f32 0.0, %v1932
  %v1934 = vpop.f32.mrf.mxu0
  %1935 = vmatprep.mubr.bf16.mxu0 0
  %1936 = vmatmul.mubr.bf16.gmra.mxu0 %v1101
  %v1937 = vpop.f32.mrf.mxu0
  %v1938 = vadd.f32 0.0, %v1937
  %v1939 = vpop.f32.mrf.mxu0
  %v1940 = vpop.f32.mrf.mxu0
  %v1941 = vadd.f32 0.0, %v1940
  %v1942 = vpop.f32.mrf.mxu0
  %1943 = vmatprep.mubr.bf16.mxu0 0
  %1944 = vmatmul.mubr.bf16.gmra.mxu0 %v1104
  %v1945 = vpop.f32.mrf.mxu0
  %v1946 = vadd.f32 0.0, %v1945
  %v1947 = vpop.f32.mrf.mxu0
  %v1948 = vpop.f32.mrf.mxu0
  %v1949 = vadd.f32 0.0, %v1948
  %v1950 = vpop.f32.mrf.mxu0
  %1951 = vmatprep.mubr.bf16.mxu0 0
  %1952 = vmatmul.mubr.bf16.gmra.mxu0 %v1107
  %v1953 = vpop.f32.mrf.mxu0
  %v1954 = vadd.f32 0.0, %v1953
  %v1955 = vpop.f32.mrf.mxu0
  %v1956 = vpop.f32.mrf.mxu0
  %v1957 = vadd.f32 0.0, %v1956
  %v1958 = vpop.f32.mrf.mxu0
  %1959 = vmatprep.mubr.bf16.mxu0 0
  %1960 = vmatmul.mubr.bf16.gmra.mxu0 %v1110
  %v1961 = vpop.f32.mrf.mxu0
  %v1962 = vadd.f32 0.0, %v1961
  %v1963 = vpop.f32.mrf.mxu0
  %v1964 = vpop.f32.mrf.mxu0
  %v1965 = vadd.f32 0.0, %v1964
  %v1966 = vpop.f32.mrf.mxu0
  %1967 = vmatprep.mubr.bf16.mxu0 0
  %1968 = vmatmul.mubr.bf16.gmra.mxu0 %v1113
  %v1969 = vpop.f32.mrf.mxu0
  %v1970 = vadd.f32 0.0, %v1969
  %v1971 = vpop.f32.mrf.mxu0
  %v1972 = vpop.f32.mrf.mxu0
  %v1973 = vadd.f32 0.0, %v1972
  %v1974 = vpop.f32.mrf.mxu0
  %1975 = vmatprep.mubr.bf16.mxu0 0
  %1976 = vmatmul.mubr.bf16.gmra.mxu0 %v1116
  %v1977 = vpop.f32.mrf.mxu0
  %v1978 = vadd.f32 0.0, %v1977
  %v1979 = vpop.f32.mrf.mxu0
  %v1980 = vpop.f32.mrf.mxu0
  %v1981 = vadd.f32 0.0, %v1980
  %v1982 = vpop.f32.mrf.mxu0
  %1983 = vmatprep.mubr.bf16.mxu0 0
  %1984 = vmatmul.mubr.bf16.gmra.mxu0 %v1119
  %v1985 = vpop.f32.mrf.mxu0
  %v1986 = vadd.f32 0.0, %v1985
  %v1987 = vpop.f32.mrf.mxu0
  %v1988 = vpop.f32.mrf.mxu0
  %v1989 = vadd.f32 0.0, %v1988
  %v1990 = vpop.f32.mrf.mxu0
  %1991 = vmatprep.mubr.bf16.mxu0 0
  %1992 = vmatmul.mubr.bf16.gmra.mxu0 %v1122
  %v1993 = vpop.f32.mrf.mxu0
  %v1994 = vadd.f32 0.0, %v1993
  %v1995 = vpop.f32.mrf.mxu0
  %v1996 = vpop.f32.mrf.mxu0
  %v1997 = vadd.f32 0.0, %v1996
  %v1998 = vpop.f32.mrf.mxu0
  %1999 = vmatprep.mubr.bf16.mxu0 0
  %2000 = vmatmul.mubr.bf16.gmra.mxu0 %v1125
  %v2001 = vpop.f32.mrf.mxu0
  %v2002 = vadd.f32 0.0, %v2001
  %v2003 = vpop.f32.mrf.mxu0
  %v2004 = vpop.f32.mrf.mxu0
  %v2005 = vadd.f32 0.0, %v2004
  %v2006 = vpop.f32.mrf.mxu0
  %2007 = vmatprep.mubr.bf16.mxu0 0
  %2008 = vmatmul.mubr.bf16.gmra.mxu0 %v1128
  %v2009 = vpop.f32.mrf.mxu0
  %v2010 = vadd.f32 0.0, %v2009
  %v2011 = vpop.f32.mrf.mxu0
  %v2012 = vpop.f32.mrf.mxu0
  %v2013 = vadd.f32 0.0, %v2012
  %v2014 = vpop.f32.mrf.mxu0
  %2015 = vmatprep.mubr.bf16.mxu0 0
  %2016 = vmatmul.mubr.bf16.gmra.mxu0 %v1131
  %v2017 = vpop.f32.mrf.mxu0
  %v2018 = vadd.f32 0.0, %v2017
  %v2019 = vpop.f32.mrf.mxu0
  %v2020 = vpop.f32.mrf.mxu0
  %v2021 = vadd.f32 0.0, %v2020
  %v2022 = vpop.f32.mrf.mxu0
  %2023 = vmatprep.mubr.bf16.mxu0 0
  %2024 = vmatmul.mubr.bf16.gmra.mxu0 %v1134
  %v2025 = vpop.f32.mrf.mxu0
  %v2026 = vadd.f32 0.0, %v2025
  %v2027 = vpop.f32.mrf.mxu0
  %v2028 = vpop.f32.mrf.mxu0
  %v2029 = vadd.f32 0.0, %v2028
  %v2030 = vpop.f32.mrf.mxu0
  %2031 = vmatprep.mubr.bf16.mxu0 0
  %2032 = vmatmul.mubr.bf16.gmra.mxu0 %v1137
  %v2033 = vpop.f32.mrf.mxu0
  %v2034 = vadd.f32 0.0, %v2033
  %v2035 = vpop.f32.mrf.mxu0
  %v2036 = vpop.f32.mrf.mxu0
  %v2037 = vadd.f32 0.0, %v2036
  %v2038 = vpop.f32.mrf.mxu0
  %2039 = vmatprep.mubr.bf16.mxu0 0
  %2040 = vmatmul.mubr.bf16.gmra.mxu0 %v1140
  %v2041 = vpop.f32.mrf.mxu0
  %v2042 = vadd.f32 0.0, %v2041
  %v2043 = vpop.f32.mrf.mxu0
  %v2044 = vpop.f32.mrf.mxu0
  %v2045 = vadd.f32 0.0, %v2044
  %v2046 = vpop.f32.mrf.mxu0
  %2047 = vmatprep.mubr.bf16.mxu0 0
  %2048 = vmatmul.mubr.bf16.gmra.mxu0 %v1143
  %v2049 = vpop.f32.mrf.mxu0
  %v2050 = vadd.f32 0.0, %v2049
  %v2051 = vpop.f32.mrf.mxu0
  %v2052 = vpop.f32.mrf.mxu0
  %v2053 = vadd.f32 0.0, %v2052
  %v2054 = vpop.f32.mrf.mxu0
  %2055 = vmatprep.mubr.bf16.mxu0 0
  %2056 = vmatmul.mubr.bf16.gmra.mxu0 %v1146
  %v2057 = vpop.f32.mrf.mxu0
  %v2058 = vadd.f32 0.0, %v2057
  %v2059 = vpop.f32.mrf.mxu0
  %v2060 = vpop.f32.mrf.mxu0
  %v2061 = vadd.f32 0.0, %v2060
  %v2062 = vpop.f32.mrf.mxu0
  %2063 = vmatprep.mubr.bf16.mxu0 0
  %2064 = vmatmul.mubr.bf16.gmra.mxu0 %v1149
  %v2065 = vpop.f32.mrf.mxu0
  %v2066 = vadd.f32 0.0, %v2065
  %v2067 = vpop.f32.mrf.mxu0
  %v2068 = vpop.f32.mrf.mxu0
  %v2069 = vadd.f32 0.0, %v2068
  %v2070 = vpop.f32.mrf.mxu0
  %2071 = vmatprep.mubr.bf16.mxu0 0
  %2072 = vmatmul.mubr.bf16.gmra.mxu0 %v1152
  %v2073 = vpop.f32.mrf.mxu0
  %v2074 = vadd.f32 0.0, %v2073
  %v2075 = vpop.f32.mrf.mxu0
  %v2076 = vpop.f32.mrf.mxu0
  %v2077 = vadd.f32 0.0, %v2076
  %v2078 = vpop.f32.mrf.mxu0
  %2079 = vmatprep.mubr.bf16.mxu0 0
  %2080 = vmatmul.mubr.bf16.gmra.mxu0 %v1155
  %v2081 = vpop.f32.mrf.mxu0
  %v2082 = vadd.f32 0.0, %v2081
  %v2083 = vpop.f32.mrf.mxu0
  %v2084 = vpop.f32.mrf.mxu0
  %v2085 = vadd.f32 0.0, %v2084
  %v2086 = vpop.f32.mrf.mxu0
  %2087 = vmatprep.mubr.bf16.mxu0 0
  %2088 = vmatmul.mubr.bf16.gmra.mxu0 %v1158
  %v2089 = vpop.f32.mrf.mxu0
  %v2090 = vadd.f32 0.0, %v2089
  %v2091 = vpop.f32.mrf.mxu0
  %v2092 = vpop.f32.mrf.mxu0
  %v2093 = vadd.f32 0.0, %v2092
  %v2094 = vpop.f32.mrf.mxu0
  %2095 = vmatprep.mubr.bf16.mxu0 0
  %2096 = vmatmul.mubr.bf16.gmra.mxu0 %v1161
  %v2097 = vpop.f32.mrf.mxu0
  %v2098 = vadd.f32 0.0, %v2097
  %v2099 = vpop.f32.mrf.mxu0
  %v2100 = vpop.f32.mrf.mxu0
  %v2101 = vpop.f32.mrf.mxu0
  %2102 = vdwg.mxu0
  %v2103 = vld [vmem:[%s2] sm:$0x3]
  %vm2104 = vcmask 261120
  %v2105 = vsel %vm2104, %v1202, 0.0
  %v2106 = vsel %vm2104, %v1205, 0.0
  %v2107 = vadd.f32 %v2105, %v2106
  %v2108 = vsel %vm2104, %v1210, 0.0
  %v2109 = vadd.f32 %v2107, %v2108
  %v2110 = vsel %vm2104, %v1213, 0.0
  %v2111 = vadd.f32 %v2109, %v2110
  %v2112 = vsel %vm2104, %v1218, 0.0
  %v2113 = vadd.f32 %v2111, %v2112
  %v2114 = vsel %vm2104, %v1221, 0.0
  %v2115 = vadd.f32 %v2113, %v2114
  %v2116 = vsel %vm2104, %v1226, 0.0
  %v2117 = vadd.f32 %v2115, %v2116
  %v2118 = vsel %vm2104, %v1229, 0.0
  %v2119 = vadd.f32 %v2117, %v2118
  %v2120 = vsel %vm2104, %v1234, 0.0
  %v2121 = vadd.f32 %v2119, %v2120
  %v2122 = vsel %vm2104, %v1237, 0.0
  %v2123 = vadd.f32 %v2121, %v2122
  %v2124 = vsel %vm2104, %v1242, 0.0
  %v2125 = vadd.f32 %v2123, %v2124
  %v2126 = vsel %vm2104, %v1245, 0.0
  %v2127 = vadd.f32 %v2125, %v2126
  %v2128 = vsel %vm2104, %v1250, 0.0
  %v2129 = vadd.f32 %v2127, %v2128
  %v2130 = vsel %vm2104, %v1253, 0.0
  %v2131 = vadd.f32 %v2129, %v2130
  %v2132 = vsel %vm2104, %v1258, 0.0
  %v2133 = vadd.f32 %v2131, %v2132
  %v2134 = vsel %vm2104, %v1261, 0.0
  %v2135 = vadd.f32 %v2133, %v2134
  %v2136 = vsel %vm2104, %v1266, 0.0
  %v2137 = vadd.f32 %v2135, %v2136
  %v2138 = vsel %vm2104, %v1269, 0.0
  %v2139 = vadd.f32 %v2137, %v2138
  %v2140 = vsel %vm2104, %v1274, 0.0
  %v2141 = vadd.f32 %v2139, %v2140
  %v2142 = vsel %vm2104, %v1277, 0.0
  %v2143 = vadd.f32 %v2141, %v2142
  %v2144 = vsel %vm2104, %v1282, 0.0
  %v2145 = vadd.f32 %v2143, %v2144
  %v2146 = vsel %vm2104, %v1285, 0.0
  %v2147 = vadd.f32 %v2145, %v2146
  %v2148 = vsel %vm2104, %v1290, 0.0
  %v2149 = vadd.f32 %v2147, %v2148
  %v2150 = vsel %vm2104, %v1293, 0.0
  %v2151 = vadd.f32 %v2149, %v2150
  %v2152 = vsel %vm2104, %v1298, 0.0
  %v2153 = vadd.f32 %v2151, %v2152
  %v2154 = vsel %vm2104, %v1301, 0.0
  %v2155 = vadd.f32 %v2153, %v2154
  %v2156 = vsel %vm2104, %v1306, 0.0
  %v2157 = vadd.f32 %v2155, %v2156
  %v2158 = vsel %vm2104, %v1309, 0.0
  %v2159 = vadd.f32 %v2157, %v2158
  %v2160 = vsel %vm2104, %v1314, 0.0
  %v2161 = vadd.f32 %v2159, %v2160
  %v2162 = vsel %vm2104, %v1317, 0.0
  %v2163 = vadd.f32 %v2161, %v2162
  %v2164 = vsel %vm2104, %v1322, 0.0
  %v2165 = vadd.f32 %v2163, %v2164
  %v2166 = vsel %vm2104, %v1325, 0.0
  %v2167 = vadd.f32 %v2165, %v2166
  %v2168 = vsel %vm2104, %v1330, 0.0
  %v2169 = vadd.f32 %v2167, %v2168
  %v2170 = vsel %vm2104, %v1333, 0.0
  %v2171 = vadd.f32 %v2169, %v2170
  %v2172 = vsel %vm2104, %v1338, 0.0
  %v2173 = vadd.f32 %v2171, %v2172
  %v2174 = vsel %vm2104, %v1341, 0.0
  %v2175 = vadd.f32 %v2173, %v2174
  %v2176 = vsel %vm2104, %v1346, 0.0
  %v2177 = vadd.f32 %v2175, %v2176
  %v2178 = vsel %vm2104, %v1349, 0.0
  %v2179 = vadd.f32 %v2177, %v2178
  %v2180 = vsel %vm2104, %v1354, 0.0
  %v2181 = vadd.f32 %v2179, %v2180
  %v2182 = vsel %vm2104, %v1357, 0.0
  %v2183 = vadd.f32 %v2181, %v2182
  %v2184 = vsel %vm2104, %v1362, 0.0
  %v2185 = vadd.f32 %v2183, %v2184
  %v2186 = vsel %vm2104, %v1365, 0.0
  %v2187 = vadd.f32 %v2185, %v2186
  %v2188 = vsel %vm2104, %v1370, 0.0
  %v2189 = vadd.f32 %v2187, %v2188
  %v2190 = vsel %vm2104, %v1373, 0.0
  %v2191 = vadd.f32 %v2189, %v2190
  %v2192 = vsel %vm2104, %v1378, 0.0
  %v2193 = vadd.f32 %v2191, %v2192
  %v2194 = vsel %vm2104, %v1381, 0.0
  %v2195 = vadd.f32 %v2193, %v2194
  %v2196 = vsel %vm2104, %v1386, 0.0
  %v2197 = vadd.f32 %v2195, %v2196
  %v2198 = vsel %vm2104, %v1389, 0.0
  %v2199 = vadd.f32 %v2197, %v2198
  %v2200 = vsel %vm2104, %v1394, 0.0
  %v2201 = vadd.f32 %v2199, %v2200
  %v2202 = vsel %vm2104, %v1397, 0.0
  %v2203 = vadd.f32 %v2201, %v2202
  %v2204 = vsel %vm2104, %v1402, 0.0
  %v2205 = vadd.f32 %v2203, %v2204
  %v2206 = vsel %vm2104, %v1405, 0.0
  %v2207 = vadd.f32 %v2205, %v2206
  %v2208 = vsel %vm2104, %v1410, 0.0
  %v2209 = vadd.f32 %v2207, %v2208
  %v2210 = vsel %vm2104, %v1413, 0.0
  %v2211 = vadd.f32 %v2209, %v2210
  %v2212 = vsel %vm2104, %v1418, 0.0
  %v2213 = vadd.f32 %v2211, %v2212
  %v2214 = vsel %vm2104, %v1421, 0.0
  %v2215 = vadd.f32 %v2213, %v2214
  %v2216 = vsel %vm2104, %v1426, 0.0
  %v2217 = vadd.f32 %v2215, %v2216
  %v2218 = vsel %vm2104, %v1429, 0.0
  %v2219 = vadd.f32 %v2217, %v2218
  %v2220 = vsel %vm2104, %v1434, 0.0
  %v2221 = vadd.f32 %v2219, %v2220
  %v2222 = vsel %vm2104, %v1437, 0.0
  %v2223 = vadd.f32 %v2221, %v2222
  %v2224 = vsel %vm2104, %v1442, 0.0
  %v2225 = vadd.f32 %v2223, %v2224
  %v2226 = vsel %vm2104, %v1445, 0.0
  %v2227 = vadd.f32 %v2225, %v2226
  %v2228 = vsel %vm2104, %v1450, 0.0
  %v2229 = vadd.f32 %v2227, %v2228
  %v2230 = vsel %vm2104, %v1453, 0.0
  %v2231 = vadd.f32 %v2229, %v2230
  %v2232 = vsel %vm2104, %v1458, 0.0
  %v2233 = vadd.f32 %v2231, %v2232
  %v2234 = vsel %vm2104, %v1461, 0.0
  %v2235 = vadd.f32 %v2233, %v2234
  %v2236 = vsel %vm2104, %v1466, 0.0
  %v2237 = vadd.f32 %v2235, %v2236
  %v2238 = vsel %vm2104, %v1469, 0.0
  %v2239 = vadd.f32 %v2237, %v2238
  %v2240 = vsel %vm2104, %v1474, 0.0
  %v2241 = vadd.f32 %v2239, %v2240
  %v2242 = vsel %vm2104, %v1477, 0.0
  %v2243 = vadd.f32 %v2241, %v2242
  %v2244 = vsel %vm2104, %v1482, 0.0
  %v2245 = vadd.f32 %v2243, %v2244
  %v2246 = vsel %vm2104, %v1485, 0.0
  %v2247 = vadd.f32 %v2245, %v2246
  %v2248 = vsel %vm2104, %v1490, 0.0
  %v2249 = vadd.f32 %v2247, %v2248
  %v2250 = vsel %vm2104, %v1493, 0.0
  %v2251 = vadd.f32 %v2249, %v2250
  %v2252 = vsel %vm2104, %v1498, 0.0
  %v2253 = vadd.f32 %v2251, %v2252
  %v2254 = vsel %vm2104, %v1501, 0.0
  %v2255 = vadd.f32 %v2253, %v2254
  %v2256 = vsel %vm2104, %v1506, 0.0
  %v2257 = vadd.f32 %v2255, %v2256
  %v2258 = vsel %vm2104, %v1509, 0.0
  %v2259 = vadd.f32 %v2257, %v2258
  %v2260 = vsel %vm2104, %v1514, 0.0
  %v2261 = vadd.f32 %v2259, %v2260
  %v2262 = vsel %vm2104, %v1517, 0.0
  %v2263 = vadd.f32 %v2261, %v2262
  %v2264 = vsel %vm2104, %v1522, 0.0
  %v2265 = vadd.f32 %v2263, %v2264
  %v2266 = vsel %vm2104, %v1525, 0.0
  %v2267 = vadd.f32 %v2265, %v2266
  %v2268 = vsel %vm2104, %v1530, 0.0
  %v2269 = vadd.f32 %v2267, %v2268
  %v2270 = vsel %vm2104, %v1533, 0.0
  %v2271 = vadd.f32 %v2269, %v2270
  %v2272 = vsel %vm2104, %v1538, 0.0
  %v2273 = vadd.f32 %v2271, %v2272
  %v2274 = vsel %vm2104, %v1541, 0.0
  %v2275 = vadd.f32 %v2273, %v2274
  %v2276 = vsel %vm2104, %v1546, 0.0
  %v2277 = vadd.f32 %v2275, %v2276
  %v2278 = vsel %vm2104, %v1549, 0.0
  %v2279 = vadd.f32 %v2277, %v2278
  %v2280 = vsel %vm2104, %v1554, 0.0
  %v2281 = vadd.f32 %v2279, %v2280
  %v2282 = vsel %vm2104, %v1557, 0.0
  %v2283 = vadd.f32 %v2281, %v2282
  %v2284 = vsel %vm2104, %v1562, 0.0
  %v2285 = vadd.f32 %v2283, %v2284
  %v2286 = vsel %vm2104, %v1565, 0.0
  %v2287 = vadd.f32 %v2285, %v2286
  %v2288 = vsel %vm2104, %v1570, 0.0
  %v2289 = vadd.f32 %v2287, %v2288
  %v2290 = vsel %vm2104, %v1573, 0.0
  %v2291 = vadd.f32 %v2289, %v2290
  %v2292 = vsel %vm2104, %v1578, 0.0
  %v2293 = vadd.f32 %v2291, %v2292
  %v2294 = vsel %vm2104, %v1581, 0.0
  %v2295 = vadd.f32 %v2293, %v2294
  %v2296 = vsel %vm2104, %v1586, 0.0
  %v2297 = vadd.f32 %v2295, %v2296
  %v2298 = vsel %vm2104, %v1589, 0.0
  %v2299 = vadd.f32 %v2297, %v2298
  %v2300 = vsel %vm2104, %v1594, 0.0
  %v2301 = vadd.f32 %v2299, %v2300
  %v2302 = vsel %vm2104, %v1597, 0.0
  %v2303 = vadd.f32 %v2301, %v2302
  %v2304 = vsel %vm2104, %v1602, 0.0
  %v2305 = vadd.f32 %v2303, %v2304
  %v2306 = vsel %vm2104, %v1605, 0.0
  %v2307 = vadd.f32 %v2305, %v2306
  %v2308 = vsel %vm2104, %v1610, 0.0
  %v2309 = vadd.f32 %v2307, %v2308
  %v2310 = vsel %vm2104, %v1613, 0.0
  %v2311 = vadd.f32 %v2309, %v2310
  %v2312 = vsel %vm2104, %v1618, 0.0
  %v2313 = vadd.f32 %v2311, %v2312
  %v2314 = vsel %vm2104, %v1621, 0.0
  %v2315 = vadd.f32 %v2313, %v2314
  %v2316 = vsel %vm2104, %v1626, 0.0
  %v2317 = vadd.f32 %v2315, %v2316
  %v2318 = vsel %vm2104, %v1629, 0.0
  %v2319 = vadd.f32 %v2317, %v2318
  %v2320 = vsel %vm2104, %v1634, 0.0
  %v2321 = vadd.f32 %v2319, %v2320
  %v2322 = vsel %vm2104, %v1637, 0.0
  %v2323 = vadd.f32 %v2321, %v2322
  %v2324 = vsel %vm2104, %v1642, 0.0
  %v2325 = vadd.f32 %v2323, %v2324
  %v2326 = vsel %vm2104, %v1645, 0.0
  %v2327 = vadd.f32 %v2325, %v2326
  %v2328 = vsel %vm2104, %v1650, 0.0
  %v2329 = vadd.f32 %v2327, %v2328
  %v2330 = vsel %vm2104, %v1653, 0.0
  %v2331 = vadd.f32 %v2329, %v2330
  %v2332 = vsel %vm2104, %v1658, 0.0
  %v2333 = vadd.f32 %v2331, %v2332
  %v2334 = vsel %vm2104, %v1661, 0.0
  %v2335 = vadd.f32 %v2333, %v2334
  %v2336 = vsel %vm2104, %v1666, 0.0
  %v2337 = vadd.f32 %v2335, %v2336
  %v2338 = vsel %vm2104, %v1669, 0.0
  %v2339 = vadd.f32 %v2337, %v2338
  %v2340 = vsel %vm2104, %v1674, 0.0
  %v2341 = vadd.f32 %v2339, %v2340
  %v2342 = vsel %vm2104, %v1677, 0.0
  %v2343 = vadd.f32 %v2341, %v2342
  %v2344 = vsel %vm2104, %v1682, 0.0
  %v2345 = vadd.f32 %v2343, %v2344
  %v2346 = vsel %vm2104, %v1685, 0.0
  %v2347 = vadd.f32 %v2345, %v2346
  %v2348 = vsel %vm2104, %v1690, 0.0
  %v2349 = vadd.f32 %v2347, %v2348
  %v2350 = vsel %vm2104, %v1693, 0.0
  %v2351 = vadd.f32 %v2349, %v2350
  %v2352 = vsel %vm2104, %v1698, 0.0
  %v2353 = vadd.f32 %v2351, %v2352
  %v2354 = vsel %vm2104, %v1701, 0.0
  %v2355 = vadd.f32 %v2353, %v2354
  %v2356 = vsel %vm2104, %v1706, 0.0
  %v2357 = vadd.f32 %v2355, %v2356
  %v2358 = vsel %vm2104, %v1709, 0.0
  %v2359 = vadd.f32 %v2357, %v2358
  %v2360 = vsel %vm2104, %v1714, 0.0
  %v2361 = vadd.f32 %v2359, %v2360
  %v2362 = vsel %vm2104, %v1717, 0.0
  %v2363 = vadd.f32 %v2361, %v2362
  %v2364 = vsel %vm2104, %v1722, 0.0
  %v2365 = vadd.f32 %v2363, %v2364
  %v2366 = vsel %vm2104, %v1725, 0.0
  %v2367 = vadd.f32 %v2365, %v2366
  %v2368 = vsel %vm2104, %v1730, 0.0
  %v2369 = vadd.f32 %v2367, %v2368
  %v2370 = vsel %vm2104, %v1733, 0.0
  %v2371 = vadd.f32 %v2369, %v2370
  %v2372 = vsel %vm2104, %v1738, 0.0
  %v2373 = vadd.f32 %v2371, %v2372
  %v2374 = vsel %vm2104, %v1741, 0.0
  %v2375 = vadd.f32 %v2373, %v2374
  %v2376 = vsel %vm2104, %v1746, 0.0
  %v2377 = vadd.f32 %v2375, %v2376
  %v2378 = vsel %vm2104, %v1749, 0.0
  %v2379 = vadd.f32 %v2377, %v2378
  %v2380 = vsel %vm2104, %v1754, 0.0
  %v2381 = vadd.f32 %v2379, %v2380
  %v2382 = vsel %vm2104, %v1757, 0.0
  %v2383 = vadd.f32 %v2381, %v2382
  %v2384 = vsel %vm2104, %v1762, 0.0
  %v2385 = vadd.f32 %v2383, %v2384
  %v2386 = vsel %vm2104, %v1765, 0.0
  %v2387 = vadd.f32 %v2385, %v2386
  %v2388 = vsel %vm2104, %v1770, 0.0
  %v2389 = vadd.f32 %v2387, %v2388
  %v2390 = vsel %vm2104, %v1773, 0.0
  %v2391 = vadd.f32 %v2389, %v2390
  %v2392 = vsel %vm2104, %v1778, 0.0
  %v2393 = vadd.f32 %v2391, %v2392
  %v2394 = vsel %vm2104, %v1781, 0.0
  %v2395 = vadd.f32 %v2393, %v2394
  %v2396 = vsel %vm2104, %v1786, 0.0
  %v2397 = vadd.f32 %v2395, %v2396
  %v2398 = vsel %vm2104, %v1789, 0.0
  %v2399 = vadd.f32 %v2397, %v2398
  %v2400 = vsel %vm2104, %v1794, 0.0
  %v2401 = vadd.f32 %v2399, %v2400
  %v2402 = vsel %vm2104, %v1797, 0.0
  %v2403 = vadd.f32 %v2401, %v2402
  %v2404 = vsel %vm2104, %v1802, 0.0
  %v2405 = vadd.f32 %v2403, %v2404
  %v2406 = vsel %vm2104, %v1805, 0.0
  %v2407 = vadd.f32 %v2405, %v2406
  %v2408 = vsel %vm2104, %v1810, 0.0
  %v2409 = vadd.f32 %v2407, %v2408
  %v2410 = vsel %vm2104, %v1813, 0.0
  %v2411 = vadd.f32 %v2409, %v2410
  %v2412 = vsel %vm2104, %v1818, 0.0
  %v2413 = vadd.f32 %v2411, %v2412
  %v2414 = vsel %vm2104, %v1821, 0.0
  %v2415 = vadd.f32 %v2413, %v2414
  %v2416 = vsel %vm2104, %v1826, 0.0
  %v2417 = vadd.f32 %v2415, %v2416
  %v2418 = vsel %vm2104, %v1829, 0.0
  %v2419 = vadd.f32 %v2417, %v2418
  %v2420 = vsel %vm2104, %v1834, 0.0
  %v2421 = vadd.f32 %v2419, %v2420
  %v2422 = vsel %vm2104, %v1837, 0.0
  %v2423 = vadd.f32 %v2421, %v2422
  %v2424 = vsel %vm2104, %v1842, 0.0
  %v2425 = vadd.f32 %v2423, %v2424
  %v2426 = vsel %vm2104, %v1845, 0.0
  %v2427 = vadd.f32 %v2425, %v2426
  %v2428 = vsel %vm2104, %v1850, 0.0
  %v2429 = vadd.f32 %v2427, %v2428
  %v2430 = vsel %vm2104, %v1853, 0.0
  %v2431 = vadd.f32 %v2429, %v2430
  %v2432 = vsel %vm2104, %v1858, 0.0
  %v2433 = vadd.f32 %v2431, %v2432
  %v2434 = vsel %vm2104, %v1861, 0.0
  %v2435 = vadd.f32 %v2433, %v2434
  %v2436 = vsel %vm2104, %v1866, 0.0
  %v2437 = vadd.f32 %v2435, %v2436
  %v2438 = vsel %vm2104, %v1869, 0.0
  %v2439 = vadd.f32 %v2437, %v2438
  %v2440 = vsel %vm2104, %v1874, 0.0
  %v2441 = vadd.f32 %v2439, %v2440
  %v2442 = vsel %vm2104, %v1877, 0.0
  %v2443 = vadd.f32 %v2441, %v2442
  %v2444 = vsel %vm2104, %v1882, 0.0
  %v2445 = vadd.f32 %v2443, %v2444
  %v2446 = vsel %vm2104, %v1885, 0.0
  %v2447 = vadd.f32 %v2445, %v2446
  %v2448 = vsel %vm2104, %v1890, 0.0
  %v2449 = vadd.f32 %v2447, %v2448
  %v2450 = vsel %vm2104, %v1893, 0.0
  %v2451 = vadd.f32 %v2449, %v2450
  %v2452 = vsel %vm2104, %v1898, 0.0
  %v2453 = vadd.f32 %v2451, %v2452
  %v2454 = vsel %vm2104, %v1901, 0.0
  %v2455 = vadd.f32 %v2453, %v2454
  %v2456 = vsel %vm2104, %v1906, 0.0
  %v2457 = vadd.f32 %v2455, %v2456
  %v2458 = vsel %vm2104, %v1909, 0.0
  %v2459 = vadd.f32 %v2457, %v2458
  %v2460 = vsel %vm2104, %v1914, 0.0
  %v2461 = vadd.f32 %v2459, %v2460
  %v2462 = vsel %vm2104, %v1917, 0.0
  %v2463 = vadd.f32 %v2461, %v2462
  %v2464 = vsel %vm2104, %v1922, 0.0
  %v2465 = vadd.f32 %v2463, %v2464
  %v2466 = vsel %vm2104, %v1925, 0.0
  %v2467 = vadd.f32 %v2465, %v2466
  %v2468 = vsel %vm2104, %v1930, 0.0
  %v2469 = vadd.f32 %v2467, %v2468
  %v2470 = vsel %vm2104, %v1933, 0.0
  %v2471 = vadd.f32 %v2469, %v2470
  %v2472 = vsel %vm2104, %v1938, 0.0
  %v2473 = vadd.f32 %v2471, %v2472
  %v2474 = vsel %vm2104, %v1941, 0.0
  %v2475 = vadd.f32 %v2473, %v2474
  %v2476 = vsel %vm2104, %v1946, 0.0
  %v2477 = vadd.f32 %v2475, %v2476
  %v2478 = vsel %vm2104, %v1949, 0.0
  %v2479 = vadd.f32 %v2477, %v2478
  %v2480 = vsel %vm2104, %v1954, 0.0
  %v2481 = vadd.f32 %v2479, %v2480
  %v2482 = vsel %vm2104, %v1957, 0.0
  %v2483 = vadd.f32 %v2481, %v2482
  %v2484 = vsel %vm2104, %v1962, 0.0
  %v2485 = vadd.f32 %v2483, %v2484
  %v2486 = vsel %vm2104, %v1965, 0.0
  %v2487 = vadd.f32 %v2485, %v2486
  %v2488 = vsel %vm2104, %v1970, 0.0
  %v2489 = vadd.f32 %v2487, %v2488
  %v2490 = vsel %vm2104, %v1973, 0.0
  %v2491 = vadd.f32 %v2489, %v2490
  %v2492 = vsel %vm2104, %v1978, 0.0
  %v2493 = vadd.f32 %v2491, %v2492
  %v2494 = vsel %vm2104, %v1981, 0.0
  %v2495 = vadd.f32 %v2493, %v2494
  %v2496 = vsel %vm2104, %v1986, 0.0
  %v2497 = vadd.f32 %v2495, %v2496
  %v2498 = vsel %vm2104, %v1989, 0.0
  %v2499 = vadd.f32 %v2497, %v2498
  %v2500 = vsel %vm2104, %v1994, 0.0
  %v2501 = vadd.f32 %v2499, %v2500
  %v2502 = vsel %vm2104, %v1997, 0.0
  %v2503 = vadd.f32 %v2501, %v2502
  %v2504 = vsel %vm2104, %v2002, 0.0
  %v2505 = vadd.f32 %v2503, %v2504
  %v2506 = vsel %vm2104, %v2005, 0.0
  %v2507 = vadd.f32 %v2505, %v2506
  %v2508 = vsel %vm2104, %v2010, 0.0
  %v2509 = vadd.f32 %v2507, %v2508
  %v2510 = vsel %vm2104, %v2013, 0.0
  %v2511 = vadd.f32 %v2509, %v2510
  %v2512 = vsel %vm2104, %v2018, 0.0
  %v2513 = vadd.f32 %v2511, %v2512
  %v2514 = vsel %vm2104, %v2021, 0.0
  %v2515 = vadd.f32 %v2513, %v2514
  %v2516 = vsel %vm2104, %v2026, 0.0
  %v2517 = vadd.f32 %v2515, %v2516
  %v2518 = vsel %vm2104, %v2029, 0.0
  %v2519 = vadd.f32 %v2517, %v2518
  %v2520 = vsel %vm2104, %v2034, 0.0
  %v2521 = vadd.f32 %v2519, %v2520
  %v2522 = vsel %vm2104, %v2037, 0.0
  %v2523 = vadd.f32 %v2521, %v2522
  %v2524 = vsel %vm2104, %v2042, 0.0
  %v2525 = vadd.f32 %v2523, %v2524
  %v2526 = vsel %vm2104, %v2045, 0.0
  %v2527 = vadd.f32 %v2525, %v2526
  %v2528 = vsel %vm2104, %v2050, 0.0
  %v2529 = vadd.f32 %v2527, %v2528
  %v2530 = vsel %vm2104, %v2053, 0.0
  %v2531 = vadd.f32 %v2529, %v2530
  %v2532 = vsel %vm2104, %v2058, 0.0
  %v2533 = vadd.f32 %v2531, %v2532
  %v2534 = vsel %vm2104, %v2061, 0.0
  %v2535 = vadd.f32 %v2533, %v2534
  %v2536 = vsel %vm2104, %v2066, 0.0
  %v2537 = vadd.f32 %v2535, %v2536
  %v2538 = vsel %vm2104, %v2069, 0.0
  %v2539 = vadd.f32 %v2537, %v2538
  %v2540 = vsel %vm2104, %v2074, 0.0
  %v2541 = vadd.f32 %v2539, %v2540
  %v2542 = vsel %vm2104, %v2077, 0.0
  %v2543 = vadd.f32 %v2541, %v2542
  %v2544 = vsel %vm2104, %v2082, 0.0
  %v2545 = vadd.f32 %v2543, %v2544
  %v2546 = vsel %vm2104, %v2085, 0.0
  %v2547 = vadd.f32 %v2545, %v2546
  %v2548 = vsel %vm2104, %v2090, 0.0
  %v2549 = vadd.f32 %v2547, %v2548
  %v2550 = vsel %vm2104, %v2093, 0.0
  %v2551 = vadd.f32 %v2549, %v2550
  %v2552 = vsel %vm2104, %v2098, 0.0
  %v2553 = vadd.f32 %v2551, %v2552
  %v2554 = vrot.slane %v2553, 4
  %v2555 = vadd.f32 %v2553, %v2554
  %v2556 = vrot.slane %v2555, 2
  %v2557 = vadd.f32 %v2555, %v2556
  %v2558 = vrot.slane %v2557, 1
  %v2559 = vadd.f32 %v2557, %v2558
  %v2560 = vmul.f32 %v2559, 0.00055555557
  %v2561 = vmul.f32 %v1202, %v1202
  %v2562 = vmul.f32 %v1205, %v1205
  %v2563 = vmul.f32 %v1210, %v1210
  %v2564 = vmul.f32 %v1213, %v1213
  %v2565 = vmul.f32 %v1218, %v1218
  %v2566 = vmul.f32 %v1221, %v1221
  %v2567 = vmul.f32 %v1226, %v1226
  %v2568 = vmul.f32 %v1229, %v1229
  %v2569 = vmul.f32 %v1234, %v1234
  %v2570 = vmul.f32 %v1237, %v1237
  %v2571 = vmul.f32 %v1242, %v1242
  %v2572 = vmul.f32 %v1245, %v1245
  %v2573 = vmul.f32 %v1250, %v1250
  %v2574 = vmul.f32 %v1253, %v1253
  %v2575 = vmul.f32 %v1258, %v1258
  %v2576 = vmul.f32 %v1261, %v1261
  %v2577 = vmul.f32 %v1266, %v1266
  %v2578 = vmul.f32 %v1269, %v1269
  %v2579 = vmul.f32 %v1274, %v1274
  %v2580 = vmul.f32 %v1277, %v1277
  %v2581 = vmul.f32 %v1282, %v1282
  %v2582 = vmul.f32 %v1285, %v1285
  %v2583 = vmul.f32 %v1290, %v1290
  %v2584 = vmul.f32 %v1293, %v1293
  %v2585 = vmul.f32 %v1298, %v1298
  %v2586 = vmul.f32 %v1301, %v1301
  %v2587 = vmul.f32 %v1306, %v1306
  %v2588 = vmul.f32 %v1309, %v1309
  %v2589 = vmul.f32 %v1314, %v1314
  %v2590 = vmul.f32 %v1317, %v1317
  %v2591 = vmul.f32 %v1322, %v1322
  %v2592 = vmul.f32 %v1325, %v1325
  %v2593 = vmul.f32 %v1330, %v1330
  %v2594 = vmul.f32 %v1333, %v1333
  %v2595 = vmul.f32 %v1338, %v1338
  %v2596 = vmul.f32 %v1341, %v1341
  %v2597 = vmul.f32 %v1346, %v1346
  %v2598 = vmul.f32 %v1349, %v1349
  %v2599 = vmul.f32 %v1354, %v1354
  %v2600 = vmul.f32 %v1357, %v1357
  %v2601 = vmul.f32 %v1362, %v1362
  %v2602 = vmul.f32 %v1365, %v1365
  %v2603 = vmul.f32 %v1370, %v1370
  %v2604 = vmul.f32 %v1373, %v1373
  %v2605 = vmul.f32 %v1378, %v1378
  %v2606 = vmul.f32 %v1381, %v1381
  %v2607 = vmul.f32 %v1386, %v1386
  %v2608 = vmul.f32 %v1389, %v1389
  %v2609 = vmul.f32 %v1394, %v1394
  %v2610 = vmul.f32 %v1397, %v1397
  %v2611 = vmul.f32 %v1402, %v1402
  %v2612 = vmul.f32 %v1405, %v1405
  %v2613 = vmul.f32 %v1410, %v1410
  %v2614 = vmul.f32 %v1413, %v1413
  %v2615 = vmul.f32 %v1418, %v1418
  %v2616 = vmul.f32 %v1421, %v1421
  %v2617 = vmul.f32 %v1426, %v1426
  %v2618 = vmul.f32 %v1429, %v1429
  %v2619 = vmul.f32 %v1434, %v1434
  %v2620 = vmul.f32 %v1437, %v1437
  %v2621 = vmul.f32 %v1442, %v1442
  %v2622 = vmul.f32 %v1445, %v1445
  %v2623 = vmul.f32 %v1450, %v1450
  %v2624 = vmul.f32 %v1453, %v1453
  %v2625 = vmul.f32 %v1458, %v1458
  %v2626 = vmul.f32 %v1461, %v1461
  %v2627 = vmul.f32 %v1466, %v1466
  %v2628 = vmul.f32 %v1469, %v1469
  %v2629 = vmul.f32 %v1474, %v1474
  %v2630 = vmul.f32 %v1477, %v1477
  %v2631 = vmul.f32 %v1482, %v1482
  %v2632 = vmul.f32 %v1485, %v1485
  %v2633 = vmul.f32 %v1490, %v1490
  %v2634 = vmul.f32 %v1493, %v1493
  %v2635 = vmul.f32 %v1498, %v1498
  %v2636 = vmul.f32 %v1501, %v1501
  %v2637 = vmul.f32 %v1506, %v1506
  %v2638 = vmul.f32 %v1509, %v1509
  %v2639 = vmul.f32 %v1514, %v1514
  %v2640 = vmul.f32 %v1517, %v1517
  %v2641 = vmul.f32 %v1522, %v1522
  %v2642 = vmul.f32 %v1525, %v1525
  %v2643 = vmul.f32 %v1530, %v1530
  %v2644 = vmul.f32 %v1533, %v1533
  %v2645 = vmul.f32 %v1538, %v1538
  %v2646 = vmul.f32 %v1541, %v1541
  %v2647 = vmul.f32 %v1546, %v1546
  %v2648 = vmul.f32 %v1549, %v1549
  %v2649 = vmul.f32 %v1554, %v1554
  %v2650 = vmul.f32 %v1557, %v1557
  %v2651 = vmul.f32 %v1562, %v1562
  %v2652 = vmul.f32 %v1565, %v1565
  %v2653 = vmul.f32 %v1570, %v1570
  %v2654 = vmul.f32 %v1573, %v1573
  %v2655 = vmul.f32 %v1578, %v1578
  %v2656 = vmul.f32 %v1581, %v1581
  %v2657 = vmul.f32 %v1586, %v1586
  %v2658 = vmul.f32 %v1589, %v1589
  %v2659 = vmul.f32 %v1594, %v1594
  %v2660 = vmul.f32 %v1597, %v1597
  %v2661 = vmul.f32 %v1602, %v1602
  %v2662 = vmul.f32 %v1605, %v1605
  %v2663 = vmul.f32 %v1610, %v1610
  %v2664 = vmul.f32 %v1613, %v1613
  %v2665 = vmul.f32 %v1618, %v1618
  %v2666 = vmul.f32 %v1621, %v1621
  %v2667 = vmul.f32 %v1626, %v1626
  %v2668 = vmul.f32 %v1629, %v1629
  %v2669 = vmul.f32 %v1634, %v1634
  %v2670 = vmul.f32 %v1637, %v1637
  %v2671 = vmul.f32 %v1642, %v1642
  %v2672 = vmul.f32 %v1645, %v1645
  %v2673 = vmul.f32 %v1650, %v1650
  %v2674 = vmul.f32 %v1653, %v1653
  %v2675 = vmul.f32 %v1658, %v1658
  %v2676 = vmul.f32 %v1661, %v1661
  %v2677 = vmul.f32 %v1666, %v1666
  %v2678 = vmul.f32 %v1669, %v1669
  %v2679 = vmul.f32 %v1674, %v1674
  %v2680 = vmul.f32 %v1677, %v1677
  %v2681 = vmul.f32 %v1682, %v1682
  %v2682 = vmul.f32 %v1685, %v1685
  %v2683 = vmul.f32 %v1690, %v1690
  %v2684 = vmul.f32 %v1693, %v1693
  %v2685 = vmul.f32 %v1698, %v1698
  %v2686 = vmul.f32 %v1701, %v1701
  %v2687 = vmul.f32 %v1706, %v1706
  %v2688 = vmul.f32 %v1709, %v1709
  %v2689 = vmul.f32 %v1714, %v1714
  %v2690 = vmul.f32 %v1717, %v1717
  %v2691 = vmul.f32 %v1722, %v1722
  %v2692 = vmul.f32 %v1725, %v1725
  %v2693 = vmul.f32 %v1730, %v1730
  %v2694 = vmul.f32 %v1733, %v1733
  %v2695 = vmul.f32 %v1738, %v1738
  %v2696 = vmul.f32 %v1741, %v1741
  %v2697 = vmul.f32 %v1746, %v1746
  %v2698 = vmul.f32 %v1749, %v1749
  %v2699 = vmul.f32 %v1754, %v1754
  %v2700 = vmul.f32 %v1757, %v1757
  %v2701 = vmul.f32 %v1762, %v1762
  %v2702 = vmul.f32 %v1765, %v1765
  %v2703 = vmul.f32 %v1770, %v1770
  %v2704 = vmul.f32 %v1773, %v1773
  %v2705 = vmul.f32 %v1778, %v1778
  %v2706 = vmul.f32 %v1781, %v1781
  %v2707 = vmul.f32 %v1786, %v1786
  %v2708 = vmul.f32 %v1789, %v1789
  %v2709 = vmul.f32 %v1794, %v1794
  %v2710 = vmul.f32 %v1797, %v1797
  %v2711 = vmul.f32 %v1802, %v1802
  %v2712 = vmul.f32 %v1805, %v1805
  %v2713 = vmul.f32 %v1810, %v1810
  %v2714 = vmul.f32 %v1813, %v1813
  %v2715 = vmul.f32 %v1818, %v1818
  %v2716 = vmul.f32 %v1821, %v1821
  %v2717 = vmul.f32 %v1826, %v1826
  %v2718 = vmul.f32 %v1829, %v1829
  %v2719 = vmul.f32 %v1834, %v1834
  %v2720 = vmul.f32 %v1837, %v1837
  %v2721 = vmul.f32 %v1842, %v1842
  %v2722 = vmul.f32 %v1845, %v1845
  %v2723 = vmul.f32 %v1850, %v1850
  %v2724 = vmul.f32 %v1853, %v1853
  %v2725 = vmul.f32 %v1858, %v1858
  %v2726 = vmul.f32 %v1861, %v1861
  %v2727 = vmul.f32 %v1866, %v1866
  %v2728 = vmul.f32 %v1869, %v1869
  %v2729 = vmul.f32 %v1874, %v1874
  %v2730 = vmul.f32 %v1877, %v1877
  %v2731 = vmul.f32 %v1882, %v1882
  %v2732 = vmul.f32 %v1885, %v1885
  %v2733 = vmul.f32 %v1890, %v1890
  %v2734 = vmul.f32 %v1893, %v1893
  %v2735 = vmul.f32 %v1898, %v1898
  %v2736 = vmul.f32 %v1901, %v1901
  %v2737 = vmul.f32 %v1906, %v1906
  %v2738 = vmul.f32 %v1909, %v1909
  %v2739 = vmul.f32 %v1914, %v1914
  %v2740 = vmul.f32 %v1917, %v1917
  %v2741 = vmul.f32 %v1922, %v1922
  %v2742 = vmul.f32 %v1925, %v1925
  %v2743 = vmul.f32 %v1930, %v1930
  %v2744 = vmul.f32 %v1933, %v1933
  %v2745 = vmul.f32 %v1938, %v1938
  %v2746 = vmul.f32 %v1941, %v1941
  %v2747 = vmul.f32 %v1946, %v1946
  %v2748 = vmul.f32 %v1949, %v1949
  %v2749 = vmul.f32 %v1954, %v1954
  %v2750 = vmul.f32 %v1957, %v1957
  %v2751 = vmul.f32 %v1962, %v1962
  %v2752 = vmul.f32 %v1965, %v1965
  %v2753 = vmul.f32 %v1970, %v1970
  %v2754 = vmul.f32 %v1973, %v1973
  %v2755 = vmul.f32 %v1978, %v1978
  %v2756 = vmul.f32 %v1981, %v1981
  %v2757 = vmul.f32 %v1986, %v1986
  %v2758 = vmul.f32 %v1989, %v1989
  %v2759 = vmul.f32 %v1994, %v1994
  %v2760 = vmul.f32 %v1997, %v1997
  %v2761 = vmul.f32 %v2002, %v2002
  %v2762 = vmul.f32 %v2005, %v2005
  %v2763 = vmul.f32 %v2010, %v2010
  %v2764 = vmul.f32 %v2013, %v2013
  %v2765 = vmul.f32 %v2018, %v2018
  %v2766 = vmul.f32 %v2021, %v2021
  %v2767 = vmul.f32 %v2026, %v2026
  %v2768 = vmul.f32 %v2029, %v2029
  %v2769 = vmul.f32 %v2034, %v2034
  %v2770 = vmul.f32 %v2037, %v2037
  %v2771 = vmul.f32 %v2042, %v2042
  %v2772 = vmul.f32 %v2045, %v2045
  %v2773 = vmul.f32 %v2050, %v2050
  %v2774 = vmul.f32 %v2053, %v2053
  %v2775 = vmul.f32 %v2058, %v2058
  %v2776 = vmul.f32 %v2061, %v2061
  %v2777 = vmul.f32 %v2066, %v2066
  %v2778 = vmul.f32 %v2069, %v2069
  %v2779 = vmul.f32 %v2074, %v2074
  %v2780 = vmul.f32 %v2077, %v2077
  %v2781 = vmul.f32 %v2082, %v2082
  %v2782 = vmul.f32 %v2085, %v2085
  %v2783 = vmul.f32 %v2090, %v2090
  %v2784 = vmul.f32 %v2093, %v2093
  %v2785 = vmul.f32 %v2098, %v2098
  %v2786 = vsel %vm2104, %v2561, 0.0
  %v2787 = vsel %vm2104, %v2562, 0.0
  %v2788 = vadd.f32 %v2786, %v2787
  %v2789 = vsel %vm2104, %v2563, 0.0
  %v2790 = vadd.f32 %v2788, %v2789
  %v2791 = vsel %vm2104, %v2564, 0.0
  %v2792 = vadd.f32 %v2790, %v2791
  %v2793 = vsel %vm2104, %v2565, 0.0
  %v2794 = vadd.f32 %v2792, %v2793
  %v2795 = vsel %vm2104, %v2566, 0.0
  %v2796 = vadd.f32 %v2794, %v2795
  %v2797 = vsel %vm2104, %v2567, 0.0
  %v2798 = vadd.f32 %v2796, %v2797
  %v2799 = vsel %vm2104, %v2568, 0.0
  %v2800 = vadd.f32 %v2798, %v2799
  %v2801 = vsel %vm2104, %v2569, 0.0
  %v2802 = vadd.f32 %v2800, %v2801
  %v2803 = vsel %vm2104, %v2570, 0.0
  %v2804 = vadd.f32 %v2802, %v2803
  %v2805 = vsel %vm2104, %v2571, 0.0
  %v2806 = vadd.f32 %v2804, %v2805
  %v2807 = vsel %vm2104, %v2572, 0.0
  %v2808 = vadd.f32 %v2806, %v2807
  %v2809 = vsel %vm2104, %v2573, 0.0
  %v2810 = vadd.f32 %v2808, %v2809
  %v2811 = vsel %vm2104, %v2574, 0.0
  %v2812 = vadd.f32 %v2810, %v2811
  %v2813 = vsel %vm2104, %v2575, 0.0
  %v2814 = vadd.f32 %v2812, %v2813
  %v2815 = vsel %vm2104, %v2576, 0.0
  %v2816 = vadd.f32 %v2814, %v2815
  %v2817 = vsel %vm2104, %v2577, 0.0
  %v2818 = vadd.f32 %v2816, %v2817
  %v2819 = vsel %vm2104, %v2578, 0.0
  %v2820 = vadd.f32 %v2818, %v2819
  %v2821 = vsel %vm2104, %v2579, 0.0
  %v2822 = vadd.f32 %v2820, %v2821
  %v2823 = vsel %vm2104, %v2580, 0.0
  %v2824 = vadd.f32 %v2822, %v2823
  %v2825 = vsel %vm2104, %v2581, 0.0
  %v2826 = vadd.f32 %v2824, %v2825
  %v2827 = vsel %vm2104, %v2582, 0.0
  %v2828 = vadd.f32 %v2826, %v2827
  %v2829 = vsel %vm2104, %v2583, 0.0
  %v2830 = vadd.f32 %v2828, %v2829
  %v2831 = vsel %vm2104, %v2584, 0.0
  %v2832 = vadd.f32 %v2830, %v2831
  %v2833 = vsel %vm2104, %v2585, 0.0
  %v2834 = vadd.f32 %v2832, %v2833
  %v2835 = vsel %vm2104, %v2586, 0.0
  %v2836 = vadd.f32 %v2834, %v2835
  %v2837 = vsel %vm2104, %v2587, 0.0
  %v2838 = vadd.f32 %v2836, %v2837
  %v2839 = vsel %vm2104, %v2588, 0.0
  %v2840 = vadd.f32 %v2838, %v2839
  %v2841 = vsel %vm2104, %v2589, 0.0
  %v2842 = vadd.f32 %v2840, %v2841
  %v2843 = vsel %vm2104, %v2590, 0.0
  %v2844 = vadd.f32 %v2842, %v2843
  %v2845 = vsel %vm2104, %v2591, 0.0
  %v2846 = vadd.f32 %v2844, %v2845
  %v2847 = vsel %vm2104, %v2592, 0.0
  %v2848 = vadd.f32 %v2846, %v2847
  %v2849 = vsel %vm2104, %v2593, 0.0
  %v2850 = vadd.f32 %v2848, %v2849
  %v2851 = vsel %vm2104, %v2594, 0.0
  %v2852 = vadd.f32 %v2850, %v2851
  %v2853 = vsel %vm2104, %v2595, 0.0
  %v2854 = vadd.f32 %v2852, %v2853
  %v2855 = vsel %vm2104, %v2596, 0.0
  %v2856 = vadd.f32 %v2854, %v2855
  %v2857 = vsel %vm2104, %v2597, 0.0
  %v2858 = vadd.f32 %v2856, %v2857
  %v2859 = vsel %vm2104, %v2598, 0.0
  %v2860 = vadd.f32 %v2858, %v2859
  %v2861 = vsel %vm2104, %v2599, 0.0
  %v2862 = vadd.f32 %v2860, %v2861
  %v2863 = vsel %vm2104, %v2600, 0.0
  %v2864 = vadd.f32 %v2862, %v2863
  %v2865 = vsel %vm2104, %v2601, 0.0
  %v2866 = vadd.f32 %v2864, %v2865
  %v2867 = vsel %vm2104, %v2602, 0.0
  %v2868 = vadd.f32 %v2866, %v2867
  %v2869 = vsel %vm2104, %v2603, 0.0
  %v2870 = vadd.f32 %v2868, %v2869
  %v2871 = vsel %vm2104, %v2604, 0.0
  %v2872 = vadd.f32 %v2870, %v2871
  %v2873 = vsel %vm2104, %v2605, 0.0
  %v2874 = vadd.f32 %v2872, %v2873
  %v2875 = vsel %vm2104, %v2606, 0.0
  %v2876 = vadd.f32 %v2874, %v2875
  %v2877 = vsel %vm2104, %v2607, 0.0
  %v2878 = vadd.f32 %v2876, %v2877
  %v2879 = vsel %vm2104, %v2608, 0.0
  %v2880 = vadd.f32 %v2878, %v2879
  %v2881 = vsel %vm2104, %v2609, 0.0
  %v2882 = vadd.f32 %v2880, %v2881
  %v2883 = vsel %vm2104, %v2610, 0.0
  %v2884 = vadd.f32 %v2882, %v2883
  %v2885 = vsel %vm2104, %v2611, 0.0
  %v2886 = vadd.f32 %v2884, %v2885
  %v2887 = vsel %vm2104, %v2612, 0.0
  %v2888 = vadd.f32 %v2886, %v2887
  %v2889 = vsel %vm2104, %v2613, 0.0
  %v2890 = vadd.f32 %v2888, %v2889
  %v2891 = vsel %vm2104, %v2614, 0.0
  %v2892 = vadd.f32 %v2890, %v2891
  %v2893 = vsel %vm2104, %v2615, 0.0
  %v2894 = vadd.f32 %v2892, %v2893
  %v2895 = vsel %vm2104, %v2616, 0.0
  %v2896 = vadd.f32 %v2894, %v2895
  %v2897 = vsel %vm2104, %v2617, 0.0
  %v2898 = vadd.f32 %v2896, %v2897
  %v2899 = vsel %vm2104, %v2618, 0.0
  %v2900 = vadd.f32 %v2898, %v2899
  %v2901 = vsel %vm2104, %v2619, 0.0
  %v2902 = vadd.f32 %v2900, %v2901
  %v2903 = vsel %vm2104, %v2620, 0.0
  %v2904 = vadd.f32 %v2902, %v2903
  %v2905 = vsel %vm2104, %v2621, 0.0
  %v2906 = vadd.f32 %v2904, %v2905
  %v2907 = vsel %vm2104, %v2622, 0.0
  %v2908 = vadd.f32 %v2906, %v2907
  %v2909 = vsel %vm2104, %v2623, 0.0
  %v2910 = vadd.f32 %v2908, %v2909
  %v2911 = vsel %vm2104, %v2624, 0.0
  %v2912 = vadd.f32 %v2910, %v2911
  %v2913 = vsel %vm2104, %v2625, 0.0
  %v2914 = vadd.f32 %v2912, %v2913
  %v2915 = vsel %vm2104, %v2626, 0.0
  %v2916 = vadd.f32 %v2914, %v2915
  %v2917 = vsel %vm2104, %v2627, 0.0
  %v2918 = vadd.f32 %v2916, %v2917
  %v2919 = vsel %vm2104, %v2628, 0.0
  %v2920 = vadd.f32 %v2918, %v2919
  %v2921 = vsel %vm2104, %v2629, 0.0
  %v2922 = vadd.f32 %v2920, %v2921
  %v2923 = vsel %vm2104, %v2630, 0.0
  %v2924 = vadd.f32 %v2922, %v2923
  %v2925 = vsel %vm2104, %v2631, 0.0
  %v2926 = vadd.f32 %v2924, %v2925
  %v2927 = vsel %vm2104, %v2632, 0.0
  %v2928 = vadd.f32 %v2926, %v2927
  %v2929 = vsel %vm2104, %v2633, 0.0
  %v2930 = vadd.f32 %v2928, %v2929
  %v2931 = vsel %vm2104, %v2634, 0.0
  %v2932 = vadd.f32 %v2930, %v2931
  %v2933 = vsel %vm2104, %v2635, 0.0
  %v2934 = vadd.f32 %v2932, %v2933
  %v2935 = vsel %vm2104, %v2636, 0.0
  %v2936 = vadd.f32 %v2934, %v2935
  %v2937 = vsel %vm2104, %v2637, 0.0
  %v2938 = vadd.f32 %v2936, %v2937
  %v2939 = vsel %vm2104, %v2638, 0.0
  %v2940 = vadd.f32 %v2938, %v2939
  %v2941 = vsel %vm2104, %v2639, 0.0
  %v2942 = vadd.f32 %v2940, %v2941
  %v2943 = vsel %vm2104, %v2640, 0.0
  %v2944 = vadd.f32 %v2942, %v2943
  %v2945 = vsel %vm2104, %v2641, 0.0
  %v2946 = vadd.f32 %v2944, %v2945
  %v2947 = vsel %vm2104, %v2642, 0.0
  %v2948 = vadd.f32 %v2946, %v2947
  %v2949 = vsel %vm2104, %v2643, 0.0
  %v2950 = vadd.f32 %v2948, %v2949
  %v2951 = vsel %vm2104, %v2644, 0.0
  %v2952 = vadd.f32 %v2950, %v2951
  %v2953 = vsel %vm2104, %v2645, 0.0
  %v2954 = vadd.f32 %v2952, %v2953
  %v2955 = vsel %vm2104, %v2646, 0.0
  %v2956 = vadd.f32 %v2954, %v2955
  %v2957 = vsel %vm2104, %v2647, 0.0
  %v2958 = vadd.f32 %v2956, %v2957
  %v2959 = vsel %vm2104, %v2648, 0.0
  %v2960 = vadd.f32 %v2958, %v2959
  %v2961 = vsel %vm2104, %v2649, 0.0
  %v2962 = vadd.f32 %v2960, %v2961
  %v2963 = vsel %vm2104, %v2650, 0.0
  %v2964 = vadd.f32 %v2962, %v2963
  %v2965 = vsel %vm2104, %v2651, 0.0
  %v2966 = vadd.f32 %v2964, %v2965
  %v2967 = vsel %vm2104, %v2652, 0.0
  %v2968 = vadd.f32 %v2966, %v2967
  %v2969 = vsel %vm2104, %v2653, 0.0
  %v2970 = vadd.f32 %v2968, %v2969
  %v2971 = vsel %vm2104, %v2654, 0.0
  %v2972 = vadd.f32 %v2970, %v2971
  %v2973 = vsel %vm2104, %v2655, 0.0
  %v2974 = vadd.f32 %v2972, %v2973
  %v2975 = vsel %vm2104, %v2656, 0.0
  %v2976 = vadd.f32 %v2974, %v2975
  %v2977 = vsel %vm2104, %v2657, 0.0
  %v2978 = vadd.f32 %v2976, %v2977
  %v2979 = vsel %vm2104, %v2658, 0.0
  %v2980 = vadd.f32 %v2978, %v2979
  %v2981 = vsel %vm2104, %v2659, 0.0
  %v2982 = vadd.f32 %v2980, %v2981
  %v2983 = vsel %vm2104, %v2660, 0.0
  %v2984 = vadd.f32 %v2982, %v2983
  %v2985 = vsel %vm2104, %v2661, 0.0
  %v2986 = vadd.f32 %v2984, %v2985
  %v2987 = vsel %vm2104, %v2662, 0.0
  %v2988 = vadd.f32 %v2986, %v2987
  %v2989 = vsel %vm2104, %v2663, 0.0
  %v2990 = vadd.f32 %v2988, %v2989
  %v2991 = vsel %vm2104, %v2664, 0.0
  %v2992 = vadd.f32 %v2990, %v2991
  %v2993 = vsel %vm2104, %v2665, 0.0
  %v2994 = vadd.f32 %v2992, %v2993
  %v2995 = vsel %vm2104, %v2666, 0.0
  %v2996 = vadd.f32 %v2994, %v2995
  %v2997 = vsel %vm2104, %v2667, 0.0
  %v2998 = vadd.f32 %v2996, %v2997
  %v2999 = vsel %vm2104, %v2668, 0.0
  %v3000 = vadd.f32 %v2998, %v2999
  %v3001 = vsel %vm2104, %v2669, 0.0
  %v3002 = vadd.f32 %v3000, %v3001
  %v3003 = vsel %vm2104, %v2670, 0.0
  %v3004 = vadd.f32 %v3002, %v3003
  %v3005 = vsel %vm2104, %v2671, 0.0
  %v3006 = vadd.f32 %v3004, %v3005
  %v3007 = vsel %vm2104, %v2672, 0.0
  %v3008 = vadd.f32 %v3006, %v3007
  %v3009 = vsel %vm2104, %v2673, 0.0
  %v3010 = vadd.f32 %v3008, %v3009
  %v3011 = vsel %vm2104, %v2674, 0.0
  %v3012 = vadd.f32 %v3010, %v3011
  %v3013 = vsel %vm2104, %v2675, 0.0
  %v3014 = vadd.f32 %v3012, %v3013
  %v3015 = vsel %vm2104, %v2676, 0.0
  %v3016 = vadd.f32 %v3014, %v3015
  %v3017 = vsel %vm2104, %v2677, 0.0
  %v3018 = vadd.f32 %v3016, %v3017
  %v3019 = vsel %vm2104, %v2678, 0.0
  %v3020 = vadd.f32 %v3018, %v3019
  %v3021 = vsel %vm2104, %v2679, 0.0
  %v3022 = vadd.f32 %v3020, %v3021
  %v3023 = vsel %vm2104, %v2680, 0.0
  %v3024 = vadd.f32 %v3022, %v3023
  %v3025 = vsel %vm2104, %v2681, 0.0
  %v3026 = vadd.f32 %v3024, %v3025
  %v3027 = vsel %vm2104, %v2682, 0.0
  %v3028 = vadd.f32 %v3026, %v3027
  %v3029 = vsel %vm2104, %v2683, 0.0
  %v3030 = vadd.f32 %v3028, %v3029
  %v3031 = vsel %vm2104, %v2684, 0.0
  %v3032 = vadd.f32 %v3030, %v3031
  %v3033 = vsel %vm2104, %v2685, 0.0
  %v3034 = vadd.f32 %v3032, %v3033
  %v3035 = vsel %vm2104, %v2686, 0.0
  %v3036 = vadd.f32 %v3034, %v3035
  %v3037 = vsel %vm2104, %v2687, 0.0
  %v3038 = vadd.f32 %v3036, %v3037
  %v3039 = vsel %vm2104, %v2688, 0.0
  %v3040 = vadd.f32 %v3038, %v3039
  %v3041 = vsel %vm2104, %v2689, 0.0
  %v3042 = vadd.f32 %v3040, %v3041
  %v3043 = vsel %vm2104, %v2690, 0.0
  %v3044 = vadd.f32 %v3042, %v3043
  %v3045 = vsel %vm2104, %v2691, 0.0
  %v3046 = vadd.f32 %v3044, %v3045
  %v3047 = vsel %vm2104, %v2692, 0.0
  %v3048 = vadd.f32 %v3046, %v3047
  %v3049 = vsel %vm2104, %v2693, 0.0
  %v3050 = vadd.f32 %v3048, %v3049
  %v3051 = vsel %vm2104, %v2694, 0.0
  %v3052 = vadd.f32 %v3050, %v3051
  %v3053 = vsel %vm2104, %v2695, 0.0
  %v3054 = vadd.f32 %v3052, %v3053
  %v3055 = vsel %vm2104, %v2696, 0.0
  %v3056 = vadd.f32 %v3054, %v3055
  %v3057 = vsel %vm2104, %v2697, 0.0
  %v3058 = vadd.f32 %v3056, %v3057
  %v3059 = vsel %vm2104, %v2698, 0.0
  %v3060 = vadd.f32 %v3058, %v3059
  %v3061 = vsel %vm2104, %v2699, 0.0
  %v3062 = vadd.f32 %v3060, %v3061
  %v3063 = vsel %vm2104, %v2700, 0.0
  %v3064 = vadd.f32 %v3062, %v3063
  %v3065 = vsel %vm2104, %v2701, 0.0
  %v3066 = vadd.f32 %v3064, %v3065
  %v3067 = vsel %vm2104, %v2702, 0.0
  %v3068 = vadd.f32 %v3066, %v3067
  %v3069 = vsel %vm2104, %v2703, 0.0
  %v3070 = vadd.f32 %v3068, %v3069
  %v3071 = vsel %vm2104, %v2704, 0.0
  %v3072 = vadd.f32 %v3070, %v3071
  %v3073 = vsel %vm2104, %v2705, 0.0
  %v3074 = vadd.f32 %v3072, %v3073
  %v3075 = vsel %vm2104, %v2706, 0.0
  %v3076 = vadd.f32 %v3074, %v3075
  %v3077 = vsel %vm2104, %v2707, 0.0
  %v3078 = vadd.f32 %v3076, %v3077
  %v3079 = vsel %vm2104, %v2708, 0.0
  %v3080 = vadd.f32 %v3078, %v3079
  %v3081 = vsel %vm2104, %v2709, 0.0
  %v3082 = vadd.f32 %v3080, %v3081
  %v3083 = vsel %vm2104, %v2710, 0.0
  %v3084 = vadd.f32 %v3082, %v3083
  %v3085 = vsel %vm2104, %v2711, 0.0
  %v3086 = vadd.f32 %v3084, %v3085
  %v3087 = vsel %vm2104, %v2712, 0.0
  %v3088 = vadd.f32 %v3086, %v3087
  %v3089 = vsel %vm2104, %v2713, 0.0
  %v3090 = vadd.f32 %v3088, %v3089
  %v3091 = vsel %vm2104, %v2714, 0.0
  %v3092 = vadd.f32 %v3090, %v3091
  %v3093 = vsel %vm2104, %v2715, 0.0
  %v3094 = vadd.f32 %v3092, %v3093
  %v3095 = vsel %vm2104, %v2716, 0.0
  %v3096 = vadd.f32 %v3094, %v3095
  %v3097 = vsel %vm2104, %v2717, 0.0
  %v3098 = vadd.f32 %v3096, %v3097
  %v3099 = vsel %vm2104, %v2718, 0.0
  %v3100 = vadd.f32 %v3098, %v3099
  %v3101 = vsel %vm2104, %v2719, 0.0
  %v3102 = vadd.f32 %v3100, %v3101
  %v3103 = vsel %vm2104, %v2720, 0.0
  %v3104 = vadd.f32 %v3102, %v3103
  %v3105 = vsel %vm2104, %v2721, 0.0
  %v3106 = vadd.f32 %v3104, %v3105
  %v3107 = vsel %vm2104, %v2722, 0.0
  %v3108 = vadd.f32 %v3106, %v3107
  %v3109 = vsel %vm2104, %v2723, 0.0
  %v3110 = vadd.f32 %v3108, %v3109
  %v3111 = vsel %vm2104, %v2724, 0.0
  %v3112 = vadd.f32 %v3110, %v3111
  %v3113 = vsel %vm2104, %v2725, 0.0
  %v3114 = vadd.f32 %v3112, %v3113
  %v3115 = vsel %vm2104, %v2726, 0.0
  %v3116 = vadd.f32 %v3114, %v3115
  %v3117 = vsel %vm2104, %v2727, 0.0
  %v3118 = vadd.f32 %v3116, %v3117
  %v3119 = vsel %vm2104, %v2728, 0.0
  %v3120 = vadd.f32 %v3118, %v3119
  %v3121 = vsel %vm2104, %v2729, 0.0
  %v3122 = vadd.f32 %v3120, %v3121
  %v3123 = vsel %vm2104, %v2730, 0.0
  %v3124 = vadd.f32 %v3122, %v3123
  %v3125 = vsel %vm2104, %v2731, 0.0
  %v3126 = vadd.f32 %v3124, %v3125
  %v3127 = vsel %vm2104, %v2732, 0.0
  %v3128 = vadd.f32 %v3126, %v3127
  %v3129 = vsel %vm2104, %v2733, 0.0
  %v3130 = vadd.f32 %v3128, %v3129
  %v3131 = vsel %vm2104, %v2734, 0.0
  %v3132 = vadd.f32 %v3130, %v3131
  %v3133 = vsel %vm2104, %v2735, 0.0
  %v3134 = vadd.f32 %v3132, %v3133
  %v3135 = vsel %vm2104, %v2736, 0.0
  %v3136 = vadd.f32 %v3134, %v3135
  %v3137 = vsel %vm2104, %v2737, 0.0
  %v3138 = vadd.f32 %v3136, %v3137
  %v3139 = vsel %vm2104, %v2738, 0.0
  %v3140 = vadd.f32 %v3138, %v3139
  %v3141 = vsel %vm2104, %v2739, 0.0
  %v3142 = vadd.f32 %v3140, %v3141
  %v3143 = vsel %vm2104, %v2740, 0.0
  %v3144 = vadd.f32 %v3142, %v3143
  %v3145 = vsel %vm2104, %v2741, 0.0
  %v3146 = vadd.f32 %v3144, %v3145
  %v3147 = vsel %vm2104, %v2742, 0.0
  %v3148 = vadd.f32 %v3146, %v3147
  %v3149 = vsel %vm2104, %v2743, 0.0
  %v3150 = vadd.f32 %v3148, %v3149
  %v3151 = vsel %vm2104, %v2744, 0.0
  %v3152 = vadd.f32 %v3150, %v3151
  %v3153 = vsel %vm2104, %v2745, 0.0
  %v3154 = vadd.f32 %v3152, %v3153
  %v3155 = vsel %vm2104, %v2746, 0.0
  %v3156 = vadd.f32 %v3154, %v3155
  %v3157 = vsel %vm2104, %v2747, 0.0
  %v3158 = vadd.f32 %v3156, %v3157
  %v3159 = vsel %vm2104, %v2748, 0.0
  %v3160 = vadd.f32 %v3158, %v3159
  %v3161 = vsel %vm2104, %v2749, 0.0
  %v3162 = vadd.f32 %v3160, %v3161
  %v3163 = vsel %vm2104, %v2750, 0.0
  %v3164 = vadd.f32 %v3162, %v3163
  %v3165 = vsel %vm2104, %v2751, 0.0
  %v3166 = vadd.f32 %v3164, %v3165
  %v3167 = vsel %vm2104, %v2752, 0.0
  %v3168 = vadd.f32 %v3166, %v3167
  %v3169 = vsel %vm2104, %v2753, 0.0
  %v3170 = vadd.f32 %v3168, %v3169
  %v3171 = vsel %vm2104, %v2754, 0.0
  %v3172 = vadd.f32 %v3170, %v3171
  %v3173 = vsel %vm2104, %v2755, 0.0
  %v3174 = vadd.f32 %v3172, %v3173
  %v3175 = vsel %vm2104, %v2756, 0.0
  %v3176 = vadd.f32 %v3174, %v3175
  %v3177 = vsel %vm2104, %v2757, 0.0
  %v3178 = vadd.f32 %v3176, %v3177
  %v3179 = vsel %vm2104, %v2758, 0.0
  %v3180 = vadd.f32 %v3178, %v3179
  %v3181 = vsel %vm2104, %v2759, 0.0
  %v3182 = vadd.f32 %v3180, %v3181
  %v3183 = vsel %vm2104, %v2760, 0.0
  %v3184 = vadd.f32 %v3182, %v3183
  %v3185 = vsel %vm2104, %v2761, 0.0
  %v3186 = vadd.f32 %v3184, %v3185
  %v3187 = vsel %vm2104, %v2762, 0.0
  %v3188 = vadd.f32 %v3186, %v3187
  %v3189 = vsel %vm2104, %v2763, 0.0
  %v3190 = vadd.f32 %v3188, %v3189
  %v3191 = vsel %vm2104, %v2764, 0.0
  %v3192 = vadd.f32 %v3190, %v3191
  %v3193 = vsel %vm2104, %v2765, 0.0
  %v3194 = vadd.f32 %v3192, %v3193
  %v3195 = vsel %vm2104, %v2766, 0.0
  %v3196 = vadd.f32 %v3194, %v3195
  %v3197 = vsel %vm2104, %v2767, 0.0
  %v3198 = vadd.f32 %v3196, %v3197
  %v3199 = vsel %vm2104, %v2768, 0.0
  %v3200 = vadd.f32 %v3198, %v3199
  %v3201 = vsel %vm2104, %v2769, 0.0
  %v3202 = vadd.f32 %v3200, %v3201
  %v3203 = vsel %vm2104, %v2770, 0.0
  %v3204 = vadd.f32 %v3202, %v3203
  %v3205 = vsel %vm2104, %v2771, 0.0
  %v3206 = vadd.f32 %v3204, %v3205
  %v3207 = vsel %vm2104, %v2772, 0.0
  %v3208 = vadd.f32 %v3206, %v3207
  %v3209 = vsel %vm2104, %v2773, 0.0
  %v3210 = vadd.f32 %v3208, %v3209
  %v3211 = vsel %vm2104, %v2774, 0.0
  %v3212 = vadd.f32 %v3210, %v3211
  %v3213 = vsel %vm2104, %v2775, 0.0
  %v3214 = vadd.f32 %v3212, %v3213
  %v3215 = vsel %vm2104, %v2776, 0.0
  %v3216 = vadd.f32 %v3214, %v3215
  %v3217 = vsel %vm2104, %v2777, 0.0
  %v3218 = vadd.f32 %v3216, %v3217
  %v3219 = vsel %vm2104, %v2778, 0.0
  %v3220 = vadd.f32 %v3218, %v3219
  %v3221 = vsel %vm2104, %v2779, 0.0
  %v3222 = vadd.f32 %v3220, %v3221
  %v3223 = vsel %vm2104, %v2780, 0.0
  %v3224 = vadd.f32 %v3222, %v3223
  %v3225 = vsel %vm2104, %v2781, 0.0
  %v3226 = vadd.f32 %v3224, %v3225
  %v3227 = vsel %vm2104, %v2782, 0.0
  %v3228 = vadd.f32 %v3226, %v3227
  %v3229 = vsel %vm2104, %v2783, 0.0
  %v3230 = vadd.f32 %v3228, %v3229
  %v3231 = vsel %vm2104, %v2784, 0.0
  %v3232 = vadd.f32 %v3230, %v3231
  %v3233 = vsel %vm2104, %v2785, 0.0
  %v3234 = vadd.f32 %v3232, %v3233
  %v3235 = vrot.slane %v3234, 4
  %v3236 = vadd.f32 %v3234, %v3235
  %v3237 = vrot.slane %v3236, 2
  %v3238 = vadd.f32 %v3236, %v3237
  %v3239 = vrot.slane %v3238, 1
  %v3240 = vadd.f32 %v3238, %v3239
  %v3241 = vmul.f32 %v3240, 0.00055555557
  %v3242 = vmul.f32 %v2560, %v2560
  %v3243 = vsub.f32 %v3241, %v3242
  %v3244 = vadd.f32 %v3243, 1e-05
  %v3245 = vrsqrt.pop %v3244
  %v3246 = vmul.f32 %v3245, %v2103
  %v3247 = vmul.f32 %v2560, %v3246
  %v3249 = vrot.slane %v3247, 7
  %v3251 = vsub.f32 %v2103, %v3249
  %v3252 = vlaneseq
  %v3253 = vshrl.u32 %v3252, 7
  %v3254 = vsub.s32 0, %v3253
  %v3255 = vrot.slane %v3246, %v3254
  %v3256 = vmul.f32 %v1202, %v3255
  %v3257 = vmul.f32 %v1205, %v3255
  %v3258 = vmul.f32 %v1210, %v3255
  %v3259 = vmul.f32 %v1213, %v3255
  %v3260 = vmul.f32 %v1218, %v3255
  %v3261 = vmul.f32 %v1221, %v3255
  %v3262 = vmul.f32 %v1226, %v3255
  %v3263 = vmul.f32 %v1229, %v3255
  %v3264 = vmul.f32 %v1234, %v3255
  %v3265 = vmul.f32 %v1237, %v3255
  %v3266 = vmul.f32 %v1242, %v3255
  %v3267 = vmul.f32 %v1245, %v3255
  %v3268 = vmul.f32 %v1250, %v3255
  %v3269 = vmul.f32 %v1253, %v3255
  %v3270 = vmul.f32 %v1258, %v3255
  %v3271 = vmul.f32 %v1261, %v3255
  %v3272 = vmul.f32 %v1266, %v3255
  %v3273 = vmul.f32 %v1269, %v3255
  %v3274 = vmul.f32 %v1274, %v3255
  %v3275 = vmul.f32 %v1277, %v3255
  %v3276 = vmul.f32 %v1282, %v3255
  %v3277 = vmul.f32 %v1285, %v3255
  %v3278 = vmul.f32 %v1290, %v3255
  %v3279 = vmul.f32 %v1293, %v3255
  %v3280 = vmul.f32 %v1298, %v3255
  %v3281 = vmul.f32 %v1301, %v3255
  %v3282 = vmul.f32 %v1306, %v3255
  %v3283 = vmul.f32 %v1309, %v3255
  %v3284 = vmul.f32 %v1314, %v3255
  %v3285 = vmul.f32 %v1317, %v3255
  %v3286 = vmul.f32 %v1322, %v3255
  %v3287 = vmul.f32 %v1325, %v3255
  %v3288 = vmul.f32 %v1330, %v3255
  %v3289 = vmul.f32 %v1333, %v3255
  %v3290 = vmul.f32 %v1338, %v3255
  %v3291 = vmul.f32 %v1341, %v3255
  %v3292 = vmul.f32 %v1346, %v3255
  %v3293 = vmul.f32 %v1349, %v3255
  %v3294 = vmul.f32 %v1354, %v3255
  %v3295 = vmul.f32 %v1357, %v3255
  %v3296 = vmul.f32 %v1362, %v3255
  %v3297 = vmul.f32 %v1365, %v3255
  %v3298 = vmul.f32 %v1370, %v3255
  %v3299 = vmul.f32 %v1373, %v3255
  %v3300 = vmul.f32 %v1378, %v3255
  %v3301 = vmul.f32 %v1381, %v3255
  %v3302 = vmul.f32 %v1386, %v3255
  %v3303 = vmul.f32 %v1389, %v3255
  %v3304 = vmul.f32 %v1394, %v3255
  %v3305 = vmul.f32 %v1397, %v3255
  %v3306 = vmul.f32 %v1402, %v3255
  %v3307 = vmul.f32 %v1405, %v3255
  %v3308 = vmul.f32 %v1410, %v3255
  %v3309 = vmul.f32 %v1413, %v3255
  %v3310 = vmul.f32 %v1418, %v3255
  %v3311 = vmul.f32 %v1421, %v3255
  %v3312 = vmul.f32 %v1426, %v3255
  %v3313 = vmul.f32 %v1429, %v3255
  %v3314 = vmul.f32 %v1434, %v3255
  %v3315 = vmul.f32 %v1437, %v3255
  %v3316 = vmul.f32 %v1442, %v3255
  %v3317 = vmul.f32 %v1445, %v3255
  %v3318 = vmul.f32 %v1450, %v3255
  %v3319 = vmul.f32 %v1453, %v3255
  %v3320 = vmul.f32 %v1458, %v3255
  %v3321 = vmul.f32 %v1461, %v3255
  %v3322 = vmul.f32 %v1466, %v3255
  %v3323 = vmul.f32 %v1469, %v3255
  %v3324 = vmul.f32 %v1474, %v3255
  %v3325 = vmul.f32 %v1477, %v3255
  %v3326 = vmul.f32 %v1482, %v3255
  %v3327 = vmul.f32 %v1485, %v3255
  %v3328 = vmul.f32 %v1490, %v3255
  %v3329 = vmul.f32 %v1493, %v3255
  %v3330 = vmul.f32 %v1498, %v3255
  %v3331 = vmul.f32 %v1501, %v3255
  %v3332 = vmul.f32 %v1506, %v3255
  %v3333 = vmul.f32 %v1509, %v3255
  %v3334 = vmul.f32 %v1514, %v3255
  %v3335 = vmul.f32 %v1517, %v3255
  %v3336 = vmul.f32 %v1522, %v3255
  %v3337 = vmul.f32 %v1525, %v3255
  %v3338 = vmul.f32 %v1530, %v3255
  %v3339 = vmul.f32 %v1533, %v3255
  %v3340 = vmul.f32 %v1538, %v3255
  %v3341 = vmul.f32 %v1541, %v3255
  %v3342 = vmul.f32 %v1546, %v3255
  %v3343 = vmul.f32 %v1549, %v3255
  %v3344 = vmul.f32 %v1554, %v3255
  %v3345 = vmul.f32 %v1557, %v3255
  %v3346 = vmul.f32 %v1562, %v3255
  %v3347 = vmul.f32 %v1565, %v3255
  %v3348 = vmul.f32 %v1570, %v3255
  %v3349 = vmul.f32 %v1573, %v3255
  %v3350 = vmul.f32 %v1578, %v3255
  %v3351 = vmul.f32 %v1581, %v3255
  %v3352 = vmul.f32 %v1586, %v3255
  %v3353 = vmul.f32 %v1589, %v3255
  %v3354 = vmul.f32 %v1594, %v3255
  %v3355 = vmul.f32 %v1597, %v3255
  %v3356 = vmul.f32 %v1602, %v3255
  %v3357 = vmul.f32 %v1605, %v3255
  %v3358 = vmul.f32 %v1610, %v3255
  %v3359 = vmul.f32 %v1613, %v3255
  %v3360 = vmul.f32 %v1618, %v3255
  %v3361 = vmul.f32 %v1621, %v3255
  %v3362 = vmul.f32 %v1626, %v3255
  %v3363 = vmul.f32 %v1629, %v3255
  %v3364 = vmul.f32 %v1634, %v3255
  %v3365 = vmul.f32 %v1637, %v3255
  %v3366 = vmul.f32 %v1642, %v3255
  %v3367 = vmul.f32 %v1645, %v3255
  %v3368 = vmul.f32 %v1650, %v3255
  %v3369 = vmul.f32 %v1653, %v3255
  %v3370 = vmul.f32 %v1658, %v3255
  %v3371 = vmul.f32 %v1661, %v3255
  %v3372 = vmul.f32 %v1666, %v3255
  %v3373 = vmul.f32 %v1669, %v3255
  %v3374 = vmul.f32 %v1674, %v3255
  %v3375 = vmul.f32 %v1677, %v3255
  %v3376 = vmul.f32 %v1682, %v3255
  %v3377 = vmul.f32 %v1685, %v3255
  %v3378 = vmul.f32 %v1690, %v3255
  %v3379 = vmul.f32 %v1693, %v3255
  %v3380 = vmul.f32 %v1698, %v3255
  %v3381 = vmul.f32 %v1701, %v3255
  %v3382 = vmul.f32 %v1706, %v3255
  %v3383 = vmul.f32 %v1709, %v3255
  %v3384 = vmul.f32 %v1714, %v3255
  %v3385 = vmul.f32 %v1717, %v3255
  %v3386 = vmul.f32 %v1722, %v3255
  %v3387 = vmul.f32 %v1725, %v3255
  %v3388 = vmul.f32 %v1730, %v3255
  %v3389 = vmul.f32 %v1733, %v3255
  %v3390 = vmul.f32 %v1738, %v3255
  %v3391 = vmul.f32 %v1741, %v3255
  %v3392 = vmul.f32 %v1746, %v3255
  %v3393 = vmul.f32 %v1749, %v3255
  %v3394 = vmul.f32 %v1754, %v3255
  %v3395 = vmul.f32 %v1757, %v3255
  %v3396 = vmul.f32 %v1762, %v3255
  %v3397 = vmul.f32 %v1765, %v3255
  %v3398 = vmul.f32 %v1770, %v3255
  %v3399 = vmul.f32 %v1773, %v3255
  %v3400 = vmul.f32 %v1778, %v3255
  %v3401 = vmul.f32 %v1781, %v3255
  %v3402 = vmul.f32 %v1786, %v3255
  %v3403 = vmul.f32 %v1789, %v3255
  %v3404 = vmul.f32 %v1794, %v3255
  %v3405 = vmul.f32 %v1797, %v3255
  %v3406 = vmul.f32 %v1802, %v3255
  %v3407 = vmul.f32 %v1805, %v3255
  %v3408 = vmul.f32 %v1810, %v3255
  %v3409 = vmul.f32 %v1813, %v3255
  %v3410 = vmul.f32 %v1818, %v3255
  %v3411 = vmul.f32 %v1821, %v3255
  %v3412 = vmul.f32 %v1826, %v3255
  %v3413 = vmul.f32 %v1829, %v3255
  %v3414 = vmul.f32 %v1834, %v3255
  %v3415 = vmul.f32 %v1837, %v3255
  %v3416 = vmul.f32 %v1842, %v3255
  %v3417 = vmul.f32 %v1845, %v3255
  %v3418 = vmul.f32 %v1850, %v3255
  %v3419 = vmul.f32 %v1853, %v3255
  %v3420 = vmul.f32 %v1858, %v3255
  %v3421 = vmul.f32 %v1861, %v3255
  %v3422 = vmul.f32 %v1866, %v3255
  %v3423 = vmul.f32 %v1869, %v3255
  %v3424 = vmul.f32 %v1874, %v3255
  %v3425 = vmul.f32 %v1877, %v3255
  %v3426 = vmul.f32 %v1882, %v3255
  %v3427 = vmul.f32 %v1885, %v3255
  %v3428 = vmul.f32 %v1890, %v3255
  %v3429 = vmul.f32 %v1893, %v3255
  %v3430 = vmul.f32 %v1898, %v3255
  %v3431 = vmul.f32 %v1901, %v3255
  %v3432 = vmul.f32 %v1906, %v3255
  %v3433 = vmul.f32 %v1909, %v3255
  %v3434 = vmul.f32 %v1914, %v3255
  %v3435 = vmul.f32 %v1917, %v3255
  %v3436 = vmul.f32 %v1922, %v3255
  %v3437 = vmul.f32 %v1925, %v3255
  %v3438 = vmul.f32 %v1930, %v3255
  %v3439 = vmul.f32 %v1933, %v3255
  %v3440 = vmul.f32 %v1938, %v3255
  %v3441 = vmul.f32 %v1941, %v3255
  %v3442 = vmul.f32 %v1946, %v3255
  %v3443 = vmul.f32 %v1949, %v3255
  %v3444 = vmul.f32 %v1954, %v3255
  %v3445 = vmul.f32 %v1957, %v3255
  %v3446 = vmul.f32 %v1962, %v3255
  %v3447 = vmul.f32 %v1965, %v3255
  %v3448 = vmul.f32 %v1970, %v3255
  %v3449 = vmul.f32 %v1973, %v3255
  %v3450 = vmul.f32 %v1978, %v3255
  %v3451 = vmul.f32 %v1981, %v3255
  %v3452 = vmul.f32 %v1986, %v3255
  %v3453 = vmul.f32 %v1989, %v3255
  %v3454 = vmul.f32 %v1994, %v3255
  %v3455 = vmul.f32 %v1997, %v3255
  %v3456 = vmul.f32 %v2002, %v3255
  %v3457 = vmul.f32 %v2005, %v3255
  %v3458 = vmul.f32 %v2010, %v3255
  %v3459 = vmul.f32 %v2013, %v3255
  %v3460 = vmul.f32 %v2018, %v3255
  %v3461 = vmul.f32 %v2021, %v3255
  %v3462 = vmul.f32 %v2026, %v3255
  %v3463 = vmul.f32 %v2029, %v3255
  %v3464 = vmul.f32 %v2034, %v3255
  %v3465 = vmul.f32 %v2037, %v3255
  %v3466 = vmul.f32 %v2042, %v3255
  %v3467 = vmul.f32 %v2045, %v3255
  %v3468 = vmul.f32 %v2050, %v3255
  %v3469 = vmul.f32 %v2053, %v3255
  %v3470 = vmul.f32 %v2058, %v3255
  %v3471 = vmul.f32 %v2061, %v3255
  %v3472 = vmul.f32 %v2066, %v3255
  %v3473 = vmul.f32 %v2069, %v3255
  %v3474 = vmul.f32 %v2074, %v3255
  %v3475 = vmul.f32 %v2077, %v3255
  %v3476 = vmul.f32 %v2082, %v3255
  %v3477 = vmul.f32 %v2085, %v3255
  %v3478 = vmul.f32 %v2090, %v3255
  %v3479 = vmul.f32 %v2093, %v3255
  %v3480 = vmul.f32 %v2098, %v3255
  %v3481 = vlaneseq
  %v3482 = vshrl.u32 %v3481, 7
  %v3483 = vsub.s32 1, %v3482
  %v3484 = vrot.slane %v3251, %v3483
  %v3485 = vadd.f32 %v3256, %v3484
  %v3486 = vadd.f32 %v3257, %v3484
  %v3487 = vadd.f32 %v3258, %v3484
  %v3488 = vadd.f32 %v3259, %v3484
  %v3489 = vadd.f32 %v3260, %v3484
  %v3490 = vadd.f32 %v3261, %v3484
  %v3491 = vadd.f32 %v3262, %v3484
  %v3492 = vadd.f32 %v3263, %v3484
  %v3493 = vadd.f32 %v3264, %v3484
  %v3494 = vadd.f32 %v3265, %v3484
  %v3495 = vadd.f32 %v3266, %v3484
  %v3496 = vadd.f32 %v3267, %v3484
  %v3497 = vadd.f32 %v3268, %v3484
  %v3498 = vadd.f32 %v3269, %v3484
  %v3499 = vadd.f32 %v3270, %v3484
  %v3500 = vadd.f32 %v3271, %v3484
  %v3501 = vadd.f32 %v3272, %v3484
  %v3502 = vadd.f32 %v3273, %v3484
  %v3503 = vadd.f32 %v3274, %v3484
  %v3504 = vadd.f32 %v3275, %v3484
  %v3505 = vadd.f32 %v3276, %v3484
  %v3506 = vadd.f32 %v3277, %v3484
  %v3507 = vadd.f32 %v3278, %v3484
  %v3508 = vadd.f32 %v3279, %v3484
  %v3509 = vadd.f32 %v3280, %v3484
  %v3510 = vadd.f32 %v3281, %v3484
  %v3511 = vadd.f32 %v3282, %v3484
  %v3512 = vadd.f32 %v3283, %v3484
  %v3513 = vadd.f32 %v3284, %v3484
  %v3514 = vadd.f32 %v3285, %v3484
  %v3515 = vadd.f32 %v3286, %v3484
  %v3516 = vadd.f32 %v3287, %v3484
  %v3517 = vadd.f32 %v3288, %v3484
  %v3518 = vadd.f32 %v3289, %v3484
  %v3519 = vadd.f32 %v3290, %v3484
  %v3520 = vadd.f32 %v3291, %v3484
  %v3521 = vadd.f32 %v3292, %v3484
  %v3522 = vadd.f32 %v3293, %v3484
  %v3523 = vadd.f32 %v3294, %v3484
  %v3524 = vadd.f32 %v3295, %v3484
  %v3525 = vadd.f32 %v3296, %v3484
  %v3526 = vadd.f32 %v3297, %v3484
  %v3527 = vadd.f32 %v3298, %v3484
  %v3528 = vadd.f32 %v3299, %v3484
  %v3529 = vadd.f32 %v3300, %v3484
  %v3530 = vadd.f32 %v3301, %v3484
  %v3531 = vadd.f32 %v3302, %v3484
  %v3532 = vadd.f32 %v3303, %v3484
  %v3533 = vadd.f32 %v3304, %v3484
  %v3534 = vadd.f32 %v3305, %v3484
  %v3535 = vadd.f32 %v3306, %v3484
  %v3536 = vadd.f32 %v3307, %v3484
  %v3537 = vadd.f32 %v3308, %v3484
  %v3538 = vadd.f32 %v3309, %v3484
  %v3539 = vadd.f32 %v3310, %v3484
  %v3540 = vadd.f32 %v3311, %v3484
  %v3541 = vadd.f32 %v3312, %v3484
  %v3542 = vadd.f32 %v3313, %v3484
  %v3543 = vadd.f32 %v3314, %v3484
  %v3544 = vadd.f32 %v3315, %v3484
  %v3545 = vadd.f32 %v3316, %v3484
  %v3546 = vadd.f32 %v3317, %v3484
  %v3547 = vadd.f32 %v3318, %v3484
  %v3548 = vadd.f32 %v3319, %v3484
  %v3549 = vadd.f32 %v3320, %v3484
  %v3550 = vadd.f32 %v3321, %v3484
  %v3551 = vadd.f32 %v3322, %v3484
  %v3552 = vadd.f32 %v3323, %v3484
  %v3553 = vadd.f32 %v3324, %v3484
  %v3554 = vadd.f32 %v3325, %v3484
  %v3555 = vadd.f32 %v3326, %v3484
  %v3556 = vadd.f32 %v3327, %v3484
  %v3557 = vadd.f32 %v3328, %v3484
  %v3558 = vadd.f32 %v3329, %v3484
  %v3559 = vadd.f32 %v3330, %v3484
  %v3560 = vadd.f32 %v3331, %v3484
  %v3561 = vadd.f32 %v3332, %v3484
  %v3562 = vadd.f32 %v3333, %v3484
  %v3563 = vadd.f32 %v3334, %v3484
  %v3564 = vadd.f32 %v3335, %v3484
  %v3565 = vadd.f32 %v3336, %v3484
  %v3566 = vadd.f32 %v3337, %v3484
  %v3567 = vadd.f32 %v3338, %v3484
  %v3568 = vadd.f32 %v3339, %v3484
  %v3569 = vadd.f32 %v3340, %v3484
  %v3570 = vadd.f32 %v3341, %v3484
  %v3571 = vadd.f32 %v3342, %v3484
  %v3572 = vadd.f32 %v3343, %v3484
  %v3573 = vadd.f32 %v3344, %v3484
  %v3574 = vadd.f32 %v3345, %v3484
  %v3575 = vadd.f32 %v3346, %v3484
  %v3576 = vadd.f32 %v3347, %v3484
  %v3577 = vadd.f32 %v3348, %v3484
  %v3578 = vadd.f32 %v3349, %v3484
  %v3579 = vadd.f32 %v3350, %v3484
  %v3580 = vadd.f32 %v3351, %v3484
  %v3581 = vadd.f32 %v3352, %v3484
  %v3582 = vadd.f32 %v3353, %v3484
  %v3583 = vadd.f32 %v3354, %v3484
  %v3584 = vadd.f32 %v3355, %v3484
  %v3585 = vadd.f32 %v3356, %v3484
  %v3586 = vadd.f32 %v3357, %v3484
  %v3587 = vadd.f32 %v3358, %v3484
  %v3588 = vadd.f32 %v3359, %v3484
  %v3589 = vadd.f32 %v3360, %v3484
  %v3590 = vadd.f32 %v3361, %v3484
  %v3591 = vadd.f32 %v3362, %v3484
  %v3592 = vadd.f32 %v3363, %v3484
  %v3593 = vadd.f32 %v3364, %v3484
  %v3594 = vadd.f32 %v3365, %v3484
  %v3595 = vadd.f32 %v3366, %v3484
  %v3596 = vadd.f32 %v3367, %v3484
  %v3597 = vadd.f32 %v3368, %v3484
  %v3598 = vadd.f32 %v3369, %v3484
  %v3599 = vadd.f32 %v3370, %v3484
  %v3600 = vadd.f32 %v3371, %v3484
  %v3601 = vadd.f32 %v3372, %v3484
  %v3602 = vadd.f32 %v3373, %v3484
  %v3603 = vadd.f32 %v3374, %v3484
  %v3604 = vadd.f32 %v3375, %v3484
  %v3605 = vadd.f32 %v3376, %v3484
  %v3606 = vadd.f32 %v3377, %v3484
  %v3607 = vadd.f32 %v3378, %v3484
  %v3608 = vadd.f32 %v3379, %v3484
  %v3609 = vadd.f32 %v3380, %v3484
  %v3610 = vadd.f32 %v3381, %v3484
  %v3611 = vadd.f32 %v3382, %v3484
  %v3612 = vadd.f32 %v3383, %v3484
  %v3613 = vadd.f32 %v3384, %v3484
  %v3614 = vadd.f32 %v3385, %v3484
  %v3615 = vadd.f32 %v3386, %v3484
  %v3616 = vadd.f32 %v3387, %v3484
  %v3617 = vadd.f32 %v3388, %v3484
  %v3618 = vadd.f32 %v3389, %v3484
  %v3619 = vadd.f32 %v3390, %v3484
  %v3620 = vadd.f32 %v3391, %v3484
  %v3621 = vadd.f32 %v3392, %v3484
  %v3622 = vadd.f32 %v3393, %v3484
  %v3623 = vadd.f32 %v3394, %v3484
  %v3624 = vadd.f32 %v3395, %v3484
  %v3625 = vadd.f32 %v3396, %v3484
  %v3626 = vadd.f32 %v3397, %v3484
  %v3627 = vadd.f32 %v3398, %v3484
  %v3628 = vadd.f32 %v3399, %v3484
  %v3629 = vadd.f32 %v3400, %v3484
  %v3630 = vadd.f32 %v3401, %v3484
  %v3631 = vadd.f32 %v3402, %v3484
  %v3632 = vadd.f32 %v3403, %v3484
  %v3633 = vadd.f32 %v3404, %v3484
  %v3634 = vadd.f32 %v3405, %v3484
  %v3635 = vadd.f32 %v3406, %v3484
  %v3636 = vadd.f32 %v3407, %v3484
  %v3637 = vadd.f32 %v3408, %v3484
  %v3638 = vadd.f32 %v3409, %v3484
  %v3639 = vadd.f32 %v3410, %v3484
  %v3640 = vadd.f32 %v3411, %v3484
  %v3641 = vadd.f32 %v3412, %v3484
  %v3642 = vadd.f32 %v3413, %v3484
  %v3643 = vadd.f32 %v3414, %v3484
  %v3644 = vadd.f32 %v3415, %v3484
  %v3645 = vadd.f32 %v3416, %v3484
  %v3646 = vadd.f32 %v3417, %v3484
  %v3647 = vadd.f32 %v3418, %v3484
  %v3648 = vadd.f32 %v3419, %v3484
  %v3649 = vadd.f32 %v3420, %v3484
  %v3650 = vadd.f32 %v3421, %v3484
  %v3651 = vadd.f32 %v3422, %v3484
  %v3652 = vadd.f32 %v3423, %v3484
  %v3653 = vadd.f32 %v3424, %v3484
  %v3654 = vadd.f32 %v3425, %v3484
  %v3655 = vadd.f32 %v3426, %v3484
  %v3656 = vadd.f32 %v3427, %v3484
  %v3657 = vadd.f32 %v3428, %v3484
  %v3658 = vadd.f32 %v3429, %v3484
  %v3659 = vadd.f32 %v3430, %v3484
  %v3660 = vadd.f32 %v3431, %v3484
  %v3661 = vadd.f32 %v3432, %v3484
  %v3662 = vadd.f32 %v3433, %v3484
  %v3663 = vadd.f32 %v3434, %v3484
  %v3664 = vadd.f32 %v3435, %v3484
  %v3665 = vadd.f32 %v3436, %v3484
  %v3666 = vadd.f32 %v3437, %v3484
  %v3667 = vadd.f32 %v3438, %v3484
  %v3668 = vadd.f32 %v3439, %v3484
  %v3669 = vadd.f32 %v3440, %v3484
  %v3670 = vadd.f32 %v3441, %v3484
  %v3671 = vadd.f32 %v3442, %v3484
  %v3672 = vadd.f32 %v3443, %v3484
  %v3673 = vadd.f32 %v3444, %v3484
  %v3674 = vadd.f32 %v3445, %v3484
  %v3675 = vadd.f32 %v3446, %v3484
  %v3676 = vadd.f32 %v3447, %v3484
  %v3677 = vadd.f32 %v3448, %v3484
  %v3678 = vadd.f32 %v3449, %v3484
  %v3679 = vadd.f32 %v3450, %v3484
  %v3680 = vadd.f32 %v3451, %v3484
  %v3681 = vadd.f32 %v3452, %v3484
  %v3682 = vadd.f32 %v3453, %v3484
  %v3683 = vadd.f32 %v3454, %v3484
  %v3684 = vadd.f32 %v3455, %v3484
  %v3685 = vadd.f32 %v3456, %v3484
  %v3686 = vadd.f32 %v3457, %v3484
  %v3687 = vadd.f32 %v3458, %v3484
  %v3688 = vadd.f32 %v3459, %v3484
  %v3689 = vadd.f32 %v3460, %v3484
  %v3690 = vadd.f32 %v3461, %v3484
  %v3691 = vadd.f32 %v3462, %v3484
  %v3692 = vadd.f32 %v3463, %v3484
  %v3693 = vadd.f32 %v3464, %v3484
  %v3694 = vadd.f32 %v3465, %v3484
  %v3695 = vadd.f32 %v3466, %v3484
  %v3696 = vadd.f32 %v3467, %v3484
  %v3697 = vadd.f32 %v3468, %v3484
  %v3698 = vadd.f32 %v3469, %v3484
  %v3699 = vadd.f32 %v3470, %v3484
  %v3700 = vadd.f32 %v3471, %v3484
  %v3701 = vadd.f32 %v3472, %v3484
  %v3702 = vadd.f32 %v3473, %v3484
  %v3703 = vadd.f32 %v3474, %v3484
  %v3704 = vadd.f32 %v3475, %v3484
  %v3705 = vadd.f32 %v3476, %v3484
  %v3706 = vadd.f32 %v3477, %v3484
  %v3707 = vadd.f32 %v3478, %v3484
  %v3708 = vadd.f32 %v3479, %v3484
  %v3709 = vadd.f32 %v3480, %v3484
  %v3710 = vmax.f32 %v3485, 0.0
  %v3711 = vmax.f32 %v3486, 0.0
  %v3712 = vmax.f32 %v3487, 0.0
  %v3713 = vmax.f32 %v3488, 0.0
  %v3714 = vmax.f32 %v3489, 0.0
  %v3715 = vmax.f32 %v3490, 0.0
  %v3716 = vmax.f32 %v3491, 0.0
  %v3717 = vmax.f32 %v3492, 0.0
  %v3718 = vmax.f32 %v3493, 0.0
  %v3719 = vmax.f32 %v3494, 0.0
  %v3720 = vmax.f32 %v3495, 0.0
  %v3721 = vmax.f32 %v3496, 0.0
  %v3722 = vmax.f32 %v3497, 0.0
  %v3723 = vmax.f32 %v3498, 0.0
  %v3724 = vmax.f32 %v3499, 0.0
  %v3725 = vmax.f32 %v3500, 0.0
  %v3726 = vmax.f32 %v3501, 0.0
  %v3727 = vmax.f32 %v3502, 0.0
  %v3728 = vmax.f32 %v3503, 0.0
  %v3729 = vmax.f32 %v3504, 0.0
  %v3730 = vmax.f32 %v3505, 0.0
  %v3731 = vmax.f32 %v3506, 0.0
  %v3732 = vmax.f32 %v3507, 0.0
  %v3733 = vmax.f32 %v3508, 0.0
  %v3734 = vmax.f32 %v3509, 0.0
  %v3735 = vmax.f32 %v3510, 0.0
  %v3736 = vmax.f32 %v3511, 0.0
  %v3737 = vmax.f32 %v3512, 0.0
  %v3738 = vmax.f32 %v3513, 0.0
  %v3739 = vmax.f32 %v3514, 0.0
  %v3740 = vmax.f32 %v3515, 0.0
  %v3741 = vmax.f32 %v3516, 0.0
  %v3742 = vmax.f32 %v3517, 0.0
  %v3743 = vmax.f32 %v3518, 0.0
  %v3744 = vmax.f32 %v3519, 0.0
  %v3745 = vmax.f32 %v3520, 0.0
  %v3746 = vmax.f32 %v3521, 0.0
  %v3747 = vmax.f32 %v3522, 0.0
  %v3748 = vmax.f32 %v3523, 0.0
  %v3749 = vmax.f32 %v3524, 0.0
  %v3750 = vmax.f32 %v3525, 0.0
  %v3751 = vmax.f32 %v3526, 0.0
  %v3752 = vmax.f32 %v3527, 0.0
  %v3753 = vmax.f32 %v3528, 0.0
  %v3754 = vmax.f32 %v3529, 0.0
  %v3755 = vmax.f32 %v3530, 0.0
  %v3756 = vmax.f32 %v3531, 0.0
  %v3757 = vmax.f32 %v3532, 0.0
  %v3758 = vmax.f32 %v3533, 0.0
  %v3759 = vmax.f32 %v3534, 0.0
  %v3760 = vmax.f32 %v3535, 0.0
  %v3761 = vmax.f32 %v3536, 0.0
  %v3762 = vmax.f32 %v3537, 0.0
  %v3763 = vmax.f32 %v3538, 0.0
  %v3764 = vmax.f32 %v3539, 0.0
  %v3765 = vmax.f32 %v3540, 0.0
  %v3766 = vmax.f32 %v3541, 0.0
  %v3767 = vmax.f32 %v3542, 0.0
  %v3768 = vmax.f32 %v3543, 0.0
  %v3769 = vmax.f32 %v3544, 0.0
  %v3770 = vmax.f32 %v3545, 0.0
  %v3771 = vmax.f32 %v3546, 0.0
  %v3772 = vmax.f32 %v3547, 0.0
  %v3773 = vmax.f32 %v3548, 0.0
  %v3774 = vmax.f32 %v3549, 0.0
  %v3775 = vmax.f32 %v3550, 0.0
  %v3776 = vmax.f32 %v3551, 0.0
  %v3777 = vmax.f32 %v3552, 0.0
  %v3778 = vmax.f32 %v3553, 0.0
  %v3779 = vmax.f32 %v3554, 0.0
  %v3780 = vmax.f32 %v3555, 0.0
  %v3781 = vmax.f32 %v3556, 0.0
  %v3782 = vmax.f32 %v3557, 0.0
  %v3783 = vmax.f32 %v3558, 0.0
  %v3784 = vmax.f32 %v3559, 0.0
  %v3785 = vmax.f32 %v3560, 0.0
  %v3786 = vmax.f32 %v3561, 0.0
  %v3787 = vmax.f32 %v3562, 0.0
  %v3788 = vmax.f32 %v3563, 0.0
  %v3789 = vmax.f32 %v3564, 0.0
  %v3790 = vmax.f32 %v3565, 0.0
  %v3791 = vmax.f32 %v3566, 0.0
  %v3792 = vmax.f32 %v3567, 0.0
  %v3793 = vmax.f32 %v3568, 0.0
  %v3794 = vmax.f32 %v3569, 0.0
  %v3795 = vmax.f32 %v3570, 0.0
  %v3796 = vmax.f32 %v3571, 0.0
  %v3797 = vmax.f32 %v3572, 0.0
  %v3798 = vmax.f32 %v3573, 0.0
  %v3799 = vmax.f32 %v3574, 0.0
  %v3800 = vmax.f32 %v3575, 0.0
  %v3801 = vmax.f32 %v3576, 0.0
  %v3802 = vmax.f32 %v3577, 0.0
  %v3803 = vmax.f32 %v3578, 0.0
  %v3804 = vmax.f32 %v3579, 0.0
  %v3805 = vmax.f32 %v3580, 0.0
  %v3806 = vmax.f32 %v3581, 0.0
  %v3807 = vmax.f32 %v3582, 0.0
  %v3808 = vmax.f32 %v3583, 0.0
  %v3809 = vmax.f32 %v3584, 0.0
  %v3810 = vmax.f32 %v3585, 0.0
  %v3811 = vmax.f32 %v3586, 0.0
  %v3812 = vmax.f32 %v3587, 0.0
  %v3813 = vmax.f32 %v3588, 0.0
  %v3814 = vmax.f32 %v3589, 0.0
  %v3815 = vmax.f32 %v3590, 0.0
  %v3816 = vmax.f32 %v3591, 0.0
  %v3817 = vmax.f32 %v3592, 0.0
  %v3818 = vmax.f32 %v3593, 0.0
  %v3819 = vmax.f32 %v3594, 0.0
  %v3820 = vmax.f32 %v3595, 0.0
  %v3821 = vmax.f32 %v3596, 0.0
  %v3822 = vmax.f32 %v3597, 0.0
  %v3823 = vmax.f32 %v3598, 0.0
  %v3824 = vmax.f32 %v3599, 0.0
  %v3825 = vmax.f32 %v3600, 0.0
  %v3826 = vmax.f32 %v3601, 0.0
  %v3827 = vmax.f32 %v3602, 0.0
  %v3828 = vmax.f32 %v3603, 0.0
  %v3829 = vmax.f32 %v3604, 0.0
  %v3830 = vmax.f32 %v3605, 0.0
  %v3831 = vmax.f32 %v3606, 0.0
  %v3832 = vmax.f32 %v3607, 0.0
  %v3833 = vmax.f32 %v3608, 0.0
  %v3834 = vmax.f32 %v3609, 0.0
  %v3835 = vmax.f32 %v3610, 0.0
  %v3836 = vmax.f32 %v3611, 0.0
  %v3837 = vmax.f32 %v3612, 0.0
  %v3838 = vmax.f32 %v3613, 0.0
  %v3839 = vmax.f32 %v3614, 0.0
  %v3840 = vmax.f32 %v3615, 0.0
  %v3841 = vmax.f32 %v3616, 0.0
  %v3842 = vmax.f32 %v3617, 0.0
  %v3843 = vmax.f32 %v3618, 0.0
  %v3844 = vmax.f32 %v3619, 0.0
  %v3845 = vmax.f32 %v3620, 0.0
  %v3846 = vmax.f32 %v3621, 0.0
  %v3847 = vmax.f32 %v3622, 0.0
  %v3848 = vmax.f32 %v3623, 0.0
  %v3849 = vmax.f32 %v3624, 0.0
  %v3850 = vmax.f32 %v3625, 0.0
  %v3851 = vmax.f32 %v3626, 0.0
  %v3852 = vmax.f32 %v3627, 0.0
  %v3853 = vmax.f32 %v3628, 0.0
  %v3854 = vmax.f32 %v3629, 0.0
  %v3855 = vmax.f32 %v3630, 0.0
  %v3856 = vmax.f32 %v3631, 0.0
  %v3857 = vmax.f32 %v3632, 0.0
  %v3858 = vmax.f32 %v3633, 0.0
  %v3859 = vmax.f32 %v3634, 0.0
  %v3860 = vmax.f32 %v3635, 0.0
  %v3861 = vmax.f32 %v3636, 0.0
  %v3862 = vmax.f32 %v3637, 0.0
  %v3863 = vmax.f32 %v3638, 0.0
  %v3864 = vmax.f32 %v3639, 0.0
  %v3865 = vmax.f32 %v3640, 0.0
  %v3866 = vmax.f32 %v3641, 0.0
  %v3867 = vmax.f32 %v3642, 0.0
  %v3868 = vmax.f32 %v3643, 0.0
  %v3869 = vmax.f32 %v3644, 0.0
  %v3870 = vmax.f32 %v3645, 0.0
  %v3871 = vmax.f32 %v3646, 0.0
  %v3872 = vmax.f32 %v3647, 0.0
  %v3873 = vmax.f32 %v3648, 0.0
  %v3874 = vmax.f32 %v3649, 0.0
  %v3875 = vmax.f32 %v3650, 0.0
  %v3876 = vmax.f32 %v3651, 0.0
  %v3877 = vmax.f32 %v3652, 0.0
  %v3878 = vmax.f32 %v3653, 0.0
  %v3879 = vmax.f32 %v3654, 0.0
  %v3880 = vmax.f32 %v3655, 0.0
  %v3881 = vmax.f32 %v3656, 0.0
  %v3882 = vmax.f32 %v3657, 0.0
  %v3883 = vmax.f32 %v3658, 0.0
  %v3884 = vmax.f32 %v3659, 0.0
  %v3885 = vmax.f32 %v3660, 0.0
  %v3886 = vmax.f32 %v3661, 0.0
  %v3887 = vmax.f32 %v3662, 0.0
  %v3888 = vmax.f32 %v3663, 0.0
  %v3889 = vmax.f32 %v3664, 0.0
  %v3890 = vmax.f32 %v3665, 0.0
  %v3891 = vmax.f32 %v3666, 0.0
  %v3892 = vmax.f32 %v3667, 0.0
  %v3893 = vmax.f32 %v3668, 0.0
  %v3894 = vmax.f32 %v3669, 0.0
  %v3895 = vmax.f32 %v3670, 0.0
  %v3896 = vmax.f32 %v3671, 0.0
  %v3897 = vmax.f32 %v3672, 0.0
  %v3898 = vmax.f32 %v3673, 0.0
  %v3899 = vmax.f32 %v3674, 0.0
  %v3900 = vmax.f32 %v3675, 0.0
  %v3901 = vmax.f32 %v3676, 0.0
  %v3902 = vmax.f32 %v3677, 0.0
  %v3903 = vmax.f32 %v3678, 0.0
  %v3904 = vmax.f32 %v3679, 0.0
  %v3905 = vmax.f32 %v3680, 0.0
  %v3906 = vmax.f32 %v3681, 0.0
  %v3907 = vmax.f32 %v3682, 0.0
  %v3908 = vmax.f32 %v3683, 0.0
  %v3909 = vmax.f32 %v3684, 0.0
  %v3910 = vmax.f32 %v3685, 0.0
  %v3911 = vmax.f32 %v3686, 0.0
  %v3912 = vmax.f32 %v3687, 0.0
  %v3913 = vmax.f32 %v3688, 0.0
  %v3914 = vmax.f32 %v3689, 0.0
  %v3915 = vmax.f32 %v3690, 0.0
  %v3916 = vmax.f32 %v3691, 0.0
  %v3917 = vmax.f32 %v3692, 0.0
  %v3918 = vmax.f32 %v3693, 0.0
  %v3919 = vmax.f32 %v3694, 0.0
  %v3920 = vmax.f32 %v3695, 0.0
  %v3921 = vmax.f32 %v3696, 0.0
  %v3922 = vmax.f32 %v3697, 0.0
  %v3923 = vmax.f32 %v3698, 0.0
  %v3924 = vmax.f32 %v3699, 0.0
  %v3925 = vmax.f32 %v3700, 0.0
  %v3926 = vmax.f32 %v3701, 0.0
  %v3927 = vmax.f32 %v3702, 0.0
  %v3928 = vmax.f32 %v3703, 0.0
  %v3929 = vmax.f32 %v3704, 0.0
  %v3930 = vmax.f32 %v3705, 0.0
  %v3931 = vmax.f32 %v3706, 0.0
  %v3932 = vmax.f32 %v3707, 0.0
  %v3933 = vmax.f32 %v3708, 0.0
  %v3934 = vmax.f32 %v3709, 0.0
  %3935 = vst.msk [vmem:[%s3] sm:$0xff] %vm2104, %v3710
  %3936 = vst.msk [vmem:[%s3 + $0x8] sm:$0xff] %vm2104, %v3711
  %3937 = vst.msk [vmem:[%s3 + $0x10] sm:$0xff] %vm2104, %v3712
  %3938 = vst.msk [vmem:[%s3 + $0x18] sm:$0xff] %vm2104, %v3713
  %3939 = vst.msk [vmem:[%s3 + $0x20] sm:$0xff] %vm2104, %v3714
  %3940 = vst.msk [vmem:[%s3 + $0x28] sm:$0xff] %vm2104, %v3715
  %3941 = vst.msk [vmem:[%s3 + $0x30] sm:$0xff] %vm2104, %v3716
  %3942 = vst.msk [vmem:[%s3 + $0x38] sm:$0xff] %vm2104, %v3717
  %3943 = vst.msk [vmem:[%s3 + $0x40] sm:$0xff] %vm2104, %v3718
  %3944 = vst.msk [vmem:[%s3 + $0x48] sm:$0xff] %vm2104, %v3719
  %3945 = vst.msk [vmem:[%s3 + $0x50] sm:$0xff] %vm2104, %v3720
  %3946 = vst.msk [vmem:[%s3 + $0x58] sm:$0xff] %vm2104, %v3721
  %3947 = vst.msk [vmem:[%s3 + $0x60] sm:$0xff] %vm2104, %v3722
  %3948 = vst.msk [vmem:[%s3 + $0x68] sm:$0xff] %vm2104, %v3723
  %3949 = vst.msk [vmem:[%s3 + $0x70] sm:$0xff] %vm2104, %v3724
  %3950 = vst.msk [vmem:[%s3 + $0x78] sm:$0xff] %vm2104, %v3725
  %3951 = vst.msk [vmem:[%s3 + $0x80] sm:$0xff] %vm2104, %v3726
  %3952 = vst.msk [vmem:[%s3 + $0x88] sm:$0xff] %vm2104, %v3727
  %3953 = vst.msk [vmem:[%s3 + $0x90] sm:$0xff] %vm2104, %v3728
  %3954 = vst.msk [vmem:[%s3 + $0x98] sm:$0xff] %vm2104, %v3729
  %3955 = vst.msk [vmem:[%s3 + $0xa0] sm:$0xff] %vm2104, %v3730
  %3956 = vst.msk [vmem:[%s3 + $0xa8] sm:$0xff] %vm2104, %v3731
  %3957 = vst.msk [vmem:[%s3 + $0xb0] sm:$0xff] %vm2104, %v3732
  %3958 = vst.msk [vmem:[%s3 + $0xb8] sm:$0xff] %vm2104, %v3733
  %3959 = vst.msk [vmem:[%s3 + $0xc0] sm:$0xff] %vm2104, %v3734
  %3960 = vst.msk [vmem:[%s3 + $0xc8] sm:$0xff] %vm2104, %v3735
  %3961 = vst.msk [vmem:[%s3 + $0xd0] sm:$0xff] %vm2104, %v3736
  %3962 = vst.msk [vmem:[%s3 + $0xd8] sm:$0xff] %vm2104, %v3737
  %3963 = vst.msk [vmem:[%s3 + $0xe0] sm:$0xff] %vm2104, %v3738
  %3964 = vst.msk [vmem:[%s3 + $0xe8] sm:$0xff] %vm2104, %v3739
  %3965 = vst.msk [vmem:[%s3 + $0xf0] sm:$0xff] %vm2104, %v3740
  %3966 = vst.msk [vmem:[%s3 + $0xf8] sm:$0xff] %vm2104, %v3741
  %3967 = vst.msk [vmem:[%s3 + $0x100] sm:$0xff] %vm2104, %v3742
  %3968 = vst.msk [vmem:[%s3 + $0x108] sm:$0xff] %vm2104, %v3743
  %3969 = vst.msk [vmem:[%s3 + $0x110] sm:$0xff] %vm2104, %v3744
  %3970 = vst.msk [vmem:[%s3 + $0x118] sm:$0xff] %vm2104, %v3745
  %3971 = vst.msk [vmem:[%s3 + $0x120] sm:$0xff] %vm2104, %v3746
  %3972 = vst.msk [vmem:[%s3 + $0x128] sm:$0xff] %vm2104, %v3747
  %3973 = vst.msk [vmem:[%s3 + $0x130] sm:$0xff] %vm2104, %v3748
  %3974 = vst.msk [vmem:[%s3 + $0x138] sm:$0xff] %vm2104, %v3749
  %3975 = vst.msk [vmem:[%s3 + $0x140] sm:$0xff] %vm2104, %v3750
  %3976 = vst.msk [vmem:[%s3 + $0x148] sm:$0xff] %vm2104, %v3751
  %3977 = vst.msk [vmem:[%s3 + $0x150] sm:$0xff] %vm2104, %v3752
  %3978 = vst.msk [vmem:[%s3 + $0x158] sm:$0xff] %vm2104, %v3753
  %3979 = vst.msk [vmem:[%s3 + $0x160] sm:$0xff] %vm2104, %v3754
  %3980 = vst.msk [vmem:[%s3 + $0x168] sm:$0xff] %vm2104, %v3755
  %3981 = vst.msk [vmem:[%s3 + $0x170] sm:$0xff] %vm2104, %v3756
  %3982 = vst.msk [vmem:[%s3 + $0x178] sm:$0xff] %vm2104, %v3757
  %3983 = vst.msk [vmem:[%s3 + $0x180] sm:$0xff] %vm2104, %v3758
  %3984 = vst.msk [vmem:[%s3 + $0x188] sm:$0xff] %vm2104, %v3759
  %3985 = vst.msk [vmem:[%s3 + $0x190] sm:$0xff] %vm2104, %v3760
  %3986 = vst.msk [vmem:[%s3 + $0x198] sm:$0xff] %vm2104, %v3761
  %3987 = vst.msk [vmem:[%s3 + $0x1a0] sm:$0xff] %vm2104, %v3762
  %3988 = vst.msk [vmem:[%s3 + $0x1a8] sm:$0xff] %vm2104, %v3763
  %3989 = vst.msk [vmem:[%s3 + $0x1b0] sm:$0xff] %vm2104, %v3764
  %3990 = vst.msk [vmem:[%s3 + $0x1b8] sm:$0xff] %vm2104, %v3765
  %3991 = vst.msk [vmem:[%s3 + $0x1c0] sm:$0xff] %vm2104, %v3766
  %3992 = vst.msk [vmem:[%s3 + $0x1c8] sm:$0xff] %vm2104, %v3767
  %3993 = vst.msk [vmem:[%s3 + $0x1d0] sm:$0xff] %vm2104, %v3768
  %3994 = vst.msk [vmem:[%s3 + $0x1d8] sm:$0xff] %vm2104, %v3769
  %3995 = vst.msk [vmem:[%s3 + $0x1e0] sm:$0xff] %vm2104, %v3770
  %3996 = vst.msk [vmem:[%s3 + $0x1e8] sm:$0xff] %vm2104, %v3771
  %3997 = vst.msk [vmem:[%s3 + $0x1f0] sm:$0xff] %vm2104, %v3772
  %3998 = vst.msk [vmem:[%s3 + $0x1f8] sm:$0xff] %vm2104, %v3773
  %3999 = vst.msk [vmem:[%s3 + $0x200] sm:$0xff] %vm2104, %v3774
  %4000 = vst.msk [vmem:[%s3 + $0x208] sm:$0xff] %vm2104, %v3775
  %4001 = vst.msk [vmem:[%s3 + $0x210] sm:$0xff] %vm2104, %v3776
  %4002 = vst.msk [vmem:[%s3 + $0x218] sm:$0xff] %vm2104, %v3777
  %4003 = vst.msk [vmem:[%s3 + $0x220] sm:$0xff] %vm2104, %v3778
  %4004 = vst.msk [vmem:[%s3 + $0x228] sm:$0xff] %vm2104, %v3779
  %4005 = vst.msk [vmem:[%s3 + $0x230] sm:$0xff] %vm2104, %v3780
  %4006 = vst.msk [vmem:[%s3 + $0x238] sm:$0xff] %vm2104, %v3781
  %4007 = vst.msk [vmem:[%s3 + $0x240] sm:$0xff] %vm2104, %v3782
  %4008 = vst.msk [vmem:[%s3 + $0x248] sm:$0xff] %vm2104, %v3783
  %4009 = vst.msk [vmem:[%s3 + $0x250] sm:$0xff] %vm2104, %v3784
  %4010 = vst.msk [vmem:[%s3 + $0x258] sm:$0xff] %vm2104, %v3785
  %4011 = vst.msk [vmem:[%s3 + $0x260] sm:$0xff] %vm2104, %v3786
  %4012 = vst.msk [vmem:[%s3 + $0x268] sm:$0xff] %vm2104, %v3787
  %4013 = vst.msk [vmem:[%s3 + $0x270] sm:$0xff] %vm2104, %v3788
  %4014 = vst.msk [vmem:[%s3 + $0x278] sm:$0xff] %vm2104, %v3789
  %4015 = vst.msk [vmem:[%s3 + $0x280] sm:$0xff] %vm2104, %v3790
  %4016 = vst.msk [vmem:[%s3 + $0x288] sm:$0xff] %vm2104, %v3791
  %4017 = vst.msk [vmem:[%s3 + $0x290] sm:$0xff] %vm2104, %v3792
  %4018 = vst.msk [vmem:[%s3 + $0x298] sm:$0xff] %vm2104, %v3793
  %4019 = vst.msk [vmem:[%s3 + $0x2a0] sm:$0xff] %vm2104, %v3794
  %4020 = vst.msk [vmem:[%s3 + $0x2a8] sm:$0xff] %vm2104, %v3795
  %4021 = vst.msk [vmem:[%s3 + $0x2b0] sm:$0xff] %vm2104, %v3796
  %4022 = vst.msk [vmem:[%s3 + $0x2b8] sm:$0xff] %vm2104, %v3797
  %4023 = vst.msk [vmem:[%s3 + $0x2c0] sm:$0xff] %vm2104, %v3798
  %4024 = vst.msk [vmem:[%s3 + $0x2c8] sm:$0xff] %vm2104, %v3799
  %4025 = vst.msk [vmem:[%s3 + $0x2d0] sm:$0xff] %vm2104, %v3800
  %4026 = vst.msk [vmem:[%s3 + $0x2d8] sm:$0xff] %vm2104, %v3801
  %4027 = vst.msk [vmem:[%s3 + $0x2e0] sm:$0xff] %vm2104, %v3802
  %4028 = vst.msk [vmem:[%s3 + $0x2e8] sm:$0xff] %vm2104, %v3803
  %4029 = vst.msk [vmem:[%s3 + $0x2f0] sm:$0xff] %vm2104, %v3804
  %4030 = vst.msk [vmem:[%s3 + $0x2f8] sm:$0xff] %vm2104, %v3805
  %4031 = vst.msk [vmem:[%s3 + $0x300] sm:$0xff] %vm2104, %v3806
  %4032 = vst.msk [vmem:[%s3 + $0x308] sm:$0xff] %vm2104, %v3807
  %4033 = vst.msk [vmem:[%s3 + $0x310] sm:$0xff] %vm2104, %v3808
  %4034 = vst.msk [vmem:[%s3 + $0x318] sm:$0xff] %vm2104, %v3809
  %4035 = vst.msk [vmem:[%s3 + $0x320] sm:$0xff] %vm2104, %v3810
  %4036 = vst.msk [vmem:[%s3 + $0x328] sm:$0xff] %vm2104, %v3811
  %4037 = vst.msk [vmem:[%s3 + $0x330] sm:$0xff] %vm2104, %v3812
  %4038 = vst.msk [vmem:[%s3 + $0x338] sm:$0xff] %vm2104, %v3813
  %4039 = vst.msk [vmem:[%s3 + $0x340] sm:$0xff] %vm2104, %v3814
  %4040 = vst.msk [vmem:[%s3 + $0x348] sm:$0xff] %vm2104, %v3815
  %4041 = vst.msk [vmem:[%s3 + $0x350] sm:$0xff] %vm2104, %v3816
  %4042 = vst.msk [vmem:[%s3 + $0x358] sm:$0xff] %vm2104, %v3817
  %4043 = vst.msk [vmem:[%s3 + $0x360] sm:$0xff] %vm2104, %v3818
  %4044 = vst.msk [vmem:[%s3 + $0x368] sm:$0xff] %vm2104, %v3819
  %4045 = vst.msk [vmem:[%s3 + $0x370] sm:$0xff] %vm2104, %v3820
  %4046 = vst.msk [vmem:[%s3 + $0x378] sm:$0xff] %vm2104, %v3821
  %4047 = vst.msk [vmem:[%s3 + $0x380] sm:$0xff] %vm2104, %v3822
  %4048 = vst.msk [vmem:[%s3 + $0x388] sm:$0xff] %vm2104, %v3823
  %4049 = vst.msk [vmem:[%s3 + $0x390] sm:$0xff] %vm2104, %v3824
  %4050 = vst.msk [vmem:[%s3 + $0x398] sm:$0xff] %vm2104, %v3825
  %4051 = vst.msk [vmem:[%s3 + $0x3a0] sm:$0xff] %vm2104, %v3826
  %4052 = vst.msk [vmem:[%s3 + $0x3a8] sm:$0xff] %vm2104, %v3827
  %4053 = vst.msk [vmem:[%s3 + $0x3b0] sm:$0xff] %vm2104, %v3828
  %4054 = vst.msk [vmem:[%s3 + $0x3b8] sm:$0xff] %vm2104, %v3829
  %4055 = vst.msk [vmem:[%s3 + $0x3c0] sm:$0xff] %vm2104, %v3830
  %4056 = vst.msk [vmem:[%s3 + $0x3c8] sm:$0xff] %vm2104, %v3831
  %4057 = vst.msk [vmem:[%s3 + $0x3d0] sm:$0xff] %vm2104, %v3832
  %4058 = vst.msk [vmem:[%s3 + $0x3d8] sm:$0xff] %vm2104, %v3833
  %4059 = vst.msk [vmem:[%s3 + $0x3e0] sm:$0xff] %vm2104, %v3834
  %4060 = vst.msk [vmem:[%s3 + $0x3e8] sm:$0xff] %vm2104, %v3835
  %4061 = vst.msk [vmem:[%s3 + $0x3f0] sm:$0xff] %vm2104, %v3836
  %4062 = vst.msk [vmem:[%s3 + $0x3f8] sm:$0xff] %vm2104, %v3837
  %4063 = vst.msk [vmem:[%s3 + $0x400] sm:$0xff] %vm2104, %v3838
  %4064 = vst.msk [vmem:[%s3 + $0x408] sm:$0xff] %vm2104, %v3839
  %4065 = vst.msk [vmem:[%s3 + $0x410] sm:$0xff] %vm2104, %v3840
  %4066 = vst.msk [vmem:[%s3 + $0x418] sm:$0xff] %vm2104, %v3841
  %4067 = vst.msk [vmem:[%s3 + $0x420] sm:$0xff] %vm2104, %v3842
  %4068 = vst.msk [vmem:[%s3 + $0x428] sm:$0xff] %vm2104, %v3843
  %4069 = vst.msk [vmem:[%s3 + $0x430] sm:$0xff] %vm2104, %v3844
  %4070 = vst.msk [vmem:[%s3 + $0x438] sm:$0xff] %vm2104, %v3845
  %4071 = vst.msk [vmem:[%s3 + $0x440] sm:$0xff] %vm2104, %v3846
  %4072 = vst.msk [vmem:[%s3 + $0x448] sm:$0xff] %vm2104, %v3847
  %4073 = vst.msk [vmem:[%s3 + $0x450] sm:$0xff] %vm2104, %v3848
  %4074 = vst.msk [vmem:[%s3 + $0x458] sm:$0xff] %vm2104, %v3849
  %4075 = vst.msk [vmem:[%s3 + $0x460] sm:$0xff] %vm2104, %v3850
  %4076 = vst.msk [vmem:[%s3 + $0x468] sm:$0xff] %vm2104, %v3851
  %4077 = vst.msk [vmem:[%s3 + $0x470] sm:$0xff] %vm2104, %v3852
  %4078 = vst.msk [vmem:[%s3 + $0x478] sm:$0xff] %vm2104, %v3853
  %4079 = vst.msk [vmem:[%s3 + $0x480] sm:$0xff] %vm2104, %v3854
  %4080 = vst.msk [vmem:[%s3 + $0x488] sm:$0xff] %vm2104, %v3855
  %4081 = vst.msk [vmem:[%s3 + $0x490] sm:$0xff] %vm2104, %v3856
  %4082 = vst.msk [vmem:[%s3 + $0x498] sm:$0xff] %vm2104, %v3857
  %4083 = vst.msk [vmem:[%s3 + $0x4a0] sm:$0xff] %vm2104, %v3858
  %4084 = vst.msk [vmem:[%s3 + $0x4a8] sm:$0xff] %vm2104, %v3859
  %4085 = vst.msk [vmem:[%s3 + $0x4b0] sm:$0xff] %vm2104, %v3860
  %4086 = vst.msk [vmem:[%s3 + $0x4b8] sm:$0xff] %vm2104, %v3861
  %4087 = vst.msk [vmem:[%s3 + $0x4c0] sm:$0xff] %vm2104, %v3862
  %4088 = vst.msk [vmem:[%s3 + $0x4c8] sm:$0xff] %vm2104, %v3863
  %4089 = vst.msk [vmem:[%s3 + $0x4d0] sm:$0xff] %vm2104, %v3864
  %4090 = vst.msk [vmem:[%s3 + $0x4d8] sm:$0xff] %vm2104, %v3865
  %4091 = vst.msk [vmem:[%s3 + $0x4e0] sm:$0xff] %vm2104, %v3866
  %4092 = vst.msk [vmem:[%s3 + $0x4e8] sm:$0xff] %vm2104, %v3867
  %4093 = vst.msk [vmem:[%s3 + $0x4f0] sm:$0xff] %vm2104, %v3868
  %4094 = vst.msk [vmem:[%s3 + $0x4f8] sm:$0xff] %vm2104, %v3869
  %4095 = vst.msk [vmem:[%s3 + $0x500] sm:$0xff] %vm2104, %v3870
  %4096 = vst.msk [vmem:[%s3 + $0x508] sm:$0xff] %vm2104, %v3871
  %4097 = vst.msk [vmem:[%s3 + $0x510] sm:$0xff] %vm2104, %v3872
  %4098 = vst.msk [vmem:[%s3 + $0x518] sm:$0xff] %vm2104, %v3873
  %4099 = vst.msk [vmem:[%s3 + $0x520] sm:$0xff] %vm2104, %v3874
  %4100 = vst.msk [vmem:[%s3 + $0x528] sm:$0xff] %vm2104, %v3875
  %4101 = vst.msk [vmem:[%s3 + $0x530] sm:$0xff] %vm2104, %v3876
  %4102 = vst.msk [vmem:[%s3 + $0x538] sm:$0xff] %vm2104, %v3877
  %4103 = vst.msk [vmem:[%s3 + $0x540] sm:$0xff] %vm2104, %v3878
  %4104 = vst.msk [vmem:[%s3 + $0x548] sm:$0xff] %vm2104, %v3879
  %4105 = vst.msk [vmem:[%s3 + $0x550] sm:$0xff] %vm2104, %v3880
  %4106 = vst.msk [vmem:[%s3 + $0x558] sm:$0xff] %vm2104, %v3881
  %4107 = vst.msk [vmem:[%s3 + $0x560] sm:$0xff] %vm2104, %v3882
  %4108 = vst.msk [vmem:[%s3 + $0x568] sm:$0xff] %vm2104, %v3883
  %4109 = vst.msk [vmem:[%s3 + $0x570] sm:$0xff] %vm2104, %v3884
  %4110 = vst.msk [vmem:[%s3 + $0x578] sm:$0xff] %vm2104, %v3885
  %4111 = vst.msk [vmem:[%s3 + $0x580] sm:$0xff] %vm2104, %v3886
  %4112 = vst.msk [vmem:[%s3 + $0x588] sm:$0xff] %vm2104, %v3887
  %4113 = vst.msk [vmem:[%s3 + $0x590] sm:$0xff] %vm2104, %v3888
  %4114 = vst.msk [vmem:[%s3 + $0x598] sm:$0xff] %vm2104, %v3889
  %4115 = vst.msk [vmem:[%s3 + $0x5a0] sm:$0xff] %vm2104, %v3890
  %4116 = vst.msk [vmem:[%s3 + $0x5a8] sm:$0xff] %vm2104, %v3891
  %4117 = vst.msk [vmem:[%s3 + $0x5b0] sm:$0xff] %vm2104, %v3892
  %4118 = vst.msk [vmem:[%s3 + $0x5b8] sm:$0xff] %vm2104, %v3893
  %4119 = vst.msk [vmem:[%s3 + $0x5c0] sm:$0xff] %vm2104, %v3894
  %4120 = vst.msk [vmem:[%s3 + $0x5c8] sm:$0xff] %vm2104, %v3895
  %4121 = vst.msk [vmem:[%s3 + $0x5d0] sm:$0xff] %vm2104, %v3896
  %4122 = vst.msk [vmem:[%s3 + $0x5d8] sm:$0xff] %vm2104, %v3897
  %4123 = vst.msk [vmem:[%s3 + $0x5e0] sm:$0xff] %vm2104, %v3898
  %4124 = vst.msk [vmem:[%s3 + $0x5e8] sm:$0xff] %vm2104, %v3899
  %4125 = vst.msk [vmem:[%s3 + $0x5f0] sm:$0xff] %vm2104, %v3900
  %4126 = vst.msk [vmem:[%s3 + $0x5f8] sm:$0xff] %vm2104, %v3901
  %4127 = vst.msk [vmem:[%s3 + $0x600] sm:$0xff] %vm2104, %v3902
  %4128 = vst.msk [vmem:[%s3 + $0x608] sm:$0xff] %vm2104, %v3903
  %4129 = vst.msk [vmem:[%s3 + $0x610] sm:$0xff] %vm2104, %v3904
  %4130 = vst.msk [vmem:[%s3 + $0x618] sm:$0xff] %vm2104, %v3905
  %4131 = vst.msk [vmem:[%s3 + $0x620] sm:$0xff] %vm2104, %v3906
  %4132 = vst.msk [vmem:[%s3 + $0x628] sm:$0xff] %vm2104, %v3907
  %4133 = vst.msk [vmem:[%s3 + $0x630] sm:$0xff] %vm2104, %v3908
  %4134 = vst.msk [vmem:[%s3 + $0x638] sm:$0xff] %vm2104, %v3909
  %4135 = vst.msk [vmem:[%s3 + $0x640] sm:$0xff] %vm2104, %v3910
  %4136 = vst.msk [vmem:[%s3 + $0x648] sm:$0xff] %vm2104, %v3911
  %4137 = vst.msk [vmem:[%s3 + $0x650] sm:$0xff] %vm2104, %v3912
  %4138 = vst.msk [vmem:[%s3 + $0x658] sm:$0xff] %vm2104, %v3913
  %4139 = vst.msk [vmem:[%s3 + $0x660] sm:$0xff] %vm2104, %v3914
  %4140 = vst.msk [vmem:[%s3 + $0x668] sm:$0xff] %vm2104, %v3915
  %4141 = vst.msk [vmem:[%s3 + $0x670] sm:$0xff] %vm2104, %v3916
  %4142 = vst.msk [vmem:[%s3 + $0x678] sm:$0xff] %vm2104, %v3917
  %4143 = vst.msk [vmem:[%s3 + $0x680] sm:$0xff] %vm2104, %v3918
  %4144 = vst.msk [vmem:[%s3 + $0x688] sm:$0xff] %vm2104, %v3919
  %4145 = vst.msk [vmem:[%s3 + $0x690] sm:$0xff] %vm2104, %v3920
  %4146 = vst.msk [vmem:[%s3 + $0x698] sm:$0xff] %vm2104, %v3921
  %4147 = vst.msk [vmem:[%s3 + $0x6a0] sm:$0xff] %vm2104, %v3922
  %4148 = vst.msk [vmem:[%s3 + $0x6a8] sm:$0xff] %vm2104, %v3923
  %4149 = vst.msk [vmem:[%s3 + $0x6b0] sm:$0xff] %vm2104, %v3924
  %4150 = vst.msk [vmem:[%s3 + $0x6b8] sm:$0xff] %vm2104, %v3925
  %4151 = vst.msk [vmem:[%s3 + $0x6c0] sm:$0xff] %vm2104, %v3926
  %4152 = vst.msk [vmem:[%s3 + $0x6c8] sm:$0xff] %vm2104, %v3927
  %4153 = vst.msk [vmem:[%s3 + $0x6d0] sm:$0xff] %vm2104, %v3928
  %4154 = vst.msk [vmem:[%s3 + $0x6d8] sm:$0xff] %vm2104, %v3929
  %4155 = vst.msk [vmem:[%s3 + $0x6e0] sm:$0xff] %vm2104, %v3930
  %4156 = vst.msk [vmem:[%s3 + $0x6e8] sm:$0xff] %vm2104, %v3931
  %4157 = vst.msk [vmem:[%s3 + $0x6f0] sm:$0xff] %vm2104, %v3932
  %4158 = vst.msk [vmem:[%s3 + $0x6f8] sm:$0xff] %vm2104, %v3933
  %4159 = vst.msk [vmem:[%s3 + $0x700] sm:$0xff] %vm2104, %v3934
  // Predicated region
  $region14: #{variational_encoder_forward.2} parent=0 // pred_check
    _
  $region15: #{variational_encoder_forward.2} parent=0 // pred_check_branch
    %4161 = sbr.rel (0) target = $region17
  $region16: #{variational_encoder_forward.2} parent=0 // pred_region
    _
  $region17: #{variational_encoder_forward.2} parent=0 // pred_fallthru
    _
  // Predicated region
  $region18: #{variational_encoder_forward.2} parent=0 // pred_check
    _
  $region19: #{variational_encoder_forward.2} parent=0 // pred_check_branch
    %4163 = sbr.rel (0) target = $region21
  $region20: #{variational_encoder_forward.2} parent=0 // pred_region
    _
  $region21: #{variational_encoder_forward.2} parent=0 // pred_fallthru
    _

// kernel: variational_encoder_forward.3
$region0: #{variational_encoder_forward.3}
  #allocation0 [shape = 'u32[]', space=smem, size = 0x4, offset = 0x4, fixed_abs, tag = 'smem constant byte address 0x4 - core index']
  #allocation1 [shape = 'u32[144,128]{1,0:T(1,128)}', space=vmem, size = 0x12000, scoped, tag = 'internal scratch']
  %s0 = inlined_call_operand.vmem [shape: bf16[200,288], index: 0, kind: input, shape index: {}]
  %s1 = inlined_call_operand.vmem [shape: bf16[288,128], index: 1, kind: input, shape index: {}]
  %s2 = inlined_call_operand.vmem [shape: bf16[72,200], index: 2, kind: input, shape index: {}]
  %s3 = inlined_call_operand.vmem [shape: bf16[1152,160], index: 3, kind: input, shape index: {}]
  %s4 = inlined_call_operand.vmem [shape: bf16[160,160], index: 4, kind: input, shape index: {}]
  %s5 = inlined_call_operand.vmem [shape: bf16[160,160], index: 5, kind: input, shape index: {}]
  %s6 = inlined_call_operand.vmem [shape: bf16[160,160], index: 6, kind: input, shape index: {}]
  %s7 = inlined_call_operand.vmem [shape: f32[2,128], index: 7, kind: input, shape index: {}]
  %s8 = inlined_call_operand.vmem [shape: f32[7,160], index: 8, kind: input, shape index: {}]
  %s9 = inlined_call_operand.vmem [shape: f32[200,128], index: 9, kind: output, shape index: {0}]
  %s10 = inlined_call_operand.vmem [shape: f32[8,160], index: 10, kind: output, shape index: {1}]
  %s11 = inlined_call_operand.vmem [shape: f32[2,160], index: 11, kind: output, shape index: {2}]
  %s12 = inlined_call_operand.hbm [shape: f32[2,160], index: 12, kind: output, shape index: {3}]
  %s13 = inlined_call_operand.hbm [shape: f32[2,160], index: 13, kind: output, shape index: {4}]
  %14 = xla_tuple %s9, %s10, %s11, %s12, %s13
  %s15 = sld [smem:[#allocation0]]
  $region78: #{variational_encoder_forward.3} parent=0
    _
  %s17 = ssub.s32 1, %s15
  %s18 = scalar_select 0, %s17, %s15
  $region1: #{variational_encoder_forward.3} parent=0
    #allocation2 [shape = 'u8[2048]{0}', space=vmem, size = 0x800, scoped, tag = 'output window, operand 3, single buffered']
    #allocation3 [shape = 's32[1]{0}', space=sflag, size = 0x4, scoped, tag = 'scoped memory for variational_encoder_forward.3']
    #allocation4 [shape = 'u8[2048]{0}', space=vmem, size = 0x800, scoped, tag = 'output window, operand 4, single buffered']
    #allocation5 [shape = 's32[1]{0}', space=sflag, size = 0x4, scoped, tag = 'scoped memory for variational_encoder_forward.3']
    %19 = vsyncpa [#allocation3], 0
    %20 = vsyncpa [#allocation5], 0
    // Predicated region
    $region2: #{variational_encoder_forward.3} parent=1 // pred_check
      _
    $region3: #{variational_encoder_forward.3} parent=1 // pred_check_branch
      %22 = sbr.rel (0) target = $region5
    $region4: #{variational_encoder_forward.3} parent=1 // pred_region
      _
    $region5: #{variational_encoder_forward.3} parent=1 // pred_fallthru
      _
    // Predicated region
    $region6: #{variational_encoder_forward.3} parent=1 // pred_check
      _
    $region7: #{variational_encoder_forward.3} parent=1 // pred_check_branch
      %24 = sbr.rel (0) target = $region9
    $region8: #{variational_encoder_forward.3} parent=1 // pred_region
      _
    $region9: #{variational_encoder_forward.3} parent=1 // pred_fallthru
      _
    // Predicated region
    $region10: #{variational_encoder_forward.3} parent=1 // pred_check
      _
    $region11: #{variational_encoder_forward.3} parent=1 // pred_check_branch
      %26 = sbr.rel (0) target = $region13
    $region12: #{variational_encoder_forward.3} parent=1 // pred_region
      _
    $region13: #{variational_encoder_forward.3} parent=1 // pred_fallthru
      _
    // Predicated region
    $region14: #{variational_encoder_forward.3} parent=1 // pred_check
      _
    $region15: #{variational_encoder_forward.3} parent=1 // pred_check_branch
      %28 = sbr.rel (0) target = $region17
    $region16: #{variational_encoder_forward.3} parent=1 // pred_region
      _
    $region17: #{variational_encoder_forward.3} parent=1 // pred_fallthru
      _
    // Predicated region
    $region18: #{variational_encoder_forward.3} parent=1 // pred_check
      _
    $region19: #{variational_encoder_forward.3} parent=1 // pred_check_branch
      %30 = sbr.rel (0) target = $region21
    $region20: #{variational_encoder_forward.3} parent=1 // pred_region
      _
    $region21: #{variational_encoder_forward.3} parent=1 // pred_fallthru
      _
    // Predicated region
    $region22: #{variational_encoder_forward.3} parent=1 // pred_check
      _
    $region23: #{variational_encoder_forward.3} parent=1 // pred_check_branch
      %32 = sbr.rel (0) target = $region25
    $region24: #{variational_encoder_forward.3} parent=1 // pred_region
      _
    $region25: #{variational_encoder_forward.3} parent=1 // pred_fallthru
      _
    // Predicated region
    $region26: #{variational_encoder_forward.3} parent=1 // pred_check
      _
    $region27: #{variational_encoder_forward.3} parent=1 // pred_check_branch
      %34 = sbr.rel (0) target = $region29
    $region28: #{variational_encoder_forward.3} parent=1 // pred_region
      _
    $region29: #{variational_encoder_forward.3} parent=1 // pred_fallthru
      _
    // Predicated region
    $region30: #{variational_encoder_forward.3} parent=1 // pred_check
      _
    $region31: #{variational_encoder_forward.3} parent=1 // pred_check_branch
      %36 = sbr.rel (0) target = $region33
    $region32: #{variational_encoder_forward.3} parent=1 // pred_region
      _
    $region33: #{variational_encoder_forward.3} parent=1 // pred_fallthru
      _
    // Predicated region
    $region34: #{variational_encoder_forward.3} parent=1 // pred_check
      _
    $region35: #{variational_encoder_forward.3} parent=1 // pred_check_branch
      %38 = sbr.rel (0) target = $region37
    $region36: #{variational_encoder_forward.3} parent=1 // pred_region
      _
    $region37: #{variational_encoder_forward.3} parent=1 // pred_fallthru
      _
    %v40 = vld [vmem:[%s7] sm:$0x3]
    %v41 = vld [vmem:[%s8] sm:$0x7f]
    %v42 = vld [vmem:[%s8 + $0x8] sm:$0x7f]
    %v43 = vld [vmem:[%s0] sm:$0xff]
    %v44 = vld [vmem:[%s0 + $0x8] sm:$0xf]
    %v45 = vld [vmem:[%s0 + $0xc] sm:$0xff]
    %v46 = vld [vmem:[%s0 + $0x14] sm:$0xf]
    %v47 = vld [vmem:[%s0 + $0x18] sm:$0xff]
    %v48 = vld [vmem:[%s0 + $0x20] sm:$0xf]
    %v49 = vld [vmem:[%s0 + $0x24] sm:$0xff]
    %v50 = vld [vmem:[%s0 + $0x2c] sm:$0xf]
    %v51 = vld [vmem:[%s0 + $0x30] sm:$0xff]
    %v52 = vld [vmem:[%s0 + $0x38] sm:$0xf]
    %v53 = vld [vmem:[%s0 + $0x3c] sm:$0xff]
    %v54 = vld [vmem:[%s0 + $0x44] sm:$0xf]
    %v55 = vld [vmem:[%s0 + $0x48] sm:$0xff]
    %v56 = vld [vmem:[%s0 + $0x50] sm:$0xf]
    %v57 = vld [vmem:[%s0 + $0x54] sm:$0xff]
    %v58 = vld [vmem:[%s0 + $0x5c] sm:$0xf]
    %v59 = vld [vmem:[%s0 + $0x60] sm:$0xff]
    %v60 = vld [vmem:[%s0 + $0x68] sm:$0xf]
    %v61 = vld [vmem:[%s0 + $0x6c] sm:$0xff]
    %v62 = vld [vmem:[%s0 + $0x74] sm:$0xf]
    %v63 = vld [vmem:[%s0 + $0x78] sm:$0xff]
    %v64 = vld [vmem:[%s0 + $0x80] sm:$0xf]
    %v65 = vld [vmem:[%s0 + $0x84] sm:$0xff]
    %v66 = vld [vmem:[%s0 + $0x8c] sm:$0xf]
    %v67 = vld [vmem:[%s0 + $0x90] sm:$0xff]
    %v68 = vld [vmem:[%s0 + $0x98] sm:$0xf]
    %v69 = vld [vmem:[%s0 + $0x9c] sm:$0xff]
    %v70 = vld [vmem:[%s0 + $0xa4] sm:$0xf]
    %v71 = vld [vmem:[%s0 + $0xa8] sm:$0xff]
    %v72 = vld [vmem:[%s0 + $0xb0] sm:$0xf]
    %v73 = vld [vmem:[%s0 + $0xb4] sm:$0xff]
    %v74 = vld [vmem:[%s0 + $0xbc] sm:$0xf]
    %v75 = vld [vmem:[%s0 + $0xc0] sm:$0xff]
    %v76 = vld [vmem:[%s0 + $0xc8] sm:$0xf]
    %v77 = vld [vmem:[%s0 + $0xcc] sm:$0xff]
    %v78 = vld [vmem:[%s0 + $0xd4] sm:$0xf]
    %v79 = vld [vmem:[%s0 + $0xd8] sm:$0xff]
    %v80 = vld [vmem:[%s0 + $0xe0] sm:$0xf]
    %v81 = vld [vmem:[%s0 + $0xe4] sm:$0xff]
    %v82 = vld [vmem:[%s0 + $0xec] sm:$0xf]
    %v83 = vld [vmem:[%s0 + $0xf0] sm:$0xff]
    %v84 = vld [vmem:[%s0 + $0xf8] sm:$0xf]
    %v85 = vld [vmem:[%s0 + $0xfc] sm:$0xff]
    %v86 = vld [vmem:[%s0 + $0x104] sm:$0xf]
    %v87 = vld [vmem:[%s0 + $0x108] sm:$0xff]
    %v88 = vld [vmem:[%s0 + $0x110] sm:$0xf]
    %v89 = vld [vmem:[%s0 + $0x114] sm:$0xff]
    %v90 = vld [vmem:[%s0 + $0x11c] sm:$0xf]
    %v91 = vld [vmem:[%s0 + $0x120] sm:$0xff]
    %v92 = vld [vmem:[%s0 + $0x128] sm:$0xf]
    %v93 = vld [vmem:[%s1] sm:$0xf]
    %v94 = vld [vmem:[%s1 + $0x4] sm:$0xf]
    %v95 = vld [vmem:[%s1 + $0x8] sm:$0xf]
    %v96 = vld [vmem:[%s1 + $0xc] sm:$0xf]
    %v97 = vld [vmem:[%s1 + $0x10] sm:$0xf]
    %v98 = vld [vmem:[%s1 + $0x14] sm:$0xf]
    %v99 = vld [vmem:[%s1 + $0x18] sm:$0xf]
    %v100 = vld [vmem:[%s1 + $0x1c] sm:$0xf]
    %v101 = vld [vmem:[%s1 + $0x20] sm:$0xf]
    %v102 = vld [vmem:[%s1 + $0x24] sm:$0xf]
    %v103 = vld [vmem:[%s1 + $0x28] sm:$0xf]
    %v104 = vld [vmem:[%s1 + $0x2c] sm:$0xf]
    %v105 = vld [vmem:[%s1 + $0x30] sm:$0xf]
    %v106 = vld [vmem:[%s1 + $0x34] sm:$0xf]
    %v107 = vld [vmem:[%s1 + $0x38] sm:$0xf]
    %v108 = vld [vmem:[%s1 + $0x3c] sm:$0xf]
    %v109 = vld [vmem:[%s1 + $0x40] sm:$0xf]
    %v110 = vld [vmem:[%s1 + $0x44] sm:$0xf]
    %v111 = vld [vmem:[%s1 + $0x48] sm:$0xf]
    %v112 = vld [vmem:[%s1 + $0x4c] sm:$0xf]
    %v113 = vld [vmem:[%s1 + $0x50] sm:$0xf]
    %v114 = vld [vmem:[%s1 + $0x54] sm:$0xf]
    %v115 = vld [vmem:[%s1 + $0x58] sm:$0xf]
    %v116 = vld [vmem:[%s1 + $0x5c] sm:$0xf]
    %v117 = vld [vmem:[%s1 + $0x60] sm:$0xf]
    %v118 = vld [vmem:[%s1 + $0x64] sm:$0xf]
    %v119 = vld [vmem:[%s1 + $0x68] sm:$0xf]
    %v120 = vld [vmem:[%s1 + $0x6c] sm:$0xf]
    %v121 = vld [vmem:[%s1 + $0x70] sm:$0xf]
    %v122 = vld [vmem:[%s1 + $0x74] sm:$0xf]
    %v123 = vld [vmem:[%s1 + $0x78] sm:$0xf]
    %v124 = vld [vmem:[%s1 + $0x7c] sm:$0xf]
    %v125 = vld [vmem:[%s1 + $0x80] sm:$0xf]
    %v126 = vld [vmem:[%s1 + $0x84] sm:$0xf]
    %v127 = vld [vmem:[%s1 + $0x88] sm:$0xf]
    %v128 = vld [vmem:[%s1 + $0x8c] sm:$0xf]
    %v179 = vunpack.c.l.b16 %v43
    %v180 = vunpack.c.h.b16 %v43
    %v181 = vunpack.c.l.b16 %v44
    %v182 = vunpack.c.l.b16 %v45
    %v183 = vunpack.c.h.b16 %v45
    %v184 = vunpack.c.l.b16 %v46
    %v185 = vunpack.c.l.b16 %v47
    %v186 = vunpack.c.h.b16 %v47
    %v187 = vunpack.c.l.b16 %v48
    %v188 = vunpack.c.l.b16 %v49
    %v189 = vunpack.c.h.b16 %v49
    %v190 = vunpack.c.l.b16 %v50
    %v191 = vunpack.c.l.b16 %v51
    %v192 = vunpack.c.h.b16 %v51
    %v193 = vunpack.c.l.b16 %v52
    %v194 = vunpack.c.l.b16 %v53
    %v195 = vunpack.c.h.b16 %v53
    %v196 = vunpack.c.l.b16 %v54
    %v197 = vunpack.c.l.b16 %v55
    %v198 = vunpack.c.h.b16 %v55
    %v199 = vunpack.c.l.b16 %v56
    %v200 = vunpack.c.l.b16 %v57
    %v201 = vunpack.c.h.b16 %v57
    %v202 = vunpack.c.l.b16 %v58
    %v203 = vunpack.c.l.b16 %v59
    %v204 = vunpack.c.h.b16 %v59
    %v205 = vunpack.c.l.b16 %v60
    %v206 = vunpack.c.l.b16 %v61
    %v207 = vunpack.c.h.b16 %v61
    %v208 = vunpack.c.l.b16 %v62
    %v209 = vunpack.c.l.b16 %v63
    %v210 = vunpack.c.h.b16 %v63
    %v211 = vunpack.c.l.b16 %v64
    %v212 = vunpack.c.l.b16 %v65
    %v213 = vunpack.c.h.b16 %v65
    %v214 = vunpack.c.l.b16 %v66
    %v215 = vunpack.c.l.b16 %v67
    %v216 = vunpack.c.h.b16 %v67
    %v217 = vunpack.c.l.b16 %v68
    %v218 = vunpack.c.l.b16 %v69
    %v219 = vunpack.c.h.b16 %v69
    %v220 = vunpack.c.l.b16 %v70
    %v221 = vunpack.c.l.b16 %v71
    %v222 = vunpack.c.h.b16 %v71
    %v223 = vunpack.c.l.b16 %v72
    %v224 = vunpack.c.l.b16 %v73
    %v225 = vunpack.c.h.b16 %v73
    %v226 = vunpack.c.l.b16 %v74
    %v227 = vunpack.c.l.b16 %v75
    %v228 = vunpack.c.h.b16 %v75
    %v229 = vunpack.c.l.b16 %v76
    %v230 = vunpack.c.l.b16 %v77
    %v231 = vunpack.c.h.b16 %v77
    %v232 = vunpack.c.l.b16 %v78
    %v233 = vunpack.c.l.b16 %v79
    %v234 = vunpack.c.h.b16 %v79
    %v235 = vunpack.c.l.b16 %v80
    %v236 = vunpack.c.l.b16 %v81
    %v237 = vunpack.c.h.b16 %v81
    %v238 = vunpack.c.l.b16 %v82
    %v239 = vunpack.c.l.b16 %v83
    %v240 = vunpack.c.h.b16 %v83
    %v241 = vunpack.c.l.b16 %v84
    %v242 = vunpack.c.l.b16 %v85
    %v243 = vunpack.c.h.b16 %v85
    %v244 = vunpack.c.l.b16 %v86
    %v245 = vunpack.c.l.b16 %v87
    %v246 = vunpack.c.h.b16 %v87
    %v247 = vunpack.c.l.b16 %v88
    %v248 = vunpack.c.l.b16 %v89
    %v249 = vunpack.c.h.b16 %v89
    %v250 = vunpack.c.l.b16 %v90
    %v251 = vunpack.c.l.b16 %v91
    %v252 = vunpack.c.h.b16 %v91
    %v253 = vunpack.c.l.b16 %v92
    %v254 = vpack.c.b16 %v182, %v179
    %v255 = vpack.c.b16 %v183, %v180
    %v256 = vpack.c.b16 %v184, %v181
    %v257 = vpack.c.b16 %v188, %v185
    %v258 = vpack.c.b16 %v189, %v186
    %v259 = vpack.c.b16 %v190, %v187
    %v260 = vpack.c.b16 %v194, %v191
    %v261 = vpack.c.b16 %v195, %v192
    %v262 = vpack.c.b16 %v196, %v193
    %v263 = vpack.c.b16 %v200, %v197
    %v264 = vpack.c.b16 %v201, %v198
    %v265 = vpack.c.b16 %v202, %v199
    %v266 = vpack.c.b16 %v206, %v203
    %v267 = vpack.c.b16 %v207, %v204
    %v268 = vpack.c.b16 %v208, %v205
    %v269 = vpack.c.b16 %v212, %v209
    %v270 = vpack.c.b16 %v213, %v210
    %v271 = vpack.c.b16 %v214, %v211
    %v272 = vpack.c.b16 %v218, %v215
    %v273 = vpack.c.b16 %v219, %v216
    %v274 = vpack.c.b16 %v220, %v217
    %v275 = vpack.c.b16 %v224, %v221
    %v276 = vpack.c.b16 %v225, %v222
    %v277 = vpack.c.b16 %v226, %v223
    %v278 = vpack.c.b16 %v230, %v227
    %v279 = vpack.c.b16 %v231, %v228
    %v280 = vpack.c.b16 %v232, %v229
    %v281 = vpack.c.b16 %v236, %v233
    %v282 = vpack.c.b16 %v237, %v234
    %v283 = vpack.c.b16 %v238, %v235
    %v284 = vpack.c.b16 %v242, %v239
    %v285 = vpack.c.b16 %v243, %v240
    %v286 = vpack.c.b16 %v244, %v241
    %v287 = vpack.c.b16 %v248, %v245
    %v288 = vpack.c.b16 %v249, %v246
    %v289 = vpack.c.b16 %v250, %v247
    %v290 = vpack.c.b16 %v251, %v251
    %v291 = vpack.c.b16 %v252, %v252
    %v292 = vpack.c.b16 %v253, %v253
    %v355 = vunpack.c.l.b16 %v93
    %v356 = vunpack.c.l.b16 %v94
    %v357 = vunpack.c.l.b16 %v95
    %v358 = vunpack.c.l.b16 %v96
    %v359 = vunpack.c.l.b16 %v97
    %v360 = vunpack.c.l.b16 %v98
    %v361 = vunpack.c.l.b16 %v99
    %v362 = vunpack.c.l.b16 %v100
    %v363 = vunpack.c.l.b16 %v101
    %v364 = vunpack.c.l.b16 %v102
    %v365 = vunpack.c.l.b16 %v103
    %v366 = vunpack.c.l.b16 %v104
    %v367 = vunpack.c.l.b16 %v105
    %v368 = vunpack.c.l.b16 %v106
    %v369 = vunpack.c.l.b16 %v107
    %v370 = vunpack.c.l.b16 %v108
    %v371 = vunpack.c.l.b16 %v109
    %v372 = vunpack.c.l.b16 %v110
    %v373 = vunpack.c.l.b16 %v111
    %v374 = vunpack.c.l.b16 %v112
    %v375 = vunpack.c.l.b16 %v113
    %v376 = vunpack.c.l.b16 %v114
    %v377 = vunpack.c.l.b16 %v115
    %v378 = vunpack.c.l.b16 %v116
    %v379 = vunpack.c.l.b16 %v117
    %v380 = vunpack.c.l.b16 %v118
    %v381 = vunpack.c.l.b16 %v119
    %v382 = vunpack.c.l.b16 %v120
    %v383 = vunpack.c.l.b16 %v121
    %v384 = vunpack.c.l.b16 %v122
    %v385 = vunpack.c.l.b16 %v123
    %v386 = vunpack.c.l.b16 %v124
    %v387 = vunpack.c.l.b16 %v125
    %v388 = vunpack.c.l.b16 %v126
    %v389 = vunpack.c.l.b16 %v127
    %v390 = vunpack.c.l.b16 %v128
    %v391 = vpack.c.b16 %v356, %v355
    %v392 = vpack.c.b16 %v358, %v357
    %v393 = vpack.c.b16 %v360, %v359
    %v394 = vpack.c.b16 %v362, %v361
    %v395 = vpack.c.b16 %v364, %v363
    %v396 = vpack.c.b16 %v366, %v365
    %v397 = vpack.c.b16 %v368, %v367
    %v398 = vpack.c.b16 %v370, %v369
    %v399 = vpack.c.b16 %v372, %v371
    %v400 = vpack.c.b16 %v374, %v373
    %v401 = vpack.c.b16 %v376, %v375
    %v402 = vpack.c.b16 %v378, %v377
    %v403 = vpack.c.b16 %v380, %v379
    %v404 = vpack.c.b16 %v382, %v381
    %v405 = vpack.c.b16 %v384, %v383
    %v406 = vpack.c.b16 %v386, %v385
    %v407 = vpack.c.b16 %v388, %v387
    %v408 = vpack.c.b16 %v390, %v389
    %vm427 = vcmask 261120
    %v429 = vsel %vm427, %v256, 0
    %v432 = vsel %vm427, %v259, 0
    %v435 = vsel %vm427, %v262, 0
    %v438 = vsel %vm427, %v265, 0
    %v441 = vsel %vm427, %v268, 0
    %v444 = vsel %vm427, %v271, 0
    %v447 = vsel %vm427, %v274, 0
    %v450 = vsel %vm427, %v277, 0
    %v453 = vsel %vm427, %v280, 0
    %v456 = vsel %vm427, %v283, 0
    %v459 = vsel %vm427, %v286, 0
    %v462 = vsel %vm427, %v289, 0
    %v465 = vsel %vm427, %v292, 0
    %467 = vmatprep.subr.bf16.mxu0 0
    %468 = vmatpush1.bf16.msra.mxu0 %v398
    %469 = vmatprep.subr.bf16.mxu0 0
    %470 = vmatpush1.bf16.msra.mxu0 %v397
    %471 = vmatprep.subr.bf16.mxu0 0
    %472 = vmatpush1.bf16.msra.mxu0 %v396
    %473 = vmatprep.subr.bf16.mxu0 0
    %474 = vmatpush1.bf16.msra.mxu0 %v395
    %475 = vmatprep.subr.bf16.mxu0 0
    %476 = vmatpush1.bf16.msra.mxu0 %v394
    %477 = vmatprep.subr.bf16.mxu0 0
    %478 = vmatpush1.bf16.msra.mxu0 %v393
    %479 = vmatprep.subr.bf16.mxu0 0
    %480 = vmatpush1.bf16.msra.mxu0 %v392
    %481 = vmatprep.subr.bf16.mxu0 0
    %482 = vmatpush1.bf16.msra.mxu0 %v391
    %483 = vmatprep.subr.bf16.mxu0 0
    %484 = vmatpush2.bf16.msra.mxu0 %v406
    %485 = vmatprep.subr.bf16.mxu0 0
    %486 = vmatpush2.bf16.msra.mxu0 %v405
    %487 = vmatprep.subr.bf16.mxu0 0
    %488 = vmatpush2.bf16.msra.mxu0 %v404
    %489 = vmatprep.subr.bf16.mxu0 0
    %490 = vmatpush2.bf16.msra.mxu0 %v403
    %491 = vmatprep.subr.bf16.mxu0 0
    %492 = vmatpush2.bf16.msra.mxu0 %v402
    %493 = vmatprep.subr.bf16.mxu0 0
    %494 = vmatpush2.bf16.msra.mxu0 %v401
    %495 = vmatprep.subr.bf16.mxu0 0
    %496 = vmatpush2.bf16.msra.mxu0 %v400
    %497 = vmatprep.subr.bf16.mxu0 0
    %498 = vmatpush2.bf16.msra.mxu0 %v399
    %499 = vmatprep.mubr.bf16.mxu0 %v255
    %500 = vmatmul.mubr.bf16.gmra.mxu0 %v254
    %v501 = vpop.f32.mrf.mxu0
    %v502 = vadd.f32 0.0, %v501
    %v503 = vpop.f32.mrf.mxu0
    %v504 = vpop.f32.mrf.mxu0
    %v505 = vadd.f32 0.0, %v504
    %v506 = vpop.f32.mrf.mxu0
    %507 = vmatprep.mubr.bf16.mxu0 %v258
    %508 = vmatmul.mubr.bf16.gmra.mxu0 %v257
    %v509 = vpop.f32.mrf.mxu0
    %v510 = vadd.f32 0.0, %v509
    %v511 = vpop.f32.mrf.mxu0
    %v512 = vpop.f32.mrf.mxu0
    %v513 = vadd.f32 0.0, %v512
    %v514 = vpop.f32.mrf.mxu0
    %515 = vmatprep.mubr.bf16.mxu0 %v261
    %516 = vmatmul.mubr.bf16.gmra.mxu0 %v260
    %v517 = vpop.f32.mrf.mxu0
    %v518 = vadd.f32 0.0, %v517
    %v519 = vpop.f32.mrf.mxu0
    %v520 = vpop.f32.mrf.mxu0
    %v521 = vadd.f32 0.0, %v520
    %v522 = vpop.f32.mrf.mxu0
    %523 = vmatprep.mubr.bf16.mxu0 %v264
    %524 = vmatmul.mubr.bf16.gmra.mxu0 %v263
    %v525 = vpop.f32.mrf.mxu0
    %v526 = vadd.f32 0.0, %v525
    %v527 = vpop.f32.mrf.mxu0
    %v528 = vpop.f32.mrf.mxu0
    %v529 = vadd.f32 0.0, %v528
    %v530 = vpop.f32.mrf.mxu0
    %531 = vmatprep.mubr.bf16.mxu0 %v267
    %532 = vmatmul.mubr.bf16.gmra.mxu0 %v266
    %v533 = vpop.f32.mrf.mxu0
    %v534 = vadd.f32 0.0, %v533
    %v535 = vpop.f32.mrf.mxu0
    %v536 = vpop.f32.mrf.mxu0
    %v537 = vadd.f32 0.0, %v536
    %v538 = vpop.f32.mrf.mxu0
    %539 = vmatprep.mubr.bf16.mxu0 %v270
    %540 = vmatmul.mubr.bf16.gmra.mxu0 %v269
    %v541 = vpop.f32.mrf.mxu0
    %v542 = vadd.f32 0.0, %v541
    %v543 = vpop.f32.mrf.mxu0
    %v544 = vpop.f32.mrf.mxu0
    %v545 = vadd.f32 0.0, %v544
    %v546 = vpop.f32.mrf.mxu0
    %547 = vmatprep.mubr.bf16.mxu0 %v273
    %548 = vmatmul.mubr.bf16.gmra.mxu0 %v272
    %v549 = vpop.f32.mrf.mxu0
    %v550 = vadd.f32 0.0, %v549
    %v551 = vpop.f32.mrf.mxu0
    %v552 = vpop.f32.mrf.mxu0
    %v553 = vadd.f32 0.0, %v552
    %v554 = vpop.f32.mrf.mxu0
    %555 = vmatprep.mubr.bf16.mxu0 %v276
    %556 = vmatmul.mubr.bf16.gmra.mxu0 %v275
    %v557 = vpop.f32.mrf.mxu0
    %v558 = vadd.f32 0.0, %v557
    %v559 = vpop.f32.mrf.mxu0
    %v560 = vpop.f32.mrf.mxu0
    %v561 = vadd.f32 0.0, %v560
    %v562 = vpop.f32.mrf.mxu0
    %563 = vmatprep.mubr.bf16.mxu0 %v279
    %564 = vmatmul.mubr.bf16.gmra.mxu0 %v278
    %v565 = vpop.f32.mrf.mxu0
    %v566 = vadd.f32 0.0, %v565
    %v567 = vpop.f32.mrf.mxu0
    %v568 = vpop.f32.mrf.mxu0
    %v569 = vadd.f32 0.0, %v568
    %v570 = vpop.f32.mrf.mxu0
    %571 = vmatprep.mubr.bf16.mxu0 %v282
    %572 = vmatmul.mubr.bf16.gmra.mxu0 %v281
    %v573 = vpop.f32.mrf.mxu0
    %v574 = vadd.f32 0.0, %v573
    %v575 = vpop.f32.mrf.mxu0
    %v576 = vpop.f32.mrf.mxu0
    %v577 = vadd.f32 0.0, %v576
    %v578 = vpop.f32.mrf.mxu0
    %579 = vmatprep.mubr.bf16.mxu0 %v285
    %580 = vmatmul.mubr.bf16.gmra.mxu0 %v284
    %v581 = vpop.f32.mrf.mxu0
    %v582 = vadd.f32 0.0, %v581
    %v583 = vpop.f32.mrf.mxu0
    %v584 = vpop.f32.mrf.mxu0
    %v585 = vadd.f32 0.0, %v584
    %v586 = vpop.f32.mrf.mxu0
    %587 = vmatprep.mubr.bf16.mxu0 %v288
    %588 = vmatmul.mubr.bf16.gmra.mxu0 %v287
    %v589 = vpop.f32.mrf.mxu0
    %v590 = vadd.f32 0.0, %v589
    %v591 = vpop.f32.mrf.mxu0
    %v592 = vpop.f32.mrf.mxu0
    %v593 = vadd.f32 0.0, %v592
    %v594 = vpop.f32.mrf.mxu0
    %595 = vmatprep.mubr.bf16.mxu0 %v291
    %596 = vmatmul.mubr.bf16.gmra.mxu0 %v290
    %v597 = vpop.f32.mrf.mxu0
    %v598 = vadd.f32 0.0, %v597
    %v599 = vpop.f32.mrf.mxu0
    %v600 = vpop.f32.mrf.mxu0
    %v601 = vpop.f32.mrf.mxu0
    %602 = vdwg.mxu0
    %603 = vmatprep.subr.bf16.mxu0 0
    %604 = vmatpush1.bf16.msra.mxu0 0
    %605 = vmatprep.subr.bf16.mxu0 0
    %606 = vmatpush1.bf16.msra.mxu0 0
    %607 = vmatprep.subr.bf16.mxu0 0
    %608 = vmatpush1.bf16.msra.mxu0 0
    %609 = vmatprep.subr.bf16.mxu0 0
    %610 = vmatpush1.bf16.msra.mxu0 0
    %611 = vmatprep.subr.bf16.mxu0 0
    %612 = vmatpush1.bf16.msra.mxu0 0
    %613 = vmatprep.subr.bf16.mxu0 0
    %614 = vmatpush1.bf16.msra.mxu0 0
    %615 = vmatprep.subr.bf16.mxu0 0
    %616 = vmatpush1.bf16.msra.mxu0 %v408
    %617 = vmatprep.subr.bf16.mxu0 0
    %618 = vmatpush1.bf16.msra.mxu0 %v407
    %619 = vmatprep.subr.bf16.mxu0 0
    %620 = vmatpush2.bf16.msra.mxu0 0
    %621 = vmatprep.subr.bf16.mxu0 0
    %622 = vmatpush2.bf16.msra.mxu0 0
    %623 = vmatprep.subr.bf16.mxu0 0
    %624 = vmatpush2.bf16.msra.mxu0 0
    %625 = vmatprep.subr.bf16.mxu0 0
    %626 = vmatpush2.bf16.msra.mxu0 0
    %627 = vmatprep.subr.bf16.mxu0 0
    %628 = vmatpush2.bf16.msra.mxu0 0
    %629 = vmatprep.subr.bf16.mxu0 0
    %630 = vmatpush2.bf16.msra.mxu0 0
    %631 = vmatprep.subr.bf16.mxu0 0
    %632 = vmatpush2.bf16.msra.mxu0 0
    %633 = vmatprep.subr.bf16.mxu0 0
    %634 = vmatpush2.bf16.msra.mxu0 0
    %635 = vmatprep.mubr.bf16.mxu0 0
    %636 = vmatmul.mubr.bf16.gmra.mxu0 %v429
    %v637 = vpop.f32.mrf.mxu0
    %v638 = vadd.f32 %v502, %v637
    %v639 = vpop.f32.mrf.mxu0
    %v640 = vpop.f32.mrf.mxu0
    %v641 = vadd.f32 %v505, %v640
    %v642 = vpop.f32.mrf.mxu0
    %643 = vmatprep.mubr.bf16.mxu0 0
    %644 = vmatmul.mubr.bf16.gmra.mxu0 %v432
    %v645 = vpop.f32.mrf.mxu0
    %v646 = vadd.f32 %v510, %v645
    %v647 = vpop.f32.mrf.mxu0
    %v648 = vpop.f32.mrf.mxu0
    %v649 = vadd.f32 %v513, %v648
    %v650 = vpop.f32.mrf.mxu0
    %651 = vmatprep.mubr.bf16.mxu0 0
    %652 = vmatmul.mubr.bf16.gmra.mxu0 %v435
    %v653 = vpop.f32.mrf.mxu0
    %v654 = vadd.f32 %v518, %v653
    %v655 = vpop.f32.mrf.mxu0
    %v656 = vpop.f32.mrf.mxu0
    %v657 = vadd.f32 %v521, %v656
    %v658 = vpop.f32.mrf.mxu0
    %659 = vmatprep.mubr.bf16.mxu0 0
    %660 = vmatmul.mubr.bf16.gmra.mxu0 %v438
    %v661 = vpop.f32.mrf.mxu0
    %v662 = vadd.f32 %v526, %v661
    %v663 = vpop.f32.mrf.mxu0
    %v664 = vpop.f32.mrf.mxu0
    %v665 = vadd.f32 %v529, %v664
    %v666 = vpop.f32.mrf.mxu0
    %667 = vmatprep.mubr.bf16.mxu0 0
    %668 = vmatmul.mubr.bf16.gmra.mxu0 %v441
    %v669 = vpop.f32.mrf.mxu0
    %v670 = vadd.f32 %v534, %v669
    %v671 = vpop.f32.mrf.mxu0
    %v672 = vpop.f32.mrf.mxu0
    %v673 = vadd.f32 %v537, %v672
    %v674 = vpop.f32.mrf.mxu0
    %675 = vmatprep.mubr.bf16.mxu0 0
    %676 = vmatmul.mubr.bf16.gmra.mxu0 %v444
    %v677 = vpop.f32.mrf.mxu0
    %v678 = vadd.f32 %v542, %v677
    %v679 = vpop.f32.mrf.mxu0
    %v680 = vpop.f32.mrf.mxu0
    %v681 = vadd.f32 %v545, %v680
    %v682 = vpop.f32.mrf.mxu0
    %683 = vmatprep.mubr.bf16.mxu0 0
    %684 = vmatmul.mubr.bf16.gmra.mxu0 %v447
    %v685 = vpop.f32.mrf.mxu0
    %v686 = vadd.f32 %v550, %v685
    %v687 = vpop.f32.mrf.mxu0
    %v688 = vpop.f32.mrf.mxu0
    %v689 = vadd.f32 %v553, %v688
    %v690 = vpop.f32.mrf.mxu0
    %691 = vmatprep.mubr.bf16.mxu0 0
    %692 = vmatmul.mubr.bf16.gmra.mxu0 %v450
    %v693 = vpop.f32.mrf.mxu0
    %v694 = vadd.f32 %v558, %v693
    %v695 = vpop.f32.mrf.mxu0
    %v696 = vpop.f32.mrf.mxu0
    %v697 = vadd.f32 %v561, %v696
    %v698 = vpop.f32.mrf.mxu0
    %699 = vmatprep.mubr.bf16.mxu0 0
    %700 = vmatmul.mubr.bf16.gmra.mxu0 %v453
    %v701 = vpop.f32.mrf.mxu0
    %v702 = vadd.f32 %v566, %v701
    %v703 = vpop.f32.mrf.mxu0
    %v704 = vpop.f32.mrf.mxu0
    %v705 = vadd.f32 %v569, %v704
    %v706 = vpop.f32.mrf.mxu0
    %707 = vmatprep.mubr.bf16.mxu0 0
    %708 = vmatmul.mubr.bf16.gmra.mxu0 %v456
    %v709 = vpop.f32.mrf.mxu0
    %v710 = vadd.f32 %v574, %v709
    %v711 = vpop.f32.mrf.mxu0
    %v712 = vpop.f32.mrf.mxu0
    %v713 = vadd.f32 %v577, %v712
    %v714 = vpop.f32.mrf.mxu0
    %715 = vmatprep.mubr.bf16.mxu0 0
    %716 = vmatmul.mubr.bf16.gmra.mxu0 %v459
    %v717 = vpop.f32.mrf.mxu0
    %v718 = vadd.f32 %v582, %v717
    %v719 = vpop.f32.mrf.mxu0
    %v720 = vpop.f32.mrf.mxu0
    %v721 = vadd.f32 %v585, %v720
    %v722 = vpop.f32.mrf.mxu0
    %723 = vmatprep.mubr.bf16.mxu0 0
    %724 = vmatmul.mubr.bf16.gmra.mxu0 %v462
    %v725 = vpop.f32.mrf.mxu0
    %v726 = vadd.f32 %v590, %v725
    %v727 = vpop.f32.mrf.mxu0
    %v728 = vpop.f32.mrf.mxu0
    %v729 = vadd.f32 %v593, %v728
    %v730 = vpop.f32.mrf.mxu0
    %731 = vmatprep.mubr.bf16.mxu0 0
    %732 = vmatmul.mubr.bf16.gmra.mxu0 %v465
    %v733 = vpop.f32.mrf.mxu0
    %v734 = vadd.f32 %v598, %v733
    %v735 = vpop.f32.mrf.mxu0
    %v736 = vpop.f32.mrf.mxu0
    %v737 = vpop.f32.mrf.mxu0
    %738 = vdwg.mxu0
    %v739 = vadd.f32 %v638, %v641
    %v740 = vadd.f32 %v739, %v646
    %v741 = vadd.f32 %v740, %v649
    %v742 = vadd.f32 %v741, %v654
    %v743 = vadd.f32 %v742, %v657
    %v744 = vadd.f32 %v743, %v662
    %v745 = vadd.f32 %v744, %v665
    %v746 = vadd.f32 %v745, %v670
    %v747 = vadd.f32 %v746, %v673
    %v748 = vadd.f32 %v747, %v678
    %v749 = vadd.f32 %v748, %v681
    %v750 = vadd.f32 %v749, %v686
    %v751 = vadd.f32 %v750, %v689
    %v752 = vadd.f32 %v751, %v694
    %v753 = vadd.f32 %v752, %v697
    %v754 = vadd.f32 %v753, %v702
    %v755 = vadd.f32 %v754, %v705
    %v756 = vadd.f32 %v755, %v710
    %v757 = vadd.f32 %v756, %v713
    %v758 = vadd.f32 %v757, %v718
    %v759 = vadd.f32 %v758, %v721
    %v760 = vadd.f32 %v759, %v726
    %v761 = vadd.f32 %v760, %v729
    %v762 = vadd.f32 %v761, %v734
    %v763 = vrot.slane %v762, 4
    %v764 = vadd.f32 %v762, %v763
    %v765 = vrot.slane %v764, 2
    %v766 = vadd.f32 %v764, %v765
    %v767 = vrot.slane %v766, 1
    %v768 = vadd.f32 %v766, %v767
    %v769 = vmul.f32 %v768, 0.005
    %v770 = vmul.f32 %v638, %v638
    %v771 = vmul.f32 %v641, %v641
    %v772 = vmul.f32 %v646, %v646
    %v773 = vmul.f32 %v649, %v649
    %v774 = vmul.f32 %v654, %v654
    %v775 = vmul.f32 %v657, %v657
    %v776 = vmul.f32 %v662, %v662
    %v777 = vmul.f32 %v665, %v665
    %v778 = vmul.f32 %v670, %v670
    %v779 = vmul.f32 %v673, %v673
    %v780 = vmul.f32 %v678, %v678
    %v781 = vmul.f32 %v681, %v681
    %v782 = vmul.f32 %v686, %v686
    %v783 = vmul.f32 %v689, %v689
    %v784 = vmul.f32 %v694, %v694
    %v785 = vmul.f32 %v697, %v697
    %v786 = vmul.f32 %v702, %v702
    %v787 = vmul.f32 %v705, %v705
    %v788 = vmul.f32 %v710, %v710
    %v789 = vmul.f32 %v713, %v713
    %v790 = vmul.f32 %v718, %v718
    %v791 = vmul.f32 %v721, %v721
    %v792 = vmul.f32 %v726, %v726
    %v793 = vmul.f32 %v729, %v729
    %v794 = vmul.f32 %v734, %v734
    %v795 = vadd.f32 %v770, %v771
    %v796 = vadd.f32 %v795, %v772
    %v797 = vadd.f32 %v796, %v773
    %v798 = vadd.f32 %v797, %v774
    %v799 = vadd.f32 %v798, %v775
    %v800 = vadd.f32 %v799, %v776
    %v801 = vadd.f32 %v800, %v777
    %v802 = vadd.f32 %v801, %v778
    %v803 = vadd.f32 %v802, %v779
    %v804 = vadd.f32 %v803, %v780
    %v805 = vadd.f32 %v804, %v781
    %v806 = vadd.f32 %v805, %v782
    %v807 = vadd.f32 %v806, %v783
    %v808 = vadd.f32 %v807, %v784
    %v809 = vadd.f32 %v808, %v785
    %v810 = vadd.f32 %v809, %v786
    %v811 = vadd.f32 %v810, %v787
    %v812 = vadd.f32 %v811, %v788
    %v813 = vadd.f32 %v812, %v789
    %v814 = vadd.f32 %v813, %v790
    %v815 = vadd.f32 %v814, %v791
    %v816 = vadd.f32 %v815, %v792
    %v817 = vadd.f32 %v816, %v793
    %v818 = vadd.f32 %v817, %v794
    %v819 = vrot.slane %v818, 4
    %v820 = vadd.f32 %v818, %v819
    %v821 = vrot.slane %v820, 2
    %v822 = vadd.f32 %v820, %v821
    %v823 = vrot.slane %v822, 1
    %v824 = vadd.f32 %v822, %v823
    %v825 = vmul.f32 %v824, 0.005
    %v826 = vmul.f32 %v769, %v769
    %v827 = vsub.f32 %v825, %v826
    %v828 = vadd.f32 %v827, 1e-05
    %v829 = vrsqrt.pop %v828
    %v830 = vmul.f32 %v829, %v40
    %v831 = vlaneseq
    %v832 = vshrl.u32 %v831, 7
    %v833 = vsub.s32 0, %v832
    %v834 = vrot.slane %v830, %v833
    %v835 = vmul.f32 %v638, %v834
    %v836 = vmul.f32 %v641, %v834
    %v837 = vmul.f32 %v646, %v834
    %v838 = vmul.f32 %v649, %v834
    %v839 = vmul.f32 %v654, %v834
    %v840 = vmul.f32 %v657, %v834
    %v841 = vmul.f32 %v662, %v834
    %v842 = vmul.f32 %v665, %v834
    %v843 = vmul.f32 %v670, %v834
    %v844 = vmul.f32 %v673, %v834
    %v845 = vmul.f32 %v678, %v834
    %v846 = vmul.f32 %v681, %v834
    %v847 = vmul.f32 %v686, %v834
    %v848 = vmul.f32 %v689, %v834
    %v849 = vmul.f32 %v694, %v834
    %v850 = vmul.f32 %v697, %v834
    %v851 = vmul.f32 %v702, %v834
    %v852 = vmul.f32 %v705, %v834
    %v853 = vmul.f32 %v710, %v834
    %v854 = vmul.f32 %v713, %v834
    %v855 = vmul.f32 %v718, %v834
    %v856 = vmul.f32 %v721, %v834
    %v857 = vmul.f32 %v726, %v834
    %v858 = vmul.f32 %v729, %v834
    %v859 = vmul.f32 %v734, %v834
    %v860 = vmul.f32 %v769, %v830
    %v862 = vrot.slane %v860, 7
    %v864 = vsub.f32 %v40, %v862
    %v865 = vlaneseq
    %v866 = vshrl.u32 %v865, 7
    %v867 = vsub.s32 1, %v866
    %v868 = vrot.slane %v864, %v867
    %v869 = vadd.f32 %v835, %v868
    %v870 = vadd.f32 %v836, %v868
    %v871 = vadd.f32 %v837, %v868
    %v872 = vadd.f32 %v838, %v868
    %v873 = vadd.f32 %v839, %v868
    %v874 = vadd.f32 %v840, %v868
    %v875 = vadd.f32 %v841, %v868
    %v876 = vadd.f32 %v842, %v868
    %v877 = vadd.f32 %v843, %v868
    %v878 = vadd.f32 %v844, %v868
    %v879 = vadd.f32 %v845, %v868
    %v880 = vadd.f32 %v846, %v868
    %v881 = vadd.f32 %v847, %v868
    %v882 = vadd.f32 %v848, %v868
    %v883 = vadd.f32 %v849, %v868
    %v884 = vadd.f32 %v850, %v868
    %v885 = vadd.f32 %v851, %v868
    %v886 = vadd.f32 %v852, %v868
    %v887 = vadd.f32 %v853, %v868
    %v888 = vadd.f32 %v854, %v868
    %v889 = vadd.f32 %v855, %v868
    %v890 = vadd.f32 %v856, %v868
    %v891 = vadd.f32 %v857, %v868
    %v892 = vadd.f32 %v858, %v868
    %v893 = vadd.f32 %v859, %v868
    %v894 = vmax.f32 %v869, 0.0
    %v895 = vmax.f32 %v870, 0.0
    %v896 = vmax.f32 %v871, 0.0
    %v897 = vmax.f32 %v872, 0.0
    %v898 = vmax.f32 %v873, 0.0
    %v899 = vmax.f32 %v874, 0.0
    %v900 = vmax.f32 %v875, 0.0
    %v901 = vmax.f32 %v876, 0.0
    %v902 = vmax.f32 %v877, 0.0
    %v903 = vmax.f32 %v878, 0.0
    %v904 = vmax.f32 %v879, 0.0
    %v905 = vmax.f32 %v880, 0.0
    %v906 = vmax.f32 %v881, 0.0
    %v907 = vmax.f32 %v882, 0.0
    %v908 = vmax.f32 %v883, 0.0
    %v909 = vmax.f32 %v884, 0.0
    %v910 = vmax.f32 %v885, 0.0
    %v911 = vmax.f32 %v886, 0.0
    %v912 = vmax.f32 %v887, 0.0
    %v913 = vmax.f32 %v888, 0.0
    %v914 = vmax.f32 %v889, 0.0
    %v915 = vmax.f32 %v890, 0.0
    %v916 = vmax.f32 %v891, 0.0
    %v917 = vmax.f32 %v892, 0.0
    %v918 = vmax.f32 %v893, 0.0
    %919 = vst [vmem:[%s9] sm:$0xff] %v894
    %920 = vst [vmem:[%s9 + $0x8] sm:$0xff] %v895
    %921 = vst [vmem:[%s9 + $0x10] sm:$0xff] %v896
    %922 = vst [vmem:[%s9 + $0x18] sm:$0xff] %v897
    %923 = vst [vmem:[%s9 + $0x20] sm:$0xff] %v898
    %924 = vst [vmem:[%s9 + $0x28] sm:$0xff] %v899
    %925 = vst [vmem:[%s9 + $0x30] sm:$0xff] %v900
    %926 = vst [vmem:[%s9 + $0x38] sm:$0xff] %v901
    %927 = vst [vmem:[%s9 + $0x40] sm:$0xff] %v902
    %928 = vst [vmem:[%s9 + $0x48] sm:$0xff] %v903
    %929 = vst [vmem:[%s9 + $0x50] sm:$0xff] %v904
    %930 = vst [vmem:[%s9 + $0x58] sm:$0xff] %v905
    %931 = vst [vmem:[%s9 + $0x60] sm:$0xff] %v906
    %932 = vst [vmem:[%s9 + $0x68] sm:$0xff] %v907
    %933 = vst [vmem:[%s9 + $0x70] sm:$0xff] %v908
    %934 = vst [vmem:[%s9 + $0x78] sm:$0xff] %v909
    %935 = vst [vmem:[%s9 + $0x80] sm:$0xff] %v910
    %936 = vst [vmem:[%s9 + $0x88] sm:$0xff] %v911
    %937 = vst [vmem:[%s9 + $0x90] sm:$0xff] %v912
    %938 = vst [vmem:[%s9 + $0x98] sm:$0xff] %v913
    %939 = vst [vmem:[%s9 + $0xa0] sm:$0xff] %v914
    %940 = vst [vmem:[%s9 + $0xa8] sm:$0xff] %v915
    %941 = vst [vmem:[%s9 + $0xb0] sm:$0xff] %v916
    %942 = vst [vmem:[%s9 + $0xb8] sm:$0xff] %v917
    %943 = vst [vmem:[%s9 + $0xc0] sm:$0xff] %v918
    %v944 = vpack.c.bf16 %v895, %v894
    %v945 = vpack.c.bf16 %v897, %v896
    %v946 = vpack.c.bf16 %v899, %v898
    %v947 = vpack.c.bf16 %v901, %v900
    %v948 = vpack.c.bf16 %v903, %v902
    %v949 = vpack.c.bf16 %v905, %v904
    %v950 = vpack.c.bf16 %v907, %v906
    %v951 = vpack.c.bf16 %v909, %v908
    %v952 = vpack.c.bf16 %v911, %v910
    %v953 = vpack.c.bf16 %v913, %v912
    %v954 = vpack.c.bf16 %v915, %v914
    %v955 = vpack.c.bf16 %v917, %v916
    %v956 = vpack.c.bf16 %v918, %v918
    %v957 = vld [vmem:[%s2] sm:$0xff]
    %v959 = vunpack.c.l.b16 %v957
    %v960 = vunpack.c.h.b16 %v957
    %v961 = vpack.c.b16 %v959, %v959
    %v962 = vpack.c.b16 %v960, %v960
    %vm964 = vcmask 588800
    %v966 = vsel %vm964, %v962, 0
    %vm968 = vcmask 1043456
    %v970 = vsel %vm968, %v956, 0
    %972 = vmatprep.subr.bf16.mxu0 0
    %973 = vmatpush1.bf16.msra.mxu0 %v951
    %974 = vmatprep.subr.bf16.mxu0 0
    %975 = vmatpush1.bf16.msra.mxu0 %v950
    %976 = vmatprep.subr.bf16.mxu0 0
    %977 = vmatpush1.bf16.msra.mxu0 %v949
    %978 = vmatprep.subr.bf16.mxu0 0
    %979 = vmatpush1.bf16.msra.mxu0 %v948
    %980 = vmatprep.subr.bf16.mxu0 0
    %981 = vmatpush1.bf16.msra.mxu0 %v947
    %982 = vmatprep.subr.bf16.mxu0 0
    %983 = vmatpush1.bf16.msra.mxu0 %v946
    %984 = vmatprep.subr.bf16.mxu0 0
    %985 = vmatpush1.bf16.msra.mxu0 %v945
    %986 = vmatprep.subr.bf16.mxu0 0
    %987 = vmatpush1.bf16.msra.mxu0 %v944
    %988 = vmatprep.subr.bf16.mxu0 0
    %989 = vmatpush2.bf16.msra.mxu0 0
    %990 = vmatprep.subr.bf16.mxu0 0
    %991 = vmatpush2.bf16.msra.mxu0 0
    %992 = vmatprep.subr.bf16.mxu0 0
    %993 = vmatpush2.bf16.msra.mxu0 0
    %994 = vmatprep.subr.bf16.mxu0 0
    %995 = vmatpush2.bf16.msra.mxu0 %v970
    %996 = vmatprep.subr.bf16.mxu0 0
    %997 = vmatpush2.bf16.msra.mxu0 %v955
    %998 = vmatprep.subr.bf16.mxu0 0
    %999 = vmatpush2.bf16.msra.mxu0 %v954
    %1000 = vmatprep.subr.bf16.mxu0 0
    %1001 = vmatpush2.bf16.msra.mxu0 %v953
    %1002 = vmatprep.subr.bf16.mxu0 0
    %1003 = vmatpush2.bf16.msra.mxu0 %v952
    %1004 = vmatprep.mubr.bf16.mxu0 %v966
    %1005 = vmatmul.mubr.bf16.gmra.mxu0 %v961
    %v1006 = vpop.f32.mrf.mxu0
    %v1007 = vadd.f32 0.0, %v1006
    %v1008 = vpop.f32.mrf.mxu0
    %v1009 = vpop.f32.mrf.mxu0
    %v1010 = vpop.f32.mrf.mxu0
    %1011 = vdwg.mxu0
    %v1012 = vpack.c.bf16 %v1007, %v1007
    %v1013 = vld [vmem:[%s3] sm:$0xff]
    %v1014 = vld [vmem:[%s3 + $0x8] sm:$0xff]
    %v1015 = vld [vmem:[%s3 + $0x10] sm:$0xff]
    %v1016 = vld [vmem:[%s3 + $0x18] sm:$0xff]
    %v1017 = vld [vmem:[%s3 + $0x20] sm:$0xff]
    %v1018 = vld [vmem:[%s3 + $0x28] sm:$0xff]
    %v1019 = vld [vmem:[%s3 + $0x30] sm:$0xff]
    %v1020 = vld [vmem:[%s3 + $0x38] sm:$0xff]
    %v1021 = vld [vmem:[%s3 + $0x40] sm:$0xff]
    %v1022 = vld [vmem:[%s3 + $0x48] sm:$0xff]
    %v1023 = vld [vmem:[%s3 + $0x50] sm:$0xff]
    %v1024 = vld [vmem:[%s3 + $0x58] sm:$0xff]
    %v1025 = vld [vmem:[%s3 + $0x60] sm:$0xff]
    %v1026 = vld [vmem:[%s3 + $0x68] sm:$0xff]
    %v1027 = vld [vmem:[%s3 + $0x70] sm:$0xff]
    %v1028 = vld [vmem:[%s3 + $0x78] sm:$0xff]
    %v1029 = vld [vmem:[%s2 + $0x8] sm:$0xff]
    %v1031 = vunpack.c.l.b16 %v1029
    %v1032 = vunpack.c.h.b16 %v1029
    %v1033 = vpack.c.b16 %v1031, %v1031
    %v1034 = vpack.c.b16 %v1032, %v1032
    %v1037 = vsel %vm964, %v1034, 0
    %1039 = vmatprep.subr.bf16.mxu0 0
    %1040 = vmatpush1.bf16.msra.mxu0 %v951
    %1041 = vmatprep.subr.bf16.mxu0 0
    %1042 = vmatpush1.bf16.msra.mxu0 %v950
    %1043 = vmatprep.subr.bf16.mxu0 0
    %1044 = vmatpush1.bf16.msra.mxu0 %v949
    %1045 = vmatprep.subr.bf16.mxu0 0
    %1046 = vmatpush1.bf16.msra.mxu0 %v948
    %1047 = vmatprep.subr.bf16.mxu0 0
    %1048 = vmatpush1.bf16.msra.mxu0 %v947
    %1049 = vmatprep.subr.bf16.mxu0 0
    %1050 = vmatpush1.bf16.msra.mxu0 %v946
    %1051 = vmatprep.subr.bf16.mxu0 0
    %1052 = vmatpush1.bf16.msra.mxu0 %v945
    %1053 = vmatprep.subr.bf16.mxu0 0
    %1054 = vmatpush1.bf16.msra.mxu0 %v944
    %1055 = vmatprep.subr.bf16.mxu0 0
    %1056 = vmatpush2.bf16.msra.mxu0 0
    %1057 = vmatprep.subr.bf16.mxu0 0
    %1058 = vmatpush2.bf16.msra.mxu0 0
    %1059 = vmatprep.subr.bf16.mxu0 0
    %1060 = vmatpush2.bf16.msra.mxu0 0
    %1061 = vmatprep.subr.bf16.mxu0 0
    %1062 = vmatpush2.bf16.msra.mxu0 %v970
    %1063 = vmatprep.subr.bf16.mxu0 0
    %1064 = vmatpush2.bf16.msra.mxu0 %v955
    %1065 = vmatprep.subr.bf16.mxu0 0
    %1066 = vmatpush2.bf16.msra.mxu0 %v954
    %1067 = vmatprep.subr.bf16.mxu0 0
    %1068 = vmatpush2.bf16.msra.mxu0 %v953
    %1069 = vmatprep.subr.bf16.mxu0 0
    %1070 = vmatpush2.bf16.msra.mxu0 %v952
    %1071 = vmatprep.mubr.bf16.mxu0 %v1037
    %1072 = vmatmul.mubr.bf16.gmra.mxu0 %v1033
    %v1073 = vpop.f32.mrf.mxu0
    %v1074 = vadd.f32 0.0, %v1073
    %v1075 = vpop.f32.mrf.mxu0
    %v1076 = vpop.f32.mrf.mxu0
    %v1077 = vpop.f32.mrf.mxu0
    %1078 = vdwg.mxu0
    %v1079 = vpack.c.bf16 %v1074, %v1074
    %v1080 = vld [vmem:[%s3 + $0x80] sm:$0xff]
    %v1081 = vld [vmem:[%s3 + $0x88] sm:$0xff]
    %v1082 = vld [vmem:[%s3 + $0x90] sm:$0xff]
    %v1083 = vld [vmem:[%s3 + $0x98] sm:$0xff]
    %v1084 = vld [vmem:[%s3 + $0xa0] sm:$0xff]
    %v1085 = vld [vmem:[%s3 + $0xa8] sm:$0xff]
    %v1086 = vld [vmem:[%s3 + $0xb0] sm:$0xff]
    %v1087 = vld [vmem:[%s3 + $0xb8] sm:$0xff]
    %v1088 = vld [vmem:[%s3 + $0xc0] sm:$0xff]
    %v1089 = vld [vmem:[%s3 + $0xc8] sm:$0xff]
    %v1090 = vld [vmem:[%s3 + $0xd0] sm:$0xff]
    %v1091 = vld [vmem:[%s3 + $0xd8] sm:$0xff]
    %v1092 = vld [vmem:[%s3 + $0xe0] sm:$0xff]
    %v1093 = vld [vmem:[%s3 + $0xe8] sm:$0xff]
    %v1094 = vld [vmem:[%s3 + $0xf0] sm:$0xff]
    %v1095 = vld [vmem:[%s3 + $0xf8] sm:$0xff]
    %v1112 = vunpack.c.l.b16 %v1080
    %v1113 = vunpack.c.h.b16 %v1080
    %v1114 = vunpack.c.l.b16 %v1081
    %v1115 = vunpack.c.h.b16 %v1081
    %v1116 = vunpack.c.l.b16 %v1082
    %v1117 = vunpack.c.h.b16 %v1082
    %v1118 = vunpack.c.l.b16 %v1083
    %v1119 = vunpack.c.h.b16 %v1083
    %v1120 = vunpack.c.l.b16 %v1084
    %v1121 = vunpack.c.h.b16 %v1084
    %v1122 = vunpack.c.l.b16 %v1085
    %v1123 = vunpack.c.h.b16 %v1085
    %v1124 = vunpack.c.l.b16 %v1086
    %v1125 = vunpack.c.h.b16 %v1086
    %v1126 = vunpack.c.l.b16 %v1087
    %v1127 = vunpack.c.h.b16 %v1087
    %v1128 = vunpack.c.l.b16 %v1088
    %v1129 = vunpack.c.h.b16 %v1088
    %v1130 = vunpack.c.l.b16 %v1089
    %v1131 = vunpack.c.h.b16 %v1089
    %v1132 = vunpack.c.l.b16 %v1090
    %v1133 = vunpack.c.h.b16 %v1090
    %v1134 = vunpack.c.l.b16 %v1091
    %v1135 = vunpack.c.h.b16 %v1091
    %v1136 = vunpack.c.l.b16 %v1092
    %v1137 = vunpack.c.h.b16 %v1092
    %v1138 = vunpack.c.l.b16 %v1093
    %v1139 = vunpack.c.h.b16 %v1093
    %v1140 = vunpack.c.l.b16 %v1094
    %v1141 = vunpack.c.h.b16 %v1094
    %v1142 = vunpack.c.l.b16 %v1095
    %v1143 = vunpack.c.h.b16 %v1095
    %v1144 = vpack.c.b16 %v1114, %v1112
    %v1145 = vpack.c.b16 %v1115, %v1113
    %v1146 = vpack.c.b16 %v1118, %v1116
    %v1147 = vpack.c.b16 %v1119, %v1117
    %v1148 = vpack.c.b16 %v1122, %v1120
    %v1149 = vpack.c.b16 %v1123, %v1121
    %v1150 = vpack.c.b16 %v1126, %v1124
    %v1151 = vpack.c.b16 %v1127, %v1125
    %v1152 = vpack.c.b16 %v1130, %v1128
    %v1153 = vpack.c.b16 %v1131, %v1129
    %v1154 = vpack.c.b16 %v1134, %v1132
    %v1155 = vpack.c.b16 %v1135, %v1133
    %v1156 = vpack.c.b16 %v1138, %v1136
    %v1157 = vpack.c.b16 %v1139, %v1137
    %v1158 = vpack.c.b16 %v1142, %v1140
    %v1159 = vpack.c.b16 %v1143, %v1141
    %1176 = vmatprep.subr.bf16.mxu0 %v1159
    %1177 = vmatpush1.bf16.msra.mxu0 %v1158
    %1178 = vmatprep.subr.bf16.mxu0 %v1157
    %1179 = vmatpush1.bf16.msra.mxu0 %v1156
    %1180 = vmatprep.subr.bf16.mxu0 %v1155
    %1181 = vmatpush1.bf16.msra.mxu0 %v1154
    %1182 = vmatprep.subr.bf16.mxu0 %v1153
    %1183 = vmatpush1.bf16.msra.mxu0 %v1152
    %1184 = vmatprep.subr.bf16.mxu0 %v1151
    %1185 = vmatpush1.bf16.msra.mxu0 %v1150
    %1186 = vmatprep.subr.bf16.mxu0 %v1149
    %1187 = vmatpush1.bf16.msra.mxu0 %v1148
    %1188 = vmatprep.subr.bf16.mxu0 %v1147
    %1189 = vmatpush1.bf16.msra.mxu0 %v1146
    %1190 = vmatprep.subr.bf16.mxu0 %v1145
    %1191 = vmatpush1.bf16.msra.mxu0 %v1144
    %1192 = vmatprep.subr.bf16.mxu0 0
    %1193 = vmatpush2.bf16.msra.mxu0 0
    %1194 = vmatprep.subr.bf16.mxu0 0
    %1195 = vmatpush2.bf16.msra.mxu0 0
    %1196 = vmatprep.subr.bf16.mxu0 0
    %1197 = vmatpush2.bf16.msra.mxu0 0
    %1198 = vmatprep.subr.bf16.mxu0 0
    %1199 = vmatpush2.bf16.msra.mxu0 0
    %1200 = vmatprep.subr.bf16.mxu0 0
    %1201 = vmatpush2.bf16.msra.mxu0 0
    %1202 = vmatprep.subr.bf16.mxu0 0
    %1203 = vmatpush2.bf16.msra.mxu0 0
    %1204 = vmatprep.subr.bf16.mxu0 0
    %1205 = vmatpush2.bf16.msra.mxu0 0
    %1206 = vmatprep.subr.bf16.mxu0 0
    %1207 = vmatpush2.bf16.msra.mxu0 0
    %1208 = vmatprep.mubr.bf16.mxu0 0
    %1209 = vmatmul.mubr.bf16.gmra.mxu0 %v1079
    %v1210 = vpop.f32.mrf.mxu0
    %v1211 = vadd.f32 0.0, %v1210
    %v1212 = vpop.f32.mrf.mxu0
    %v1213 = vadd.f32 0.0, %v1212
    %v1214 = vpop.f32.mrf.mxu0
    %v1215 = vpop.f32.mrf.mxu0
    %1216 = vdwg.mxu0
    %v1233 = vunpack.c.l.b16 %v1013
    %v1234 = vunpack.c.h.b16 %v1013
    %v1235 = vunpack.c.l.b16 %v1014
    %v1236 = vunpack.c.h.b16 %v1014
    %v1237 = vunpack.c.l.b16 %v1015
    %v1238 = vunpack.c.h.b16 %v1015
    %v1239 = vunpack.c.l.b16 %v1016
    %v1240 = vunpack.c.h.b16 %v1016
    %v1241 = vunpack.c.l.b16 %v1017
    %v1242 = vunpack.c.h.b16 %v1017
    %v1243 = vunpack.c.l.b16 %v1018
    %v1244 = vunpack.c.h.b16 %v1018
    %v1245 = vunpack.c.l.b16 %v1019
    %v1246 = vunpack.c.h.b16 %v1019
    %v1247 = vunpack.c.l.b16 %v1020
    %v1248 = vunpack.c.h.b16 %v1020
    %v1249 = vunpack.c.l.b16 %v1021
    %v1250 = vunpack.c.h.b16 %v1021
    %v1251 = vunpack.c.l.b16 %v1022
    %v1252 = vunpack.c.h.b16 %v1022
    %v1253 = vunpack.c.l.b16 %v1023
    %v1254 = vunpack.c.h.b16 %v1023
    %v1255 = vunpack.c.l.b16 %v1024
    %v1256 = vunpack.c.h.b16 %v1024
    %v1257 = vunpack.c.l.b16 %v1025
    %v1258 = vunpack.c.h.b16 %v1025
    %v1259 = vunpack.c.l.b16 %v1026
    %v1260 = vunpack.c.h.b16 %v1026
    %v1261 = vunpack.c.l.b16 %v1027
    %v1262 = vunpack.c.h.b16 %v1027
    %v1263 = vunpack.c.l.b16 %v1028
    %v1264 = vunpack.c.h.b16 %v1028
    %v1265 = vpack.c.b16 %v1235, %v1233
    %v1266 = vpack.c.b16 %v1236, %v1234
    %v1267 = vpack.c.b16 %v1239, %v1237
    %v1268 = vpack.c.b16 %v1240, %v1238
    %v1269 = vpack.c.b16 %v1243, %v1241
    %v1270 = vpack.c.b16 %v1244, %v1242
    %v1271 = vpack.c.b16 %v1247, %v1245
    %v1272 = vpack.c.b16 %v1248, %v1246
    %v1273 = vpack.c.b16 %v1251, %v1249
    %v1274 = vpack.c.b16 %v1252, %v1250
    %v1275 = vpack.c.b16 %v1255, %v1253
    %v1276 = vpack.c.b16 %v1256, %v1254
    %v1277 = vpack.c.b16 %v1259, %v1257
    %v1278 = vpack.c.b16 %v1260, %v1258
    %v1279 = vpack.c.b16 %v1263, %v1261
    %v1280 = vpack.c.b16 %v1264, %v1262
    %1297 = vmatprep.subr.bf16.mxu0 %v1280
    %1298 = vmatpush1.bf16.msra.mxu0 %v1279
    %1299 = vmatprep.subr.bf16.mxu0 %v1278
    %1300 = vmatpush1.bf16.msra.mxu0 %v1277
    %1301 = vmatprep.subr.bf16.mxu0 %v1276
    %1302 = vmatpush1.bf16.msra.mxu0 %v1275
    %1303 = vmatprep.subr.bf16.mxu0 %v1274
    %1304 = vmatpush1.bf16.msra.mxu0 %v1273
    %1305 = vmatprep.subr.bf16.mxu0 %v1272
    %1306 = vmatpush1.bf16.msra.mxu0 %v1271
    %1307 = vmatprep.subr.bf16.mxu0 %v1270
    %1308 = vmatpush1.bf16.msra.mxu0 %v1269
    %1309 = vmatprep.subr.bf16.mxu0 %v1268
    %1310 = vmatpush1.bf16.msra.mxu0 %v1267
    %1311 = vmatprep.subr.bf16.mxu0 %v1266
    %1312 = vmatpush1.bf16.msra.mxu0 %v1265
    %1313 = vmatprep.subr.bf16.mxu0 0
    %1314 = vmatpush2.bf16.msra.mxu0 0
    %1315 = vmatprep.subr.bf16.mxu0 0
    %1316 = vmatpush2.bf16.msra.mxu0 0
    %1317 = vmatprep.subr.bf16.mxu0 0
    %1318 = vmatpush2.bf16.msra.mxu0 0
    %1319 = vmatprep.subr.bf16.mxu0 0
    %1320 = vmatpush2.bf16.msra.mxu0 0
    %1321 = vmatprep.subr.bf16.mxu0 0
    %1322 = vmatpush2.bf16.msra.mxu0 0
    %1323 = vmatprep.subr.bf16.mxu0 0
    %1324 = vmatpush2.bf16.msra.mxu0 0
    %1325 = vmatprep.subr.bf16.mxu0 0
    %1326 = vmatpush2.bf16.msra.mxu0 0
    %1327 = vmatprep.subr.bf16.mxu0 0
    %1328 = vmatpush2.bf16.msra.mxu0 0
    %1329 = vmatprep.mubr.bf16.mxu0 0
    %1330 = vmatmul.mubr.bf16.gmra.mxu0 %v1012
    %v1331 = vpop.f32.mrf.mxu0
    %v1332 = vadd.f32 %v1211, %v1331
    %v1333 = vpop.f32.mrf.mxu0
    %v1334 = vadd.f32 %v1213, %v1333
    %v1335 = vpop.f32.mrf.mxu0
    %v1336 = vpop.f32.mrf.mxu0
    %1337 = vdwg.mxu0
    %v1338 = vld [vmem:[%s2 + $0x10] sm:$0xff]
    %v1340 = vunpack.c.l.b16 %v1338
    %v1341 = vunpack.c.h.b16 %v1338
    %v1342 = vpack.c.b16 %v1340, %v1340
    %v1343 = vpack.c.b16 %v1341, %v1341
    %v1346 = vsel %vm964, %v1343, 0
    %1348 = vmatprep.subr.bf16.mxu0 0
    %1349 = vmatpush1.bf16.msra.mxu0 %v951
    %1350 = vmatprep.subr.bf16.mxu0 0
    %1351 = vmatpush1.bf16.msra.mxu0 %v950
    %1352 = vmatprep.subr.bf16.mxu0 0
    %1353 = vmatpush1.bf16.msra.mxu0 %v949
    %1354 = vmatprep.subr.bf16.mxu0 0
    %1355 = vmatpush1.bf16.msra.mxu0 %v948
    %1356 = vmatprep.subr.bf16.mxu0 0
    %1357 = vmatpush1.bf16.msra.mxu0 %v947
    %1358 = vmatprep.subr.bf16.mxu0 0
    %1359 = vmatpush1.bf16.msra.mxu0 %v946
    %1360 = vmatprep.subr.bf16.mxu0 0
    %1361 = vmatpush1.bf16.msra.mxu0 %v945
    %1362 = vmatprep.subr.bf16.mxu0 0
    %1363 = vmatpush1.bf16.msra.mxu0 %v944
    %1364 = vmatprep.subr.bf16.mxu0 0
    %1365 = vmatpush2.bf16.msra.mxu0 0
    %1366 = vmatprep.subr.bf16.mxu0 0
    %1367 = vmatpush2.bf16.msra.mxu0 0
    %1368 = vmatprep.subr.bf16.mxu0 0
    %1369 = vmatpush2.bf16.msra.mxu0 0
    %1370 = vmatprep.subr.bf16.mxu0 0
    %1371 = vmatpush2.bf16.msra.mxu0 %v970
    %1372 = vmatprep.subr.bf16.mxu0 0
    %1373 = vmatpush2.bf16.msra.mxu0 %v955
    %1374 = vmatprep.subr.bf16.mxu0 0
    %1375 = vmatpush2.bf16.msra.mxu0 %v954
    %1376 = vmatprep.subr.bf16.mxu0 0
    %1377 = vmatpush2.bf16.msra.mxu0 %v953
    %1378 = vmatprep.subr.bf16.mxu0 0
    %1379 = vmatpush2.bf16.msra.mxu0 %v952
    %1380 = vmatprep.mubr.bf16.mxu0 %v1346
    %1381 = vmatmul.mubr.bf16.gmra.mxu0 %v1342
    %v1382 = vpop.f32.mrf.mxu0
    %v1383 = vadd.f32 0.0, %v1382
    %v1384 = vpop.f32.mrf.mxu0
    %v1385 = vpop.f32.mrf.mxu0
    %v1386 = vpop.f32.mrf.mxu0
    %1387 = vdwg.mxu0
    %v1388 = vpack.c.bf16 %v1383, %v1383
    %v1389 = vld [vmem:[%s3 + $0x100] sm:$0xff]
    %v1390 = vld [vmem:[%s3 + $0x108] sm:$0xff]
    %v1391 = vld [vmem:[%s3 + $0x110] sm:$0xff]
    %v1392 = vld [vmem:[%s3 + $0x118] sm:$0xff]
    %v1393 = vld [vmem:[%s3 + $0x120] sm:$0xff]
    %v1394 = vld [vmem:[%s3 + $0x128] sm:$0xff]
    %v1395 = vld [vmem:[%s3 + $0x130] sm:$0xff]
    %v1396 = vld [vmem:[%s3 + $0x138] sm:$0xff]
    %v1397 = vld [vmem:[%s3 + $0x140] sm:$0xff]
    %v1398 = vld [vmem:[%s3 + $0x148] sm:$0xff]
    %v1399 = vld [vmem:[%s3 + $0x150] sm:$0xff]
    %v1400 = vld [vmem:[%s3 + $0x158] sm:$0xff]
    %v1401 = vld [vmem:[%s3 + $0x160] sm:$0xff]
    %v1402 = vld [vmem:[%s3 + $0x168] sm:$0xff]
    %v1403 = vld [vmem:[%s3 + $0x170] sm:$0xff]
    %v1404 = vld [vmem:[%s3 + $0x178] sm:$0xff]
    %v1421 = vunpack.c.l.b16 %v1389
    %v1422 = vunpack.c.h.b16 %v1389
    %v1423 = vunpack.c.l.b16 %v1390
    %v1424 = vunpack.c.h.b16 %v1390
    %v1425 = vunpack.c.l.b16 %v1391
    %v1426 = vunpack.c.h.b16 %v1391
    %v1427 = vunpack.c.l.b16 %v1392
    %v1428 = vunpack.c.h.b16 %v1392
    %v1429 = vunpack.c.l.b16 %v1393
    %v1430 = vunpack.c.h.b16 %v1393
    %v1431 = vunpack.c.l.b16 %v1394
    %v1432 = vunpack.c.h.b16 %v1394
    %v1433 = vunpack.c.l.b16 %v1395
    %v1434 = vunpack.c.h.b16 %v1395
    %v1435 = vunpack.c.l.b16 %v1396
    %v1436 = vunpack.c.h.b16 %v1396
    %v1437 = vunpack.c.l.b16 %v1397
    %v1438 = vunpack.c.h.b16 %v1397
    %v1439 = vunpack.c.l.b16 %v1398
    %v1440 = vunpack.c.h.b16 %v1398
    %v1441 = vunpack.c.l.b16 %v1399
    %v1442 = vunpack.c.h.b16 %v1399
    %v1443 = vunpack.c.l.b16 %v1400
    %v1444 = vunpack.c.h.b16 %v1400
    %v1445 = vunpack.c.l.b16 %v1401
    %v1446 = vunpack.c.h.b16 %v1401
    %v1447 = vunpack.c.l.b16 %v1402
    %v1448 = vunpack.c.h.b16 %v1402
    %v1449 = vunpack.c.l.b16 %v1403
    %v1450 = vunpack.c.h.b16 %v1403
    %v1451 = vunpack.c.l.b16 %v1404
    %v1452 = vunpack.c.h.b16 %v1404
    %v1453 = vpack.c.b16 %v1423, %v1421
    %v1454 = vpack.c.b16 %v1424, %v1422
    %v1455 = vpack.c.b16 %v1427, %v1425
    %v1456 = vpack.c.b16 %v1428, %v1426
    %v1457 = vpack.c.b16 %v1431, %v1429
    %v1458 = vpack.c.b16 %v1432, %v1430
    %v1459 = vpack.c.b16 %v1435, %v1433
    %v1460 = vpack.c.b16 %v1436, %v1434
    %v1461 = vpack.c.b16 %v1439, %v1437
    %v1462 = vpack.c.b16 %v1440, %v1438
    %v1463 = vpack.c.b16 %v1443, %v1441
    %v1464 = vpack.c.b16 %v1444, %v1442
    %v1465 = vpack.c.b16 %v1447, %v1445
    %v1466 = vpack.c.b16 %v1448, %v1446
    %v1467 = vpack.c.b16 %v1451, %v1449
    %v1468 = vpack.c.b16 %v1452, %v1450
    %1485 = vmatprep.subr.bf16.mxu0 %v1468
    %1486 = vmatpush1.bf16.msra.mxu0 %v1467
    %1487 = vmatprep.subr.bf16.mxu0 %v1466
    %1488 = vmatpush1.bf16.msra.mxu0 %v1465
    %1489 = vmatprep.subr.bf16.mxu0 %v1464
    %1490 = vmatpush1.bf16.msra.mxu0 %v1463
    %1491 = vmatprep.subr.bf16.mxu0 %v1462
    %1492 = vmatpush1.bf16.msra.mxu0 %v1461
    %1493 = vmatprep.subr.bf16.mxu0 %v1460
    %1494 = vmatpush1.bf16.msra.mxu0 %v1459
    %1495 = vmatprep.subr.bf16.mxu0 %v1458
    %1496 = vmatpush1.bf16.msra.mxu0 %v1457
    %1497 = vmatprep.subr.bf16.mxu0 %v1456
    %1498 = vmatpush1.bf16.msra.mxu0 %v1455
    %1499 = vmatprep.subr.bf16.mxu0 %v1454
    %1500 = vmatpush1.bf16.msra.mxu0 %v1453
    %1501 = vmatprep.subr.bf16.mxu0 0
    %1502 = vmatpush2.bf16.msra.mxu0 0
    %1503 = vmatprep.subr.bf16.mxu0 0
    %1504 = vmatpush2.bf16.msra.mxu0 0
    %1505 = vmatprep.subr.bf16.mxu0 0
    %1506 = vmatpush2.bf16.msra.mxu0 0
    %1507 = vmatprep.subr.bf16.mxu0 0
    %1508 = vmatpush2.bf16.msra.mxu0 0
    %1509 = vmatprep.subr.bf16.mxu0 0
    %1510 = vmatpush2.bf16.msra.mxu0 0
    %1511 = vmatprep.subr.bf16.mxu0 0
    %1512 = vmatpush2.bf16.msra.mxu0 0
    %1513 = vmatprep.subr.bf16.mxu0 0
    %1514 = vmatpush2.bf16.msra.mxu0 0
    %1515 = vmatprep.subr.bf16.mxu0 0
    %1516 = vmatpush2.bf16.msra.mxu0 0
    %1517 = vmatprep.mubr.bf16.mxu0 0
    %1518 = vmatmul.mubr.bf16.gmra.mxu0 %v1388
    %v1519 = vpop.f32.mrf.mxu0
    %v1520 = vadd.f32 0.0, %v1519
    %v1521 = vpop.f32.mrf.mxu0
    %v1522 = vadd.f32 0.0, %v1521
    %v1523 = vpop.f32.mrf.mxu0
    %v1524 = vpop.f32.mrf.mxu0
    %1525 = vdwg.mxu0
    %v1526 = vadd.f32 %v1332, %v1520
    %v1527 = vadd.f32 %v1334, %v1522
    %v1528 = vld [vmem:[%s2 + $0x18] sm:$0xff]
    %v1530 = vunpack.c.l.b16 %v1528
    %v1531 = vunpack.c.h.b16 %v1528
    %v1532 = vpack.c.b16 %v1530, %v1530
    %v1533 = vpack.c.b16 %v1531, %v1531
    %v1536 = vsel %vm964, %v1533, 0
    %1538 = vmatprep.subr.bf16.mxu0 0
    %1539 = vmatpush1.bf16.msra.mxu0 %v951
    %1540 = vmatprep.subr.bf16.mxu0 0
    %1541 = vmatpush1.bf16.msra.mxu0 %v950
    %1542 = vmatprep.subr.bf16.mxu0 0
    %1543 = vmatpush1.bf16.msra.mxu0 %v949
    %1544 = vmatprep.subr.bf16.mxu0 0
    %1545 = vmatpush1.bf16.msra.mxu0 %v948
    %1546 = vmatprep.subr.bf16.mxu0 0
    %1547 = vmatpush1.bf16.msra.mxu0 %v947
    %1548 = vmatprep.subr.bf16.mxu0 0
    %1549 = vmatpush1.bf16.msra.mxu0 %v946
    %1550 = vmatprep.subr.bf16.mxu0 0
    %1551 = vmatpush1.bf16.msra.mxu0 %v945
    %1552 = vmatprep.subr.bf16.mxu0 0
    %1553 = vmatpush1.bf16.msra.mxu0 %v944
    %1554 = vmatprep.subr.bf16.mxu0 0
    %1555 = vmatpush2.bf16.msra.mxu0 0
    %1556 = vmatprep.subr.bf16.mxu0 0
    %1557 = vmatpush2.bf16.msra.mxu0 0
    %1558 = vmatprep.subr.bf16.mxu0 0
    %1559 = vmatpush2.bf16.msra.mxu0 0
    %1560 = vmatprep.subr.bf16.mxu0 0
    %1561 = vmatpush2.bf16.msra.mxu0 %v970
    %1562 = vmatprep.subr.bf16.mxu0 0
    %1563 = vmatpush2.bf16.msra.mxu0 %v955
    %1564 = vmatprep.subr.bf16.mxu0 0
    %1565 = vmatpush2.bf16.msra.mxu0 %v954
    %1566 = vmatprep.subr.bf16.mxu0 0
    %1567 = vmatpush2.bf16.msra.mxu0 %v953
    %1568 = vmatprep.subr.bf16.mxu0 0
    %1569 = vmatpush2.bf16.msra.mxu0 %v952
    %1570 = vmatprep.mubr.bf16.mxu0 %v1536
    %1571 = vmatmul.mubr.bf16.gmra.mxu0 %v1532
    %v1572 = vpop.f32.mrf.mxu0
    %v1573 = vadd.f32 0.0, %v1572
    %v1574 = vpop.f32.mrf.mxu0
    %v1575 = vpop.f32.mrf.mxu0
    %v1576 = vpop.f32.mrf.mxu0
    %1577 = vdwg.mxu0
    %v1578 = vpack.c.bf16 %v1573, %v1573
    %v1579 = vld [vmem:[%s3 + $0x180] sm:$0xff]
    %v1580 = vld [vmem:[%s3 + $0x188] sm:$0xff]
    %v1581 = vld [vmem:[%s3 + $0x190] sm:$0xff]
    %v1582 = vld [vmem:[%s3 + $0x198] sm:$0xff]
    %v1583 = vld [vmem:[%s3 + $0x1a0] sm:$0xff]
    %v1584 = vld [vmem:[%s3 + $0x1a8] sm:$0xff]
    %v1585 = vld [vmem:[%s3 + $0x1b0] sm:$0xff]
    %v1586 = vld [vmem:[%s3 + $0x1b8] sm:$0xff]
    %v1587 = vld [vmem:[%s3 + $0x1c0] sm:$0xff]
    %v1588 = vld [vmem:[%s3 + $0x1c8] sm:$0xff]
    %v1589 = vld [vmem:[%s3 + $0x1d0] sm:$0xff]
    %v1590 = vld [vmem:[%s3 + $0x1d8] sm:$0xff]
    %v1591 = vld [vmem:[%s3 + $0x1e0] sm:$0xff]
    %v1592 = vld [vmem:[%s3 + $0x1e8] sm:$0xff]
    %v1593 = vld [vmem:[%s3 + $0x1f0] sm:$0xff]
    %v1594 = vld [vmem:[%s3 + $0x1f8] sm:$0xff]
    %v1611 = vunpack.c.l.b16 %v1579
    %v1612 = vunpack.c.h.b16 %v1579
    %v1613 = vunpack.c.l.b16 %v1580
    %v1614 = vunpack.c.h.b16 %v1580
    %v1615 = vunpack.c.l.b16 %v1581
    %v1616 = vunpack.c.h.b16 %v1581
    %v1617 = vunpack.c.l.b16 %v1582
    %v1618 = vunpack.c.h.b16 %v1582
    %v1619 = vunpack.c.l.b16 %v1583
    %v1620 = vunpack.c.h.b16 %v1583
    %v1621 = vunpack.c.l.b16 %v1584
    %v1622 = vunpack.c.h.b16 %v1584
    %v1623 = vunpack.c.l.b16 %v1585
    %v1624 = vunpack.c.h.b16 %v1585
    %v1625 = vunpack.c.l.b16 %v1586
    %v1626 = vunpack.c.h.b16 %v1586
    %v1627 = vunpack.c.l.b16 %v1587
    %v1628 = vunpack.c.h.b16 %v1587
    %v1629 = vunpack.c.l.b16 %v1588
    %v1630 = vunpack.c.h.b16 %v1588
    %v1631 = vunpack.c.l.b16 %v1589
    %v1632 = vunpack.c.h.b16 %v1589
    %v1633 = vunpack.c.l.b16 %v1590
    %v1634 = vunpack.c.h.b16 %v1590
    %v1635 = vunpack.c.l.b16 %v1591
    %v1636 = vunpack.c.h.b16 %v1591
    %v1637 = vunpack.c.l.b16 %v1592
    %v1638 = vunpack.c.h.b16 %v1592
    %v1639 = vunpack.c.l.b16 %v1593
    %v1640 = vunpack.c.h.b16 %v1593
    %v1641 = vunpack.c.l.b16 %v1594
    %v1642 = vunpack.c.h.b16 %v1594
    %v1643 = vpack.c.b16 %v1613, %v1611
    %v1644 = vpack.c.b16 %v1614, %v1612
    %v1645 = vpack.c.b16 %v1617, %v1615
    %v1646 = vpack.c.b16 %v1618, %v1616
    %v1647 = vpack.c.b16 %v1621, %v1619
    %v1648 = vpack.c.b16 %v1622, %v1620
    %v1649 = vpack.c.b16 %v1625, %v1623
    %v1650 = vpack.c.b16 %v1626, %v1624
    %v1651 = vpack.c.b16 %v1629, %v1627
    %v1652 = vpack.c.b16 %v1630, %v1628
    %v1653 = vpack.c.b16 %v1633, %v1631
    %v1654 = vpack.c.b16 %v1634, %v1632
    %v1655 = vpack.c.b16 %v1637, %v1635
    %v1656 = vpack.c.b16 %v1638, %v1636
    %v1657 = vpack.c.b16 %v1641, %v1639
    %v1658 = vpack.c.b16 %v1642, %v1640
    %1675 = vmatprep.subr.bf16.mxu0 %v1658
    %1676 = vmatpush1.bf16.msra.mxu0 %v1657
    %1677 = vmatprep.subr.bf16.mxu0 %v1656
    %1678 = vmatpush1.bf16.msra.mxu0 %v1655
    %1679 = vmatprep.subr.bf16.mxu0 %v1654
    %1680 = vmatpush1.bf16.msra.mxu0 %v1653
    %1681 = vmatprep.subr.bf16.mxu0 %v1652
    %1682 = vmatpush1.bf16.msra.mxu0 %v1651
    %1683 = vmatprep.subr.bf16.mxu0 %v1650
    %1684 = vmatpush1.bf16.msra.mxu0 %v1649
    %1685 = vmatprep.subr.bf16.mxu0 %v1648
    %1686 = vmatpush1.bf16.msra.mxu0 %v1647
    %1687 = vmatprep.subr.bf16.mxu0 %v1646
    %1688 = vmatpush1.bf16.msra.mxu0 %v1645
    %1689 = vmatprep.subr.bf16.mxu0 %v1644
    %1690 = vmatpush1.bf16.msra.mxu0 %v1643
    %1691 = vmatprep.subr.bf16.mxu0 0
    %1692 = vmatpush2.bf16.msra.mxu0 0
    %1693 = vmatprep.subr.bf16.mxu0 0
    %1694 = vmatpush2.bf16.msra.mxu0 0
    %1695 = vmatprep.subr.bf16.mxu0 0
    %1696 = vmatpush2.bf16.msra.mxu0 0
    %1697 = vmatprep.subr.bf16.mxu0 0
    %1698 = vmatpush2.bf16.msra.mxu0 0
    %1699 = vmatprep.subr.bf16.mxu0 0
    %1700 = vmatpush2.bf16.msra.mxu0 0
    %1701 = vmatprep.subr.bf16.mxu0 0
    %1702 = vmatpush2.bf16.msra.mxu0 0
    %1703 = vmatprep.subr.bf16.mxu0 0
    %1704 = vmatpush2.bf16.msra.mxu0 0
    %1705 = vmatprep.subr.bf16.mxu0 0
    %1706 = vmatpush2.bf16.msra.mxu0 0
    %1707 = vmatprep.mubr.bf16.mxu0 0
    %1708 = vmatmul.mubr.bf16.gmra.mxu0 %v1578
    %v1709 = vpop.f32.mrf.mxu0
    %v1710 = vadd.f32 0.0, %v1709
    %v1711 = vpop.f32.mrf.mxu0
    %v1712 = vadd.f32 0.0, %v1711
    %v1713 = vpop.f32.mrf.mxu0
    %v1714 = vpop.f32.mrf.mxu0
    %1715 = vdwg.mxu0
    %v1716 = vadd.f32 %v1526, %v1710
    %v1717 = vadd.f32 %v1527, %v1712
    %v1718 = vld [vmem:[%s2 + $0x20] sm:$0xff]
    %v1720 = vunpack.c.l.b16 %v1718
    %v1721 = vunpack.c.h.b16 %v1718
    %v1722 = vpack.c.b16 %v1720, %v1720
    %v1723 = vpack.c.b16 %v1721, %v1721
    %v1726 = vsel %vm964, %v1723, 0
    %1728 = vmatprep.subr.bf16.mxu0 0
    %1729 = vmatpush1.bf16.msra.mxu0 %v951
    %1730 = vmatprep.subr.bf16.mxu0 0
    %1731 = vmatpush1.bf16.msra.mxu0 %v950
    %1732 = vmatprep.subr.bf16.mxu0 0
    %1733 = vmatpush1.bf16.msra.mxu0 %v949
    %1734 = vmatprep.subr.bf16.mxu0 0
    %1735 = vmatpush1.bf16.msra.mxu0 %v948
    %1736 = vmatprep.subr.bf16.mxu0 0
    %1737 = vmatpush1.bf16.msra.mxu0 %v947
    %1738 = vmatprep.subr.bf16.mxu0 0
    %1739 = vmatpush1.bf16.msra.mxu0 %v946
    %1740 = vmatprep.subr.bf16.mxu0 0
    %1741 = vmatpush1.bf16.msra.mxu0 %v945
    %1742 = vmatprep.subr.bf16.mxu0 0
    %1743 = vmatpush1.bf16.msra.mxu0 %v944
    %1744 = vmatprep.subr.bf16.mxu0 0
    %1745 = vmatpush2.bf16.msra.mxu0 0
    %1746 = vmatprep.subr.bf16.mxu0 0
    %1747 = vmatpush2.bf16.msra.mxu0 0
    %1748 = vmatprep.subr.bf16.mxu0 0
    %1749 = vmatpush2.bf16.msra.mxu0 0
    %1750 = vmatprep.subr.bf16.mxu0 0
    %1751 = vmatpush2.bf16.msra.mxu0 %v970
    %1752 = vmatprep.subr.bf16.mxu0 0
    %1753 = vmatpush2.bf16.msra.mxu0 %v955
    %1754 = vmatprep.subr.bf16.mxu0 0
    %1755 = vmatpush2.bf16.msra.mxu0 %v954
    %1756 = vmatprep.subr.bf16.mxu0 0
    %1757 = vmatpush2.bf16.msra.mxu0 %v953
    %1758 = vmatprep.subr.bf16.mxu0 0
    %1759 = vmatpush2.bf16.msra.mxu0 %v952
    %1760 = vmatprep.mubr.bf16.mxu0 %v1726
    %1761 = vmatmul.mubr.bf16.gmra.mxu0 %v1722
    %v1762 = vpop.f32.mrf.mxu0
    %v1763 = vadd.f32 0.0, %v1762
    %v1764 = vpop.f32.mrf.mxu0
    %v1765 = vpop.f32.mrf.mxu0
    %v1766 = vpop.f32.mrf.mxu0
    %1767 = vdwg.mxu0
    %v1768 = vpack.c.bf16 %v1763, %v1763
    %v1769 = vld [vmem:[%s3 + $0x200] sm:$0xff]
    %v1770 = vld [vmem:[%s3 + $0x208] sm:$0xff]
    %v1771 = vld [vmem:[%s3 + $0x210] sm:$0xff]
    %v1772 = vld [vmem:[%s3 + $0x218] sm:$0xff]
    %v1773 = vld [vmem:[%s3 + $0x220] sm:$0xff]
    %v1774 = vld [vmem:[%s3 + $0x228] sm:$0xff]
    %v1775 = vld [vmem:[%s3 + $0x230] sm:$0xff]
    %v1776 = vld [vmem:[%s3 + $0x238] sm:$0xff]
    %v1777 = vld [vmem:[%s3 + $0x240] sm:$0xff]
    %v1778 = vld [vmem:[%s3 + $0x248] sm:$0xff]
    %v1779 = vld [vmem:[%s3 + $0x250] sm:$0xff]
    %v1780 = vld [vmem:[%s3 + $0x258] sm:$0xff]
    %v1781 = vld [vmem:[%s3 + $0x260] sm:$0xff]
    %v1782 = vld [vmem:[%s3 + $0x268] sm:$0xff]
    %v1783 = vld [vmem:[%s3 + $0x270] sm:$0xff]
    %v1784 = vld [vmem:[%s3 + $0x278] sm:$0xff]
    %v1801 = vunpack.c.l.b16 %v1769
    %v1802 = vunpack.c.h.b16 %v1769
    %v1803 = vunpack.c.l.b16 %v1770
    %v1804 = vunpack.c.h.b16 %v1770
    %v1805 = vunpack.c.l.b16 %v1771
    %v1806 = vunpack.c.h.b16 %v1771
    %v1807 = vunpack.c.l.b16 %v1772
    %v1808 = vunpack.c.h.b16 %v1772
    %v1809 = vunpack.c.l.b16 %v1773
    %v1810 = vunpack.c.h.b16 %v1773
    %v1811 = vunpack.c.l.b16 %v1774
    %v1812 = vunpack.c.h.b16 %v1774
    %v1813 = vunpack.c.l.b16 %v1775
    %v1814 = vunpack.c.h.b16 %v1775
    %v1815 = vunpack.c.l.b16 %v1776
    %v1816 = vunpack.c.h.b16 %v1776
    %v1817 = vunpack.c.l.b16 %v1777
    %v1818 = vunpack.c.h.b16 %v1777
    %v1819 = vunpack.c.l.b16 %v1778
    %v1820 = vunpack.c.h.b16 %v1778
    %v1821 = vunpack.c.l.b16 %v1779
    %v1822 = vunpack.c.h.b16 %v1779
    %v1823 = vunpack.c.l.b16 %v1780
    %v1824 = vunpack.c.h.b16 %v1780
    %v1825 = vunpack.c.l.b16 %v1781
    %v1826 = vunpack.c.h.b16 %v1781
    %v1827 = vunpack.c.l.b16 %v1782
    %v1828 = vunpack.c.h.b16 %v1782
    %v1829 = vunpack.c.l.b16 %v1783
    %v1830 = vunpack.c.h.b16 %v1783
    %v1831 = vunpack.c.l.b16 %v1784
    %v1832 = vunpack.c.h.b16 %v1784
    %v1833 = vpack.c.b16 %v1803, %v1801
    %v1834 = vpack.c.b16 %v1804, %v1802
    %v1835 = vpack.c.b16 %v1807, %v1805
    %v1836 = vpack.c.b16 %v1808, %v1806
    %v1837 = vpack.c.b16 %v1811, %v1809
    %v1838 = vpack.c.b16 %v1812, %v1810
    %v1839 = vpack.c.b16 %v1815, %v1813
    %v1840 = vpack.c.b16 %v1816, %v1814
    %v1841 = vpack.c.b16 %v1819, %v1817
    %v1842 = vpack.c.b16 %v1820, %v1818
    %v1843 = vpack.c.b16 %v1823, %v1821
    %v1844 = vpack.c.b16 %v1824, %v1822
    %v1845 = vpack.c.b16 %v1827, %v1825
    %v1846 = vpack.c.b16 %v1828, %v1826
    %v1847 = vpack.c.b16 %v1831, %v1829
    %v1848 = vpack.c.b16 %v1832, %v1830
    %1865 = vmatprep.subr.bf16.mxu0 %v1848
    %1866 = vmatpush1.bf16.msra.mxu0 %v1847
    %1867 = vmatprep.subr.bf16.mxu0 %v1846
    %1868 = vmatpush1.bf16.msra.mxu0 %v1845
    %1869 = vmatprep.subr.bf16.mxu0 %v1844
    %1870 = vmatpush1.bf16.msra.mxu0 %v1843
    %1871 = vmatprep.subr.bf16.mxu0 %v1842
    %1872 = vmatpush1.bf16.msra.mxu0 %v1841
    %1873 = vmatprep.subr.bf16.mxu0 %v1840
    %1874 = vmatpush1.bf16.msra.mxu0 %v1839
    %1875 = vmatprep.subr.bf16.mxu0 %v1838
    %1876 = vmatpush1.bf16.msra.mxu0 %v1837
    %1877 = vmatprep.subr.bf16.mxu0 %v1836
    %1878 = vmatpush1.bf16.msra.mxu0 %v1835
    %1879 = vmatprep.subr.bf16.mxu0 %v1834
    %1880 = vmatpush1.bf16.msra.mxu0 %v1833
    %1881 = vmatprep.subr.bf16.mxu0 0
    %1882 = vmatpush2.bf16.msra.mxu0 0
    %1883 = vmatprep.subr.bf16.mxu0 0
    %1884 = vmatpush2.bf16.msra.mxu0 0
    %1885 = vmatprep.subr.bf16.mxu0 0
    %1886 = vmatpush2.bf16.msra.mxu0 0
    %1887 = vmatprep.subr.bf16.mxu0 0
    %1888 = vmatpush2.bf16.msra.mxu0 0
    %1889 = vmatprep.subr.bf16.mxu0 0
    %1890 = vmatpush2.bf16.msra.mxu0 0
    %1891 = vmatprep.subr.bf16.mxu0 0
    %1892 = vmatpush2.bf16.msra.mxu0 0
    %1893 = vmatprep.subr.bf16.mxu0 0
    %1894 = vmatpush2.bf16.msra.mxu0 0
    %1895 = vmatprep.subr.bf16.mxu0 0
    %1896 = vmatpush2.bf16.msra.mxu0 0
    %1897 = vmatprep.mubr.bf16.mxu0 0
    %1898 = vmatmul.mubr.bf16.gmra.mxu0 %v1768
    %v1899 = vpop.f32.mrf.mxu0
    %v1900 = vadd.f32 0.0, %v1899
    %v1901 = vpop.f32.mrf.mxu0
    %v1902 = vadd.f32 0.0, %v1901
    %v1903 = vpop.f32.mrf.mxu0
    %v1904 = vpop.f32.mrf.mxu0
    %1905 = vdwg.mxu0
    %v1906 = vadd.f32 %v1716, %v1900
    %v1907 = vadd.f32 %v1717, %v1902
    %v1908 = vld [vmem:[%s2 + $0x28] sm:$0xff]
    %v1910 = vunpack.c.l.b16 %v1908
    %v1911 = vunpack.c.h.b16 %v1908
    %v1912 = vpack.c.b16 %v1910, %v1910
    %v1913 = vpack.c.b16 %v1911, %v1911
    %v1916 = vsel %vm964, %v1913, 0
    %1918 = vmatprep.subr.bf16.mxu0 0
    %1919 = vmatpush1.bf16.msra.mxu0 %v951
    %1920 = vmatprep.subr.bf16.mxu0 0
    %1921 = vmatpush1.bf16.msra.mxu0 %v950
    %1922 = vmatprep.subr.bf16.mxu0 0
    %1923 = vmatpush1.bf16.msra.mxu0 %v949
    %1924 = vmatprep.subr.bf16.mxu0 0
    %1925 = vmatpush1.bf16.msra.mxu0 %v948
    %1926 = vmatprep.subr.bf16.mxu0 0
    %1927 = vmatpush1.bf16.msra.mxu0 %v947
    %1928 = vmatprep.subr.bf16.mxu0 0
    %1929 = vmatpush1.bf16.msra.mxu0 %v946
    %1930 = vmatprep.subr.bf16.mxu0 0
    %1931 = vmatpush1.bf16.msra.mxu0 %v945
    %1932 = vmatprep.subr.bf16.mxu0 0
    %1933 = vmatpush1.bf16.msra.mxu0 %v944
    %1934 = vmatprep.subr.bf16.mxu0 0
    %1935 = vmatpush2.bf16.msra.mxu0 0
    %1936 = vmatprep.subr.bf16.mxu0 0
    %1937 = vmatpush2.bf16.msra.mxu0 0
    %1938 = vmatprep.subr.bf16.mxu0 0
    %1939 = vmatpush2.bf16.msra.mxu0 0
    %1940 = vmatprep.subr.bf16.mxu0 0
    %1941 = vmatpush2.bf16.msra.mxu0 %v970
    %1942 = vmatprep.subr.bf16.mxu0 0
    %1943 = vmatpush2.bf16.msra.mxu0 %v955
    %1944 = vmatprep.subr.bf16.mxu0 0
    %1945 = vmatpush2.bf16.msra.mxu0 %v954
    %1946 = vmatprep.subr.bf16.mxu0 0
    %1947 = vmatpush2.bf16.msra.mxu0 %v953
    %1948 = vmatprep.subr.bf16.mxu0 0
    %1949 = vmatpush2.bf16.msra.mxu0 %v952
    %1950 = vmatprep.mubr.bf16.mxu0 %v1916
    %1951 = vmatmul.mubr.bf16.gmra.mxu0 %v1912
    %v1952 = vpop.f32.mrf.mxu0
    %v1953 = vadd.f32 0.0, %v1952
    %v1954 = vpop.f32.mrf.mxu0
    %v1955 = vpop.f32.mrf.mxu0
    %v1956 = vpop.f32.mrf.mxu0
    %1957 = vdwg.mxu0
    %v1958 = vpack.c.bf16 %v1953, %v1953
    %v1959 = vld [vmem:[%s3 + $0x280] sm:$0xff]
    %v1960 = vld [vmem:[%s3 + $0x288] sm:$0xff]
    %v1961 = vld [vmem:[%s3 + $0x290] sm:$0xff]
    %v1962 = vld [vmem:[%s3 + $0x298] sm:$0xff]
    %v1963 = vld [vmem:[%s3 + $0x2a0] sm:$0xff]
    %v1964 = vld [vmem:[%s3 + $0x2a8] sm:$0xff]
    %v1965 = vld [vmem:[%s3 + $0x2b0] sm:$0xff]
    %v1966 = vld [vmem:[%s3 + $0x2b8] sm:$0xff]
    %v1967 = vld [vmem:[%s3 + $0x2c0] sm:$0xff]
    %v1968 = vld [vmem:[%s3 + $0x2c8] sm:$0xff]
    %v1969 = vld [vmem:[%s3 + $0x2d0] sm:$0xff]
    %v1970 = vld [vmem:[%s3 + $0x2d8] sm:$0xff]
    %v1971 = vld [vmem:[%s3 + $0x2e0] sm:$0xff]
    %v1972 = vld [vmem:[%s3 + $0x2e8] sm:$0xff]
    %v1973 = vld [vmem:[%s3 + $0x2f0] sm:$0xff]
    %v1974 = vld [vmem:[%s3 + $0x2f8] sm:$0xff]
    %v1991 = vunpack.c.l.b16 %v1959
    %v1992 = vunpack.c.h.b16 %v1959
    %v1993 = vunpack.c.l.b16 %v1960
    %v1994 = vunpack.c.h.b16 %v1960
    %v1995 = vunpack.c.l.b16 %v1961
    %v1996 = vunpack.c.h.b16 %v1961
    %v1997 = vunpack.c.l.b16 %v1962
    %v1998 = vunpack.c.h.b16 %v1962
    %v1999 = vunpack.c.l.b16 %v1963
    %v2000 = vunpack.c.h.b16 %v1963
    %v2001 = vunpack.c.l.b16 %v1964
    %v2002 = vunpack.c.h.b16 %v1964
    %v2003 = vunpack.c.l.b16 %v1965
    %v2004 = vunpack.c.h.b16 %v1965
    %v2005 = vunpack.c.l.b16 %v1966
    %v2006 = vunpack.c.h.b16 %v1966
    %v2007 = vunpack.c.l.b16 %v1967
    %v2008 = vunpack.c.h.b16 %v1967
    %v2009 = vunpack.c.l.b16 %v1968
    %v2010 = vunpack.c.h.b16 %v1968
    %v2011 = vunpack.c.l.b16 %v1969
    %v2012 = vunpack.c.h.b16 %v1969
    %v2013 = vunpack.c.l.b16 %v1970
    %v2014 = vunpack.c.h.b16 %v1970
    %v2015 = vunpack.c.l.b16 %v1971
    %v2016 = vunpack.c.h.b16 %v1971
    %v2017 = vunpack.c.l.b16 %v1972
    %v2018 = vunpack.c.h.b16 %v1972
    %v2019 = vunpack.c.l.b16 %v1973
    %v2020 = vunpack.c.h.b16 %v1973
    %v2021 = vunpack.c.l.b16 %v1974
    %v2022 = vunpack.c.h.b16 %v1974
    %v2023 = vpack.c.b16 %v1993, %v1991
    %v2024 = vpack.c.b16 %v1994, %v1992
    %v2025 = vpack.c.b16 %v1997, %v1995
    %v2026 = vpack.c.b16 %v1998, %v1996
    %v2027 = vpack.c.b16 %v2001, %v1999
    %v2028 = vpack.c.b16 %v2002, %v2000
    %v2029 = vpack.c.b16 %v2005, %v2003
    %v2030 = vpack.c.b16 %v2006, %v2004
    %v2031 = vpack.c.b16 %v2009, %v2007
    %v2032 = vpack.c.b16 %v2010, %v2008
    %v2033 = vpack.c.b16 %v2013, %v2011
    %v2034 = vpack.c.b16 %v2014, %v2012
    %v2035 = vpack.c.b16 %v2017, %v2015
    %v2036 = vpack.c.b16 %v2018, %v2016
    %v2037 = vpack.c.b16 %v2021, %v2019
    %v2038 = vpack.c.b16 %v2022, %v2020
    %2055 = vmatprep.subr.bf16.mxu0 %v2038
    %2056 = vmatpush1.bf16.msra.mxu0 %v2037
    %2057 = vmatprep.subr.bf16.mxu0 %v2036
    %2058 = vmatpush1.bf16.msra.mxu0 %v2035
    %2059 = vmatprep.subr.bf16.mxu0 %v2034
    %2060 = vmatpush1.bf16.msra.mxu0 %v2033
    %2061 = vmatprep.subr.bf16.mxu0 %v2032
    %2062 = vmatpush1.bf16.msra.mxu0 %v2031
    %2063 = vmatprep.subr.bf16.mxu0 %v2030
    %2064 = vmatpush1.bf16.msra.mxu0 %v2029
    %2065 = vmatprep.subr.bf16.mxu0 %v2028
    %2066 = vmatpush1.bf16.msra.mxu0 %v2027
    %2067 = vmatprep.subr.bf16.mxu0 %v2026
    %2068 = vmatpush1.bf16.msra.mxu0 %v2025
    %2069 = vmatprep.subr.bf16.mxu0 %v2024
    %2070 = vmatpush1.bf16.msra.mxu0 %v2023
    %2071 = vmatprep.subr.bf16.mxu0 0
    %2072 = vmatpush2.bf16.msra.mxu0 0
    %2073 = vmatprep.subr.bf16.mxu0 0
    %2074 = vmatpush2.bf16.msra.mxu0 0
    %2075 = vmatprep.subr.bf16.mxu0 0
    %2076 = vmatpush2.bf16.msra.mxu0 0
    %2077 = vmatprep.subr.bf16.mxu0 0
    %2078 = vmatpush2.bf16.msra.mxu0 0
    %2079 = vmatprep.subr.bf16.mxu0 0
    %2080 = vmatpush2.bf16.msra.mxu0 0
    %2081 = vmatprep.subr.bf16.mxu0 0
    %2082 = vmatpush2.bf16.msra.mxu0 0
    %2083 = vmatprep.subr.bf16.mxu0 0
    %2084 = vmatpush2.bf16.msra.mxu0 0
    %2085 = vmatprep.subr.bf16.mxu0 0
    %2086 = vmatpush2.bf16.msra.mxu0 0
    %2087 = vmatprep.mubr.bf16.mxu0 0
    %2088 = vmatmul.mubr.bf16.gmra.mxu0 %v1958
    %v2089 = vpop.f32.mrf.mxu0
    %v2090 = vadd.f32 0.0, %v2089
    %v2091 = vpop.f32.mrf.mxu0
    %v2092 = vadd.f32 0.0, %v2091
    %v2093 = vpop.f32.mrf.mxu0
    %v2094 = vpop.f32.mrf.mxu0
    %2095 = vdwg.mxu0
    %v2096 = vadd.f32 %v1906, %v2090
    %v2097 = vadd.f32 %v1907, %v2092
    %v2098 = vld [vmem:[%s2 + $0x30] sm:$0xff]
    %v2100 = vunpack.c.l.b16 %v2098
    %v2101 = vunpack.c.h.b16 %v2098
    %v2102 = vpack.c.b16 %v2100, %v2100
    %v2103 = vpack.c.b16 %v2101, %v2101
    %v2106 = vsel %vm964, %v2103, 0
    %2108 = vmatprep.subr.bf16.mxu0 0
    %2109 = vmatpush1.bf16.msra.mxu0 %v951
    %2110 = vmatprep.subr.bf16.mxu0 0
    %2111 = vmatpush1.bf16.msra.mxu0 %v950
    %2112 = vmatprep.subr.bf16.mxu0 0
    %2113 = vmatpush1.bf16.msra.mxu0 %v949
    %2114 = vmatprep.subr.bf16.mxu0 0
    %2115 = vmatpush1.bf16.msra.mxu0 %v948
    %2116 = vmatprep.subr.bf16.mxu0 0
    %2117 = vmatpush1.bf16.msra.mxu0 %v947
    %2118 = vmatprep.subr.bf16.mxu0 0
    %2119 = vmatpush1.bf16.msra.mxu0 %v946
    %2120 = vmatprep.subr.bf16.mxu0 0
    %2121 = vmatpush1.bf16.msra.mxu0 %v945
    %2122 = vmatprep.subr.bf16.mxu0 0
    %2123 = vmatpush1.bf16.msra.mxu0 %v944
    %2124 = vmatprep.subr.bf16.mxu0 0
    %2125 = vmatpush2.bf16.msra.mxu0 0
    %2126 = vmatprep.subr.bf16.mxu0 0
    %2127 = vmatpush2.bf16.msra.mxu0 0
    %2128 = vmatprep.subr.bf16.mxu0 0
    %2129 = vmatpush2.bf16.msra.mxu0 0
    %2130 = vmatprep.subr.bf16.mxu0 0
    %2131 = vmatpush2.bf16.msra.mxu0 %v970
    %2132 = vmatprep.subr.bf16.mxu0 0
    %2133 = vmatpush2.bf16.msra.mxu0 %v955
    %2134 = vmatprep.subr.bf16.mxu0 0
    %2135 = vmatpush2.bf16.msra.mxu0 %v954
    %2136 = vmatprep.subr.bf16.mxu0 0
    %2137 = vmatpush2.bf16.msra.mxu0 %v953
    %2138 = vmatprep.subr.bf16.mxu0 0
    %2139 = vmatpush2.bf16.msra.mxu0 %v952
    %2140 = vmatprep.mubr.bf16.mxu0 %v2106
    %2141 = vmatmul.mubr.bf16.gmra.mxu0 %v2102
    %v2142 = vpop.f32.mrf.mxu0
    %v2143 = vadd.f32 0.0, %v2142
    %v2144 = vpop.f32.mrf.mxu0
    %v2145 = vpop.f32.mrf.mxu0
    %v2146 = vpop.f32.mrf.mxu0
    %2147 = vdwg.mxu0
    %v2148 = vpack.c.bf16 %v2143, %v2143
    %v2149 = vld [vmem:[%s3 + $0x300] sm:$0xff]
    %v2150 = vld [vmem:[%s3 + $0x308] sm:$0xff]
    %v2151 = vld [vmem:[%s3 + $0x310] sm:$0xff]
    %v2152 = vld [vmem:[%s3 + $0x318] sm:$0xff]
    %v2153 = vld [vmem:[%s3 + $0x320] sm:$0xff]
    %v2154 = vld [vmem:[%s3 + $0x328] sm:$0xff]
    %v2155 = vld [vmem:[%s3 + $0x330] sm:$0xff]
    %v2156 = vld [vmem:[%s3 + $0x338] sm:$0xff]
    %v2157 = vld [vmem:[%s3 + $0x340] sm:$0xff]
    %v2158 = vld [vmem:[%s3 + $0x348] sm:$0xff]
    %v2159 = vld [vmem:[%s3 + $0x350] sm:$0xff]
    %v2160 = vld [vmem:[%s3 + $0x358] sm:$0xff]
    %v2161 = vld [vmem:[%s3 + $0x360] sm:$0xff]
    %v2162 = vld [vmem:[%s3 + $0x368] sm:$0xff]
    %v2163 = vld [vmem:[%s3 + $0x370] sm:$0xff]
    %v2164 = vld [vmem:[%s3 + $0x378] sm:$0xff]
    %v2181 = vunpack.c.l.b16 %v2149
    %v2182 = vunpack.c.h.b16 %v2149
    %v2183 = vunpack.c.l.b16 %v2150
    %v2184 = vunpack.c.h.b16 %v2150
    %v2185 = vunpack.c.l.b16 %v2151
    %v2186 = vunpack.c.h.b16 %v2151
    %v2187 = vunpack.c.l.b16 %v2152
    %v2188 = vunpack.c.h.b16 %v2152
    %v2189 = vunpack.c.l.b16 %v2153
    %v2190 = vunpack.c.h.b16 %v2153
    %v2191 = vunpack.c.l.b16 %v2154
    %v2192 = vunpack.c.h.b16 %v2154
    %v2193 = vunpack.c.l.b16 %v2155
    %v2194 = vunpack.c.h.b16 %v2155
    %v2195 = vunpack.c.l.b16 %v2156
    %v2196 = vunpack.c.h.b16 %v2156
    %v2197 = vunpack.c.l.b16 %v2157
    %v2198 = vunpack.c.h.b16 %v2157
    %v2199 = vunpack.c.l.b16 %v2158
    %v2200 = vunpack.c.h.b16 %v2158
    %v2201 = vunpack.c.l.b16 %v2159
    %v2202 = vunpack.c.h.b16 %v2159
    %v2203 = vunpack.c.l.b16 %v2160
    %v2204 = vunpack.c.h.b16 %v2160
    %v2205 = vunpack.c.l.b16 %v2161
    %v2206 = vunpack.c.h.b16 %v2161
    %v2207 = vunpack.c.l.b16 %v2162
    %v2208 = vunpack.c.h.b16 %v2162
    %v2209 = vunpack.c.l.b16 %v2163
    %v2210 = vunpack.c.h.b16 %v2163
    %v2211 = vunpack.c.l.b16 %v2164
    %v2212 = vunpack.c.h.b16 %v2164
    %v2213 = vpack.c.b16 %v2183, %v2181
    %v2214 = vpack.c.b16 %v2184, %v2182
    %v2215 = vpack.c.b16 %v2187, %v2185
    %v2216 = vpack.c.b16 %v2188, %v2186
    %v2217 = vpack.c.b16 %v2191, %v2189
    %v2218 = vpack.c.b16 %v2192, %v2190
    %v2219 = vpack.c.b16 %v2195, %v2193
    %v2220 = vpack.c.b16 %v2196, %v2194
    %v2221 = vpack.c.b16 %v2199, %v2197
    %v2222 = vpack.c.b16 %v2200, %v2198
    %v2223 = vpack.c.b16 %v2203, %v2201
    %v2224 = vpack.c.b16 %v2204, %v2202
    %v2225 = vpack.c.b16 %v2207, %v2205
    %v2226 = vpack.c.b16 %v2208, %v2206
    %v2227 = vpack.c.b16 %v2211, %v2209
    %v2228 = vpack.c.b16 %v2212, %v2210
    %2245 = vmatprep.subr.bf16.mxu0 %v2228
    %2246 = vmatpush1.bf16.msra.mxu0 %v2227
    %2247 = vmatprep.subr.bf16.mxu0 %v2226
    %2248 = vmatpush1.bf16.msra.mxu0 %v2225
    %2249 = vmatprep.subr.bf16.mxu0 %v2224
    %2250 = vmatpush1.bf16.msra.mxu0 %v2223
    %2251 = vmatprep.subr.bf16.mxu0 %v2222
    %2252 = vmatpush1.bf16.msra.mxu0 %v2221
    %2253 = vmatprep.subr.bf16.mxu0 %v2220
    %2254 = vmatpush1.bf16.msra.mxu0 %v2219
    %2255 = vmatprep.subr.bf16.mxu0 %v2218
    %2256 = vmatpush1.bf16.msra.mxu0 %v2217
    %2257 = vmatprep.subr.bf16.mxu0 %v2216
    %2258 = vmatpush1.bf16.msra.mxu0 %v2215
    %2259 = vmatprep.subr.bf16.mxu0 %v2214
    %2260 = vmatpush1.bf16.msra.mxu0 %v2213
    %2261 = vmatprep.subr.bf16.mxu0 0
    %2262 = vmatpush2.bf16.msra.mxu0 0
    %2263 = vmatprep.subr.bf16.mxu0 0
    %2264 = vmatpush2.bf16.msra.mxu0 0
    %2265 = vmatprep.subr.bf16.mxu0 0
    %2266 = vmatpush2.bf16.msra.mxu0 0
    %2267 = vmatprep.subr.bf16.mxu0 0
    %2268 = vmatpush2.bf16.msra.mxu0 0
    %2269 = vmatprep.subr.bf16.mxu0 0
    %2270 = vmatpush2.bf16.msra.mxu0 0
    %2271 = vmatprep.subr.bf16.mxu0 0
    %2272 = vmatpush2.bf16.msra.mxu0 0
    %2273 = vmatprep.subr.bf16.mxu0 0
    %2274 = vmatpush2.bf16.msra.mxu0 0
    %2275 = vmatprep.subr.bf16.mxu0 0
    %2276 = vmatpush2.bf16.msra.mxu0 0
    %2277 = vmatprep.mubr.bf16.mxu0 0
    %2278 = vmatmul.mubr.bf16.gmra.mxu0 %v2148
    %v2279 = vpop.f32.mrf.mxu0
    %v2280 = vadd.f32 0.0, %v2279
    %v2281 = vpop.f32.mrf.mxu0
    %v2282 = vadd.f32 0.0, %v2281
    %v2283 = vpop.f32.mrf.mxu0
    %v2284 = vpop.f32.mrf.mxu0
    %2285 = vdwg.mxu0
    %v2286 = vadd.f32 %v2096, %v2280
    %v2287 = vadd.f32 %v2097, %v2282
    %v2288 = vld [vmem:[%s2 + $0x38] sm:$0xff]
    %v2290 = vunpack.c.l.b16 %v2288
    %v2291 = vunpack.c.h.b16 %v2288
    %v2292 = vpack.c.b16 %v2290, %v2290
    %v2293 = vpack.c.b16 %v2291, %v2291
    %v2296 = vsel %vm964, %v2293, 0
    %2298 = vmatprep.subr.bf16.mxu0 0
    %2299 = vmatpush1.bf16.msra.mxu0 %v951
    %2300 = vmatprep.subr.bf16.mxu0 0
    %2301 = vmatpush1.bf16.msra.mxu0 %v950
    %2302 = vmatprep.subr.bf16.mxu0 0
    %2303 = vmatpush1.bf16.msra.mxu0 %v949
    %2304 = vmatprep.subr.bf16.mxu0 0
    %2305 = vmatpush1.bf16.msra.mxu0 %v948
    %2306 = vmatprep.subr.bf16.mxu0 0
    %2307 = vmatpush1.bf16.msra.mxu0 %v947
    %2308 = vmatprep.subr.bf16.mxu0 0
    %2309 = vmatpush1.bf16.msra.mxu0 %v946
    %2310 = vmatprep.subr.bf16.mxu0 0
    %2311 = vmatpush1.bf16.msra.mxu0 %v945
    %2312 = vmatprep.subr.bf16.mxu0 0
    %2313 = vmatpush1.bf16.msra.mxu0 %v944
    %2314 = vmatprep.subr.bf16.mxu0 0
    %2315 = vmatpush2.bf16.msra.mxu0 0
    %2316 = vmatprep.subr.bf16.mxu0 0
    %2317 = vmatpush2.bf16.msra.mxu0 0
    %2318 = vmatprep.subr.bf16.mxu0 0
    %2319 = vmatpush2.bf16.msra.mxu0 0
    %2320 = vmatprep.subr.bf16.mxu0 0
    %2321 = vmatpush2.bf16.msra.mxu0 %v970
    %2322 = vmatprep.subr.bf16.mxu0 0
    %2323 = vmatpush2.bf16.msra.mxu0 %v955
    %2324 = vmatprep.subr.bf16.mxu0 0
    %2325 = vmatpush2.bf16.msra.mxu0 %v954
    %2326 = vmatprep.subr.bf16.mxu0 0
    %2327 = vmatpush2.bf16.msra.mxu0 %v953
    %2328 = vmatprep.subr.bf16.mxu0 0
    %2329 = vmatpush2.bf16.msra.mxu0 %v952
    %2330 = vmatprep.mubr.bf16.mxu0 %v2296
    %2331 = vmatmul.mubr.bf16.gmra.mxu0 %v2292
    %v2332 = vpop.f32.mrf.mxu0
    %v2333 = vadd.f32 0.0, %v2332
    %v2334 = vpop.f32.mrf.mxu0
    %v2335 = vpop.f32.mrf.mxu0
    %v2336 = vpop.f32.mrf.mxu0
    %2337 = vdwg.mxu0
    %v2338 = vpack.c.bf16 %v2333, %v2333
    %v2339 = vld [vmem:[%s3 + $0x380] sm:$0xff]
    %v2340 = vld [vmem:[%s3 + $0x388] sm:$0xff]
    %v2341 = vld [vmem:[%s3 + $0x390] sm:$0xff]
    %v2342 = vld [vmem:[%s3 + $0x398] sm:$0xff]
    %v2343 = vld [vmem:[%s3 + $0x3a0] sm:$0xff]
    %v2344 = vld [vmem:[%s3 + $0x3a8] sm:$0xff]
    %v2345 = vld [vmem:[%s3 + $0x3b0] sm:$0xff]
    %v2346 = vld [vmem:[%s3 + $0x3b8] sm:$0xff]
    %v2347 = vld [vmem:[%s3 + $0x3c0] sm:$0xff]
    %v2348 = vld [vmem:[%s3 + $0x3c8] sm:$0xff]
    %v2349 = vld [vmem:[%s3 + $0x3d0] sm:$0xff]
    %v2350 = vld [vmem:[%s3 + $0x3d8] sm:$0xff]
    %v2351 = vld [vmem:[%s3 + $0x3e0] sm:$0xff]
    %v2352 = vld [vmem:[%s3 + $0x3e8] sm:$0xff]
    %v2353 = vld [vmem:[%s3 + $0x3f0] sm:$0xff]
    %v2354 = vld [vmem:[%s3 + $0x3f8] sm:$0xff]
    %v2371 = vunpack.c.l.b16 %v2339
    %v2372 = vunpack.c.h.b16 %v2339
    %v2373 = vunpack.c.l.b16 %v2340
    %v2374 = vunpack.c.h.b16 %v2340
    %v2375 = vunpack.c.l.b16 %v2341
    %v2376 = vunpack.c.h.b16 %v2341
    %v2377 = vunpack.c.l.b16 %v2342
    %v2378 = vunpack.c.h.b16 %v2342
    %v2379 = vunpack.c.l.b16 %v2343
    %v2380 = vunpack.c.h.b16 %v2343
    %v2381 = vunpack.c.l.b16 %v2344
    %v2382 = vunpack.c.h.b16 %v2344
    %v2383 = vunpack.c.l.b16 %v2345
    %v2384 = vunpack.c.h.b16 %v2345
    %v2385 = vunpack.c.l.b16 %v2346
    %v2386 = vunpack.c.h.b16 %v2346
    %v2387 = vunpack.c.l.b16 %v2347
    %v2388 = vunpack.c.h.b16 %v2347
    %v2389 = vunpack.c.l.b16 %v2348
    %v2390 = vunpack.c.h.b16 %v2348
    %v2391 = vunpack.c.l.b16 %v2349
    %v2392 = vunpack.c.h.b16 %v2349
    %v2393 = vunpack.c.l.b16 %v2350
    %v2394 = vunpack.c.h.b16 %v2350
    %v2395 = vunpack.c.l.b16 %v2351
    %v2396 = vunpack.c.h.b16 %v2351
    %v2397 = vunpack.c.l.b16 %v2352
    %v2398 = vunpack.c.h.b16 %v2352
    %v2399 = vunpack.c.l.b16 %v2353
    %v2400 = vunpack.c.h.b16 %v2353
    %v2401 = vunpack.c.l.b16 %v2354
    %v2402 = vunpack.c.h.b16 %v2354
    %v2403 = vpack.c.b16 %v2373, %v2371
    %v2404 = vpack.c.b16 %v2374, %v2372
    %v2405 = vpack.c.b16 %v2377, %v2375
    %v2406 = vpack.c.b16 %v2378, %v2376
    %v2407 = vpack.c.b16 %v2381, %v2379
    %v2408 = vpack.c.b16 %v2382, %v2380
    %v2409 = vpack.c.b16 %v2385, %v2383
    %v2410 = vpack.c.b16 %v2386, %v2384
    %v2411 = vpack.c.b16 %v2389, %v2387
    %v2412 = vpack.c.b16 %v2390, %v2388
    %v2413 = vpack.c.b16 %v2393, %v2391
    %v2414 = vpack.c.b16 %v2394, %v2392
    %v2415 = vpack.c.b16 %v2397, %v2395
    %v2416 = vpack.c.b16 %v2398, %v2396
    %v2417 = vpack.c.b16 %v2401, %v2399
    %v2418 = vpack.c.b16 %v2402, %v2400
    %2435 = vmatprep.subr.bf16.mxu0 %v2418
    %2436 = vmatpush1.bf16.msra.mxu0 %v2417
    %2437 = vmatprep.subr.bf16.mxu0 %v2416
    %2438 = vmatpush1.bf16.msra.mxu0 %v2415
    %2439 = vmatprep.subr.bf16.mxu0 %v2414
    %2440 = vmatpush1.bf16.msra.mxu0 %v2413
    %2441 = vmatprep.subr.bf16.mxu0 %v2412
    %2442 = vmatpush1.bf16.msra.mxu0 %v2411
    %2443 = vmatprep.subr.bf16.mxu0 %v2410
    %2444 = vmatpush1.bf16.msra.mxu0 %v2409
    %2445 = vmatprep.subr.bf16.mxu0 %v2408
    %2446 = vmatpush1.bf16.msra.mxu0 %v2407
    %2447 = vmatprep.subr.bf16.mxu0 %v2406
    %2448 = vmatpush1.bf16.msra.mxu0 %v2405
    %2449 = vmatprep.subr.bf16.mxu0 %v2404
    %2450 = vmatpush1.bf16.msra.mxu0 %v2403
    %2451 = vmatprep.subr.bf16.mxu0 0
    %2452 = vmatpush2.bf16.msra.mxu0 0
    %2453 = vmatprep.subr.bf16.mxu0 0
    %2454 = vmatpush2.bf16.msra.mxu0 0
    %2455 = vmatprep.subr.bf16.mxu0 0
    %2456 = vmatpush2.bf16.msra.mxu0 0
    %2457 = vmatprep.subr.bf16.mxu0 0
    %2458 = vmatpush2.bf16.msra.mxu0 0
    %2459 = vmatprep.subr.bf16.mxu0 0
    %2460 = vmatpush2.bf16.msra.mxu0 0
    %2461 = vmatprep.subr.bf16.mxu0 0
    %2462 = vmatpush2.bf16.msra.mxu0 0
    %2463 = vmatprep.subr.bf16.mxu0 0
    %2464 = vmatpush2.bf16.msra.mxu0 0
    %2465 = vmatprep.subr.bf16.mxu0 0
    %2466 = vmatpush2.bf16.msra.mxu0 0
    %2467 = vmatprep.mubr.bf16.mxu0 0
    %2468 = vmatmul.mubr.bf16.gmra.mxu0 %v2338
    %v2469 = vpop.f32.mrf.mxu0
    %v2470 = vadd.f32 0.0, %v2469
    %v2471 = vpop.f32.mrf.mxu0
    %v2472 = vadd.f32 0.0, %v2471
    %v2473 = vpop.f32.mrf.mxu0
    %v2474 = vpop.f32.mrf.mxu0
    %2475 = vdwg.mxu0
    %v2476 = vadd.f32 %v2286, %v2470
    %v2477 = vadd.f32 %v2287, %v2472
    %v2478 = vld [vmem:[%s2 + $0x40] sm:$0xff]
    %v2480 = vunpack.c.l.b16 %v2478
    %v2481 = vunpack.c.h.b16 %v2478
    %v2482 = vpack.c.b16 %v2480, %v2480
    %v2483 = vpack.c.b16 %v2481, %v2481
    %v2486 = vsel %vm964, %v2483, 0
    %2488 = vmatprep.subr.bf16.mxu0 0
    %2489 = vmatpush1.bf16.msra.mxu0 %v951
    %2490 = vmatprep.subr.bf16.mxu0 0
    %2491 = vmatpush1.bf16.msra.mxu0 %v950
    %2492 = vmatprep.subr.bf16.mxu0 0
    %2493 = vmatpush1.bf16.msra.mxu0 %v949
    %2494 = vmatprep.subr.bf16.mxu0 0
    %2495 = vmatpush1.bf16.msra.mxu0 %v948
    %2496 = vmatprep.subr.bf16.mxu0 0
    %2497 = vmatpush1.bf16.msra.mxu0 %v947
    %2498 = vmatprep.subr.bf16.mxu0 0
    %2499 = vmatpush1.bf16.msra.mxu0 %v946
    %2500 = vmatprep.subr.bf16.mxu0 0
    %2501 = vmatpush1.bf16.msra.mxu0 %v945
    %2502 = vmatprep.subr.bf16.mxu0 0
    %2503 = vmatpush1.bf16.msra.mxu0 %v944
    %2504 = vmatprep.subr.bf16.mxu0 0
    %2505 = vmatpush2.bf16.msra.mxu0 0
    %2506 = vmatprep.subr.bf16.mxu0 0
    %2507 = vmatpush2.bf16.msra.mxu0 0
    %2508 = vmatprep.subr.bf16.mxu0 0
    %2509 = vmatpush2.bf16.msra.mxu0 0
    %2510 = vmatprep.subr.bf16.mxu0 0
    %2511 = vmatpush2.bf16.msra.mxu0 %v970
    %2512 = vmatprep.subr.bf16.mxu0 0
    %2513 = vmatpush2.bf16.msra.mxu0 %v955
    %2514 = vmatprep.subr.bf16.mxu0 0
    %2515 = vmatpush2.bf16.msra.mxu0 %v954
    %2516 = vmatprep.subr.bf16.mxu0 0
    %2517 = vmatpush2.bf16.msra.mxu0 %v953
    %2518 = vmatprep.subr.bf16.mxu0 0
    %2519 = vmatpush2.bf16.msra.mxu0 %v952
    %2520 = vmatprep.mubr.bf16.mxu0 %v2486
    %2521 = vmatmul.mubr.bf16.gmra.mxu0 %v2482
    %v2522 = vpop.f32.mrf.mxu0
    %v2523 = vadd.f32 0.0, %v2522
    %v2524 = vpop.f32.mrf.mxu0
    %v2525 = vpop.f32.mrf.mxu0
    %v2526 = vpop.f32.mrf.mxu0
    %2527 = vdwg.mxu0
    %v2528 = vpack.c.bf16 %v2523, %v2523
    %v2529 = vld [vmem:[%s3 + $0x400] sm:$0xff]
    %v2530 = vld [vmem:[%s3 + $0x408] sm:$0xff]
    %v2531 = vld [vmem:[%s3 + $0x410] sm:$0xff]
    %v2532 = vld [vmem:[%s3 + $0x418] sm:$0xff]
    %v2533 = vld [vmem:[%s3 + $0x420] sm:$0xff]
    %v2534 = vld [vmem:[%s3 + $0x428] sm:$0xff]
    %v2535 = vld [vmem:[%s3 + $0x430] sm:$0xff]
    %v2536 = vld [vmem:[%s3 + $0x438] sm:$0xff]
    %v2537 = vld [vmem:[%s3 + $0x440] sm:$0xff]
    %v2538 = vld [vmem:[%s3 + $0x448] sm:$0xff]
    %v2539 = vld [vmem:[%s3 + $0x450] sm:$0xff]
    %v2540 = vld [vmem:[%s3 + $0x458] sm:$0xff]
    %v2541 = vld [vmem:[%s3 + $0x460] sm:$0xff]
    %v2542 = vld [vmem:[%s3 + $0x468] sm:$0xff]
    %v2543 = vld [vmem:[%s3 + $0x470] sm:$0xff]
    %v2544 = vld [vmem:[%s3 + $0x478] sm:$0xff]
    %v2561 = vunpack.c.l.b16 %v2529
    %v2562 = vunpack.c.h.b16 %v2529
    %v2563 = vunpack.c.l.b16 %v2530
    %v2564 = vunpack.c.h.b16 %v2530
    %v2565 = vunpack.c.l.b16 %v2531
    %v2566 = vunpack.c.h.b16 %v2531
    %v2567 = vunpack.c.l.b16 %v2532
    %v2568 = vunpack.c.h.b16 %v2532
    %v2569 = vunpack.c.l.b16 %v2533
    %v2570 = vunpack.c.h.b16 %v2533
    %v2571 = vunpack.c.l.b16 %v2534
    %v2572 = vunpack.c.h.b16 %v2534
    %v2573 = vunpack.c.l.b16 %v2535
    %v2574 = vunpack.c.h.b16 %v2535
    %v2575 = vunpack.c.l.b16 %v2536
    %v2576 = vunpack.c.h.b16 %v2536
    %v2577 = vunpack.c.l.b16 %v2537
    %v2578 = vunpack.c.h.b16 %v2537
    %v2579 = vunpack.c.l.b16 %v2538
    %v2580 = vunpack.c.h.b16 %v2538
    %v2581 = vunpack.c.l.b16 %v2539
    %v2582 = vunpack.c.h.b16 %v2539
    %v2583 = vunpack.c.l.b16 %v2540
    %v2584 = vunpack.c.h.b16 %v2540
    %v2585 = vunpack.c.l.b16 %v2541
    %v2586 = vunpack.c.h.b16 %v2541
    %v2587 = vunpack.c.l.b16 %v2542
    %v2588 = vunpack.c.h.b16 %v2542
    %v2589 = vunpack.c.l.b16 %v2543
    %v2590 = vunpack.c.h.b16 %v2543
    %v2591 = vunpack.c.l.b16 %v2544
    %v2592 = vunpack.c.h.b16 %v2544
    %v2593 = vpack.c.b16 %v2563, %v2561
    %v2594 = vpack.c.b16 %v2564, %v2562
    %v2595 = vpack.c.b16 %v2567, %v2565
    %v2596 = vpack.c.b16 %v2568, %v2566
    %v2597 = vpack.c.b16 %v2571, %v2569
    %v2598 = vpack.c.b16 %v2572, %v2570
    %v2599 = vpack.c.b16 %v2575, %v2573
    %v2600 = vpack.c.b16 %v2576, %v2574
    %v2601 = vpack.c.b16 %v2579, %v2577
    %v2602 = vpack.c.b16 %v2580, %v2578
    %v2603 = vpack.c.b16 %v2583, %v2581
    %v2604 = vpack.c.b16 %v2584, %v2582
    %v2605 = vpack.c.b16 %v2587, %v2585
    %v2606 = vpack.c.b16 %v2588, %v2586
    %v2607 = vpack.c.b16 %v2591, %v2589
    %v2608 = vpack.c.b16 %v2592, %v2590
    %2625 = vmatprep.subr.bf16.mxu0 %v2608
    %2626 = vmatpush1.bf16.msra.mxu0 %v2607
    %2627 = vmatprep.subr.bf16.mxu0 %v2606
    %2628 = vmatpush1.bf16.msra.mxu0 %v2605
    %2629 = vmatprep.subr.bf16.mxu0 %v2604
    %2630 = vmatpush1.bf16.msra.mxu0 %v2603
    %2631 = vmatprep.subr.bf16.mxu0 %v2602
    %2632 = vmatpush1.bf16.msra.mxu0 %v2601
    %2633 = vmatprep.subr.bf16.mxu0 %v2600
    %2634 = vmatpush1.bf16.msra.mxu0 %v2599
    %2635 = vmatprep.subr.bf16.mxu0 %v2598
    %2636 = vmatpush1.bf16.msra.mxu0 %v2597
    %2637 = vmatprep.subr.bf16.mxu0 %v2596
    %2638 = vmatpush1.bf16.msra.mxu0 %v2595
    %2639 = vmatprep.subr.bf16.mxu0 %v2594
    %2640 = vmatpush1.bf16.msra.mxu0 %v2593
    %2641 = vmatprep.subr.bf16.mxu0 0
    %2642 = vmatpush2.bf16.msra.mxu0 0
    %2643 = vmatprep.subr.bf16.mxu0 0
    %2644 = vmatpush2.bf16.msra.mxu0 0
    %2645 = vmatprep.subr.bf16.mxu0 0
    %2646 = vmatpush2.bf16.msra.mxu0 0
    %2647 = vmatprep.subr.bf16.mxu0 0
    %2648 = vmatpush2.bf16.msra.mxu0 0
    %2649 = vmatprep.subr.bf16.mxu0 0
    %2650 = vmatpush2.bf16.msra.mxu0 0
    %2651 = vmatprep.subr.bf16.mxu0 0
    %2652 = vmatpush2.bf16.msra.mxu0 0
    %2653 = vmatprep.subr.bf16.mxu0 0
    %2654 = vmatpush2.bf16.msra.mxu0 0
    %2655 = vmatprep.subr.bf16.mxu0 0
    %2656 = vmatpush2.bf16.msra.mxu0 0
    %2657 = vmatprep.mubr.bf16.mxu0 0
    %2658 = vmatmul.mubr.bf16.gmra.mxu0 %v2528
    %v2659 = vpop.f32.mrf.mxu0
    %v2660 = vadd.f32 0.0, %v2659
    %v2661 = vpop.f32.mrf.mxu0
    %v2662 = vadd.f32 0.0, %v2661
    %v2663 = vpop.f32.mrf.mxu0
    %v2664 = vpop.f32.mrf.mxu0
    %2665 = vdwg.mxu0
    %v2666 = vadd.f32 %v2476, %v2660
    %v2667 = vadd.f32 %v2477, %v2662
    %v2668 = vrot.slane %v2666, 4
    %v2669 = vadd.f32 %v2666, %v2668
    %v2670 = vrot.slane %v2669, 2
    %v2671 = vadd.f32 %v2669, %v2670
    %v2672 = vrot.slane %v2671, 1
    %v2673 = vadd.f32 %v2671, %v2672
    %v2674 = vsel %vm427, %v2667, 0.0
    %v2675 = vrot.slane %v2674, 4
    %v2676 = vadd.f32 %v2674, %v2675
    %v2677 = vrot.slane %v2676, 2
    %v2678 = vadd.f32 %v2676, %v2677
    %v2679 = vrot.slane %v2678, 1
    %v2680 = vadd.f32 %v2678, %v2679
    %v2681 = vmul.f32 %v2673, 0.125
    %v2682 = vmul.f32 %v2680, 0.125
    %v2683 = vmul.f32 %v2666, %v2666
    %v2684 = vmul.f32 %v2667, %v2667
    %v2685 = vrot.slane %v2683, 4
    %v2686 = vadd.f32 %v2683, %v2685
    %v2687 = vrot.slane %v2686, 2
    %v2688 = vadd.f32 %v2686, %v2687
    %v2689 = vrot.slane %v2688, 1
    %v2690 = vadd.f32 %v2688, %v2689
    %v2691 = vsel %vm427, %v2684, 0.0
    %v2692 = vrot.slane %v2691, 4
    %v2693 = vadd.f32 %v2691, %v2692
    %v2694 = vrot.slane %v2693, 2
    %v2695 = vadd.f32 %v2693, %v2694
    %v2696 = vrot.slane %v2695, 1
    %v2697 = vadd.f32 %v2695, %v2696
    %v2698 = vmul.f32 %v2690, 0.125
    %v2699 = vmul.f32 %v2697, 0.125
    %v2700 = vmul.f32 %v2681, %v2681
    %v2701 = vmul.f32 %v2682, %v2682
    %v2702 = vsub.f32 %v2698, %v2700
    %v2703 = vsub.f32 %v2699, %v2701
    %v2704 = vadd.f32 %v2702, 1e-05
    %v2705 = vadd.f32 %v2703, 1e-05
    %v2706 = vrsqrt.pop %v2704
    %v2707 = vrsqrt.pop %v2705
    %v2708 = vmul.f32 %v2706, %v41
    %v2709 = vmul.f32 %v2707, %v42
    %v2710 = vlaneseq
    %v2711 = vshrl.u32 %v2710, 7
    %v2712 = vsub.s32 0, %v2711
    %v2713 = vrot.slane %v2708, %v2712
    %v2714 = vlaneseq
    %v2715 = vshrl.u32 %v2714, 7
    %v2716 = vsub.s32 0, %v2715
    %v2717 = vrot.slane %v2709, %v2716
    %v2718 = vmul.f32 %v2666, %v2713
    %v2719 = vmul.f32 %v2667, %v2717
    %v2720 = vmul.f32 %v2681, %v2708
    %v2721 = vmul.f32 %v2682, %v2709
    %v2724 = vrot.slane %v2720, 7
    %v2725 = vrot.slane %v2721, 7
    %v2728 = vsub.f32 %v41, %v2724
    %v2729 = vsub.f32 %v42, %v2725
    %v2730 = vlaneseq
    %v2731 = vshrl.u32 %v2730, 7
    %v2732 = vsub.s32 1, %v2731
    %v2733 = vrot.slane %v2728, %v2732
    %v2734 = vlaneseq
    %v2735 = vshrl.u32 %v2734, 7
    %v2736 = vsub.s32 1, %v2735
    %v2737 = vrot.slane %v2729, %v2736
    %v2738 = vadd.f32 %v2718, %v2733
    %v2739 = vadd.f32 %v2719, %v2737
    %v2740 = vmax.f32 %v2738, 0.0
    %v2741 = vmax.f32 %v2739, 0.0
    %2742 = vst [vmem:[%s10] sm:$0xff] %v2740
    %2743 = vst.msk [vmem:[%s10 + $0x8] sm:$0xff] %vm427, %v2741
    %v2744 = vsel %vm968, %v2740, 0.0
    %v2745 = vrot.slane %v2744, 4
    %v2746 = vadd.f32 %v2744, %v2745
    %v2747 = vrot.slane %v2746, 2
    %v2748 = vadd.f32 %v2746, %v2747
    %v2749 = vrot.slane %v2748, 1
    %v2750 = vadd.f32 %v2748, %v2749
    %vm2751 = vcmask 257024
    %v2752 = vsel %vm2751, %v2741, 0.0
    %v2753 = vrot.slane %v2752, 4
    %v2754 = vadd.f32 %v2752, %v2753
    %v2755 = vrot.slane %v2754, 2
    %v2756 = vadd.f32 %v2754, %v2755
    %v2757 = vrot.slane %v2756, 1
    %v2758 = vadd.f32 %v2756, %v2757
    %v2761 = vrot.slane %v2740, 4
    %v2762 = vrot.slane %v2741, 4
    %v2765 = vsel %vm968, %v2761, 0.0
    %v2766 = vrot.slane %v2765, 4
    %v2767 = vadd.f32 %v2765, %v2766
    %v2768 = vrot.slane %v2767, 2
    %v2769 = vadd.f32 %v2767, %v2768
    %v2770 = vrot.slane %v2769, 1
    %v2771 = vadd.f32 %v2769, %v2770
    %v2772 = vsel %vm2751, %v2762, 0.0
    %v2773 = vrot.slane %v2772, 4
    %v2774 = vadd.f32 %v2772, %v2773
    %v2775 = vrot.slane %v2774, 2
    %v2776 = vadd.f32 %v2774, %v2775
    %v2777 = vrot.slane %v2776, 1
    %v2778 = vadd.f32 %v2776, %v2777
    %vm2779 = vcmask 1040384
    %v2780 = vsel %vm2779, %v2750, %v2771
    %v2781 = vsel %vm2779, %v2758, %v2778
    %v2782 = vmul.f32 %v2780, 0.25
    %v2783 = vmul.f32 %v2781, 0.25
    %v2784 = vpack.c.bf16 %v2782, %v2782
    %v2785 = vpack.c.bf16 %v2783, %v2783
    %v2786 = vld [vmem:[%s4] sm:$0xff]
    %v2787 = vld [vmem:[%s4 + $0x8] sm:$0xff]
    %v2788 = vld [vmem:[%s4 + $0x10] sm:$0xff]
    %v2789 = vld [vmem:[%s4 + $0x18] sm:$0xff]
    %v2790 = vld [vmem:[%s4 + $0x20] sm:$0xff]
    %v2791 = vld [vmem:[%s4 + $0x28] sm:$0xff]
    %v2792 = vld [vmem:[%s4 + $0x30] sm:$0xff]
    %v2793 = vld [vmem:[%s4 + $0x38] sm:$0xff]
    %v2794 = vld [vmem:[%s4 + $0x40] sm:$0xff]
    %v2795 = vld [vmem:[%s4 + $0x48] sm:$0xff]
    %v2796 = vld [vmem:[%s4 + $0x50] sm:$0xff]
    %v2797 = vld [vmem:[%s4 + $0x58] sm:$0xff]
    %v2798 = vld [vmem:[%s4 + $0x60] sm:$0xff]
    %v2799 = vld [vmem:[%s4 + $0x68] sm:$0xff]
    %v2800 = vld [vmem:[%s4 + $0x70] sm:$0xff]
    %v2801 = vld [vmem:[%s4 + $0x78] sm:$0xff]
    %v2802 = vld [vmem:[%s4 + $0x80] sm:$0xff]
    %v2803 = vld [vmem:[%s4 + $0x88] sm:$0xff]
    %v2804 = vld [vmem:[%s4 + $0x90] sm:$0xff]
    %v2805 = vld [vmem:[%s4 + $0x98] sm:$0xff]
    %v2806 = vlaneseq
    %v2807 = vshrl.u32 %v2806, 7
    %v2808 = vsub.s32 2, %v2807
    %v2809 = vrot.slane %v41, %v2808
    %v2810 = vlaneseq
    %v2811 = vshrl.u32 %v2810, 7
    %v2812 = vsub.s32 2, %v2811
    %v2813 = vrot.slane %v42, %v2812
    %v2834 = vunpack.c.l.b16 %v2786
    %v2835 = vunpack.c.h.b16 %v2786
    %v2836 = vunpack.c.l.b16 %v2787
    %v2837 = vunpack.c.h.b16 %v2787
    %v2838 = vunpack.c.l.b16 %v2788
    %v2839 = vunpack.c.h.b16 %v2788
    %v2840 = vunpack.c.l.b16 %v2789
    %v2841 = vunpack.c.h.b16 %v2789
    %v2842 = vunpack.c.l.b16 %v2790
    %v2843 = vunpack.c.h.b16 %v2790
    %v2844 = vunpack.c.l.b16 %v2791
    %v2845 = vunpack.c.h.b16 %v2791
    %v2846 = vunpack.c.l.b16 %v2792
    %v2847 = vunpack.c.h.b16 %v2792
    %v2848 = vunpack.c.l.b16 %v2793
    %v2849 = vunpack.c.h.b16 %v2793
    %v2850 = vunpack.c.l.b16 %v2794
    %v2851 = vunpack.c.h.b16 %v2794
    %v2852 = vunpack.c.l.b16 %v2795
    %v2853 = vunpack.c.h.b16 %v2795
    %v2854 = vunpack.c.l.b16 %v2796
    %v2855 = vunpack.c.h.b16 %v2796
    %v2856 = vunpack.c.l.b16 %v2797
    %v2857 = vunpack.c.h.b16 %v2797
    %v2858 = vunpack.c.l.b16 %v2798
    %v2859 = vunpack.c.h.b16 %v2798
    %v2860 = vunpack.c.l.b16 %v2799
    %v2861 = vunpack.c.h.b16 %v2799
    %v2862 = vunpack.c.l.b16 %v2800
    %v2863 = vunpack.c.h.b16 %v2800
    %v2864 = vunpack.c.l.b16 %v2801
    %v2865 = vunpack.c.h.b16 %v2801
    %v2866 = vunpack.c.l.b16 %v2802
    %v2867 = vunpack.c.h.b16 %v2802
    %v2868 = vunpack.c.l.b16 %v2803
    %v2869 = vunpack.c.h.b16 %v2803
    %v2870 = vunpack.c.l.b16 %v2804
    %v2871 = vunpack.c.h.b16 %v2804
    %v2872 = vunpack.c.l.b16 %v2805
    %v2873 = vunpack.c.h.b16 %v2805
    %v2874 = vpack.c.b16 %v2836, %v2834
    %v2875 = vpack.c.b16 %v2837, %v2835
    %v2876 = vpack.c.b16 %v2840, %v2838
    %v2877 = vpack.c.b16 %v2841, %v2839
    %v2878 = vpack.c.b16 %v2844, %v2842
    %v2879 = vpack.c.b16 %v2845, %v2843
    %v2880 = vpack.c.b16 %v2848, %v2846
    %v2881 = vpack.c.b16 %v2849, %v2847
    %v2882 = vpack.c.b16 %v2852, %v2850
    %v2883 = vpack.c.b16 %v2853, %v2851
    %v2884 = vpack.c.b16 %v2856, %v2854
    %v2885 = vpack.c.b16 %v2857, %v2855
    %v2886 = vpack.c.b16 %v2860, %v2858
    %v2887 = vpack.c.b16 %v2861, %v2859
    %v2888 = vpack.c.b16 %v2864, %v2862
    %v2889 = vpack.c.b16 %v2865, %v2863
    %v2890 = vpack.c.b16 %v2868, %v2866
    %v2891 = vpack.c.b16 %v2869, %v2867
    %v2892 = vpack.c.b16 %v2872, %v2870
    %v2893 = vpack.c.b16 %v2873, %v2871
    %v2915 = vsel %vm427, %v2785, 0
    %2917 = vmatprep.subr.bf16.mxu0 %v2889
    %2918 = vmatpush1.bf16.msra.mxu0 %v2888
    %2919 = vmatprep.subr.bf16.mxu0 %v2887
    %2920 = vmatpush1.bf16.msra.mxu0 %v2886
    %2921 = vmatprep.subr.bf16.mxu0 %v2885
    %2922 = vmatpush1.bf16.msra.mxu0 %v2884
    %2923 = vmatprep.subr.bf16.mxu0 %v2883
    %2924 = vmatpush1.bf16.msra.mxu0 %v2882
    %2925 = vmatprep.subr.bf16.mxu0 %v2881
    %2926 = vmatpush1.bf16.msra.mxu0 %v2880
    %2927 = vmatprep.subr.bf16.mxu0 %v2879
    %2928 = vmatpush1.bf16.msra.mxu0 %v2878
    %2929 = vmatprep.subr.bf16.mxu0 %v2877
    %2930 = vmatpush1.bf16.msra.mxu0 %v2876
    %2931 = vmatprep.subr.bf16.mxu0 %v2875
    %2932 = vmatpush1.bf16.msra.mxu0 %v2874
    %2933 = vmatprep.subr.bf16.mxu0 0
    %2934 = vmatpush2.bf16.msra.mxu0 0
    %2935 = vmatprep.subr.bf16.mxu0 0
    %2936 = vmatpush2.bf16.msra.mxu0 0
    %2937 = vmatprep.subr.bf16.mxu0 0
    %2938 = vmatpush2.bf16.msra.mxu0 0
    %2939 = vmatprep.subr.bf16.mxu0 0
    %2940 = vmatpush2.bf16.msra.mxu0 0
    %2941 = vmatprep.subr.bf16.mxu0 0
    %2942 = vmatpush2.bf16.msra.mxu0 0
    %2943 = vmatprep.subr.bf16.mxu0 0
    %2944 = vmatpush2.bf16.msra.mxu0 0
    %2945 = vmatprep.subr.bf16.mxu0 %v2893
    %2946 = vmatpush2.bf16.msra.mxu0 %v2892
    %2947 = vmatprep.subr.bf16.mxu0 %v2891
    %2948 = vmatpush2.bf16.msra.mxu0 %v2890
    %2949 = vmatprep.mubr.bf16.mxu0 %v2915
    %2950 = vmatmul.mubr.bf16.gmra.mxu0 %v2784
    %v2951 = vpop.f32.mrf.mxu0
    %v2952 = vadd.f32 %v2809, %v2951
    %v2953 = vpop.f32.mrf.mxu0
    %v2954 = vadd.f32 %v2813, %v2953
    %v2955 = vpop.f32.mrf.mxu0
    %v2956 = vpop.f32.mrf.mxu0
    %2957 = vdwg.mxu0
    %v2960 = vcombine.low %v2952, %v2954
    %v2962 = vunpack.c.l.s4 1983009808
    %v2963 = vunpack.c.0.s8 %v2962
    %v2964 = vlaneseq
    %v2965 = vshrl.u32 %v2964, 7
    %v2966 = vsub.s32 %v2963, %v2965
    %v2967 = vrot.slane %v2960, %v2966
    %vm2969 = vcmask 1041408
    %vm2970 = vcmask 257026
    %vm2971 = vmor %vm2970, %vm2969
    %2972 = vst.msk [vmem:[%s11] sm:$0xf] %vm2971, %v2967
    %v2973 = vsel %vm2969, %v2952, 0.0
    %v2974 = vrot.slane %v2973, 4
    %v2975 = vadd.f32 %v2973, %v2974
    %v2976 = vrot.slane %v2975, 2
    %v2977 = vadd.f32 %v2975, %v2976
    %v2978 = vrot.slane %v2977, 1
    %v2979 = vadd.f32 %v2977, %v2978
    %vm2980 = vcmask 254976
    %v2981 = vsel %vm2980, %v2954, 0.0
    %v2982 = vrot.slane %v2981, 4
    %v2983 = vadd.f32 %v2981, %v2982
    %v2984 = vrot.slane %v2983, 2
    %v2985 = vadd.f32 %v2983, %v2984
    %v2986 = vrot.slane %v2985, 1
    %v2987 = vadd.f32 %v2985, %v2986
    %v2988 = vmul.f32 %v2979, 0.5
    %v2989 = vmul.f32 %v2987, 0.5
    %v2990 = vmul.f32 %v2952, %v2952
    %v2991 = vmul.f32 %v2954, %v2954
    %v2992 = vsel %vm2969, %v2990, 0.0
    %v2993 = vrot.slane %v2992, 4
    %v2994 = vadd.f32 %v2992, %v2993
    %v2995 = vrot.slane %v2994, 2
    %v2996 = vadd.f32 %v2994, %v2995
    %v2997 = vrot.slane %v2996, 1
    %v2998 = vadd.f32 %v2996, %v2997
    %v2999 = vsel %vm2980, %v2991, 0.0
    %v3000 = vrot.slane %v2999, 4
    %v3001 = vadd.f32 %v2999, %v3000
    %v3002 = vrot.slane %v3001, 2
    %v3003 = vadd.f32 %v3001, %v3002
    %v3004 = vrot.slane %v3003, 1
    %v3005 = vadd.f32 %v3003, %v3004
    %v3006 = vmul.f32 %v2998, 0.5
    %v3007 = vmul.f32 %v3005, 0.5
    %v3008 = vmul.f32 %v2988, %v2988
    %v3009 = vmul.f32 %v2989, %v2989
    %v3010 = vsub.f32 %v3006, %v3008
    %v3011 = vsub.f32 %v3007, %v3009
    %v3012 = vadd.f32 %v3010, 1e-05
    %v3013 = vadd.f32 %v3011, 1e-05
    %v3014 = vrsqrt.pop %v3012
    %v3015 = vrsqrt.pop %v3013
    %v3016 = vmul.f32 %v3014, %v41
    %v3017 = vmul.f32 %v3015, %v42
    %v3018 = vlaneseq
    %v3019 = vshrl.u32 %v3018, 7
    %v3020 = vsub.s32 3, %v3019
    %v3021 = vrot.slane %v3016, %v3020
    %v3022 = vlaneseq
    %v3023 = vshrl.u32 %v3022, 7
    %v3024 = vsub.s32 3, %v3023
    %v3025 = vrot.slane %v3017, %v3024
    %v3026 = vmul.f32 %v2952, %v3021
    %v3027 = vmul.f32 %v2954, %v3025
    %v3028 = vmul.f32 %v2988, %v3016
    %v3029 = vmul.f32 %v2989, %v3017
    %v3032 = vrot.slane %v3028, 7
    %v3033 = vrot.slane %v3029, 7
    %v3036 = vsub.f32 %v41, %v3032
    %v3037 = vsub.f32 %v42, %v3033
    %v3038 = vlaneseq
    %v3039 = vshrl.u32 %v3038, 7
    %v3040 = vsub.s32 4, %v3039
    %v3041 = vrot.slane %v3036, %v3040
    %v3042 = vlaneseq
    %v3043 = vshrl.u32 %v3042, 7
    %v3044 = vsub.s32 4, %v3043
    %v3045 = vrot.slane %v3037, %v3044
    %v3046 = vadd.f32 %v3026, %v3041
    %v3047 = vadd.f32 %v3027, %v3045
    %v3048 = vmax.f32 %v3046, 0.0
    %v3049 = vmax.f32 %v3047, 0.0
    %v3050 = vpack.c.bf16 %v3048, %v3048
    %v3051 = vpack.c.bf16 %v3049, %v3049
    %v3052 = vld [vmem:[%s5] sm:$0xff]
    %v3053 = vld [vmem:[%s5 + $0x8] sm:$0xff]
    %v3054 = vld [vmem:[%s5 + $0x10] sm:$0xff]
    %v3055 = vld [vmem:[%s5 + $0x18] sm:$0xff]
    %v3056 = vld [vmem:[%s5 + $0x20] sm:$0xff]
    %v3057 = vld [vmem:[%s5 + $0x28] sm:$0xff]
    %v3058 = vld [vmem:[%s5 + $0x30] sm:$0xff]
    %v3059 = vld [vmem:[%s5 + $0x38] sm:$0xff]
    %v3060 = vld [vmem:[%s5 + $0x40] sm:$0xff]
    %v3061 = vld [vmem:[%s5 + $0x48] sm:$0xff]
    %v3062 = vld [vmem:[%s5 + $0x50] sm:$0xff]
    %v3063 = vld [vmem:[%s5 + $0x58] sm:$0xff]
    %v3064 = vld [vmem:[%s5 + $0x60] sm:$0xff]
    %v3065 = vld [vmem:[%s5 + $0x68] sm:$0xff]
    %v3066 = vld [vmem:[%s5 + $0x70] sm:$0xff]
    %v3067 = vld [vmem:[%s5 + $0x78] sm:$0xff]
    %v3068 = vld [vmem:[%s5 + $0x80] sm:$0xff]
    %v3069 = vld [vmem:[%s5 + $0x88] sm:$0xff]
    %v3070 = vld [vmem:[%s5 + $0x90] sm:$0xff]
    %v3071 = vld [vmem:[%s5 + $0x98] sm:$0xff]
    %v3072 = vlaneseq
    %v3073 = vshrl.u32 %v3072, 7
    %v3074 = vsub.s32 5, %v3073
    %v3075 = vrot.slane %v41, %v3074
    %v3076 = vlaneseq
    %v3077 = vshrl.u32 %v3076, 7
    %v3078 = vsub.s32 5, %v3077
    %v3079 = vrot.slane %v42, %v3078
    %v3100 = vunpack.c.l.b16 %v3052
    %v3101 = vunpack.c.h.b16 %v3052
    %v3102 = vunpack.c.l.b16 %v3053
    %v3103 = vunpack.c.h.b16 %v3053
    %v3104 = vunpack.c.l.b16 %v3054
    %v3105 = vunpack.c.h.b16 %v3054
    %v3106 = vunpack.c.l.b16 %v3055
    %v3107 = vunpack.c.h.b16 %v3055
    %v3108 = vunpack.c.l.b16 %v3056
    %v3109 = vunpack.c.h.b16 %v3056
    %v3110 = vunpack.c.l.b16 %v3057
    %v3111 = vunpack.c.h.b16 %v3057
    %v3112 = vunpack.c.l.b16 %v3058
    %v3113 = vunpack.c.h.b16 %v3058
    %v3114 = vunpack.c.l.b16 %v3059
    %v3115 = vunpack.c.h.b16 %v3059
    %v3116 = vunpack.c.l.b16 %v3060
    %v3117 = vunpack.c.h.b16 %v3060
    %v3118 = vunpack.c.l.b16 %v3061
    %v3119 = vunpack.c.h.b16 %v3061
    %v3120 = vunpack.c.l.b16 %v3062
    %v3121 = vunpack.c.h.b16 %v3062
    %v3122 = vunpack.c.l.b16 %v3063
    %v3123 = vunpack.c.h.b16 %v3063
    %v3124 = vunpack.c.l.b16 %v3064
    %v3125 = vunpack.c.h.b16 %v3064
    %v3126 = vunpack.c.l.b16 %v3065
    %v3127 = vunpack.c.h.b16 %v3065
    %v3128 = vunpack.c.l.b16 %v3066
    %v3129 = vunpack.c.h.b16 %v3066
    %v3130 = vunpack.c.l.b16 %v3067
    %v3131 = vunpack.c.h.b16 %v3067
    %v3132 = vunpack.c.l.b16 %v3068
    %v3133 = vunpack.c.h.b16 %v3068
    %v3134 = vunpack.c.l.b16 %v3069
    %v3135 = vunpack.c.h.b16 %v3069
    %v3136 = vunpack.c.l.b16 %v3070
    %v3137 = vunpack.c.h.b16 %v3070
    %v3138 = vunpack.c.l.b16 %v3071
    %v3139 = vunpack.c.h.b16 %v3071
    %v3140 = vpack.c.b16 %v3102, %v3100
    %v3141 = vpack.c.b16 %v3103, %v3101
    %v3142 = vpack.c.b16 %v3106, %v3104
    %v3143 = vpack.c.b16 %v3107, %v3105
    %v3144 = vpack.c.b16 %v3110, %v3108
    %v3145 = vpack.c.b16 %v3111, %v3109
    %v3146 = vpack.c.b16 %v3114, %v3112
    %v3147 = vpack.c.b16 %v3115, %v3113
    %v3148 = vpack.c.b16 %v3118, %v3116
    %v3149 = vpack.c.b16 %v3119, %v3117
    %v3150 = vpack.c.b16 %v3122, %v3120
    %v3151 = vpack.c.b16 %v3123, %v3121
    %v3152 = vpack.c.b16 %v3126, %v3124
    %v3153 = vpack.c.b16 %v3127, %v3125
    %v3154 = vpack.c.b16 %v3130, %v3128
    %v3155 = vpack.c.b16 %v3131, %v3129
    %v3156 = vpack.c.b16 %v3134, %v3132
    %v3157 = vpack.c.b16 %v3135, %v3133
    %v3158 = vpack.c.b16 %v3138, %v3136
    %v3159 = vpack.c.b16 %v3139, %v3137
    %v3181 = vsel %vm427, %v3051, 0
    %3183 = vmatprep.subr.bf16.mxu0 %v3155
    %3184 = vmatpush1.bf16.msra.mxu0 %v3154
    %3185 = vmatprep.subr.bf16.mxu0 %v3153
    %3186 = vmatpush1.bf16.msra.mxu0 %v3152
    %3187 = vmatprep.subr.bf16.mxu0 %v3151
    %3188 = vmatpush1.bf16.msra.mxu0 %v3150
    %3189 = vmatprep.subr.bf16.mxu0 %v3149
    %3190 = vmatpush1.bf16.msra.mxu0 %v3148
    %3191 = vmatprep.subr.bf16.mxu0 %v3147
    %3192 = vmatpush1.bf16.msra.mxu0 %v3146
    %3193 = vmatprep.subr.bf16.mxu0 %v3145
    %3194 = vmatpush1.bf16.msra.mxu0 %v3144
    %3195 = vmatprep.subr.bf16.mxu0 %v3143
    %3196 = vmatpush1.bf16.msra.mxu0 %v3142
    %3197 = vmatprep.subr.bf16.mxu0 %v3141
    %3198 = vmatpush1.bf16.msra.mxu0 %v3140
    %3199 = vmatprep.subr.bf16.mxu0 0
    %3200 = vmatpush2.bf16.msra.mxu0 0
    %3201 = vmatprep.subr.bf16.mxu0 0
    %3202 = vmatpush2.bf16.msra.mxu0 0
    %3203 = vmatprep.subr.bf16.mxu0 0
    %3204 = vmatpush2.bf16.msra.mxu0 0
    %3205 = vmatprep.subr.bf16.mxu0 0
    %3206 = vmatpush2.bf16.msra.mxu0 0
    %3207 = vmatprep.subr.bf16.mxu0 0
    %3208 = vmatpush2.bf16.msra.mxu0 0
    %3209 = vmatprep.subr.bf16.mxu0 0
    %3210 = vmatpush2.bf16.msra.mxu0 0
    %3211 = vmatprep.subr.bf16.mxu0 %v3159
    %3212 = vmatpush2.bf16.msra.mxu0 %v3158
    %3213 = vmatprep.subr.bf16.mxu0 %v3157
    %3214 = vmatpush2.bf16.msra.mxu0 %v3156
    %3215 = vmatprep.mubr.bf16.mxu0 %v3181
    %3216 = vmatmul.mubr.bf16.gmra.mxu0 %v3050
    %v3217 = vpop.f32.mrf.mxu0
    %v3218 = vadd.f32 %v3075, %v3217
    %v3219 = vpop.f32.mrf.mxu0
    %v3220 = vadd.f32 %v3079, %v3219
    %v3221 = vpop.f32.mrf.mxu0
    %v3222 = vpop.f32.mrf.mxu0
    %3223 = vdwg.mxu0
    %v3226 = vcombine.low %v3218, %v3220
    %v3228 = vunpack.c.l.s4 1983009808
    %v3229 = vunpack.c.0.s8 %v3228
    %v3230 = vlaneseq
    %v3231 = vshrl.u32 %v3230, 7
    %v3232 = vsub.s32 %v3229, %v3231
    %v3233 = vrot.slane %v3226, %v3232
    %3235 = vst.msk [vmem:[#allocation2] sm:$0xf] %vm2971, %v3233
    %v3236 = vld [vmem:[%s6] sm:$0xff]
    %v3237 = vld [vmem:[%s6 + $0x8] sm:$0xff]
    %v3238 = vld [vmem:[%s6 + $0x10] sm:$0xff]
    %v3239 = vld [vmem:[%s6 + $0x18] sm:$0xff]
    %v3240 = vld [vmem:[%s6 + $0x20] sm:$0xff]
    %v3241 = vld [vmem:[%s6 + $0x28] sm:$0xff]
    %v3242 = vld [vmem:[%s6 + $0x30] sm:$0xff]
    %v3243 = vld [vmem:[%s6 + $0x38] sm:$0xff]
    %v3244 = vld [vmem:[%s6 + $0x40] sm:$0xff]
    %v3245 = vld [vmem:[%s6 + $0x48] sm:$0xff]
    %v3246 = vld [vmem:[%s6 + $0x50] sm:$0xff]
    %v3247 = vld [vmem:[%s6 + $0x58] sm:$0xff]
    %v3248 = vld [vmem:[%s6 + $0x60] sm:$0xff]
    %v3249 = vld [vmem:[%s6 + $0x68] sm:$0xff]
    %v3250 = vld [vmem:[%s6 + $0x70] sm:$0xff]
    %v3251 = vld [vmem:[%s6 + $0x78] sm:$0xff]
    %v3252 = vld [vmem:[%s6 + $0x80] sm:$0xff]
    %v3253 = vld [vmem:[%s6 + $0x88] sm:$0xff]
    %v3254 = vld [vmem:[%s6 + $0x90] sm:$0xff]
    %v3255 = vld [vmem:[%s6 + $0x98] sm:$0xff]
    %v3256 = vlaneseq
    %v3257 = vshrl.u32 %v3256, 7
    %v3258 = vsub.s32 6, %v3257
    %v3259 = vrot.slane %v41, %v3258
    %v3260 = vlaneseq
    %v3261 = vshrl.u32 %v3260, 7
    %v3262 = vsub.s32 6, %v3261
    %v3263 = vrot.slane %v42, %v3262
    %v3284 = vunpack.c.l.b16 %v3236
    %v3285 = vunpack.c.h.b16 %v3236
    %v3286 = vunpack.c.l.b16 %v3237
    %v3287 = vunpack.c.h.b16 %v3237
    %v3288 = vunpack.c.l.b16 %v3238
    %v3289 = vunpack.c.h.b16 %v3238
    %v3290 = vunpack.c.l.b16 %v3239
    %v3291 = vunpack.c.h.b16 %v3239
    %v3292 = vunpack.c.l.b16 %v3240
    %v3293 = vunpack.c.h.b16 %v3240
    %v3294 = vunpack.c.l.b16 %v3241
    %v3295 = vunpack.c.h.b16 %v3241
    %v3296 = vunpack.c.l.b16 %v3242
    %v3297 = vunpack.c.h.b16 %v3242
    %v3298 = vunpack.c.l.b16 %v3243
    %v3299 = vunpack.c.h.b16 %v3243
    %v3300 = vunpack.c.l.b16 %v3244
    %v3301 = vunpack.c.h.b16 %v3244
    %v3302 = vunpack.c.l.b16 %v3245
    %v3303 = vunpack.c.h.b16 %v3245
    %v3304 = vunpack.c.l.b16 %v3246
    %v3305 = vunpack.c.h.b16 %v3246
    %v3306 = vunpack.c.l.b16 %v3247
    %v3307 = vunpack.c.h.b16 %v3247
    %v3308 = vunpack.c.l.b16 %v3248
    %v3309 = vunpack.c.h.b16 %v3248
    %v3310 = vunpack.c.l.b16 %v3249
    %v3311 = vunpack.c.h.b16 %v3249
    %v3312 = vunpack.c.l.b16 %v3250
    %v3313 = vunpack.c.h.b16 %v3250
    %v3314 = vunpack.c.l.b16 %v3251
    %v3315 = vunpack.c.h.b16 %v3251
    %v3316 = vunpack.c.l.b16 %v3252
    %v3317 = vunpack.c.h.b16 %v3252
    %v3318 = vunpack.c.l.b16 %v3253
    %v3319 = vunpack.c.h.b16 %v3253
    %v3320 = vunpack.c.l.b16 %v3254
    %v3321 = vunpack.c.h.b16 %v3254
    %v3322 = vunpack.c.l.b16 %v3255
    %v3323 = vunpack.c.h.b16 %v3255
    %v3324 = vpack.c.b16 %v3286, %v3284
    %v3325 = vpack.c.b16 %v3287, %v3285
    %v3326 = vpack.c.b16 %v3290, %v3288
    %v3327 = vpack.c.b16 %v3291, %v3289
    %v3328 = vpack.c.b16 %v3294, %v3292
    %v3329 = vpack.c.b16 %v3295, %v3293
    %v3330 = vpack.c.b16 %v3298, %v3296
    %v3331 = vpack.c.b16 %v3299, %v3297
    %v3332 = vpack.c.b16 %v3302, %v3300
    %v3333 = vpack.c.b16 %v3303, %v3301
    %v3334 = vpack.c.b16 %v3306, %v3304
    %v3335 = vpack.c.b16 %v3307, %v3305
    %v3336 = vpack.c.b16 %v3310, %v3308
    %v3337 = vpack.c.b16 %v3311, %v3309
    %v3338 = vpack.c.b16 %v3314, %v3312
    %v3339 = vpack.c.b16 %v3315, %v3313
    %v3340 = vpack.c.b16 %v3318, %v3316
    %v3341 = vpack.c.b16 %v3319, %v3317
    %v3342 = vpack.c.b16 %v3322, %v3320
    %v3343 = vpack.c.b16 %v3323, %v3321
    %3364 = vmatprep.subr.bf16.mxu0 %v3339
    %3365 = vmatpush1.bf16.msra.mxu0 %v3338
    %3366 = vmatprep.subr.bf16.mxu0 %v3337
    %3367 = vmatpush1.bf16.msra.mxu0 %v3336
    %3368 = vmatprep.subr.bf16.mxu0 %v3335
    %3369 = vmatpush1.bf16.msra.mxu0 %v3334
    %3370 = vmatprep.subr.bf16.mxu0 %v3333
    %3371 = vmatpush1.bf16.msra.mxu0 %v3332
    %3372 = vmatprep.subr.bf16.mxu0 %v3331
    %3373 = vmatpush1.bf16.msra.mxu0 %v3330
    %3374 = vmatprep.subr.bf16.mxu0 %v3329
    %3375 = vmatpush1.bf16.msra.mxu0 %v3328
    %3376 = vmatprep.subr.bf16.mxu0 %v3327
    %3377 = vmatpush1.bf16.msra.mxu0 %v3326
    %3378 = vmatprep.subr.bf16.mxu0 %v3325
    %3379 = vmatpush1.bf16.msra.mxu0 %v3324
    %3380 = vmatprep.subr.bf16.mxu0 0
    %3381 = vmatpush2.bf16.msra.mxu0 0
    %3382 = vmatprep.subr.bf16.mxu0 0
    %3383 = vmatpush2.bf16.msra.mxu0 0
    %3384 = vmatprep.subr.bf16.mxu0 0
    %3385 = vmatpush2.bf16.msra.mxu0 0
    %3386 = vmatprep.subr.bf16.mxu0 0
    %3387 = vmatpush2.bf16.msra.mxu0 0
    %3388 = vmatprep.subr.bf16.mxu0 0
    %3389 = vmatpush2.bf16.msra.mxu0 0
    %3390 = vmatprep.subr.bf16.mxu0 0
    %3391 = vmatpush2.bf16.msra.mxu0 0
    %3392 = vmatprep.subr.bf16.mxu0 %v3343
    %3393 = vmatpush2.bf16.msra.mxu0 %v3342
    %3394 = vmatprep.subr.bf16.mxu0 %v3341
    %3395 = vmatpush2.bf16.msra.mxu0 %v3340
    %3396 = vmatprep.mubr.bf16.mxu0 %v3181
    %3397 = vmatmul.mubr.bf16.gmra.mxu0 %v3050
    %v3398 = vpop.f32.mrf.mxu0
    %v3399 = vadd.f32 %v3259, %v3398
    %v3400 = vpop.f32.mrf.mxu0
    %v3401 = vadd.f32 %v3263, %v3400
    %v3402 = vpop.f32.mrf.mxu0
    %v3403 = vpop.f32.mrf.mxu0
    %3404 = vdwg.mxu0
    %v3407 = vcombine.low %v3399, %v3401
    %v3409 = vunpack.c.l.s4 1983009808
    %v3410 = vunpack.c.0.s8 %v3409
    %v3411 = vlaneseq
    %v3412 = vshrl.u32 %v3411, 7
    %v3413 = vsub.s32 %v3410, %v3412
    %v3414 = vrot.slane %v3407, %v3413
    %3416 = vst.msk [vmem:[#allocation4] sm:$0xf] %vm2971, %v3414
    // Predicated region
    $region38: #{variational_encoder_forward.3} parent=1 // pred_check
      _
    $region39: #{variational_encoder_forward.3} parent=1 // pred_check_branch
      %3418 = sbr.rel (0) target = $region41
    $region40: #{variational_encoder_forward.3} parent=1 // pred_region
      _
    $region41: #{variational_encoder_forward.3} parent=1 // pred_fallthru
      _
    // Predicated region
    $region42: #{variational_encoder_forward.3} parent=1 // pred_check
      _
    $region43: #{variational_encoder_forward.3} parent=1 // pred_check_branch
      %3420 = sbr.rel (0) target = $region45
    $region44: #{variational_encoder_forward.3} parent=1 // pred_region
      _
    $region45: #{variational_encoder_forward.3} parent=1 // pred_fallthru
      _
    // Predicated region
    $region46: #{variational_encoder_forward.3} parent=1 // pred_check
      _
    $region47: #{variational_encoder_forward.3} parent=1 // pred_check_branch
      %3422 = sbr.rel (0) target = $region49
    $region48: #{variational_encoder_forward.3} parent=1 // pred_region
      _
    $region49: #{variational_encoder_forward.3} parent=1 // pred_fallthru
      _
    // Predicated region
    $region50: #{variational_encoder_forward.3} parent=1 // pred_check
      _
    $region51: #{variational_encoder_forward.3} parent=1 // pred_check_branch
      %3424 = sbr.rel (0) target = $region53
    $region52: #{variational_encoder_forward.3} parent=1 // pred_region
      %s3426 = ssub.s32 64, 64
      %3427 = vsyncadd [#allocation3], %s3426
      %s3429 = sshll.u32 [#allocation2], 4
      %s3430 = int_to_ptr.vmem [resolvable:$true] %s3429
      %3432 = dma.vmem_to_hbm [thread:$0]  %s3430, 64, %s12, [#allocation3]
    $region53: #{variational_encoder_forward.3} parent=1 // pred_fallthru
      _
    // Predicated region
    $region54: #{variational_encoder_forward.3} parent=1 // pred_check
      _
    $region55: #{variational_encoder_forward.3} parent=1 // pred_check_branch
      %3434 = sbr.rel (0) target = $region57
    $region56: #{variational_encoder_forward.3} parent=1 // pred_region
      %s3436 = ssub.s32 64, 64
      %3437 = vsyncadd [#allocation5], %s3436
      %s3439 = sshll.u32 [#allocation4], 4
      %s3440 = int_to_ptr.vmem [resolvable:$true] %s3439
      %3442 = dma.vmem_to_hbm [thread:$0]  %s3440, 64, %s13, [#allocation5]
    $region57: #{variational_encoder_forward.3} parent=1 // pred_fallthru
      _
    // Predicated region
    $region58: #{variational_encoder_forward.3} parent=1 // pred_check
      _
    $region59: #{variational_encoder_forward.3} parent=1 // pred_check_branch
      %3444 = sbr.rel (0) target = $region61
    $region60: #{variational_encoder_forward.3} parent=1 // pred_region
      _
    $region61: #{variational_encoder_forward.3} parent=1 // pred_fallthru
      _
    // Predicated region
    $region62: #{variational_encoder_forward.3} parent=1 // pred_check
      _
    $region63: #{variational_encoder_forward.3} parent=1 // pred_check_branch
      %3446 = sbr.rel (0) target = $region65
    $region64: #{variational_encoder_forward.3} parent=1 // pred_region
      _
    $region65: #{variational_encoder_forward.3} parent=1 // pred_fallthru
      _
    // Predicated region
    $region66: #{variational_encoder_forward.3} parent=1 // pred_check
      _
    $region67: #{variational_encoder_forward.3} parent=1 // pred_check_branch
      %3448 = sbr.rel (0) target = $region69
    $region68: #{variational_encoder_forward.3} parent=1 // pred_region
      _
    $region69: #{variational_encoder_forward.3} parent=1 // pred_fallthru
      _
    // Predicated region
    $region70: #{variational_encoder_forward.3} parent=1 // pred_check
      _
    $region71: #{variational_encoder_forward.3} parent=1 // pred_check_branch
      %3450 = sbr.rel (0) target = $region73
    $region72: #{variational_encoder_forward.3} parent=1 // pred_region
      %3451 = dma.done [#allocation3], 64
    $region73: #{variational_encoder_forward.3} parent=1 // pred_fallthru
      _
    // Predicated region
    $region74: #{variational_encoder_forward.3} parent=1 // pred_check
      _
    $region75: #{variational_encoder_forward.3} parent=1 // pred_check_branch
      %3453 = sbr.rel (0) target = $region77
    $region76: #{variational_encoder_forward.3} parent=1 // pred_region
      %3454 = dma.done [#allocation5], 64
    $region77: #{variational_encoder_forward.3} parent=1 // pred_fallthru
      _
    %3455 = vsyncpa [#allocation3], 1
    %3456 = vsyncpa [#allocation5], 1

</llo_original>
